<compile_context>
chip_gen: v5e
topology: v5e:2x2
jax: 0.10.0
libtpu: 0.0.40
codegen_flags: <defaults>
</compile_context>

<pallas_src>
import math
import jax
import jax.numpy as jnp
from jax import lax
from jax.experimental import pallas as pl
from jax.experimental.pallas import tpu as pltpu

d_ff = 2048
d_model = 512
d_k = d_v = 64
n_heads = 8
LN_EPS = 1e-5


# ---------------------------------------------------------------- helpers ----

def _layernorm(y):
    mu = jnp.mean(y, axis=-1, keepdims=True)
    var = jnp.mean((y - mu) ** 2, axis=-1, keepdims=True)
    return (y - mu) * lax.rsqrt(var + LN_EPS)


def _q_tile(S):
    # Bound per-step VMEM (scores / attn blocks scale with TQ*S) while keeping the
    # q-row tile a multiple of 8; fall back to the full extent for small / odd S.
    if S <= 256:
        return S
    for t in (256, 128, 64, 32, 16, 8):
        if S % t == 0:
            return t
    return S


# ----------------------------------------------------------------- kernel ----

def _encoder_layer_kernel(xq_ref, x_ref, wq_ref, wkv_ref, wo_ref, w1_ref, w2_ref,
                          out_ref, attn_ref, kv_ref, ctx_ref):
    # grid = (B, S // TQ): batch "parallel", q-row tile "arbitrary".
    qi = pl.program_id(1)

    # --- K/V projection for the whole sequence, once per batch (persists in VMEM) ---
    @pl.when(qi == 0)
    def _():
        kv_ref[...] = jnp.dot(x_ref[...], wkv_ref[...],
                              preferred_element_type=jnp.float32)

    xq = xq_ref[...]                                            # (TQ, d_model)

    # --- Q projection for this row tile; 1/sqrt(d_k) folded into q (exact: /8) ---
    q = jnp.dot(xq, wq_ref[...],
                preferred_element_type=jnp.float32) * (1.0 / math.sqrt(d_k))

    # --- per-head scaled-dot-product attention (static unroll over heads) ---
    for h in range(n_heads):
        q_h = q[:, h * d_k:(h + 1) * d_k]                       # (TQ, d_k)
        k_h = kv_ref[:, h * d_k:(h + 1) * d_k]                  # (S,  d_k)
        v_h = kv_ref[:, d_model + h * d_v: d_model + (h + 1) * d_v]  # (S, d_v)
        # contract minor axes directly -> no materialized k transpose
        s_h = lax.dot_general(q_h, k_h, (((1,), (1,)), ((), ())),
                              preferred_element_type=jnp.float32)    # (TQ, S)
        # NOTE: reference's masked_fill is non-in-place and discarded -> no masking.
        m_h = jnp.max(s_h, axis=-1, keepdims=True)
        e_h = jnp.exp(s_h - m_h)
        p_h = e_h * (1.0 / jnp.sum(e_h, axis=-1, keepdims=True))
        attn_ref[h] = p_h
        # write this head's context straight into its lane slice (no 8-way concat)
        ctx_ref[:, h * d_v:(h + 1) * d_v] = jnp.dot(
            p_h, v_h, preferred_element_type=jnp.float32)

    # --- output projection (one full K=512 GEMM) + residual + LayerNorm ---
    y = jnp.dot(ctx_ref[...], wo_ref[...], preferred_element_type=jnp.float32)
    enc1 = _layernorm(y + xq)                                   # (TQ, d_model)

    # --- position-wise FFN + residual + LayerNorm (fused; enc1 never hits HBM) ---
    hid = jnp.maximum(
        jnp.dot(enc1, w1_ref[...], preferred_element_type=jnp.float32), 0.0)
    y2 = jnp.dot(hid, w2_ref[...], preferred_element_type=jnp.float32) + enc1
    out_ref[...] = _layernorm(y2)


# ---------------------------------------------------------------- wrapper ----

def encoder_layer(enc_inputs, enc_self_attn_mask, params):
    """enc_inputs: (B, S, d_model) f32; enc_self_attn_mask: (B, S, S) bool (unused,
    see faithfulness note).  Returns (enc_outputs (B,S,d_model), attn (B,H,S,S))."""
    del enc_self_attn_mask  # reference discards the masked_fill result
    B, S, _ = enc_inputs.shape
    w_q, w_kv = params["wq"], params["wkv"]
    wo, w1, w2 = params["wo"], params["w1"], params["w2"]

    TQ = _q_tile(S)
    nq = S // TQ

    enc_out, attn = pl.pallas_call(
        _encoder_layer_kernel,
        grid=(B, nq),
        in_specs=[
            pl.BlockSpec((None, TQ, d_model), lambda b, q: (b, q, 0)),   # x (q tile)
            pl.BlockSpec((None, S, d_model), lambda b, q: (b, 0, 0)),    # x (full, K/V)
            pl.BlockSpec((d_model, d_model), lambda b, q: (0, 0)),       # w_q
            pl.BlockSpec((d_model, 2 * d_model), lambda b, q: (0, 0)),   # w_kv
            pl.BlockSpec((d_model, d_model), lambda b, q: (0, 0)),       # w_o
            pl.BlockSpec((d_model, d_ff), lambda b, q: (0, 0)),          # w1
            pl.BlockSpec((d_ff, d_model), lambda b, q: (0, 0)),          # w2
        ],
        out_specs=[
            pl.BlockSpec((None, TQ, d_model), lambda b, q: (b, q, 0)),
            pl.BlockSpec((None, n_heads, TQ, S), lambda b, q: (b, 0, q, 0)),
        ],
        out_shape=[
            jax.ShapeDtypeStruct((B, S, d_model), jnp.float32),
            jax.ShapeDtypeStruct((B, n_heads, S, S), jnp.float32),
        ],
        scratch_shapes=[
            pltpu.VMEM((S, 2 * d_model), jnp.float32),   # K/V projection, per batch
            pltpu.VMEM((TQ, d_model), jnp.float32),      # merged-head context
        ],
        compiler_params=pltpu.CompilerParams(
            dimension_semantics=("parallel", "arbitrary"),
            vmem_limit_bytes=48 * 1024 * 1024),          # > v5e 16 MiB default, < v7x 64 MiB
    )(enc_inputs, enc_inputs, w_q, w_kv, wo, w1, w2)

    return enc_out, attn


# ----------------------------------------------------------------- params ----

def init_params(key):
    ks = jax.random.split(key, 6)
    scale = 0.02
    return {
        "wq": scale * jax.random.normal(ks[0], (d_model, n_heads * d_k), jnp.float32),
        "wk": scale * jax.random.normal(ks[1], (d_model, n_heads * d_k), jnp.float32),
        "wv": scale * jax.random.normal(ks[2], (d_model, n_heads * d_v), jnp.float32),
        "wo": scale * jax.random.normal(ks[3], (n_heads * d_v, d_model), jnp.float32),
        "w1": scale * jax.random.normal(ks[4], (d_model, d_ff), jnp.float32),
        "w2": scale * jax.random.normal(ks[5], (d_ff, d_model), jnp.float32),
    }


def fuse_params(params):
    # Fuse K/V weights ONCE (outside the jitted forward) so the (d_model, 2*d_model)
    # concat is not re-materialized on every call.
    return {
        "wq": params["wq"],
        "wkv": jnp.concatenate([params["wk"], params["wv"]], axis=1),
        "wo": params["wo"],
        "w1": params["w1"],
        "w2": params["w2"],
    }


if __name__ == "__main__":
    key = jax.random.PRNGKey(0)
    k_x, k_p = jax.random.split(key)

    B, S = 2, 8
    enc_inputs = jax.random.normal(k_x, (B, S, d_model), jnp.float32)
    # pad-mask style boolean mask (unused by the reference forward, see note)
    enc_self_attn_mask = jnp.zeros((B, S, S), dtype=jnp.bool_)

    params = fuse_params(init_params(k_p))

    enc_outputs, attn = jax.jit(encoder_layer)(enc_inputs, enc_self_attn_mask, params)
    jax.block_until_ready((enc_outputs, attn))

    assert enc_outputs.shape == (B, S, d_model)
    assert attn.shape == (B, n_heads, S, S)
    print("KERNEL_OK")
</pallas_src>

<mosaic_0001>
module attributes {stable_mosaic.version = 11 : i64} {
  func.func @_encoder_layer_kernel(%arg0: i32, %arg1: i32, %arg2: memref<1x8x512xf32, #tpu.memory_space<vmem>>, %arg3: memref<1x8x512xf32, #tpu.memory_space<vmem>>, %arg4: memref<512x512xf32, #tpu.memory_space<vmem>>, %arg5: memref<512x1024xf32, #tpu.memory_space<vmem>>, %arg6: memref<512x512xf32, #tpu.memory_space<vmem>>, %arg7: memref<512x2048xf32, #tpu.memory_space<vmem>>, %arg8: memref<2048x512xf32, #tpu.memory_space<vmem>>, %arg9: memref<1x8x512xf32, #tpu.memory_space<vmem>>, %arg10: memref<1x8x8x8xf32, #tpu.memory_space<vmem>>, %arg11: memref<8x1024xf32, #tpu.memory_space<vmem>>, %arg12: memref<8x512xf32, #tpu.memory_space<vmem>>) attributes {dimension_semantics = [#tpu.dimension_semantics<parallel>, #tpu.dimension_semantics<arbitrary>], iteration_bounds = array<i64: 2, 1>, scalar_prefetch = 0 : i64, scratch_operands = 2 : i64, tpu.core_type = #tpu.core_type<tc>, window_params = [{transform_indices = @transform_0, window_bounds = array<i64: 1, 8, 512>}, {transform_indices = @transform_1, window_bounds = array<i64: 1, 8, 512>}, {pipeline_mode = #tpu.pipeline_mode<synchronous>, transform_indices = @transform_2, window_bounds = array<i64: 512, 512>}, {pipeline_mode = #tpu.pipeline_mode<synchronous>, transform_indices = @transform_3, window_bounds = array<i64: 512, 1024>}, {pipeline_mode = #tpu.pipeline_mode<synchronous>, transform_indices = @transform_4, window_bounds = array<i64: 512, 512>}, {pipeline_mode = #tpu.pipeline_mode<synchronous>, transform_indices = @transform_5, window_bounds = array<i64: 512, 2048>}, {pipeline_mode = #tpu.pipeline_mode<synchronous>, transform_indices = @transform_6, window_bounds = array<i64: 2048, 512>}, {transform_indices = @transform_7, window_bounds = array<i64: 1, 8, 512>}, {transform_indices = @transform_8, window_bounds = array<i64: 1, 8, 8, 8>}]} {
    %c0_i32 = arith.constant 0 : i32
    %0 = arith.cmpi eq, %arg1, %c0_i32 : i32
    %1 = arith.extui %0 : i1 to i32
    %c0_i32_0 = arith.constant 0 : i32
    %2 = arith.cmpi ne, %1, %c0_i32_0 : i32
    scf.if %2 {
      %c0_129 = arith.constant 0 : index
      %c0_130 = arith.constant 0 : index
      %c0_131 = arith.constant 0 : index
      %219 = vector.load %arg3[%c0_129, %c0_130, %c0_131] : memref<1x8x512xf32, #tpu.memory_space<vmem>>, vector<1x8x512xf32>
      %220 = vector.shape_cast %219 : vector<1x8x512xf32> to vector<8x512xf32>
      %c0_132 = arith.constant 0 : index
      %c0_133 = arith.constant 0 : index
      %221 = vector.load %arg5[%c0_132, %c0_133] : memref<512x1024xf32, #tpu.memory_space<vmem>>, vector<512x1024xf32>
      %cst_134 = arith.constant dense<0.000000e+00> : vector<8x1024xf32>
      %222 = tpu.matmul %220, %221, %cst_134 {dimension_numbers = #tpu.dot_dimension_numbers<[1], [0], [0], [1], [0, 0, 1, 1], [], []>} : vector<8x512xf32>, vector<512x1024xf32>, vector<8x1024xf32> -> vector<8x1024xf32>
      %c0_135 = arith.constant 0 : index
      %c0_136 = arith.constant 0 : index
      %223 = vector.load %arg11[%c0_135, %c0_136] : memref<8x1024xf32, #tpu.memory_space<vmem>>, vector<8x1024xf32>
      tpu.vector_store %arg11[%c0_135, %c0_136], %222 {strides = array<i32>} : memref<8x1024xf32, #tpu.memory_space<vmem>>, vector<8x1024xf32>,
    } else {
    }
    %c0 = arith.constant 0 : index
    %c0_1 = arith.constant 0 : index
    %c0_2 = arith.constant 0 : index
    %3 = vector.load %arg2[%c0, %c0_1, %c0_2] : memref<1x8x512xf32, #tpu.memory_space<vmem>>, vector<1x8x512xf32>
    %4 = vector.shape_cast %3 : vector<1x8x512xf32> to vector<8x512xf32>
    %c0_3 = arith.constant 0 : index
    %c0_4 = arith.constant 0 : index
    %5 = vector.load %arg4[%c0_3, %c0_4] : memref<512x512xf32, #tpu.memory_space<vmem>>, vector<512x512xf32>
    %cst = arith.constant dense<0.000000e+00> : vector<8x512xf32>
    %6 = tpu.matmul %4, %5, %cst {dimension_numbers = #tpu.dot_dimension_numbers<[1], [0], [0], [1], [0, 0, 1, 1], [], []>} : vector<8x512xf32>, vector<512x512xf32>, vector<8x512xf32> -> vector<8x512xf32>
    %cst_5 = arith.constant 1.250000e-01 : f32
    %7 = vector.broadcast %cst_5 : f32 to vector<8x512xf32>
    %8 = arith.mulf %6, %7 : vector<8x512xf32>
    %9 = vector.extract_strided_slice %8 {offsets = [0, 0], sizes = [8, 64], strides = [1, 1]} : vector<8x512xf32> to vector<8x64xf32>
    %c0_6 = arith.constant 0 : index
    %c0_7 = arith.constant 0 : index
    %10 = vector.load %arg11[%c0_6, %c0_7] : memref<8x1024xf32, #tpu.memory_space<vmem>>, vector<8x64xf32>
    %c0_8 = arith.constant 0 : index
    %c512 = arith.constant 512 : index
    %11 = vector.load %arg11[%c0_8, %c512] : memref<8x1024xf32, #tpu.memory_space<vmem>>, vector<8x64xf32>
    %cst_9 = arith.constant dense<0.000000e+00> : vector<8x8xf32>
    %12 = tpu.matmul %9, %10, %cst_9 {dimension_numbers = #tpu.dot_dimension_numbers<[1], [1], [0], [0], [0, 0, 1, 0], [], []>} : vector<8x64xf32>, vector<8x64xf32>, vector<8x8xf32> -> vector<8x8xf32>
    %cst_10 = arith.constant dense<0xFF800000> : vector<8xf32>
    %13 = vector.multi_reduction <maximumf>, %12, %cst_10 [1] : vector<8x8xf32> to vector<8xf32>
    %14 = vector.shape_cast %13 : vector<8xf32> to vector<8x1xf32>
    %15 = vector.broadcast %14 : vector<8x1xf32> to vector<8x8xf32>
    %16 = arith.subf %12, %15 : vector<8x8xf32>
    %17 = math.exp %16 : vector<8x8xf32>
    %cst_11 = arith.constant dense<0.000000e+00> : vector<8xf32>
    %18 = vector.multi_reduction <add>, %17, %cst_11 [1] : vector<8x8xf32> to vector<8xf32>
    %19 = vector.shape_cast %18 : vector<8xf32> to vector<8x1xf32>
    %cst_12 = arith.constant 1.000000e+00 : f32
    %20 = vector.broadcast %cst_12 : f32 to vector<8x1xf32>
    %21 = arith.divf %20, %19 : vector<8x1xf32>
    %22 = vector.broadcast %21 : vector<8x1xf32> to vector<8x8xf32>
    %23 = arith.mulf %17, %22 : vector<8x8xf32>
    %c0_13 = arith.constant 0 : index
    %c0_14 = arith.constant 0 : index
    %c0_15 = arith.constant 0 : index
    %c0_16 = arith.constant 0 : index
    %24 = vector.load %arg10[%c0_13, %c0_14, %c0_15, %c0_16] : memref<1x8x8x8xf32, #tpu.memory_space<vmem>>, vector<1x1x8x8xf32>
    %25 = vector.shape_cast %24 : vector<1x1x8x8xf32> to vector<8x8xf32>
    %26 = vector.shape_cast %23 : vector<8x8xf32> to vector<1x1x8x8xf32>
    tpu.vector_store %arg10[%c0_13, %c0_14, %c0_15, %c0_16], %26 {strides = array<i32>} : memref<1x8x8x8xf32, #tpu.memory_space<vmem>>, vector<1x1x8x8xf32>,
    %cst_17 = arith.constant dense<0.000000e+00> : vector<8x64xf32>
    %27 = tpu.matmul %23, %11, %cst_17 {dimension_numbers = #tpu.dot_dimension_numbers<[1], [0], [0], [1], [0, 0, 1, 1], [], []>} : vector<8x8xf32>, vector<8x64xf32>, vector<8x64xf32> -> vector<8x64xf32>
    %c0_18 = arith.constant 0 : index
    %c0_19 = arith.constant 0 : index
    %28 = vector.load %arg12[%c0_18, %c0_19] : memref<8x512xf32, #tpu.memory_space<vmem>>, vector<8x64xf32>
    tpu.vector_store %arg12[%c0_18, %c0_19], %27 {strides = array<i32>} : memref<8x512xf32, #tpu.memory_space<vmem>>, vector<8x64xf32>,
    %29 = vector.extract_strided_slice %8 {offsets = [0, 64], sizes = [8, 64], strides = [1, 1]} : vector<8x512xf32> to vector<8x64xf32>
    %c0_20 = arith.constant 0 : index
    %c64 = arith.constant 64 : index
    %30 = vector.load %arg11[%c0_20, %c64] : memref<8x1024xf32, #tpu.memory_space<vmem>>, vector<8x64xf32>
    %c0_21 = arith.constant 0 : index
    %c576 = arith.constant 576 : index
    %31 = vector.load %arg11[%c0_21, %c576] : memref<8x1024xf32, #tpu.memory_space<vmem>>, vector<8x64xf32>
    %cst_22 = arith.constant dense<0.000000e+00> : vector<8x8xf32>
    %32 = tpu.matmul %29, %30, %cst_22 {dimension_numbers = #tpu.dot_dimension_numbers<[1], [1], [0], [0], [0, 0, 1, 0], [], []>} : vector<8x64xf32>, vector<8x64xf32>, vector<8x8xf32> -> vector<8x8xf32>
    %cst_23 = arith.constant dense<0xFF800000> : vector<8xf32>
    %33 = vector.multi_reduction <maximumf>, %32, %cst_23 [1] : vector<8x8xf32> to vector<8xf32>
    %34 = vector.shape_cast %33 : vector<8xf32> to vector<8x1xf32>
    %35 = vector.broadcast %34 : vector<8x1xf32> to vector<8x8xf32>
    %36 = arith.subf %32, %35 : vector<8x8xf32>
    %37 = math.exp %36 : vector<8x8xf32>
    %cst_24 = arith.constant dense<0.000000e+00> : vector<8xf32>
    %38 = vector.multi_reduction <add>, %37, %cst_24 [1] : vector<8x8xf32> to vector<8xf32>
    %39 = vector.shape_cast %38 : vector<8xf32> to vector<8x1xf32>
    %cst_25 = arith.constant 1.000000e+00 : f32
    %40 = vector.broadcast %cst_25 : f32 to vector<8x1xf32>
    %41 = arith.divf %40, %39 : vector<8x1xf32>
    %42 = vector.broadcast %41 : vector<8x1xf32> to vector<8x8xf32>
    %43 = arith.mulf %37, %42 : vector<8x8xf32>
    %c0_26 = arith.constant 0 : index
    %c1 = arith.constant 1 : index
    %c0_27 = arith.constant 0 : index
    %c0_28 = arith.constant 0 : index
    %44 = vector.load %arg10[%c0_26, %c1, %c0_27, %c0_28] : memref<1x8x8x8xf32, #tpu.memory_space<vmem>>, vector<1x1x8x8xf32>
    %45 = vector.shape_cast %44 : vector<1x1x8x8xf32> to vector<8x8xf32>
    %46 = vector.shape_cast %43 : vector<8x8xf32> to vector<1x1x8x8xf32>
    tpu.vector_store %arg10[%c0_26, %c1, %c0_27, %c0_28], %46 {strides = array<i32>} : memref<1x8x8x8xf32, #tpu.memory_space<vmem>>, vector<1x1x8x8xf32>,
    %cst_29 = arith.constant dense<0.000000e+00> : vector<8x64xf32>
    %47 = tpu.matmul %43, %31, %cst_29 {dimension_numbers = #tpu.dot_dimension_numbers<[1], [0], [0], [1], [0, 0, 1, 1], [], []>} : vector<8x8xf32>, vector<8x64xf32>, vector<8x64xf32> -> vector<8x64xf32>
    %c0_30 = arith.constant 0 : index
    %c64_31 = arith.constant 64 : index
    %48 = vector.load %arg12[%c0_30, %c64_31] : memref<8x512xf32, #tpu.memory_space<vmem>>, vector<8x64xf32>
    tpu.vector_store %arg12[%c0_30, %c64_31], %47 {strides = array<i32>} : memref<8x512xf32, #tpu.memory_space<vmem>>, vector<8x64xf32>,
    %49 = vector.extract_strided_slice %8 {offsets = [0, 128], sizes = [8, 64], strides = [1, 1]} : vector<8x512xf32> to vector<8x64xf32>
    %c0_32 = arith.constant 0 : index
    %c128 = arith.constant 128 : index
    %50 = vector.load %arg11[%c0_32, %c128] : memref<8x1024xf32, #tpu.memory_space<vmem>>, vector<8x64xf32>
    %c0_33 = arith.constant 0 : index
    %c640 = arith.constant 640 : index
    %51 = vector.load %arg11[%c0_33, %c640] : memref<8x1024xf32, #tpu.memory_space<vmem>>, vector<8x64xf32>
    %cst_34 = arith.constant dense<0.000000e+00> : vector<8x8xf32>
    %52 = tpu.matmul %49, %50, %cst_34 {dimension_numbers = #tpu.dot_dimension_numbers<[1], [1], [0], [0], [0, 0, 1, 0], [], []>} : vector<8x64xf32>, vector<8x64xf32>, vector<8x8xf32> -> vector<8x8xf32>
    %cst_35 = arith.constant dense<0xFF800000> : vector<8xf32>
    %53 = vector.multi_reduction <maximumf>, %52, %cst_35 [1] : vector<8x8xf32> to vector<8xf32>
    %54 = vector.shape_cast %53 : vector<8xf32> to vector<8x1xf32>
    %55 = vector.broadcast %54 : vector<8x1xf32> to vector<8x8xf32>
    %56 = arith.subf %52, %55 : vector<8x8xf32>
    %57 = math.exp %56 : vector<8x8xf32>
    %cst_36 = arith.constant dense<0.000000e+00> : vector<8xf32>
    %58 = vector.multi_reduction <add>, %57, %cst_36 [1] : vector<8x8xf32> to vector<8xf32>
    %59 = vector.shape_cast %58 : vector<8xf32> to vector<8x1xf32>
    %cst_37 = arith.constant 1.000000e+00 : f32
    %60 = vector.broadcast %cst_37 : f32 to vector<8x1xf32>
    %61 = arith.divf %60, %59 : vector<8x1xf32>
    %62 = vector.broadcast %61 : vector<8x1xf32> to vector<8x8xf32>
    %63 = arith.mulf %57, %62 : vector<8x8xf32>
    %c0_38 = arith.constant 0 : index
    %c2 = arith.constant 2 : index
    %c0_39 = arith.constant 0 : index
    %c0_40 = arith.constant 0 : index
    %64 = vector.load %arg10[%c0_38, %c2, %c0_39, %c0_40] : memref<1x8x8x8xf32, #tpu.memory_space<vmem>>, vector<1x1x8x8xf32>
    %65 = vector.shape_cast %64 : vector<1x1x8x8xf32> to vector<8x8xf32>
    %66 = vector.shape_cast %63 : vector<8x8xf32> to vector<1x1x8x8xf32>
    tpu.vector_store %arg10[%c0_38, %c2, %c0_39, %c0_40], %66 {strides = array<i32>} : memref<1x8x8x8xf32, #tpu.memory_space<vmem>>, vector<1x1x8x8xf32>,
    %cst_41 = arith.constant dense<0.000000e+00> : vector<8x64xf32>
    %67 = tpu.matmul %63, %51, %cst_41 {dimension_numbers = #tpu.dot_dimension_numbers<[1], [0], [0], [1], [0, 0, 1, 1], [], []>} : vector<8x8xf32>, vector<8x64xf32>, vector<8x64xf32> -> vector<8x64xf32>
    %c0_42 = arith.constant 0 : index
    %c128_43 = arith.constant 128 : index
    %68 = vector.load %arg12[%c0_42, %c128_43] : memref<8x512xf32, #tpu.memory_space<vmem>>, vector<8x64xf32>
    tpu.vector_store %arg12[%c0_42, %c128_43], %67 {strides = array<i32>} : memref<8x512xf32, #tpu.memory_space<vmem>>, vector<8x64xf32>,
    %69 = vector.extract_strided_slice %8 {offsets = [0, 192], sizes = [8, 64], strides = [1, 1]} : vector<8x512xf32> to vector<8x64xf32>
    %c0_44 = arith.constant 0 : index
    %c192 = arith.constant 192 : index
    %70 = vector.load %arg11[%c0_44, %c192] : memref<8x1024xf32, #tpu.memory_space<vmem>>, vector<8x64xf32>
    %c0_45 = arith.constant 0 : index
    %c704 = arith.constant 704 : index
    %71 = vector.load %arg11[%c0_45, %c704] : memref<8x1024xf32, #tpu.memory_space<vmem>>, vector<8x64xf32>
    %cst_46 = arith.constant dense<0.000000e+00> : vector<8x8xf32>
    %72 = tpu.matmul %69, %70, %cst_46 {dimension_numbers = #tpu.dot_dimension_numbers<[1], [1], [0], [0], [0, 0, 1, 0], [], []>} : vector<8x64xf32>, vector<8x64xf32>, vector<8x8xf32> -> vector<8x8xf32>
    %cst_47 = arith.constant dense<0xFF800000> : vector<8xf32>
    %73 = vector.multi_reduction <maximumf>, %72, %cst_47 [1] : vector<8x8xf32> to vector<8xf32>
    %74 = vector.shape_cast %73 : vector<8xf32> to vector<8x1xf32>
    %75 = vector.broadcast %74 : vector<8x1xf32> to vector<8x8xf32>
    %76 = arith.subf %72, %75 : vector<8x8xf32>
    %77 = math.exp %76 : vector<8x8xf32>
    %cst_48 = arith.constant dense<0.000000e+00> : vector<8xf32>
    %78 = vector.multi_reduction <add>, %77, %cst_48 [1] : vector<8x8xf32> to vector<8xf32>
    %79 = vector.shape_cast %78 : vector<8xf32> to vector<8x1xf32>
    %cst_49 = arith.constant 1.000000e+00 : f32
    %80 = vector.broadcast %cst_49 : f32 to vector<8x1xf32>
    %81 = arith.divf %80, %79 : vector<8x1xf32>
    %82 = vector.broadcast %81 : vector<8x1xf32> to vector<8x8xf32>
    %83 = arith.mulf %77, %82 : vector<8x8xf32>
    %c0_50 = arith.constant 0 : index
    %c3 = arith.constant 3 : index
    %c0_51 = arith.constant 0 : index
    %c0_52 = arith.constant 0 : index
    %84 = vector.load %arg10[%c0_50, %c3, %c0_51, %c0_52] : memref<1x8x8x8xf32, #tpu.memory_space<vmem>>, vector<1x1x8x8xf32>
    %85 = vector.shape_cast %84 : vector<1x1x8x8xf32> to vector<8x8xf32>
    %86 = vector.shape_cast %83 : vector<8x8xf32> to vector<1x1x8x8xf32>
    tpu.vector_store %arg10[%c0_50, %c3, %c0_51, %c0_52], %86 {strides = array<i32>} : memref<1x8x8x8xf32, #tpu.memory_space<vmem>>, vector<1x1x8x8xf32>,
    %cst_53 = arith.constant dense<0.000000e+00> : vector<8x64xf32>
    %87 = tpu.matmul %83, %71, %cst_53 {dimension_numbers = #tpu.dot_dimension_numbers<[1], [0], [0], [1], [0, 0, 1, 1], [], []>} : vector<8x8xf32>, vector<8x64xf32>, vector<8x64xf32> -> vector<8x64xf32>
    %c0_54 = arith.constant 0 : index
    %c192_55 = arith.constant 192 : index
    %88 = vector.load %arg12[%c0_54, %c192_55] : memref<8x512xf32, #tpu.memory_space<vmem>>, vector<8x64xf32>
    tpu.vector_store %arg12[%c0_54, %c192_55], %87 {strides = array<i32>} : memref<8x512xf32, #tpu.memory_space<vmem>>, vector<8x64xf32>,
    %89 = vector.extract_strided_slice %8 {offsets = [0, 256], sizes = [8, 64], strides = [1, 1]} : vector<8x512xf32> to vector<8x64xf32>
    %c0_56 = arith.constant 0 : index
    %c256 = arith.constant 256 : index
    %90 = vector.load %arg11[%c0_56, %c256] : memref<8x1024xf32, #tpu.memory_space<vmem>>, vector<8x64xf32>
    %c0_57 = arith.constant 0 : index
    %c768 = arith.constant 768 : index
    %91 = vector.load %arg11[%c0_57, %c768] : memref<8x1024xf32, #tpu.memory_space<vmem>>, vector<8x64xf32>
    %cst_58 = arith.constant dense<0.000000e+00> : vector<8x8xf32>
    %92 = tpu.matmul %89, %90, %cst_58 {dimension_numbers = #tpu.dot_dimension_numbers<[1], [1], [0], [0], [0, 0, 1, 0], [], []>} : vector<8x64xf32>, vector<8x64xf32>, vector<8x8xf32> -> vector<8x8xf32>
    %cst_59 = arith.constant dense<0xFF800000> : vector<8xf32>
    %93 = vector.multi_reduction <maximumf>, %92, %cst_59 [1] : vector<8x8xf32> to vector<8xf32>
    %94 = vector.shape_cast %93 : vector<8xf32> to vector<8x1xf32>
    %95 = vector.broadcast %94 : vector<8x1xf32> to vector<8x8xf32>
    %96 = arith.subf %92, %95 : vector<8x8xf32>
    %97 = math.exp %96 : vector<8x8xf32>
    %cst_60 = arith.constant dense<0.000000e+00> : vector<8xf32>
    %98 = vector.multi_reduction <add>, %97, %cst_60 [1] : vector<8x8xf32> to vector<8xf32>
    %99 = vector.shape_cast %98 : vector<8xf32> to vector<8x1xf32>
    %cst_61 = arith.constant 1.000000e+00 : f32
    %100 = vector.broadcast %cst_61 : f32 to vector<8x1xf32>
    %101 = arith.divf %100, %99 : vector<8x1xf32>
    %102 = vector.broadcast %101 : vector<8x1xf32> to vector<8x8xf32>
    %103 = arith.mulf %97, %102 : vector<8x8xf32>
    %c0_62 = arith.constant 0 : index
    %c4 = arith.constant 4 : index
    %c0_63 = arith.constant 0 : index
    %c0_64 = arith.constant 0 : index
    %104 = vector.load %arg10[%c0_62, %c4, %c0_63, %c0_64] : memref<1x8x8x8xf32, #tpu.memory_space<vmem>>, vector<1x1x8x8xf32>
    %105 = vector.shape_cast %104 : vector<1x1x8x8xf32> to vector<8x8xf32>
    %106 = vector.shape_cast %103 : vector<8x8xf32> to vector<1x1x8x8xf32>
    tpu.vector_store %arg10[%c0_62, %c4, %c0_63, %c0_64], %106 {strides = array<i32>} : memref<1x8x8x8xf32, #tpu.memory_space<vmem>>, vector<1x1x8x8xf32>,
    %cst_65 = arith.constant dense<0.000000e+00> : vector<8x64xf32>
    %107 = tpu.matmul %103, %91, %cst_65 {dimension_numbers = #tpu.dot_dimension_numbers<[1], [0], [0], [1], [0, 0, 1, 1], [], []>} : vector<8x8xf32>, vector<8x64xf32>, vector<8x64xf32> -> vector<8x64xf32>
    %c0_66 = arith.constant 0 : index
    %c256_67 = arith.constant 256 : index
    %108 = vector.load %arg12[%c0_66, %c256_67] : memref<8x512xf32, #tpu.memory_space<vmem>>, vector<8x64xf32>
    tpu.vector_store %arg12[%c0_66, %c256_67], %107 {strides = array<i32>} : memref<8x512xf32, #tpu.memory_space<vmem>>, vector<8x64xf32>,
    %109 = vector.extract_strided_slice %8 {offsets = [0, 320], sizes = [8, 64], strides = [1, 1]} : vector<8x512xf32> to vector<8x64xf32>
    %c0_68 = arith.constant 0 : index
    %c320 = arith.constant 320 : index
    %110 = vector.load %arg11[%c0_68, %c320] : memref<8x1024xf32, #tpu.memory_space<vmem>>, vector<8x64xf32>
    %c0_69 = arith.constant 0 : index
    %c832 = arith.constant 832 : index
    %111 = vector.load %arg11[%c0_69, %c832] : memref<8x1024xf32, #tpu.memory_space<vmem>>, vector<8x64xf32>
    %cst_70 = arith.constant dense<0.000000e+00> : vector<8x8xf32>
    %112 = tpu.matmul %109, %110, %cst_70 {dimension_numbers = #tpu.dot_dimension_numbers<[1], [1], [0], [0], [0, 0, 1, 0], [], []>} : vector<8x64xf32>, vector<8x64xf32>, vector<8x8xf32> -> vector<8x8xf32>
    %cst_71 = arith.constant dense<0xFF800000> : vector<8xf32>
    %113 = vector.multi_reduction <maximumf>, %112, %cst_71 [1] : vector<8x8xf32> to vector<8xf32>
    %114 = vector.shape_cast %113 : vector<8xf32> to vector<8x1xf32>
    %115 = vector.broadcast %114 : vector<8x1xf32> to vector<8x8xf32>
    %116 = arith.subf %112, %115 : vector<8x8xf32>
    %117 = math.exp %116 : vector<8x8xf32>
    %cst_72 = arith.constant dense<0.000000e+00> : vector<8xf32>
    %118 = vector.multi_reduction <add>, %117, %cst_72 [1] : vector<8x8xf32> to vector<8xf32>
    %119 = vector.shape_cast %118 : vector<8xf32> to vector<8x1xf32>
    %cst_73 = arith.constant 1.000000e+00 : f32
    %120 = vector.broadcast %cst_73 : f32 to vector<8x1xf32>
    %121 = arith.divf %120, %119 : vector<8x1xf32>
    %122 = vector.broadcast %121 : vector<8x1xf32> to vector<8x8xf32>
    %123 = arith.mulf %117, %122 : vector<8x8xf32>
    %c0_74 = arith.constant 0 : index
    %c5 = arith.constant 5 : index
    %c0_75 = arith.constant 0 : index
    %c0_76 = arith.constant 0 : index
    %124 = vector.load %arg10[%c0_74, %c5, %c0_75, %c0_76] : memref<1x8x8x8xf32, #tpu.memory_space<vmem>>, vector<1x1x8x8xf32>
    %125 = vector.shape_cast %124 : vector<1x1x8x8xf32> to vector<8x8xf32>
    %126 = vector.shape_cast %123 : vector<8x8xf32> to vector<1x1x8x8xf32>
    tpu.vector_store %arg10[%c0_74, %c5, %c0_75, %c0_76], %126 {strides = array<i32>} : memref<1x8x8x8xf32, #tpu.memory_space<vmem>>, vector<1x1x8x8xf32>,
    %cst_77 = arith.constant dense<0.000000e+00> : vector<8x64xf32>
    %127 = tpu.matmul %123, %111, %cst_77 {dimension_numbers = #tpu.dot_dimension_numbers<[1], [0], [0], [1], [0, 0, 1, 1], [], []>} : vector<8x8xf32>, vector<8x64xf32>, vector<8x64xf32> -> vector<8x64xf32>
    %c0_78 = arith.constant 0 : index
    %c320_79 = arith.constant 320 : index
    %128 = vector.load %arg12[%c0_78, %c320_79] : memref<8x512xf32, #tpu.memory_space<vmem>>, vector<8x64xf32>
    tpu.vector_store %arg12[%c0_78, %c320_79], %127 {strides = array<i32>} : memref<8x512xf32, #tpu.memory_space<vmem>>, vector<8x64xf32>,
    %129 = vector.extract_strided_slice %8 {offsets = [0, 384], sizes = [8, 64], strides = [1, 1]} : vector<8x512xf32> to vector<8x64xf32>
    %c0_80 = arith.constant 0 : index
    %c384 = arith.constant 384 : index
    %130 = vector.load %arg11[%c0_80, %c384] : memref<8x1024xf32, #tpu.memory_space<vmem>>, vector<8x64xf32>
    %c0_81 = arith.constant 0 : index
    %c896 = arith.constant 896 : index
    %131 = vector.load %arg11[%c0_81, %c896] : memref<8x1024xf32, #tpu.memory_space<vmem>>, vector<8x64xf32>
    %cst_82 = arith.constant dense<0.000000e+00> : vector<8x8xf32>
    %132 = tpu.matmul %129, %130, %cst_82 {dimension_numbers = #tpu.dot_dimension_numbers<[1], [1], [0], [0], [0, 0, 1, 0], [], []>} : vector<8x64xf32>, vector<8x64xf32>, vector<8x8xf32> -> vector<8x8xf32>
    %cst_83 = arith.constant dense<0xFF800000> : vector<8xf32>
    %133 = vector.multi_reduction <maximumf>, %132, %cst_83 [1] : vector<8x8xf32> to vector<8xf32>
    %134 = vector.shape_cast %133 : vector<8xf32> to vector<8x1xf32>
    %135 = vector.broadcast %134 : vector<8x1xf32> to vector<8x8xf32>
    %136 = arith.subf %132, %135 : vector<8x8xf32>
    %137 = math.exp %136 : vector<8x8xf32>
    %cst_84 = arith.constant dense<0.000000e+00> : vector<8xf32>
    %138 = vector.multi_reduction <add>, %137, %cst_84 [1] : vector<8x8xf32> to vector<8xf32>
    %139 = vector.shape_cast %138 : vector<8xf32> to vector<8x1xf32>
    %cst_85 = arith.constant 1.000000e+00 : f32
    %140 = vector.broadcast %cst_85 : f32 to vector<8x1xf32>
    %141 = arith.divf %140, %139 : vector<8x1xf32>
    %142 = vector.broadcast %141 : vector<8x1xf32> to vector<8x8xf32>
    %143 = arith.mulf %137, %142 : vector<8x8xf32>
    %c0_86 = arith.constant 0 : index
    %c6 = arith.constant 6 : index
    %c0_87 = arith.constant 0 : index
    %c0_88 = arith.constant 0 : index
    %144 = vector.load %arg10[%c0_86, %c6, %c0_87, %c0_88] : memref<1x8x8x8xf32, #tpu.memory_space<vmem>>, vector<1x1x8x8xf32>
    %145 = vector.shape_cast %144 : vector<1x1x8x8xf32> to vector<8x8xf32>
    %146 = vector.shape_cast %143 : vector<8x8xf32> to vector<1x1x8x8xf32>
    tpu.vector_store %arg10[%c0_86, %c6, %c0_87, %c0_88], %146 {strides = array<i32>} : memref<1x8x8x8xf32, #tpu.memory_space<vmem>>, vector<1x1x8x8xf32>,
    %cst_89 = arith.constant dense<0.000000e+00> : vector<8x64xf32>
    %147 = tpu.matmul %143, %131, %cst_89 {dimension_numbers = #tpu.dot_dimension_numbers<[1], [0], [0], [1], [0, 0, 1, 1], [], []>} : vector<8x8xf32>, vector<8x64xf32>, vector<8x64xf32> -> vector<8x64xf32>
    %c0_90 = arith.constant 0 : index
    %c384_91 = arith.constant 384 : index
    %148 = vector.load %arg12[%c0_90, %c384_91] : memref<8x512xf32, #tpu.memory_space<vmem>>, vector<8x64xf32>
    tpu.vector_store %arg12[%c0_90, %c384_91], %147 {strides = array<i32>} : memref<8x512xf32, #tpu.memory_space<vmem>>, vector<8x64xf32>,
    %149 = vector.extract_strided_slice %8 {offsets = [0, 448], sizes = [8, 64], strides = [1, 1]} : vector<8x512xf32> to vector<8x64xf32>
    %c0_92 = arith.constant 0 : index
    %c448 = arith.constant 448 : index
    %150 = vector.load %arg11[%c0_92, %c448] : memref<8x1024xf32, #tpu.memory_space<vmem>>, vector<8x64xf32>
    %c0_93 = arith.constant 0 : index
    %c960 = arith.constant 960 : index
    %151 = vector.load %arg11[%c0_93, %c960] : memref<8x1024xf32, #tpu.memory_space<vmem>>, vector<8x64xf32>
    %cst_94 = arith.constant dense<0.000000e+00> : vector<8x8xf32>
    %152 = tpu.matmul %149, %150, %cst_94 {dimension_numbers = #tpu.dot_dimension_numbers<[1], [1], [0], [0], [0, 0, 1, 0], [], []>} : vector<8x64xf32>, vector<8x64xf32>, vector<8x8xf32> -> vector<8x8xf32>
    %cst_95 = arith.constant dense<0xFF800000> : vector<8xf32>
    %153 = vector.multi_reduction <maximumf>, %152, %cst_95 [1] : vector<8x8xf32> to vector<8xf32>
    %154 = vector.shape_cast %153 : vector<8xf32> to vector<8x1xf32>
    %155 = vector.broadcast %154 : vector<8x1xf32> to vector<8x8xf32>
    %156 = arith.subf %152, %155 : vector<8x8xf32>
    %157 = math.exp %156 : vector<8x8xf32>
    %cst_96 = arith.constant dense<0.000000e+00> : vector<8xf32>
    %158 = vector.multi_reduction <add>, %157, %cst_96 [1] : vector<8x8xf32> to vector<8xf32>
    %159 = vector.shape_cast %158 : vector<8xf32> to vector<8x1xf32>
    %cst_97 = arith.constant 1.000000e+00 : f32
    %160 = vector.broadcast %cst_97 : f32 to vector<8x1xf32>
    %161 = arith.divf %160, %159 : vector<8x1xf32>
    %162 = vector.broadcast %161 : vector<8x1xf32> to vector<8x8xf32>
    %163 = arith.mulf %157, %162 : vector<8x8xf32>
    %c0_98 = arith.constant 0 : index
    %c7 = arith.constant 7 : index
    %c0_99 = arith.constant 0 : index
    %c0_100 = arith.constant 0 : index
    %164 = vector.load %arg10[%c0_98, %c7, %c0_99, %c0_100] : memref<1x8x8x8xf32, #tpu.memory_space<vmem>>, vector<1x1x8x8xf32>
    %165 = vector.shape_cast %164 : vector<1x1x8x8xf32> to vector<8x8xf32>
    %166 = vector.shape_cast %163 : vector<8x8xf32> to vector<1x1x8x8xf32>
    tpu.vector_store %arg10[%c0_98, %c7, %c0_99, %c0_100], %166 {strides = array<i32>} : memref<1x8x8x8xf32, #tpu.memory_space<vmem>>, vector<1x1x8x8xf32>,
    %cst_101 = arith.constant dense<0.000000e+00> : vector<8x64xf32>
    %167 = tpu.matmul %163, %151, %cst_101 {dimension_numbers = #tpu.dot_dimension_numbers<[1], [0], [0], [1], [0, 0, 1, 1], [], []>} : vector<8x8xf32>, vector<8x64xf32>, vector<8x64xf32> -> vector<8x64xf32>
    %c0_102 = arith.constant 0 : index
    %c448_103 = arith.constant 448 : index
    %168 = vector.load %arg12[%c0_102, %c448_103] : memref<8x512xf32, #tpu.memory_space<vmem>>, vector<8x64xf32>
    tpu.vector_store %arg12[%c0_102, %c448_103], %167 {strides = array<i32>} : memref<8x512xf32, #tpu.memory_space<vmem>>, vector<8x64xf32>,
    %c0_104 = arith.constant 0 : index
    %c0_105 = arith.constant 0 : index
    %169 = vector.load %arg12[%c0_104, %c0_105] : memref<8x512xf32, #tpu.memory_space<vmem>>, vector<8x512xf32>
    %c0_106 = arith.constant 0 : index
    %c0_107 = arith.constant 0 : index
    %170 = vector.load %arg6[%c0_106, %c0_107] : memref<512x512xf32, #tpu.memory_space<vmem>>, vector<512x512xf32>
    %cst_108 = arith.constant dense<0.000000e+00> : vector<8x512xf32>
    %171 = tpu.matmul %169, %170, %cst_108 {dimension_numbers = #tpu.dot_dimension_numbers<[1], [0], [0], [1], [0, 0, 1, 1], [], []>} : vector<8x512xf32>, vector<512x512xf32>, vector<8x512xf32> -> vector<8x512xf32>
    %172 = arith.addf %171, %4 : vector<8x512xf32>
    %cst_109 = arith.constant dense<0.000000e+00> : vector<8xf32>
    %173 = vector.multi_reduction <add>, %172, %cst_109 [1] : vector<8x512xf32> to vector<8xf32>
    %174 = vector.shape_cast %173 : vector<8xf32> to vector<8x1xf32>
    %cst_110 = arith.constant 5.120000e+02 : f32
    %175 = vector.broadcast %cst_110 : f32 to vector<8x1xf32>
    %176 = arith.divf %174, %175 : vector<8x1xf32>
    %177 = vector.broadcast %176 : vector<8x1xf32> to vector<8x512xf32>
    %178 = arith.subf %172, %177 : vector<8x512xf32>
    %179 = arith.mulf %178, %178 : vector<8x512xf32>
    %cst_111 = arith.constant dense<0.000000e+00> : vector<8xf32>
    %180 = vector.multi_reduction <add>, %179, %cst_111 [1] : vector<8x512xf32> to vector<8xf32>
    %181 = vector.shape_cast %180 : vector<8xf32> to vector<8x1xf32>
    %cst_112 = arith.constant 5.120000e+02 : f32
    %182 = vector.broadcast %cst_112 : f32 to vector<8x1xf32>
    %183 = arith.divf %181, %182 : vector<8x1xf32>
    %184 = vector.broadcast %176 : vector<8x1xf32> to vector<8x512xf32>
    %185 = arith.subf %172, %184 : vector<8x512xf32>
    %cst_113 = arith.constant 9.99999974E-6 : f32
    %186 = vector.broadcast %cst_113 : f32 to vector<8x1xf32>
    %187 = arith.addf %183, %186 : vector<8x1xf32>
    %188 = math.rsqrt %187 : vector<8x1xf32>
    %189 = vector.broadcast %188 : vector<8x1xf32> to vector<8x512xf32>
    %190 = arith.mulf %185, %189 : vector<8x512xf32>
    %c0_114 = arith.constant 0 : index
    %c0_115 = arith.constant 0 : index
    %191 = vector.load %arg7[%c0_114, %c0_115] : memref<512x2048xf32, #tpu.memory_space<vmem>>, vector<512x2048xf32>
    %cst_116 = arith.constant dense<0.000000e+00> : vector<8x2048xf32>
    %192 = tpu.matmul %190, %191, %cst_116 {dimension_numbers = #tpu.dot_dimension_numbers<[1], [0], [0], [1], [0, 0, 1, 1], [], []>} : vector<8x512xf32>, vector<512x2048xf32>, vector<8x2048xf32> -> vector<8x2048xf32>
    %cst_117 = arith.constant 0.000000e+00 : f32
    %193 = vector.broadcast %cst_117 : f32 to vector<8x2048xf32>
    %194 = arith.maximumf %192, %193 : vector<8x2048xf32>
    %c0_118 = arith.constant 0 : index
    %c0_119 = arith.constant 0 : index
    %195 = vector.load %arg8[%c0_118, %c0_119] : memref<2048x512xf32, #tpu.memory_space<vmem>>, vector<2048x512xf32>
    %cst_120 = arith.constant dense<0.000000e+00> : vector<8x512xf32>
    %196 = tpu.matmul %194, %195, %cst_120 {dimension_numbers = #tpu.dot_dimension_numbers<[1], [0], [0], [1], [0, 0, 1, 1], [], []>} : vector<8x2048xf32>, vector<2048x512xf32>, vector<8x512xf32> -> vector<8x512xf32>
    %197 = arith.addf %196, %190 : vector<8x512xf32>
    %cst_121 = arith.constant dense<0.000000e+00> : vector<8xf32>
    %198 = vector.multi_reduction <add>, %197, %cst_121 [1] : vector<8x512xf32> to vector<8xf32>
    %199 = vector.shape_cast %198 : vector<8xf32> to vector<8x1xf32>
    %cst_122 = arith.constant 5.120000e+02 : f32
    %200 = vector.broadcast %cst_122 : f32 to vector<8x1xf32>
    %201 = arith.divf %199, %200 : vector<8x1xf32>
    %202 = vector.broadcast %201 : vector<8x1xf32> to vector<8x512xf32>
    %203 = arith.subf %197, %202 : vector<8x512xf32>
    %204 = arith.mulf %203, %203 : vector<8x512xf32>
    %cst_123 = arith.constant dense<0.000000e+00> : vector<8xf32>
    %205 = vector.multi_reduction <add>, %204, %cst_123 [1] : vector<8x512xf32> to vector<8xf32>
    %206 = vector.shape_cast %205 : vector<8xf32> to vector<8x1xf32>
    %cst_124 = arith.constant 5.120000e+02 : f32
    %207 = vector.broadcast %cst_124 : f32 to vector<8x1xf32>
    %208 = arith.divf %206, %207 : vector<8x1xf32>
    %209 = vector.broadcast %201 : vector<8x1xf32> to vector<8x512xf32>
    %210 = arith.subf %197, %209 : vector<8x512xf32>
    %cst_125 = arith.constant 9.99999974E-6 : f32
    %211 = vector.broadcast %cst_125 : f32 to vector<8x1xf32>
    %212 = arith.addf %208, %211 : vector<8x1xf32>
    %213 = math.rsqrt %212 : vector<8x1xf32>
    %214 = vector.broadcast %213 : vector<8x1xf32> to vector<8x512xf32>
    %215 = arith.mulf %210, %214 : vector<8x512xf32>
    %c0_126 = arith.constant 0 : index
    %c0_127 = arith.constant 0 : index
    %c0_128 = arith.constant 0 : index
    %216 = vector.load %arg9[%c0_126, %c0_127, %c0_128] : memref<1x8x512xf32, #tpu.memory_space<vmem>>, vector<1x8x512xf32>
    %217 = vector.shape_cast %216 : vector<1x8x512xf32> to vector<8x512xf32>
    %218 = vector.shape_cast %215 : vector<8x512xf32> to vector<1x8x512xf32>
    tpu.vector_store %arg9[%c0_126, %c0_127, %c0_128], %218 {strides = array<i32>} : memref<1x8x512xf32, #tpu.memory_space<vmem>>, vector<1x8x512xf32>,
    return
  }
  func.func @transform_0(%arg0: i32, %arg1: i32) -> (i32, i32, i32) {
    %c0_i32 = arith.constant 0 : i32
    %c0_i32_0 = arith.constant 0 : i32
    return %arg0, %arg1, %c0_i32 : i32, i32, i32
  }
  func.func @transform_1(%arg0: i32, %arg1: i32) -> (i32, i32, i32) {
    %c0_i32 = arith.constant 0 : i32
    %c0_i32_0 = arith.constant 0 : i32
    %c0_i32_1 = arith.constant 0 : i32
    return %arg0, %c0_i32, %c0_i32_0 : i32, i32, i32
  }
  func.func @transform_2(%arg0: i32, %arg1: i32) -> (i32, i32) {
    %c0_i32 = arith.constant 0 : i32
    %c0_i32_0 = arith.constant 0 : i32
    %c0_i32_1 = arith.constant 0 : i32
    return %c0_i32, %c0_i32_0 : i32, i32
  }
  func.func @transform_3(%arg0: i32, %arg1: i32) -> (i32, i32) {
    %c0_i32 = arith.constant 0 : i32
    %c0_i32_0 = arith.constant 0 : i32
    %c0_i32_1 = arith.constant 0 : i32
    return %c0_i32, %c0_i32_0 : i32, i32
  }
  func.func @transform_4(%arg0: i32, %arg1: i32) -> (i32, i32) {
    %c0_i32 = arith.constant 0 : i32
    %c0_i32_0 = arith.constant 0 : i32
    %c0_i32_1 = arith.constant 0 : i32
    return %c0_i32, %c0_i32_0 : i32, i32
  }
  func.func @transform_5(%arg0: i32, %arg1: i32) -> (i32, i32) {
    %c0_i32 = arith.constant 0 : i32
    %c0_i32_0 = arith.constant 0 : i32
    %c0_i32_1 = arith.constant 0 : i32
    return %c0_i32, %c0_i32_0 : i32, i32
  }
  func.func @transform_6(%arg0: i32, %arg1: i32) -> (i32, i32) {
    %c0_i32 = arith.constant 0 : i32
    %c0_i32_0 = arith.constant 0 : i32
    %c0_i32_1 = arith.constant 0 : i32
    return %c0_i32, %c0_i32_0 : i32, i32
  }
  func.func @transform_7(%arg0: i32, %arg1: i32) -> (i32, i32, i32) {
    %c0_i32 = arith.constant 0 : i32
    %c0_i32_0 = arith.constant 0 : i32
    return %arg0, %arg1, %c0_i32 : i32, i32, i32
  }
  func.func @transform_8(%arg0: i32, %arg1: i32) -> (i32, i32, i32, i32) {
    %c0_i32 = arith.constant 0 : i32
    %c0_i32_0 = arith.constant 0 : i32
    %c0_i32_1 = arith.constant 0 : i32
    return %arg0, %c0_i32, %arg1, %c0_i32_0 : i32, i32, i32, i32
  }
}

</mosaic_0001>

<llo_original>
// kernel: encoder_layer.1
$region0: #{encoder_layer.1}
  #allocation0 [shape = 'u32[]', space=smem, size = 0x4, offset = 0x4, fixed_abs, tag = 'smem constant byte address 0x4 - core index']
  #allocation1 [shape = 'u32[72,128]{1,0:T(1,128)}', space=vmem, size = 0x9000, scoped, tag = 'internal scratch']
  #allocation2 [shape = 'f32[8,1024]{1,0:T(8,128)}', space=vmem, size = 0x8000, scoped, tag = 'scratch operand']
  #allocation3 [shape = 'f32[8,512]{1,0:T(8,128)}', space=vmem, size = 0x4000, scoped, tag = 'scratch operand']
  %s0 = inlined_call_operand.hbm [shape: f32[2,8,512], index: 0, kind: input, shape index: {}, may-alias: {0,1}]
  %s1 = inlined_call_operand.hbm [shape: f32[2,8,512], index: 1, kind: input, shape index: {}, may-alias: {0,1}]
  %s2 = inlined_call_operand.hbm [shape: f32[512,512], index: 2, kind: input, shape index: {}]
  %s3 = inlined_call_operand.hbm [shape: f32[512,1024], index: 3, kind: input, shape index: {}]
  %s4 = inlined_call_operand.hbm [shape: f32[512,512], index: 4, kind: input, shape index: {}]
  %s5 = inlined_call_operand.hbm [shape: f32[512,2048], index: 5, kind: input, shape index: {}]
  %s6 = inlined_call_operand.hbm [shape: f32[2048,512], index: 6, kind: input, shape index: {}]
  %s7 = inlined_call_operand.hbm [shape: f32[2,8,512], index: 7, kind: output, shape index: {0}]
  %s8 = inlined_call_operand.hbm [shape: f32[2,8,8,8], index: 8, kind: output, shape index: {1}]
  %9 = xla_tuple %s7, %s8
  %s10 = sld [smem:[#allocation0]]
  $region101: #{encoder_layer.1} parent=0
    _
  %s12 = ssub.s32 1, %s10
  %s13 = scalar_select 0, %s12, %s10
  $region1: #{encoder_layer.1} parent=0
    #allocation4 [shape = 'u8[32768]{0}', space=vmem, size = 0x8000, scoped, tag = 'input window, operand 0']
    #allocation5 [shape = 's32[2]{0}', space=sflag, size = 0x8, scoped, tag = 'scoped memory for encoder_layer.1']
    #allocation6 [shape = 's32[2]{0}', space=sflag, size = 0x8, scoped, tag = 'scoped memory for encoder_layer.1']
    #allocation7 [shape = 'u8[32768]{0}', space=vmem, size = 0x8000, scoped, tag = 'input window, operand 1']
    #allocation8 [shape = 's32[2]{0}', space=sflag, size = 0x8, scoped, tag = 'scoped memory for encoder_layer.1']
    #allocation9 [shape = 'u8[1048576]{0}', space=vmem, size = 0x100000, scoped, tag = 'input window, operand 2, single buffered']
    #allocation10 [shape = 'u8[2097152]{0}', space=vmem, size = 0x200000, scoped, tag = 'input window, operand 3, single buffered']
    #allocation11 [shape = 's32[1]{0}', space=sflag, size = 0x4, scoped, tag = 'scoped memory for encoder_layer.1']
    #allocation12 [shape = 'u8[1048576]{0}', space=vmem, size = 0x100000, scoped, tag = 'input window, operand 4, single buffered']
    #allocation13 [shape = 'u8[4194304]{0}', space=vmem, size = 0x400000, scoped, tag = 'input window, operand 5, single buffered']
    #allocation14 [shape = 's32[1]{0}', space=sflag, size = 0x4, scoped, tag = 'scoped memory for encoder_layer.1']
    #allocation15 [shape = 'u8[4194304]{0}', space=vmem, size = 0x400000, scoped, tag = 'input window, operand 6, single buffered']
    #allocation16 [shape = 'u8[32768]{0}', space=vmem, size = 0x8000, scoped, tag = 'output window, operand 0']
    #allocation17 [shape = 'u8[65536]{0}', space=vmem, size = 0x10000, scoped, tag = 'output window, operand 1']
    #allocation18 [shape = 's32[2]{0}', space=sflag, size = 0x8, scoped, tag = 'scoped memory for encoder_layer.1']
    %14 = vsyncpa [#allocation5], 0
    %s15 = scalar_lea.sflag [#allocation5], 1
    %16 = vsyncpa %s15, 0
    %17 = vsyncpa [#allocation8], 0
    %s18 = scalar_lea.sflag [#allocation8], 1
    %19 = vsyncpa %s18, 0
    %20 = vsyncpa [#allocation11], 0
    %21 = vsyncpa [#allocation14], 0
    %22 = vsyncpa [#allocation6], 0
    %s23 = scalar_lea.sflag [#allocation6], 1
    %24 = vsyncpa %s23, 0
    %25 = vsyncpa [#allocation18], 0
    %s26 = scalar_lea.sflag [#allocation18], 1
    %27 = vsyncpa %s26, 0
    loop: start=0, step=1, limit=4
    $region2: #{encoder_layer.1} parent=1 // loop_pre_header
      _
    $region3: #{encoder_layer.1} parent=1 // loop_header
      %s29 = sphi 0, %s33
      %p30 = scmp.ge.s32.totalorder %s29, 4
      %s36 = sphi 0, %s48
      %s37 = sphi 0, %s44
      %s38 = sphi 0, %s36
      %s39 = sphi 0, %s37
      %s40 = sphi 0, %s38
      %s41 = sphi 0, %s39
      %s53 = sphi 0, %s55
      %s56 = sphi 0, %s53
      %s57 = sphi 0, %s56
      %s73 = sphi 0, %s57
      %s79 = sphi 0, %s81
      %s82 = sphi 0, %s79
      %s83 = sphi 0, %s82
      %s99 = sphi 0, %s83
      %s103 = sphi 0, %s103
      %s105 = sphi 0, %s103
      %s106 = sphi 0, %s105
      %s120 = sphi 0, %s106
      %s124 = sphi 0, %s124
      %s126 = sphi 0, %s124
      %s127 = sphi 0, %s126
      %s141 = sphi 0, %s127
      %s145 = sphi 0, %s145
      %s147 = sphi 0, %s145
      %s148 = sphi 0, %s147
      %s162 = sphi 0, %s148
      %s166 = sphi 0, %s166
      %s168 = sphi 0, %s166
      %s169 = sphi 0, %s168
      %s183 = sphi 0, %s169
      %s187 = sphi 0, %s187
      %s189 = sphi 0, %s187
      %s190 = sphi 0, %s189
      %s204 = sphi 0, %s190
      %s212 = sphi 0, %s214
      %s215 = sphi 0, %s212
      %s216 = sphi 0, %s215
      %s232 = sphi 0, %s216
      %s240 = sphi 0, %s242
      %s243 = sphi 0, %s240
      %s244 = sphi 0, %s243
      %s260 = sphi 0, %s244
    $region4: #{encoder_layer.1} parent=1 // loop_header_branch
      %32 = sbr.rel (%p30) target = $region8
    $region5: #{encoder_layer.1} parent=1 // loop_body
      %s34 = ssub.s32 %s29, 1
      %s35 = ssub.s32 %s29, 2
      %s42 = sadd.s32 1, %s37
      %p43 = scmp.ge.s32.totalorder %s42, 1
      %s44 = scalar_select %p43, 0, %s42
      %s45 = sadd.s32 1, %s36
      %s46 = scalar_select %p43, %s45, %s36
      %p47 = scmp.ge.s32.totalorder %s46, 2
      %s48 = scalar_select %p47, 0, %s46
      %s49 = ssub.s32 %s36, %s48
      %s50 = ssub.s32 %s37, %s44
      %s51 = sor.u32 %s49, %s50
      %p52 = scmp.eq.s32.totalorder %s51, 0
      %s54 = sadd.s32 %s53, 1
      %s55 = scalar_select %p52, %s53, %s54
      %p58 = pneg %p52
      %p59 = scmp.eq.s32.totalorder %s29, 1
      %p60 = por %p58, %p59
      %p61 = scmp.ne.s32.totalorder %s53, %s56
      %p62 = scmp.eq.s32.totalorder %s29, 0
      %p63 = por %p61, %p62
      %p64 = scmp.ne.s32.totalorder %s53, %s56
      %p65 = scmp.eq.s32.totalorder %s34, 1
      %p66 = por %p64, %p65
      %p67 = scmp.ne.s32.totalorder %s56, %s57
      %p68 = scmp.eq.s32.totalorder %s34, 0
      %p69 = por %p67, %p68
      %p70 = scmp.ne.s32.totalorder %s56, %s57
      %p71 = scmp.eq.s32.totalorder %s35, 1
      %p72 = por %p70, %p71
      %p74 = scmp.ne.s32.totalorder %s57, %s73
      %p75 = scmp.eq.s32.totalorder %s35, 0
      %p76 = por %p74, %p75
      %s77 = ssub.s32 %s36, %s48
      %p78 = scmp.eq.s32.totalorder %s77, 0
      %s80 = sadd.s32 %s79, 1
      %s81 = scalar_select %p78, %s79, %s80
      %p84 = pneg %p78
      %p85 = scmp.eq.s32.totalorder %s29, 1
      %p86 = por %p84, %p85
      %p87 = scmp.ne.s32.totalorder %s79, %s82
      %p88 = scmp.eq.s32.totalorder %s29, 0
      %p89 = por %p87, %p88
      %p90 = scmp.ne.s32.totalorder %s79, %s82
      %p91 = scmp.eq.s32.totalorder %s34, 1
      %p92 = por %p90, %p91
      %p93 = scmp.ne.s32.totalorder %s82, %s83
      %p94 = scmp.eq.s32.totalorder %s34, 0
      %p95 = por %p93, %p94
      %p96 = scmp.ne.s32.totalorder %s82, %s83
      %p97 = scmp.eq.s32.totalorder %s35, 1
      %p98 = por %p96, %p97
      %p100 = scmp.ne.s32.totalorder %s83, %s99
      %p101 = scmp.eq.s32.totalorder %s35, 0
      %p102 = por %p100, %p101
      %s104 = sadd.s32 %s103, 1
      %p107 = scmp.eq.s32.totalorder %s29, 1
      %p108 = scmp.ne.s32.totalorder %s103, %s105
      %p109 = scmp.eq.s32.totalorder %s29, 0
      %p110 = por %p108, %p109
      %p111 = scmp.ne.s32.totalorder %s103, %s105
      %p112 = scmp.eq.s32.totalorder %s34, 1
      %p113 = por %p111, %p112
      %p114 = scmp.ne.s32.totalorder %s105, %s106
      %p115 = scmp.eq.s32.totalorder %s34, 0
      %p116 = por %p114, %p115
      %p117 = scmp.ne.s32.totalorder %s105, %s106
      %p118 = scmp.eq.s32.totalorder %s35, 1
      %p119 = por %p117, %p118
      %p121 = scmp.ne.s32.totalorder %s106, %s120
      %p122 = scmp.eq.s32.totalorder %s35, 0
      %p123 = por %p121, %p122
      %s125 = sadd.s32 %s124, 1
      %p128 = scmp.eq.s32.totalorder %s29, 1
      %p129 = scmp.ne.s32.totalorder %s124, %s126
      %p130 = scmp.eq.s32.totalorder %s29, 0
      %p131 = por %p129, %p130
      %p132 = scmp.ne.s32.totalorder %s124, %s126
      %p133 = scmp.eq.s32.totalorder %s34, 1
      %p134 = por %p132, %p133
      %p135 = scmp.ne.s32.totalorder %s126, %s127
      %p136 = scmp.eq.s32.totalorder %s34, 0
      %p137 = por %p135, %p136
      %p138 = scmp.ne.s32.totalorder %s126, %s127
      %p139 = scmp.eq.s32.totalorder %s35, 1
      %p140 = por %p138, %p139
      %p142 = scmp.ne.s32.totalorder %s127, %s141
      %p143 = scmp.eq.s32.totalorder %s35, 0
      %p144 = por %p142, %p143
      %s146 = sadd.s32 %s145, 1
      %p149 = scmp.eq.s32.totalorder %s29, 1
      %p150 = scmp.ne.s32.totalorder %s145, %s147
      %p151 = scmp.eq.s32.totalorder %s29, 0
      %p152 = por %p150, %p151
      %p153 = scmp.ne.s32.totalorder %s145, %s147
      %p154 = scmp.eq.s32.totalorder %s34, 1
      %p155 = por %p153, %p154
      %p156 = scmp.ne.s32.totalorder %s147, %s148
      %p157 = scmp.eq.s32.totalorder %s34, 0
      %p158 = por %p156, %p157
      %p159 = scmp.ne.s32.totalorder %s147, %s148
      %p160 = scmp.eq.s32.totalorder %s35, 1
      %p161 = por %p159, %p160
      %p163 = scmp.ne.s32.totalorder %s148, %s162
      %p164 = scmp.eq.s32.totalorder %s35, 0
      %p165 = por %p163, %p164
      %s167 = sadd.s32 %s166, 1
      %p170 = scmp.eq.s32.totalorder %s29, 1
      %p171 = scmp.ne.s32.totalorder %s166, %s168
      %p172 = scmp.eq.s32.totalorder %s29, 0
      %p173 = por %p171, %p172
      %p174 = scmp.ne.s32.totalorder %s166, %s168
      %p175 = scmp.eq.s32.totalorder %s34, 1
      %p176 = por %p174, %p175
      %p177 = scmp.ne.s32.totalorder %s168, %s169
      %p178 = scmp.eq.s32.totalorder %s34, 0
      %p179 = por %p177, %p178
      %p180 = scmp.ne.s32.totalorder %s168, %s169
      %p181 = scmp.eq.s32.totalorder %s35, 1
      %p182 = por %p180, %p181
      %p184 = scmp.ne.s32.totalorder %s169, %s183
      %p185 = scmp.eq.s32.totalorder %s35, 0
      %p186 = por %p184, %p185
      %s188 = sadd.s32 %s187, 1
      %p191 = scmp.eq.s32.totalorder %s29, 1
      %p192 = scmp.ne.s32.totalorder %s187, %s189
      %p193 = scmp.eq.s32.totalorder %s29, 0
      %p194 = por %p192, %p193
      %p195 = scmp.ne.s32.totalorder %s187, %s189
      %p196 = scmp.eq.s32.totalorder %s34, 1
      %p197 = por %p195, %p196
      %p198 = scmp.ne.s32.totalorder %s189, %s190
      %p199 = scmp.eq.s32.totalorder %s34, 0
      %p200 = por %p198, %p199
      %p201 = scmp.ne.s32.totalorder %s189, %s190
      %p202 = scmp.eq.s32.totalorder %s35, 1
      %p203 = por %p201, %p202
      %p205 = scmp.ne.s32.totalorder %s190, %s204
      %p206 = scmp.eq.s32.totalorder %s35, 0
      %p207 = por %p205, %p206
      %s208 = ssub.s32 %s36, %s48
      %s209 = ssub.s32 %s37, %s44
      %s210 = sor.u32 %s208, %s209
      %p211 = scmp.eq.s32.totalorder %s210, 0
      %s213 = sadd.s32 %s212, 1
      %s214 = scalar_select %p211, %s212, %s213
      %p217 = pneg %p211
      %p218 = scmp.eq.s32.totalorder %s29, 1
      %p219 = por %p217, %p218
      %p220 = scmp.ne.s32.totalorder %s212, %s215
      %p221 = scmp.eq.s32.totalorder %s29, 0
      %p222 = por %p220, %p221
      %p223 = scmp.ne.s32.totalorder %s212, %s215
      %p224 = scmp.eq.s32.totalorder %s34, 1
      %p225 = por %p223, %p224
      %p226 = scmp.ne.s32.totalorder %s215, %s216
      %p227 = scmp.eq.s32.totalorder %s34, 0
      %p228 = por %p226, %p227
      %p229 = scmp.ne.s32.totalorder %s215, %s216
      %p230 = scmp.eq.s32.totalorder %s35, 1
      %p231 = por %p229, %p230
      %p233 = scmp.ne.s32.totalorder %s216, %s232
      %p234 = scmp.eq.s32.totalorder %s35, 0
      %p235 = por %p233, %p234
      %s236 = ssub.s32 %s36, %s48
      %s237 = ssub.s32 %s37, %s44
      %s238 = sor.u32 %s236, %s237
      %p239 = scmp.eq.s32.totalorder %s238, 0
      %s241 = sadd.s32 %s240, 1
      %s242 = scalar_select %p239, %s240, %s241
      %p245 = pneg %p239
      %p246 = scmp.eq.s32.totalorder %s29, 1
      %p247 = por %p245, %p246
      %p248 = scmp.ne.s32.totalorder %s240, %s243
      %p249 = scmp.eq.s32.totalorder %s29, 0
      %p250 = por %p248, %p249
      %p251 = scmp.ne.s32.totalorder %s240, %s243
      %p252 = scmp.eq.s32.totalorder %s34, 1
      %p253 = por %p251, %p252
      %p254 = scmp.ne.s32.totalorder %s243, %s244
      %p255 = scmp.eq.s32.totalorder %s34, 0
      %p256 = por %p254, %p255
      %p257 = scmp.ne.s32.totalorder %s243, %s244
      %p258 = scmp.eq.s32.totalorder %s35, 1
      %p259 = por %p257, %p258
      %p261 = scmp.ne.s32.totalorder %s244, %s260
      %p262 = scmp.eq.s32.totalorder %s35, 0
      %p263 = por %p261, %p262
      %p264 = scmp.le.s32.totalorder 1, %s29
      %p265 = scmp.lt.s32.totalorder %s29, 3
      %p266 = pnand %p264, %p265
      %p267 = pneg %p266
      // Predicated region
      $region9: #{encoder_layer.1} parent=5 // pred_check
        _
      $region10: #{encoder_layer.1} parent=5 // pred_check_branch
        %269 = sbr.rel (%p266) target = $region12
      $region11: #{encoder_layer.1} parent=5 // pred_region
        %s270 = ssub.s32 %s29, 1
        // Predicated region
        $region13: #{encoder_layer.1} parent=11 // pred_check
          %p271 = pneg %p116
        $region14: #{encoder_layer.1} parent=11 // pred_check_branch
          %273 = sbr.rel (%p271) target = $region16
        $region15: #{encoder_layer.1} parent=11 // pred_region
          %275 = vsyncadd [#allocation8], 0
          %s276 = sshll.u32 %s2, 4
          %s277 = int_to_ptr.hbm [resolvable:$true] %s276
          %s278 = sshll.u32 [#allocation9], 4
          %s279 = int_to_ptr.vmem [resolvable:$true] %s278
          %284 = dma.hbm_to_vmem [thread:$0]  %s277, 32768, %s279, [#allocation8], 512, 512, 32
        $region16: #{encoder_layer.1} parent=11 // pred_fallthru
          _
        // Predicated region
        $region17: #{encoder_layer.1} parent=11 // pred_check
          %p285 = pneg %p137
        $region18: #{encoder_layer.1} parent=11 // pred_check_branch
          %287 = sbr.rel (%p285) target = $region20
        $region19: #{encoder_layer.1} parent=11 // pred_region
          %289 = vsyncadd [#allocation11], 0
          %s290 = sshll.u32 %s3, 4
          %s291 = int_to_ptr.hbm [resolvable:$true] %s290
          %s292 = sshll.u32 [#allocation10], 4
          %s293 = int_to_ptr.vmem [resolvable:$true] %s292
          %298 = dma.hbm_to_vmem [thread:$0]  %s291, 65536, %s293, [#allocation11], 1024, 1024, 64
        $region20: #{encoder_layer.1} parent=11 // pred_fallthru
          _
        // Predicated region
        $region21: #{encoder_layer.1} parent=11 // pred_check
          %p299 = pneg %p158
        $region22: #{encoder_layer.1} parent=11 // pred_check_branch
          %301 = sbr.rel (%p299) target = $region24
        $region23: #{encoder_layer.1} parent=11 // pred_region
          %303 = vsyncadd [#allocation11], 0
          %s304 = sshll.u32 %s4, 4
          %s305 = int_to_ptr.hbm [resolvable:$true] %s304
          %s306 = sshll.u32 [#allocation12], 4
          %s307 = int_to_ptr.vmem [resolvable:$true] %s306
          %312 = dma.hbm_to_vmem [thread:$0]  %s305, 32768, %s307, [#allocation11], 512, 512, 32
        $region24: #{encoder_layer.1} parent=11 // pred_fallthru
          _
        // Predicated region
        $region25: #{encoder_layer.1} parent=11 // pred_check
          %p313 = pneg %p179
        $region26: #{encoder_layer.1} parent=11 // pred_check_branch
          %315 = sbr.rel (%p313) target = $region28
        $region27: #{encoder_layer.1} parent=11 // pred_region
          %317 = vsyncadd [#allocation14], 0
          %s318 = sshll.u32 %s5, 4
          %s319 = int_to_ptr.hbm [resolvable:$true] %s318
          %s320 = sshll.u32 [#allocation13], 4
          %s321 = int_to_ptr.vmem [resolvable:$true] %s320
          %326 = dma.hbm_to_vmem [thread:$0]  %s319, 131072, %s321, [#allocation14], 2048, 2048, 128
        $region28: #{encoder_layer.1} parent=11 // pred_fallthru
          _
        // Predicated region
        $region29: #{encoder_layer.1} parent=11 // pred_check
          %p327 = pneg %p200
        $region30: #{encoder_layer.1} parent=11 // pred_check_branch
          %329 = sbr.rel (%p327) target = $region32
        $region31: #{encoder_layer.1} parent=11 // pred_region
          %331 = vsyncadd [#allocation14], 0
          %s332 = sshll.u32 %s6, 4
          %s333 = int_to_ptr.hbm [resolvable:$true] %s332
          %s334 = sshll.u32 [#allocation15], 4
          %s335 = int_to_ptr.vmem [resolvable:$true] %s334
          %340 = dma.hbm_to_vmem [thread:$0]  %s333, 131072, %s335, [#allocation14], 512, 512, 32
        $region32: #{encoder_layer.1} parent=11 // pred_fallthru
          _
      $region12: #{encoder_layer.1} parent=5 // pred_fallthru
        _
      %p341 = scmp.lt.s32.totalorder %s29, 2
      // Predicated region
      $region33: #{encoder_layer.1} parent=5 // pred_check
        %p342 = pneg %p341
      $region34: #{encoder_layer.1} parent=5 // pred_check_branch
        %344 = sbr.rel (%p342) target = $region36
      $region35: #{encoder_layer.1} parent=5 // pred_region
        // Predicated region
        $region37: #{encoder_layer.1} parent=35 // pred_check
          %p345 = pneg %p63
        $region38: #{encoder_layer.1} parent=35 // pred_check_branch
          %347 = sbr.rel (%p345) target = $region40
        $region39: #{encoder_layer.1} parent=35 // pred_region
          %s348 = sand.u32 %s53, 1
          %s349 = scalar_lea.sflag [#allocation5], %s348
          %s350 = sand.u32 %s53, 1
          %s351 = smul.addr %s350, 32
          %s352 = scalar_lea.vmem [#allocation4], %s351
          %354 = vsyncadd %s349, 0
          %s355 = smul.addr %s37, 4
          %s356 = smul.addr %s36, 4
          %s357 = sadd.s32 %s355, %s356
          %s358 = smul.addr %s357, 8
          %s359 = scalar_lea.hbm %s0, %s358
          %s361 = sshll.u32 %s359, 4
          %s362 = int_to_ptr.hbm [resolvable:$true] %s361
          %s363 = sshll.u32 %s352, 4
          %s364 = int_to_ptr.vmem [resolvable:$true] %s363
          %366 = dma.hbm_to_vmem [thread:$0]  %s362, 512, %s364, %s349
        $region40: #{encoder_layer.1} parent=35 // pred_fallthru
          _
        // Predicated region
        $region41: #{encoder_layer.1} parent=35 // pred_check
          %p367 = pneg %p89
        $region42: #{encoder_layer.1} parent=35 // pred_check_branch
          %369 = sbr.rel (%p367) target = $region44
        $region43: #{encoder_layer.1} parent=35 // pred_region
          %s370 = sand.u32 %s29, 1
          %s371 = scalar_lea.sflag [#allocation8], %s370
          %s372 = sand.u32 %s79, 1
          %s373 = smul.addr %s372, 32
          %s374 = scalar_lea.vmem [#allocation7], %s373
          %376 = vsyncadd %s371, 0
          %s377 = smul.addr %s36, 4
          %s378 = smul.addr %s377, 8
          %s379 = scalar_lea.hbm %s1, %s378
          %s381 = sshll.u32 %s379, 4
          %s382 = int_to_ptr.hbm [resolvable:$true] %s381
          %s383 = sshll.u32 %s374, 4
          %s384 = int_to_ptr.vmem [resolvable:$true] %s383
          %386 = dma.hbm_to_vmem [thread:$0]  %s382, 512, %s384, %s371
        $region44: #{encoder_layer.1} parent=35 // pred_fallthru
          _
      $region36: #{encoder_layer.1} parent=5 // pred_fallthru
        _
      %p387 = scmp.le.s32.totalorder 1, %s29
      %p388 = scmp.lt.s32.totalorder %s29, 3
      %p389 = pnand %p387, %p388
      %p390 = pneg %p389
      // Predicated region
      $region45: #{encoder_layer.1} parent=5 // pred_check
        _
      $region46: #{encoder_layer.1} parent=5 // pred_check_branch
        %392 = sbr.rel (%p389) target = $region48
      $region47: #{encoder_layer.1} parent=5 // pred_region
        %s393 = ssub.s32 %s29, 1
        %s394 = sand.u32 %s56, 1
        %s395 = scalar_lea.sflag [#allocation5], %s394
        %s396 = sand.u32 %s56, 1
        %s397 = smul.addr %s396, 32
        %s398 = scalar_lea.vmem [#allocation4], %s397
        // Predicated region
        $region49: #{encoder_layer.1} parent=47 // pred_check
          %p399 = pneg %p69
        $region50: #{encoder_layer.1} parent=47 // pred_check_branch
          %401 = sbr.rel (%p399) target = $region52
        $region51: #{encoder_layer.1} parent=47 // pred_region
          %403 = dma.done %s395, 512
        $region52: #{encoder_layer.1} parent=47 // pred_fallthru
          _
        %s404 = sand.u32 %s34, 1
        %s405 = scalar_lea.sflag [#allocation8], %s404
        %s406 = sand.u32 %s82, 1
        %s407 = smul.addr %s406, 32
        %s408 = scalar_lea.vmem [#allocation7], %s407
        // Predicated region
        $region53: #{encoder_layer.1} parent=47 // pred_check
          %p409 = pneg %p95
        $region54: #{encoder_layer.1} parent=47 // pred_check_branch
          %411 = sbr.rel (%p409) target = $region56
        $region55: #{encoder_layer.1} parent=47 // pred_region
          %413 = dma.done %s405, 512
        $region56: #{encoder_layer.1} parent=47 // pred_fallthru
          _
        // Predicated region
        $region57: #{encoder_layer.1} parent=47 // pred_check
          %p414 = pneg %p116
        $region58: #{encoder_layer.1} parent=47 // pred_check_branch
          %416 = sbr.rel (%p414) target = $region60
        $region59: #{encoder_layer.1} parent=47 // pred_region
          %418 = dma.done [#allocation8], 32768
        $region60: #{encoder_layer.1} parent=47 // pred_fallthru
          _
        // Predicated region
        $region61: #{encoder_layer.1} parent=47 // pred_check
          %p419 = pneg %p137
        $region62: #{encoder_layer.1} parent=47 // pred_check_branch
          %421 = sbr.rel (%p419) target = $region64
        $region63: #{encoder_layer.1} parent=47 // pred_region
          %423 = dma.done [#allocation11], 65536
        $region64: #{encoder_layer.1} parent=47 // pred_fallthru
          _
        // Predicated region
        $region65: #{encoder_layer.1} parent=47 // pred_check
          %p424 = pneg %p158
        $region66: #{encoder_layer.1} parent=47 // pred_check_branch
          %426 = sbr.rel (%p424) target = $region68
        $region67: #{encoder_layer.1} parent=47 // pred_region
          %428 = dma.done [#allocation11], 32768
        $region68: #{encoder_layer.1} parent=47 // pred_fallthru
          _
        // Predicated region
        $region69: #{encoder_layer.1} parent=47 // pred_check
          %p429 = pneg %p179
        $region70: #{encoder_layer.1} parent=47 // pred_check_branch
          %431 = sbr.rel (%p429) target = $region72
        $region71: #{encoder_layer.1} parent=47 // pred_region
          %433 = dma.done [#allocation14], 131072
        $region72: #{encoder_layer.1} parent=47 // pred_fallthru
          _
        // Predicated region
        $region73: #{encoder_layer.1} parent=47 // pred_check
          %p434 = pneg %p200
        $region74: #{encoder_layer.1} parent=47 // pred_check_branch
          %436 = sbr.rel (%p434) target = $region76
        $region75: #{encoder_layer.1} parent=47 // pred_region
          %438 = dma.done [#allocation14], 131072
        $region76: #{encoder_layer.1} parent=47 // pred_fallthru
          _
        %s439 = sand.u32 %s56, 1
        %s440 = scalar_lea.sflag [#allocation5], %s439
        %s441 = sand.u32 %s56, 1
        %s442 = smul.addr %s441, 32
        %s443 = scalar_lea.vmem [#allocation4], %s442
        %p444 = pneg %p69
        %p445 = pneg %p66
        %s446 = sand.u32 %s34, 1
        %s447 = scalar_lea.sflag [#allocation8], %s446
        %s448 = sand.u32 %s82, 1
        %s449 = smul.addr %s448, 32
        %s450 = scalar_lea.vmem [#allocation7], %s449
        %p451 = pneg %p95
        %p452 = pneg %p92
        %p453 = pneg %p116
        %p454 = pneg %p113
        %p455 = pneg %p137
        %p456 = pneg %p134
        %p457 = pneg %p158
        %p458 = pneg %p155
        %p459 = pneg %p179
        %p460 = pneg %p176
        %p461 = pneg %p200
        %p462 = pneg %p197
        %p463 = pneg %p228
        %p464 = pneg %p225
        %s465 = sand.u32 %s215, 1
        %s466 = scalar_lea.sflag [#allocation6], %s465
        %s467 = sand.u32 %s215, 1
        %s468 = smul.addr %s467, 32
        %s469 = scalar_lea.vmem [#allocation16], %s468
        %p470 = pneg %p256
        %p471 = pneg %p253
        %s472 = sand.u32 %s243, 1
        %s473 = scalar_lea.sflag [#allocation18], %s472
        %s474 = sand.u32 %s243, 1
        %s475 = smul.addr %s474, 64
        %s476 = scalar_lea.vmem [#allocation17], %s475
        %p477 = scmp.eq.s32.totalorder %s39, 0
        // Predicated region
        $region77: #{encoder_layer.1} parent=47 // pred_check
          %p478 = pneg %p477
        $region78: #{encoder_layer.1} parent=47 // pred_check_branch
          %480 = sbr.rel (%p478) target = $region80
        $region79: #{encoder_layer.1} parent=47 // pred_region
          %v481 = vld [vmem:[%s408] sm:$0xff]
          %v482 = vld [vmem:[%s408 + $0x8] sm:$0xff]
          %v483 = vld [vmem:[%s408 + $0x10] sm:$0xff]
          %v484 = vld [vmem:[%s408 + $0x18] sm:$0xff]
          %v485 = vld [vmem:[#allocation10] sm:$0xff]
          %v486 = vld [vmem:[#allocation10 + $0x8] sm:$0xff]
          %v487 = vld [vmem:[#allocation10 + $0x10] sm:$0xff]
          %v488 = vld [vmem:[#allocation10 + $0x18] sm:$0xff]
          %v489 = vld [vmem:[#allocation10 + $0x20] sm:$0xff]
          %v490 = vld [vmem:[#allocation10 + $0x28] sm:$0xff]
          %v491 = vld [vmem:[#allocation10 + $0x30] sm:$0xff]
          %v492 = vld [vmem:[#allocation10 + $0x38] sm:$0xff]
          %v493 = vld [vmem:[#allocation10 + $0x40] sm:$0xff]
          %v494 = vld [vmem:[#allocation10 + $0x48] sm:$0xff]
          %v495 = vld [vmem:[#allocation10 + $0x50] sm:$0xff]
          %v496 = vld [vmem:[#allocation10 + $0x58] sm:$0xff]
          %v497 = vld [vmem:[#allocation10 + $0x60] sm:$0xff]
          %v498 = vld [vmem:[#allocation10 + $0x68] sm:$0xff]
          %v499 = vld [vmem:[#allocation10 + $0x70] sm:$0xff]
          %v500 = vld [vmem:[#allocation10 + $0x78] sm:$0xff]
          %v501 = vld [vmem:[#allocation10 + $0x80] sm:$0xff]
          %v502 = vld [vmem:[#allocation10 + $0x88] sm:$0xff]
          %v503 = vld [vmem:[#allocation10 + $0x90] sm:$0xff]
          %v504 = vld [vmem:[#allocation10 + $0x98] sm:$0xff]
          %v505 = vld [vmem:[#allocation10 + $0xa0] sm:$0xff]
          %v506 = vld [vmem:[#allocation10 + $0xa8] sm:$0xff]
          %v507 = vld [vmem:[#allocation10 + $0xb0] sm:$0xff]
          %v508 = vld [vmem:[#allocation10 + $0xb8] sm:$0xff]
          %v509 = vld [vmem:[#allocation10 + $0xc0] sm:$0xff]
          %v510 = vld [vmem:[#allocation10 + $0xc8] sm:$0xff]
          %v511 = vld [vmem:[#allocation10 + $0xd0] sm:$0xff]
          %v512 = vld [vmem:[#allocation10 + $0xd8] sm:$0xff]
          %v513 = vld [vmem:[#allocation10 + $0xe0] sm:$0xff]
          %v514 = vld [vmem:[#allocation10 + $0xe8] sm:$0xff]
          %v515 = vld [vmem:[#allocation10 + $0xf0] sm:$0xff]
          %v516 = vld [vmem:[#allocation10 + $0xf8] sm:$0xff]
          %v517 = vld [vmem:[#allocation10 + $0x100] sm:$0xff]
          %v518 = vld [vmem:[#allocation10 + $0x108] sm:$0xff]
          %v519 = vld [vmem:[#allocation10 + $0x110] sm:$0xff]
          %v520 = vld [vmem:[#allocation10 + $0x118] sm:$0xff]
          %v521 = vld [vmem:[#allocation10 + $0x120] sm:$0xff]
          %v522 = vld [vmem:[#allocation10 + $0x128] sm:$0xff]
          %v523 = vld [vmem:[#allocation10 + $0x130] sm:$0xff]
          %v524 = vld [vmem:[#allocation10 + $0x138] sm:$0xff]
          %v525 = vld [vmem:[#allocation10 + $0x140] sm:$0xff]
          %v526 = vld [vmem:[#allocation10 + $0x148] sm:$0xff]
          %v527 = vld [vmem:[#allocation10 + $0x150] sm:$0xff]
          %v528 = vld [vmem:[#allocation10 + $0x158] sm:$0xff]
          %v529 = vld [vmem:[#allocation10 + $0x160] sm:$0xff]
          %v530 = vld [vmem:[#allocation10 + $0x168] sm:$0xff]
          %v531 = vld [vmem:[#allocation10 + $0x170] sm:$0xff]
          %v532 = vld [vmem:[#allocation10 + $0x178] sm:$0xff]
          %v533 = vld [vmem:[#allocation10 + $0x180] sm:$0xff]
          %v534 = vld [vmem:[#allocation10 + $0x188] sm:$0xff]
          %v535 = vld [vmem:[#allocation10 + $0x190] sm:$0xff]
          %v536 = vld [vmem:[#allocation10 + $0x198] sm:$0xff]
          %v537 = vld [vmem:[#allocation10 + $0x1a0] sm:$0xff]
          %v538 = vld [vmem:[#allocation10 + $0x1a8] sm:$0xff]
          %v539 = vld [vmem:[#allocation10 + $0x1b0] sm:$0xff]
          %v540 = vld [vmem:[#allocation10 + $0x1b8] sm:$0xff]
          %v541 = vld [vmem:[#allocation10 + $0x1c0] sm:$0xff]
          %v542 = vld [vmem:[#allocation10 + $0x1c8] sm:$0xff]
          %v543 = vld [vmem:[#allocation10 + $0x1d0] sm:$0xff]
          %v544 = vld [vmem:[#allocation10 + $0x1d8] sm:$0xff]
          %v545 = vld [vmem:[#allocation10 + $0x1e0] sm:$0xff]
          %v546 = vld [vmem:[#allocation10 + $0x1e8] sm:$0xff]
          %v547 = vld [vmem:[#allocation10 + $0x1f0] sm:$0xff]
          %v548 = vld [vmem:[#allocation10 + $0x1f8] sm:$0xff]
          %v549 = vld [vmem:[#allocation10 + $0x200] sm:$0xff]
          %v550 = vld [vmem:[#allocation10 + $0x208] sm:$0xff]
          %v551 = vld [vmem:[#allocation10 + $0x210] sm:$0xff]
          %v552 = vld [vmem:[#allocation10 + $0x218] sm:$0xff]
          %v553 = vld [vmem:[#allocation10 + $0x220] sm:$0xff]
          %v554 = vld [vmem:[#allocation10 + $0x228] sm:$0xff]
          %v555 = vld [vmem:[#allocation10 + $0x230] sm:$0xff]
          %v556 = vld [vmem:[#allocation10 + $0x238] sm:$0xff]
          %v557 = vld [vmem:[#allocation10 + $0x240] sm:$0xff]
          %v558 = vld [vmem:[#allocation10 + $0x248] sm:$0xff]
          %v559 = vld [vmem:[#allocation10 + $0x250] sm:$0xff]
          %v560 = vld [vmem:[#allocation10 + $0x258] sm:$0xff]
          %v561 = vld [vmem:[#allocation10 + $0x260] sm:$0xff]
          %v562 = vld [vmem:[#allocation10 + $0x268] sm:$0xff]
          %v563 = vld [vmem:[#allocation10 + $0x270] sm:$0xff]
          %v564 = vld [vmem:[#allocation10 + $0x278] sm:$0xff]
          %v565 = vld [vmem:[#allocation10 + $0x280] sm:$0xff]
          %v566 = vld [vmem:[#allocation10 + $0x288] sm:$0xff]
          %v567 = vld [vmem:[#allocation10 + $0x290] sm:$0xff]
          %v568 = vld [vmem:[#allocation10 + $0x298] sm:$0xff]
          %v569 = vld [vmem:[#allocation10 + $0x2a0] sm:$0xff]
          %v570 = vld [vmem:[#allocation10 + $0x2a8] sm:$0xff]
          %v571 = vld [vmem:[#allocation10 + $0x2b0] sm:$0xff]
          %v572 = vld [vmem:[#allocation10 + $0x2b8] sm:$0xff]
          %v573 = vld [vmem:[#allocation10 + $0x2c0] sm:$0xff]
          %v574 = vld [vmem:[#allocation10 + $0x2c8] sm:$0xff]
          %v575 = vld [vmem:[#allocation10 + $0x2d0] sm:$0xff]
          %v576 = vld [vmem:[#allocation10 + $0x2d8] sm:$0xff]
          %v577 = vld [vmem:[#allocation10 + $0x2e0] sm:$0xff]
          %v578 = vld [vmem:[#allocation10 + $0x2e8] sm:$0xff]
          %v579 = vld [vmem:[#allocation10 + $0x2f0] sm:$0xff]
          %v580 = vld [vmem:[#allocation10 + $0x2f8] sm:$0xff]
          %v581 = vld [vmem:[#allocation10 + $0x300] sm:$0xff]
          %v582 = vld [vmem:[#allocation10 + $0x308] sm:$0xff]
          %v583 = vld [vmem:[#allocation10 + $0x310] sm:$0xff]
          %v584 = vld [vmem:[#allocation10 + $0x318] sm:$0xff]
          %v585 = vld [vmem:[#allocation10 + $0x320] sm:$0xff]
          %v586 = vld [vmem:[#allocation10 + $0x328] sm:$0xff]
          %v587 = vld [vmem:[#allocation10 + $0x330] sm:$0xff]
          %v588 = vld [vmem:[#allocation10 + $0x338] sm:$0xff]
          %v589 = vld [vmem:[#allocation10 + $0x340] sm:$0xff]
          %v590 = vld [vmem:[#allocation10 + $0x348] sm:$0xff]
          %v591 = vld [vmem:[#allocation10 + $0x350] sm:$0xff]
          %v592 = vld [vmem:[#allocation10 + $0x358] sm:$0xff]
          %v593 = vld [vmem:[#allocation10 + $0x360] sm:$0xff]
          %v594 = vld [vmem:[#allocation10 + $0x368] sm:$0xff]
          %v595 = vld [vmem:[#allocation10 + $0x370] sm:$0xff]
          %v596 = vld [vmem:[#allocation10 + $0x378] sm:$0xff]
          %v597 = vld [vmem:[#allocation10 + $0x380] sm:$0xff]
          %v598 = vld [vmem:[#allocation10 + $0x388] sm:$0xff]
          %v599 = vld [vmem:[#allocation10 + $0x390] sm:$0xff]
          %v600 = vld [vmem:[#allocation10 + $0x398] sm:$0xff]
          %v601 = vld [vmem:[#allocation10 + $0x3a0] sm:$0xff]
          %v602 = vld [vmem:[#allocation10 + $0x3a8] sm:$0xff]
          %v603 = vld [vmem:[#allocation10 + $0x3b0] sm:$0xff]
          %v604 = vld [vmem:[#allocation10 + $0x3b8] sm:$0xff]
          %v605 = vld [vmem:[#allocation10 + $0x3c0] sm:$0xff]
          %v606 = vld [vmem:[#allocation10 + $0x3c8] sm:$0xff]
          %v607 = vld [vmem:[#allocation10 + $0x3d0] sm:$0xff]
          %v608 = vld [vmem:[#allocation10 + $0x3d8] sm:$0xff]
          %v609 = vld [vmem:[#allocation10 + $0x3e0] sm:$0xff]
          %v610 = vld [vmem:[#allocation10 + $0x3e8] sm:$0xff]
          %v611 = vld [vmem:[#allocation10 + $0x3f0] sm:$0xff]
          %v612 = vld [vmem:[#allocation10 + $0x3f8] sm:$0xff]
          %v613 = vld [vmem:[#allocation10 + $0x400] sm:$0xff]
          %v614 = vld [vmem:[#allocation10 + $0x408] sm:$0xff]
          %v615 = vld [vmem:[#allocation10 + $0x410] sm:$0xff]
          %v616 = vld [vmem:[#allocation10 + $0x418] sm:$0xff]
          %v617 = vld [vmem:[#allocation10 + $0x420] sm:$0xff]
          %v618 = vld [vmem:[#allocation10 + $0x428] sm:$0xff]
          %v619 = vld [vmem:[#allocation10 + $0x430] sm:$0xff]
          %v620 = vld [vmem:[#allocation10 + $0x438] sm:$0xff]
          %v621 = vld [vmem:[#allocation10 + $0x440] sm:$0xff]
          %v622 = vld [vmem:[#allocation10 + $0x448] sm:$0xff]
          %v623 = vld [vmem:[#allocation10 + $0x450] sm:$0xff]
          %v624 = vld [vmem:[#allocation10 + $0x458] sm:$0xff]
          %v625 = vld [vmem:[#allocation10 + $0x460] sm:$0xff]
          %v626 = vld [vmem:[#allocation10 + $0x468] sm:$0xff]
          %v627 = vld [vmem:[#allocation10 + $0x470] sm:$0xff]
          %v628 = vld [vmem:[#allocation10 + $0x478] sm:$0xff]
          %v629 = vld [vmem:[#allocation10 + $0x480] sm:$0xff]
          %v630 = vld [vmem:[#allocation10 + $0x488] sm:$0xff]
          %v631 = vld [vmem:[#allocation10 + $0x490] sm:$0xff]
          %v632 = vld [vmem:[#allocation10 + $0x498] sm:$0xff]
          %v633 = vld [vmem:[#allocation10 + $0x4a0] sm:$0xff]
          %v634 = vld [vmem:[#allocation10 + $0x4a8] sm:$0xff]
          %v635 = vld [vmem:[#allocation10 + $0x4b0] sm:$0xff]
          %v636 = vld [vmem:[#allocation10 + $0x4b8] sm:$0xff]
          %v637 = vld [vmem:[#allocation10 + $0x4c0] sm:$0xff]
          %v638 = vld [vmem:[#allocation10 + $0x4c8] sm:$0xff]
          %v639 = vld [vmem:[#allocation10 + $0x4d0] sm:$0xff]
          %v640 = vld [vmem:[#allocation10 + $0x4d8] sm:$0xff]
          %v641 = vld [vmem:[#allocation10 + $0x4e0] sm:$0xff]
          %v642 = vld [vmem:[#allocation10 + $0x4e8] sm:$0xff]
          %v643 = vld [vmem:[#allocation10 + $0x4f0] sm:$0xff]
          %v644 = vld [vmem:[#allocation10 + $0x4f8] sm:$0xff]
          %v645 = vld [vmem:[#allocation10 + $0x500] sm:$0xff]
          %v646 = vld [vmem:[#allocation10 + $0x508] sm:$0xff]
          %v647 = vld [vmem:[#allocation10 + $0x510] sm:$0xff]
          %v648 = vld [vmem:[#allocation10 + $0x518] sm:$0xff]
          %v649 = vld [vmem:[#allocation10 + $0x520] sm:$0xff]
          %v650 = vld [vmem:[#allocation10 + $0x528] sm:$0xff]
          %v651 = vld [vmem:[#allocation10 + $0x530] sm:$0xff]
          %v652 = vld [vmem:[#allocation10 + $0x538] sm:$0xff]
          %v653 = vld [vmem:[#allocation10 + $0x540] sm:$0xff]
          %v654 = vld [vmem:[#allocation10 + $0x548] sm:$0xff]
          %v655 = vld [vmem:[#allocation10 + $0x550] sm:$0xff]
          %v656 = vld [vmem:[#allocation10 + $0x558] sm:$0xff]
          %v657 = vld [vmem:[#allocation10 + $0x560] sm:$0xff]
          %v658 = vld [vmem:[#allocation10 + $0x568] sm:$0xff]
          %v659 = vld [vmem:[#allocation10 + $0x570] sm:$0xff]
          %v660 = vld [vmem:[#allocation10 + $0x578] sm:$0xff]
          %v661 = vld [vmem:[#allocation10 + $0x580] sm:$0xff]
          %v662 = vld [vmem:[#allocation10 + $0x588] sm:$0xff]
          %v663 = vld [vmem:[#allocation10 + $0x590] sm:$0xff]
          %v664 = vld [vmem:[#allocation10 + $0x598] sm:$0xff]
          %v665 = vld [vmem:[#allocation10 + $0x5a0] sm:$0xff]
          %v666 = vld [vmem:[#allocation10 + $0x5a8] sm:$0xff]
          %v667 = vld [vmem:[#allocation10 + $0x5b0] sm:$0xff]
          %v668 = vld [vmem:[#allocation10 + $0x5b8] sm:$0xff]
          %v669 = vld [vmem:[#allocation10 + $0x5c0] sm:$0xff]
          %v670 = vld [vmem:[#allocation10 + $0x5c8] sm:$0xff]
          %v671 = vld [vmem:[#allocation10 + $0x5d0] sm:$0xff]
          %v672 = vld [vmem:[#allocation10 + $0x5d8] sm:$0xff]
          %v673 = vld [vmem:[#allocation10 + $0x5e0] sm:$0xff]
          %v674 = vld [vmem:[#allocation10 + $0x5e8] sm:$0xff]
          %v675 = vld [vmem:[#allocation10 + $0x5f0] sm:$0xff]
          %v676 = vld [vmem:[#allocation10 + $0x5f8] sm:$0xff]
          %v677 = vld [vmem:[#allocation10 + $0x600] sm:$0xff]
          %v678 = vld [vmem:[#allocation10 + $0x608] sm:$0xff]
          %v679 = vld [vmem:[#allocation10 + $0x610] sm:$0xff]
          %v680 = vld [vmem:[#allocation10 + $0x618] sm:$0xff]
          %v681 = vld [vmem:[#allocation10 + $0x620] sm:$0xff]
          %v682 = vld [vmem:[#allocation10 + $0x628] sm:$0xff]
          %v683 = vld [vmem:[#allocation10 + $0x630] sm:$0xff]
          %v684 = vld [vmem:[#allocation10 + $0x638] sm:$0xff]
          %v685 = vld [vmem:[#allocation10 + $0x640] sm:$0xff]
          %v686 = vld [vmem:[#allocation10 + $0x648] sm:$0xff]
          %v687 = vld [vmem:[#allocation10 + $0x650] sm:$0xff]
          %v688 = vld [vmem:[#allocation10 + $0x658] sm:$0xff]
          %v689 = vld [vmem:[#allocation10 + $0x660] sm:$0xff]
          %v690 = vld [vmem:[#allocation10 + $0x668] sm:$0xff]
          %v691 = vld [vmem:[#allocation10 + $0x670] sm:$0xff]
          %v692 = vld [vmem:[#allocation10 + $0x678] sm:$0xff]
          %v693 = vld [vmem:[#allocation10 + $0x680] sm:$0xff]
          %v694 = vld [vmem:[#allocation10 + $0x688] sm:$0xff]
          %v695 = vld [vmem:[#allocation10 + $0x690] sm:$0xff]
          %v696 = vld [vmem:[#allocation10 + $0x698] sm:$0xff]
          %v697 = vld [vmem:[#allocation10 + $0x6a0] sm:$0xff]
          %v698 = vld [vmem:[#allocation10 + $0x6a8] sm:$0xff]
          %v699 = vld [vmem:[#allocation10 + $0x6b0] sm:$0xff]
          %v700 = vld [vmem:[#allocation10 + $0x6b8] sm:$0xff]
          %v701 = vld [vmem:[#allocation10 + $0x6c0] sm:$0xff]
          %v702 = vld [vmem:[#allocation10 + $0x6c8] sm:$0xff]
          %v703 = vld [vmem:[#allocation10 + $0x6d0] sm:$0xff]
          %v704 = vld [vmem:[#allocation10 + $0x6d8] sm:$0xff]
          %v705 = vld [vmem:[#allocation10 + $0x6e0] sm:$0xff]
          %v706 = vld [vmem:[#allocation10 + $0x6e8] sm:$0xff]
          %v707 = vld [vmem:[#allocation10 + $0x6f0] sm:$0xff]
          %v708 = vld [vmem:[#allocation10 + $0x6f8] sm:$0xff]
          %v709 = vld [vmem:[#allocation10 + $0x700] sm:$0xff]
          %v710 = vld [vmem:[#allocation10 + $0x708] sm:$0xff]
          %v711 = vld [vmem:[#allocation10 + $0x710] sm:$0xff]
          %v712 = vld [vmem:[#allocation10 + $0x718] sm:$0xff]
          %v713 = vld [vmem:[#allocation10 + $0x720] sm:$0xff]
          %v714 = vld [vmem:[#allocation10 + $0x728] sm:$0xff]
          %v715 = vld [vmem:[#allocation10 + $0x730] sm:$0xff]
          %v716 = vld [vmem:[#allocation10 + $0x738] sm:$0xff]
          %v717 = vld [vmem:[#allocation10 + $0x740] sm:$0xff]
          %v718 = vld [vmem:[#allocation10 + $0x748] sm:$0xff]
          %v719 = vld [vmem:[#allocation10 + $0x750] sm:$0xff]
          %v720 = vld [vmem:[#allocation10 + $0x758] sm:$0xff]
          %v721 = vld [vmem:[#allocation10 + $0x760] sm:$0xff]
          %v722 = vld [vmem:[#allocation10 + $0x768] sm:$0xff]
          %v723 = vld [vmem:[#allocation10 + $0x770] sm:$0xff]
          %v724 = vld [vmem:[#allocation10 + $0x778] sm:$0xff]
          %v725 = vld [vmem:[#allocation10 + $0x780] sm:$0xff]
          %v726 = vld [vmem:[#allocation10 + $0x788] sm:$0xff]
          %v727 = vld [vmem:[#allocation10 + $0x790] sm:$0xff]
          %v728 = vld [vmem:[#allocation10 + $0x798] sm:$0xff]
          %v729 = vld [vmem:[#allocation10 + $0x7a0] sm:$0xff]
          %v730 = vld [vmem:[#allocation10 + $0x7a8] sm:$0xff]
          %v731 = vld [vmem:[#allocation10 + $0x7b0] sm:$0xff]
          %v732 = vld [vmem:[#allocation10 + $0x7b8] sm:$0xff]
          %v733 = vld [vmem:[#allocation10 + $0x7c0] sm:$0xff]
          %v734 = vld [vmem:[#allocation10 + $0x7c8] sm:$0xff]
          %v735 = vld [vmem:[#allocation10 + $0x7d0] sm:$0xff]
          %v736 = vld [vmem:[#allocation10 + $0x7d8] sm:$0xff]
          %v737 = vld [vmem:[#allocation10 + $0x7e0] sm:$0xff]
          %v738 = vld [vmem:[#allocation10 + $0x7e8] sm:$0xff]
          %v739 = vld [vmem:[#allocation10 + $0x7f0] sm:$0xff]
          %v740 = vld [vmem:[#allocation10 + $0x7f8] sm:$0xff]
          %v741 = vld [vmem:[#allocation10 + $0x800] sm:$0xff]
          %v742 = vld [vmem:[#allocation10 + $0x808] sm:$0xff]
          %v743 = vld [vmem:[#allocation10 + $0x810] sm:$0xff]
          %v744 = vld [vmem:[#allocation10 + $0x818] sm:$0xff]
          %v745 = vld [vmem:[#allocation10 + $0x820] sm:$0xff]
          %v746 = vld [vmem:[#allocation10 + $0x828] sm:$0xff]
          %v747 = vld [vmem:[#allocation10 + $0x830] sm:$0xff]
          %v748 = vld [vmem:[#allocation10 + $0x838] sm:$0xff]
          %v749 = vld [vmem:[#allocation10 + $0x840] sm:$0xff]
          %v750 = vld [vmem:[#allocation10 + $0x848] sm:$0xff]
          %v751 = vld [vmem:[#allocation10 + $0x850] sm:$0xff]
          %v752 = vld [vmem:[#allocation10 + $0x858] sm:$0xff]
          %v753 = vld [vmem:[#allocation10 + $0x860] sm:$0xff]
          %v754 = vld [vmem:[#allocation10 + $0x868] sm:$0xff]
          %v755 = vld [vmem:[#allocation10 + $0x870] sm:$0xff]
          %v756 = vld [vmem:[#allocation10 + $0x878] sm:$0xff]
          %v757 = vld [vmem:[#allocation10 + $0x880] sm:$0xff]
          %v758 = vld [vmem:[#allocation10 + $0x888] sm:$0xff]
          %v759 = vld [vmem:[#allocation10 + $0x890] sm:$0xff]
          %v760 = vld [vmem:[#allocation10 + $0x898] sm:$0xff]
          %v761 = vld [vmem:[#allocation10 + $0x8a0] sm:$0xff]
          %v762 = vld [vmem:[#allocation10 + $0x8a8] sm:$0xff]
          %v763 = vld [vmem:[#allocation10 + $0x8b0] sm:$0xff]
          %v764 = vld [vmem:[#allocation10 + $0x8b8] sm:$0xff]
          %v765 = vld [vmem:[#allocation10 + $0x8c0] sm:$0xff]
          %v766 = vld [vmem:[#allocation10 + $0x8c8] sm:$0xff]
          %v767 = vld [vmem:[#allocation10 + $0x8d0] sm:$0xff]
          %v768 = vld [vmem:[#allocation10 + $0x8d8] sm:$0xff]
          %v769 = vld [vmem:[#allocation10 + $0x8e0] sm:$0xff]
          %v770 = vld [vmem:[#allocation10 + $0x8e8] sm:$0xff]
          %v771 = vld [vmem:[#allocation10 + $0x8f0] sm:$0xff]
          %v772 = vld [vmem:[#allocation10 + $0x8f8] sm:$0xff]
          %v773 = vld [vmem:[#allocation10 + $0x900] sm:$0xff]
          %v774 = vld [vmem:[#allocation10 + $0x908] sm:$0xff]
          %v775 = vld [vmem:[#allocation10 + $0x910] sm:$0xff]
          %v776 = vld [vmem:[#allocation10 + $0x918] sm:$0xff]
          %v777 = vld [vmem:[#allocation10 + $0x920] sm:$0xff]
          %v778 = vld [vmem:[#allocation10 + $0x928] sm:$0xff]
          %v779 = vld [vmem:[#allocation10 + $0x930] sm:$0xff]
          %v780 = vld [vmem:[#allocation10 + $0x938] sm:$0xff]
          %v781 = vld [vmem:[#allocation10 + $0x940] sm:$0xff]
          %v782 = vld [vmem:[#allocation10 + $0x948] sm:$0xff]
          %v783 = vld [vmem:[#allocation10 + $0x950] sm:$0xff]
          %v784 = vld [vmem:[#allocation10 + $0x958] sm:$0xff]
          %v785 = vld [vmem:[#allocation10 + $0x960] sm:$0xff]
          %v786 = vld [vmem:[#allocation10 + $0x968] sm:$0xff]
          %v787 = vld [vmem:[#allocation10 + $0x970] sm:$0xff]
          %v788 = vld [vmem:[#allocation10 + $0x978] sm:$0xff]
          %v789 = vld [vmem:[#allocation10 + $0x980] sm:$0xff]
          %v790 = vld [vmem:[#allocation10 + $0x988] sm:$0xff]
          %v791 = vld [vmem:[#allocation10 + $0x990] sm:$0xff]
          %v792 = vld [vmem:[#allocation10 + $0x998] sm:$0xff]
          %v793 = vld [vmem:[#allocation10 + $0x9a0] sm:$0xff]
          %v794 = vld [vmem:[#allocation10 + $0x9a8] sm:$0xff]
          %v795 = vld [vmem:[#allocation10 + $0x9b0] sm:$0xff]
          %v796 = vld [vmem:[#allocation10 + $0x9b8] sm:$0xff]
          %v797 = vld [vmem:[#allocation10 + $0x9c0] sm:$0xff]
          %v798 = vld [vmem:[#allocation10 + $0x9c8] sm:$0xff]
          %v799 = vld [vmem:[#allocation10 + $0x9d0] sm:$0xff]
          %v800 = vld [vmem:[#allocation10 + $0x9d8] sm:$0xff]
          %v801 = vld [vmem:[#allocation10 + $0x9e0] sm:$0xff]
          %v802 = vld [vmem:[#allocation10 + $0x9e8] sm:$0xff]
          %v803 = vld [vmem:[#allocation10 + $0x9f0] sm:$0xff]
          %v804 = vld [vmem:[#allocation10 + $0x9f8] sm:$0xff]
          %v805 = vld [vmem:[#allocation10 + $0xa00] sm:$0xff]
          %v806 = vld [vmem:[#allocation10 + $0xa08] sm:$0xff]
          %v807 = vld [vmem:[#allocation10 + $0xa10] sm:$0xff]
          %v808 = vld [vmem:[#allocation10 + $0xa18] sm:$0xff]
          %v809 = vld [vmem:[#allocation10 + $0xa20] sm:$0xff]
          %v810 = vld [vmem:[#allocation10 + $0xa28] sm:$0xff]
          %v811 = vld [vmem:[#allocation10 + $0xa30] sm:$0xff]
          %v812 = vld [vmem:[#allocation10 + $0xa38] sm:$0xff]
          %v813 = vld [vmem:[#allocation10 + $0xa40] sm:$0xff]
          %v814 = vld [vmem:[#allocation10 + $0xa48] sm:$0xff]
          %v815 = vld [vmem:[#allocation10 + $0xa50] sm:$0xff]
          %v816 = vld [vmem:[#allocation10 + $0xa58] sm:$0xff]
          %v817 = vld [vmem:[#allocation10 + $0xa60] sm:$0xff]
          %v818 = vld [vmem:[#allocation10 + $0xa68] sm:$0xff]
          %v819 = vld [vmem:[#allocation10 + $0xa70] sm:$0xff]
          %v820 = vld [vmem:[#allocation10 + $0xa78] sm:$0xff]
          %v821 = vld [vmem:[#allocation10 + $0xa80] sm:$0xff]
          %v822 = vld [vmem:[#allocation10 + $0xa88] sm:$0xff]
          %v823 = vld [vmem:[#allocation10 + $0xa90] sm:$0xff]
          %v824 = vld [vmem:[#allocation10 + $0xa98] sm:$0xff]
          %v825 = vld [vmem:[#allocation10 + $0xaa0] sm:$0xff]
          %v826 = vld [vmem:[#allocation10 + $0xaa8] sm:$0xff]
          %v827 = vld [vmem:[#allocation10 + $0xab0] sm:$0xff]
          %v828 = vld [vmem:[#allocation10 + $0xab8] sm:$0xff]
          %v829 = vld [vmem:[#allocation10 + $0xac0] sm:$0xff]
          %v830 = vld [vmem:[#allocation10 + $0xac8] sm:$0xff]
          %v831 = vld [vmem:[#allocation10 + $0xad0] sm:$0xff]
          %v832 = vld [vmem:[#allocation10 + $0xad8] sm:$0xff]
          %v833 = vld [vmem:[#allocation10 + $0xae0] sm:$0xff]
          %v834 = vld [vmem:[#allocation10 + $0xae8] sm:$0xff]
          %v835 = vld [vmem:[#allocation10 + $0xaf0] sm:$0xff]
          %v836 = vld [vmem:[#allocation10 + $0xaf8] sm:$0xff]
          %v837 = vld [vmem:[#allocation10 + $0xb00] sm:$0xff]
          %v838 = vld [vmem:[#allocation10 + $0xb08] sm:$0xff]
          %v839 = vld [vmem:[#allocation10 + $0xb10] sm:$0xff]
          %v840 = vld [vmem:[#allocation10 + $0xb18] sm:$0xff]
          %v841 = vld [vmem:[#allocation10 + $0xb20] sm:$0xff]
          %v842 = vld [vmem:[#allocation10 + $0xb28] sm:$0xff]
          %v843 = vld [vmem:[#allocation10 + $0xb30] sm:$0xff]
          %v844 = vld [vmem:[#allocation10 + $0xb38] sm:$0xff]
          %v845 = vld [vmem:[#allocation10 + $0xb40] sm:$0xff]
          %v846 = vld [vmem:[#allocation10 + $0xb48] sm:$0xff]
          %v847 = vld [vmem:[#allocation10 + $0xb50] sm:$0xff]
          %v848 = vld [vmem:[#allocation10 + $0xb58] sm:$0xff]
          %v849 = vld [vmem:[#allocation10 + $0xb60] sm:$0xff]
          %v850 = vld [vmem:[#allocation10 + $0xb68] sm:$0xff]
          %v851 = vld [vmem:[#allocation10 + $0xb70] sm:$0xff]
          %v852 = vld [vmem:[#allocation10 + $0xb78] sm:$0xff]
          %v853 = vld [vmem:[#allocation10 + $0xb80] sm:$0xff]
          %v854 = vld [vmem:[#allocation10 + $0xb88] sm:$0xff]
          %v855 = vld [vmem:[#allocation10 + $0xb90] sm:$0xff]
          %v856 = vld [vmem:[#allocation10 + $0xb98] sm:$0xff]
          %v857 = vld [vmem:[#allocation10 + $0xba0] sm:$0xff]
          %v858 = vld [vmem:[#allocation10 + $0xba8] sm:$0xff]
          %v859 = vld [vmem:[#allocation10 + $0xbb0] sm:$0xff]
          %v860 = vld [vmem:[#allocation10 + $0xbb8] sm:$0xff]
          %v861 = vld [vmem:[#allocation10 + $0xbc0] sm:$0xff]
          %v862 = vld [vmem:[#allocation10 + $0xbc8] sm:$0xff]
          %v863 = vld [vmem:[#allocation10 + $0xbd0] sm:$0xff]
          %v864 = vld [vmem:[#allocation10 + $0xbd8] sm:$0xff]
          %v865 = vld [vmem:[#allocation10 + $0xbe0] sm:$0xff]
          %v866 = vld [vmem:[#allocation10 + $0xbe8] sm:$0xff]
          %v867 = vld [vmem:[#allocation10 + $0xbf0] sm:$0xff]
          %v868 = vld [vmem:[#allocation10 + $0xbf8] sm:$0xff]
          %v869 = vld [vmem:[#allocation10 + $0xc00] sm:$0xff]
          %v870 = vld [vmem:[#allocation10 + $0xc08] sm:$0xff]
          %v871 = vld [vmem:[#allocation10 + $0xc10] sm:$0xff]
          %v872 = vld [vmem:[#allocation10 + $0xc18] sm:$0xff]
          %v873 = vld [vmem:[#allocation10 + $0xc20] sm:$0xff]
          %v874 = vld [vmem:[#allocation10 + $0xc28] sm:$0xff]
          %v875 = vld [vmem:[#allocation10 + $0xc30] sm:$0xff]
          %v876 = vld [vmem:[#allocation10 + $0xc38] sm:$0xff]
          %v877 = vld [vmem:[#allocation10 + $0xc40] sm:$0xff]
          %v878 = vld [vmem:[#allocation10 + $0xc48] sm:$0xff]
          %v879 = vld [vmem:[#allocation10 + $0xc50] sm:$0xff]
          %v880 = vld [vmem:[#allocation10 + $0xc58] sm:$0xff]
          %v881 = vld [vmem:[#allocation10 + $0xc60] sm:$0xff]
          %v882 = vld [vmem:[#allocation10 + $0xc68] sm:$0xff]
          %v883 = vld [vmem:[#allocation10 + $0xc70] sm:$0xff]
          %v884 = vld [vmem:[#allocation10 + $0xc78] sm:$0xff]
          %v885 = vld [vmem:[#allocation10 + $0xc80] sm:$0xff]
          %v886 = vld [vmem:[#allocation10 + $0xc88] sm:$0xff]
          %v887 = vld [vmem:[#allocation10 + $0xc90] sm:$0xff]
          %v888 = vld [vmem:[#allocation10 + $0xc98] sm:$0xff]
          %v889 = vld [vmem:[#allocation10 + $0xca0] sm:$0xff]
          %v890 = vld [vmem:[#allocation10 + $0xca8] sm:$0xff]
          %v891 = vld [vmem:[#allocation10 + $0xcb0] sm:$0xff]
          %v892 = vld [vmem:[#allocation10 + $0xcb8] sm:$0xff]
          %v893 = vld [vmem:[#allocation10 + $0xcc0] sm:$0xff]
          %v894 = vld [vmem:[#allocation10 + $0xcc8] sm:$0xff]
          %v895 = vld [vmem:[#allocation10 + $0xcd0] sm:$0xff]
          %v896 = vld [vmem:[#allocation10 + $0xcd8] sm:$0xff]
          %v897 = vld [vmem:[#allocation10 + $0xce0] sm:$0xff]
          %v898 = vld [vmem:[#allocation10 + $0xce8] sm:$0xff]
          %v899 = vld [vmem:[#allocation10 + $0xcf0] sm:$0xff]
          %v900 = vld [vmem:[#allocation10 + $0xcf8] sm:$0xff]
          %v901 = vld [vmem:[#allocation10 + $0xd00] sm:$0xff]
          %v902 = vld [vmem:[#allocation10 + $0xd08] sm:$0xff]
          %v903 = vld [vmem:[#allocation10 + $0xd10] sm:$0xff]
          %v904 = vld [vmem:[#allocation10 + $0xd18] sm:$0xff]
          %v905 = vld [vmem:[#allocation10 + $0xd20] sm:$0xff]
          %v906 = vld [vmem:[#allocation10 + $0xd28] sm:$0xff]
          %v907 = vld [vmem:[#allocation10 + $0xd30] sm:$0xff]
          %v908 = vld [vmem:[#allocation10 + $0xd38] sm:$0xff]
          %v909 = vld [vmem:[#allocation10 + $0xd40] sm:$0xff]
          %v910 = vld [vmem:[#allocation10 + $0xd48] sm:$0xff]
          %v911 = vld [vmem:[#allocation10 + $0xd50] sm:$0xff]
          %v912 = vld [vmem:[#allocation10 + $0xd58] sm:$0xff]
          %v913 = vld [vmem:[#allocation10 + $0xd60] sm:$0xff]
          %v914 = vld [vmem:[#allocation10 + $0xd68] sm:$0xff]
          %v915 = vld [vmem:[#allocation10 + $0xd70] sm:$0xff]
          %v916 = vld [vmem:[#allocation10 + $0xd78] sm:$0xff]
          %v917 = vld [vmem:[#allocation10 + $0xd80] sm:$0xff]
          %v918 = vld [vmem:[#allocation10 + $0xd88] sm:$0xff]
          %v919 = vld [vmem:[#allocation10 + $0xd90] sm:$0xff]
          %v920 = vld [vmem:[#allocation10 + $0xd98] sm:$0xff]
          %v921 = vld [vmem:[#allocation10 + $0xda0] sm:$0xff]
          %v922 = vld [vmem:[#allocation10 + $0xda8] sm:$0xff]
          %v923 = vld [vmem:[#allocation10 + $0xdb0] sm:$0xff]
          %v924 = vld [vmem:[#allocation10 + $0xdb8] sm:$0xff]
          %v925 = vld [vmem:[#allocation10 + $0xdc0] sm:$0xff]
          %v926 = vld [vmem:[#allocation10 + $0xdc8] sm:$0xff]
          %v927 = vld [vmem:[#allocation10 + $0xdd0] sm:$0xff]
          %v928 = vld [vmem:[#allocation10 + $0xdd8] sm:$0xff]
          %v929 = vld [vmem:[#allocation10 + $0xde0] sm:$0xff]
          %v930 = vld [vmem:[#allocation10 + $0xde8] sm:$0xff]
          %v931 = vld [vmem:[#allocation10 + $0xdf0] sm:$0xff]
          %v932 = vld [vmem:[#allocation10 + $0xdf8] sm:$0xff]
          %v933 = vld [vmem:[#allocation10 + $0xe00] sm:$0xff]
          %v934 = vld [vmem:[#allocation10 + $0xe08] sm:$0xff]
          %v935 = vld [vmem:[#allocation10 + $0xe10] sm:$0xff]
          %v936 = vld [vmem:[#allocation10 + $0xe18] sm:$0xff]
          %v937 = vld [vmem:[#allocation10 + $0xe20] sm:$0xff]
          %v938 = vld [vmem:[#allocation10 + $0xe28] sm:$0xff]
          %v939 = vld [vmem:[#allocation10 + $0xe30] sm:$0xff]
          %v940 = vld [vmem:[#allocation10 + $0xe38] sm:$0xff]
          %v941 = vld [vmem:[#allocation10 + $0xe40] sm:$0xff]
          %v942 = vld [vmem:[#allocation10 + $0xe48] sm:$0xff]
          %v943 = vld [vmem:[#allocation10 + $0xe50] sm:$0xff]
          %v944 = vld [vmem:[#allocation10 + $0xe58] sm:$0xff]
          %v945 = vld [vmem:[#allocation10 + $0xe60] sm:$0xff]
          %v946 = vld [vmem:[#allocation10 + $0xe68] sm:$0xff]
          %v947 = vld [vmem:[#allocation10 + $0xe70] sm:$0xff]
          %v948 = vld [vmem:[#allocation10 + $0xe78] sm:$0xff]
          %v949 = vld [vmem:[#allocation10 + $0xe80] sm:$0xff]
          %v950 = vld [vmem:[#allocation10 + $0xe88] sm:$0xff]
          %v951 = vld [vmem:[#allocation10 + $0xe90] sm:$0xff]
          %v952 = vld [vmem:[#allocation10 + $0xe98] sm:$0xff]
          %v953 = vld [vmem:[#allocation10 + $0xea0] sm:$0xff]
          %v954 = vld [vmem:[#allocation10 + $0xea8] sm:$0xff]
          %v955 = vld [vmem:[#allocation10 + $0xeb0] sm:$0xff]
          %v956 = vld [vmem:[#allocation10 + $0xeb8] sm:$0xff]
          %v957 = vld [vmem:[#allocation10 + $0xec0] sm:$0xff]
          %v958 = vld [vmem:[#allocation10 + $0xec8] sm:$0xff]
          %v959 = vld [vmem:[#allocation10 + $0xed0] sm:$0xff]
          %v960 = vld [vmem:[#allocation10 + $0xed8] sm:$0xff]
          %v961 = vld [vmem:[#allocation10 + $0xee0] sm:$0xff]
          %v962 = vld [vmem:[#allocation10 + $0xee8] sm:$0xff]
          %v963 = vld [vmem:[#allocation10 + $0xef0] sm:$0xff]
          %v964 = vld [vmem:[#allocation10 + $0xef8] sm:$0xff]
          %v965 = vld [vmem:[#allocation10 + $0xf00] sm:$0xff]
          %v966 = vld [vmem:[#allocation10 + $0xf08] sm:$0xff]
          %v967 = vld [vmem:[#allocation10 + $0xf10] sm:$0xff]
          %v968 = vld [vmem:[#allocation10 + $0xf18] sm:$0xff]
          %v969 = vld [vmem:[#allocation10 + $0xf20] sm:$0xff]
          %v970 = vld [vmem:[#allocation10 + $0xf28] sm:$0xff]
          %v971 = vld [vmem:[#allocation10 + $0xf30] sm:$0xff]
          %v972 = vld [vmem:[#allocation10 + $0xf38] sm:$0xff]
          %v973 = vld [vmem:[#allocation10 + $0xf40] sm:$0xff]
          %v974 = vld [vmem:[#allocation10 + $0xf48] sm:$0xff]
          %v975 = vld [vmem:[#allocation10 + $0xf50] sm:$0xff]
          %v976 = vld [vmem:[#allocation10 + $0xf58] sm:$0xff]
          %v977 = vld [vmem:[#allocation10 + $0xf60] sm:$0xff]
          %v978 = vld [vmem:[#allocation10 + $0xf68] sm:$0xff]
          %v979 = vld [vmem:[#allocation10 + $0xf70] sm:$0xff]
          %v980 = vld [vmem:[#allocation10 + $0xf78] sm:$0xff]
          %v981 = vld [vmem:[#allocation10 + $0xf80] sm:$0xff]
          %v982 = vld [vmem:[#allocation10 + $0xf88] sm:$0xff]
          %v983 = vld [vmem:[#allocation10 + $0xf90] sm:$0xff]
          %v984 = vld [vmem:[#allocation10 + $0xf98] sm:$0xff]
          %v985 = vld [vmem:[#allocation10 + $0xfa0] sm:$0xff]
          %v986 = vld [vmem:[#allocation10 + $0xfa8] sm:$0xff]
          %v987 = vld [vmem:[#allocation10 + $0xfb0] sm:$0xff]
          %v988 = vld [vmem:[#allocation10 + $0xfb8] sm:$0xff]
          %v989 = vld [vmem:[#allocation10 + $0xfc0] sm:$0xff]
          %v990 = vld [vmem:[#allocation10 + $0xfc8] sm:$0xff]
          %v991 = vld [vmem:[#allocation10 + $0xfd0] sm:$0xff]
          %v992 = vld [vmem:[#allocation10 + $0xfd8] sm:$0xff]
          %v993 = vld [vmem:[#allocation10 + $0xfe0] sm:$0xff]
          %v994 = vld [vmem:[#allocation10 + $0xfe8] sm:$0xff]
          %v995 = vld [vmem:[#allocation10 + $0xff0] sm:$0xff]
          %v996 = vld [vmem:[#allocation10 + $0xff8] sm:$0xff]
          %997 = vmatpush.msra.mxu0 %v605
          %998 = vmatpush.msra.mxu0 %v597
          %999 = vmatpush.msra.mxu0 %v589
          %1000 = vmatpush.msra.mxu0 %v581
          %1001 = vmatpush.msra.mxu0 %v573
          %1002 = vmatpush.msra.mxu0 %v565
          %1003 = vmatpush.msra.mxu0 %v557
          %1004 = vmatpush.msra.mxu0 %v549
          %1005 = vmatpush.msra.mxu0 %v541
          %1006 = vmatpush.msra.mxu0 %v533
          %1007 = vmatpush.msra.mxu0 %v525
          %1008 = vmatpush.msra.mxu0 %v517
          %1009 = vmatpush.msra.mxu0 %v509
          %1010 = vmatpush.msra.mxu0 %v501
          %1011 = vmatpush.msra.mxu0 %v493
          %1012 = vmatpush.msra.mxu0 %v485
          %1013 = vmatmul.f32.gmra.mxu0 %v481
          %v1014 = vpop.f32.mrf.mxu0
          %v1015 = vadd.f32 0.0, %v1014
          %1016 = vdwg.mxu0
          %1017 = vmatpush.msra.mxu0 %v733
          %1018 = vmatpush.msra.mxu0 %v725
          %1019 = vmatpush.msra.mxu0 %v717
          %1020 = vmatpush.msra.mxu0 %v709
          %1021 = vmatpush.msra.mxu0 %v701
          %1022 = vmatpush.msra.mxu0 %v693
          %1023 = vmatpush.msra.mxu0 %v685
          %1024 = vmatpush.msra.mxu0 %v677
          %1025 = vmatpush.msra.mxu0 %v669
          %1026 = vmatpush.msra.mxu0 %v661
          %1027 = vmatpush.msra.mxu0 %v653
          %1028 = vmatpush.msra.mxu0 %v645
          %1029 = vmatpush.msra.mxu0 %v637
          %1030 = vmatpush.msra.mxu0 %v629
          %1031 = vmatpush.msra.mxu0 %v621
          %1032 = vmatpush.msra.mxu0 %v613
          %1033 = vmatmul.f32.gmra.mxu0 %v482
          %v1034 = vpop.f32.mrf.mxu0
          %v1035 = vadd.f32 %v1015, %v1034
          %1036 = vdwg.mxu0
          %1037 = vmatpush.msra.mxu0 %v861
          %1038 = vmatpush.msra.mxu0 %v853
          %1039 = vmatpush.msra.mxu0 %v845
          %1040 = vmatpush.msra.mxu0 %v837
          %1041 = vmatpush.msra.mxu0 %v829
          %1042 = vmatpush.msra.mxu0 %v821
          %1043 = vmatpush.msra.mxu0 %v813
          %1044 = vmatpush.msra.mxu0 %v805
          %1045 = vmatpush.msra.mxu0 %v797
          %1046 = vmatpush.msra.mxu0 %v789
          %1047 = vmatpush.msra.mxu0 %v781
          %1048 = vmatpush.msra.mxu0 %v773
          %1049 = vmatpush.msra.mxu0 %v765
          %1050 = vmatpush.msra.mxu0 %v757
          %1051 = vmatpush.msra.mxu0 %v749
          %1052 = vmatpush.msra.mxu0 %v741
          %1053 = vmatmul.f32.gmra.mxu0 %v483
          %v1054 = vpop.f32.mrf.mxu0
          %v1055 = vadd.f32 %v1035, %v1054
          %1056 = vdwg.mxu0
          %1057 = vmatpush.msra.mxu0 %v989
          %1058 = vmatpush.msra.mxu0 %v981
          %1059 = vmatpush.msra.mxu0 %v973
          %1060 = vmatpush.msra.mxu0 %v965
          %1061 = vmatpush.msra.mxu0 %v957
          %1062 = vmatpush.msra.mxu0 %v949
          %1063 = vmatpush.msra.mxu0 %v941
          %1064 = vmatpush.msra.mxu0 %v933
          %1065 = vmatpush.msra.mxu0 %v925
          %1066 = vmatpush.msra.mxu0 %v917
          %1067 = vmatpush.msra.mxu0 %v909
          %1068 = vmatpush.msra.mxu0 %v901
          %1069 = vmatpush.msra.mxu0 %v893
          %1070 = vmatpush.msra.mxu0 %v885
          %1071 = vmatpush.msra.mxu0 %v877
          %1072 = vmatpush.msra.mxu0 %v869
          %1073 = vmatmul.f32.gmra.mxu0 %v484
          %v1074 = vpop.f32.mrf.mxu0
          %v1075 = vadd.f32 %v1055, %v1074
          %1076 = vdwg.mxu0
          %1077 = vmatpush.msra.mxu0 %v606
          %1078 = vmatpush.msra.mxu0 %v598
          %1079 = vmatpush.msra.mxu0 %v590
          %1080 = vmatpush.msra.mxu0 %v582
          %1081 = vmatpush.msra.mxu0 %v574
          %1082 = vmatpush.msra.mxu0 %v566
          %1083 = vmatpush.msra.mxu0 %v558
          %1084 = vmatpush.msra.mxu0 %v550
          %1085 = vmatpush.msra.mxu0 %v542
          %1086 = vmatpush.msra.mxu0 %v534
          %1087 = vmatpush.msra.mxu0 %v526
          %1088 = vmatpush.msra.mxu0 %v518
          %1089 = vmatpush.msra.mxu0 %v510
          %1090 = vmatpush.msra.mxu0 %v502
          %1091 = vmatpush.msra.mxu0 %v494
          %1092 = vmatpush.msra.mxu0 %v486
          %1093 = vmatmul.f32.gmra.mxu0 %v481
          %v1094 = vpop.f32.mrf.mxu0
          %v1095 = vadd.f32 0.0, %v1094
          %1096 = vdwg.mxu0
          %1097 = vmatpush.msra.mxu0 %v734
          %1098 = vmatpush.msra.mxu0 %v726
          %1099 = vmatpush.msra.mxu0 %v718
          %1100 = vmatpush.msra.mxu0 %v710
          %1101 = vmatpush.msra.mxu0 %v702
          %1102 = vmatpush.msra.mxu0 %v694
          %1103 = vmatpush.msra.mxu0 %v686
          %1104 = vmatpush.msra.mxu0 %v678
          %1105 = vmatpush.msra.mxu0 %v670
          %1106 = vmatpush.msra.mxu0 %v662
          %1107 = vmatpush.msra.mxu0 %v654
          %1108 = vmatpush.msra.mxu0 %v646
          %1109 = vmatpush.msra.mxu0 %v638
          %1110 = vmatpush.msra.mxu0 %v630
          %1111 = vmatpush.msra.mxu0 %v622
          %1112 = vmatpush.msra.mxu0 %v614
          %1113 = vmatmul.f32.gmra.mxu0 %v482
          %v1114 = vpop.f32.mrf.mxu0
          %v1115 = vadd.f32 %v1095, %v1114
          %1116 = vdwg.mxu0
          %1117 = vmatpush.msra.mxu0 %v862
          %1118 = vmatpush.msra.mxu0 %v854
          %1119 = vmatpush.msra.mxu0 %v846
          %1120 = vmatpush.msra.mxu0 %v838
          %1121 = vmatpush.msra.mxu0 %v830
          %1122 = vmatpush.msra.mxu0 %v822
          %1123 = vmatpush.msra.mxu0 %v814
          %1124 = vmatpush.msra.mxu0 %v806
          %1125 = vmatpush.msra.mxu0 %v798
          %1126 = vmatpush.msra.mxu0 %v790
          %1127 = vmatpush.msra.mxu0 %v782
          %1128 = vmatpush.msra.mxu0 %v774
          %1129 = vmatpush.msra.mxu0 %v766
          %1130 = vmatpush.msra.mxu0 %v758
          %1131 = vmatpush.msra.mxu0 %v750
          %1132 = vmatpush.msra.mxu0 %v742
          %1133 = vmatmul.f32.gmra.mxu0 %v483
          %v1134 = vpop.f32.mrf.mxu0
          %v1135 = vadd.f32 %v1115, %v1134
          %1136 = vdwg.mxu0
          %1137 = vmatpush.msra.mxu0 %v990
          %1138 = vmatpush.msra.mxu0 %v982
          %1139 = vmatpush.msra.mxu0 %v974
          %1140 = vmatpush.msra.mxu0 %v966
          %1141 = vmatpush.msra.mxu0 %v958
          %1142 = vmatpush.msra.mxu0 %v950
          %1143 = vmatpush.msra.mxu0 %v942
          %1144 = vmatpush.msra.mxu0 %v934
          %1145 = vmatpush.msra.mxu0 %v926
          %1146 = vmatpush.msra.mxu0 %v918
          %1147 = vmatpush.msra.mxu0 %v910
          %1148 = vmatpush.msra.mxu0 %v902
          %1149 = vmatpush.msra.mxu0 %v894
          %1150 = vmatpush.msra.mxu0 %v886
          %1151 = vmatpush.msra.mxu0 %v878
          %1152 = vmatpush.msra.mxu0 %v870
          %1153 = vmatmul.f32.gmra.mxu0 %v484
          %v1154 = vpop.f32.mrf.mxu0
          %v1155 = vadd.f32 %v1135, %v1154
          %1156 = vdwg.mxu0
          %1157 = vmatpush.msra.mxu0 %v607
          %1158 = vmatpush.msra.mxu0 %v599
          %1159 = vmatpush.msra.mxu0 %v591
          %1160 = vmatpush.msra.mxu0 %v583
          %1161 = vmatpush.msra.mxu0 %v575
          %1162 = vmatpush.msra.mxu0 %v567
          %1163 = vmatpush.msra.mxu0 %v559
          %1164 = vmatpush.msra.mxu0 %v551
          %1165 = vmatpush.msra.mxu0 %v543
          %1166 = vmatpush.msra.mxu0 %v535
          %1167 = vmatpush.msra.mxu0 %v527
          %1168 = vmatpush.msra.mxu0 %v519
          %1169 = vmatpush.msra.mxu0 %v511
          %1170 = vmatpush.msra.mxu0 %v503
          %1171 = vmatpush.msra.mxu0 %v495
          %1172 = vmatpush.msra.mxu0 %v487
          %1173 = vmatmul.f32.gmra.mxu0 %v481
          %v1174 = vpop.f32.mrf.mxu0
          %v1175 = vadd.f32 0.0, %v1174
          %1176 = vdwg.mxu0
          %1177 = vmatpush.msra.mxu0 %v735
          %1178 = vmatpush.msra.mxu0 %v727
          %1179 = vmatpush.msra.mxu0 %v719
          %1180 = vmatpush.msra.mxu0 %v711
          %1181 = vmatpush.msra.mxu0 %v703
          %1182 = vmatpush.msra.mxu0 %v695
          %1183 = vmatpush.msra.mxu0 %v687
          %1184 = vmatpush.msra.mxu0 %v679
          %1185 = vmatpush.msra.mxu0 %v671
          %1186 = vmatpush.msra.mxu0 %v663
          %1187 = vmatpush.msra.mxu0 %v655
          %1188 = vmatpush.msra.mxu0 %v647
          %1189 = vmatpush.msra.mxu0 %v639
          %1190 = vmatpush.msra.mxu0 %v631
          %1191 = vmatpush.msra.mxu0 %v623
          %1192 = vmatpush.msra.mxu0 %v615
          %1193 = vmatmul.f32.gmra.mxu0 %v482
          %v1194 = vpop.f32.mrf.mxu0
          %v1195 = vadd.f32 %v1175, %v1194
          %1196 = vdwg.mxu0
          %1197 = vmatpush.msra.mxu0 %v863
          %1198 = vmatpush.msra.mxu0 %v855
          %1199 = vmatpush.msra.mxu0 %v847
          %1200 = vmatpush.msra.mxu0 %v839
          %1201 = vmatpush.msra.mxu0 %v831
          %1202 = vmatpush.msra.mxu0 %v823
          %1203 = vmatpush.msra.mxu0 %v815
          %1204 = vmatpush.msra.mxu0 %v807
          %1205 = vmatpush.msra.mxu0 %v799
          %1206 = vmatpush.msra.mxu0 %v791
          %1207 = vmatpush.msra.mxu0 %v783
          %1208 = vmatpush.msra.mxu0 %v775
          %1209 = vmatpush.msra.mxu0 %v767
          %1210 = vmatpush.msra.mxu0 %v759
          %1211 = vmatpush.msra.mxu0 %v751
          %1212 = vmatpush.msra.mxu0 %v743
          %1213 = vmatmul.f32.gmra.mxu0 %v483
          %v1214 = vpop.f32.mrf.mxu0
          %v1215 = vadd.f32 %v1195, %v1214
          %1216 = vdwg.mxu0
          %1217 = vmatpush.msra.mxu0 %v991
          %1218 = vmatpush.msra.mxu0 %v983
          %1219 = vmatpush.msra.mxu0 %v975
          %1220 = vmatpush.msra.mxu0 %v967
          %1221 = vmatpush.msra.mxu0 %v959
          %1222 = vmatpush.msra.mxu0 %v951
          %1223 = vmatpush.msra.mxu0 %v943
          %1224 = vmatpush.msra.mxu0 %v935
          %1225 = vmatpush.msra.mxu0 %v927
          %1226 = vmatpush.msra.mxu0 %v919
          %1227 = vmatpush.msra.mxu0 %v911
          %1228 = vmatpush.msra.mxu0 %v903
          %1229 = vmatpush.msra.mxu0 %v895
          %1230 = vmatpush.msra.mxu0 %v887
          %1231 = vmatpush.msra.mxu0 %v879
          %1232 = vmatpush.msra.mxu0 %v871
          %1233 = vmatmul.f32.gmra.mxu0 %v484
          %v1234 = vpop.f32.mrf.mxu0
          %v1235 = vadd.f32 %v1215, %v1234
          %1236 = vdwg.mxu0
          %1237 = vmatpush.msra.mxu0 %v608
          %1238 = vmatpush.msra.mxu0 %v600
          %1239 = vmatpush.msra.mxu0 %v592
          %1240 = vmatpush.msra.mxu0 %v584
          %1241 = vmatpush.msra.mxu0 %v576
          %1242 = vmatpush.msra.mxu0 %v568
          %1243 = vmatpush.msra.mxu0 %v560
          %1244 = vmatpush.msra.mxu0 %v552
          %1245 = vmatpush.msra.mxu0 %v544
          %1246 = vmatpush.msra.mxu0 %v536
          %1247 = vmatpush.msra.mxu0 %v528
          %1248 = vmatpush.msra.mxu0 %v520
          %1249 = vmatpush.msra.mxu0 %v512
          %1250 = vmatpush.msra.mxu0 %v504
          %1251 = vmatpush.msra.mxu0 %v496
          %1252 = vmatpush.msra.mxu0 %v488
          %1253 = vmatmul.f32.gmra.mxu0 %v481
          %v1254 = vpop.f32.mrf.mxu0
          %v1255 = vadd.f32 0.0, %v1254
          %1256 = vdwg.mxu0
          %1257 = vmatpush.msra.mxu0 %v736
          %1258 = vmatpush.msra.mxu0 %v728
          %1259 = vmatpush.msra.mxu0 %v720
          %1260 = vmatpush.msra.mxu0 %v712
          %1261 = vmatpush.msra.mxu0 %v704
          %1262 = vmatpush.msra.mxu0 %v696
          %1263 = vmatpush.msra.mxu0 %v688
          %1264 = vmatpush.msra.mxu0 %v680
          %1265 = vmatpush.msra.mxu0 %v672
          %1266 = vmatpush.msra.mxu0 %v664
          %1267 = vmatpush.msra.mxu0 %v656
          %1268 = vmatpush.msra.mxu0 %v648
          %1269 = vmatpush.msra.mxu0 %v640
          %1270 = vmatpush.msra.mxu0 %v632
          %1271 = vmatpush.msra.mxu0 %v624
          %1272 = vmatpush.msra.mxu0 %v616
          %1273 = vmatmul.f32.gmra.mxu0 %v482
          %v1274 = vpop.f32.mrf.mxu0
          %v1275 = vadd.f32 %v1255, %v1274
          %1276 = vdwg.mxu0
          %1277 = vmatpush.msra.mxu0 %v864
          %1278 = vmatpush.msra.mxu0 %v856
          %1279 = vmatpush.msra.mxu0 %v848
          %1280 = vmatpush.msra.mxu0 %v840
          %1281 = vmatpush.msra.mxu0 %v832
          %1282 = vmatpush.msra.mxu0 %v824
          %1283 = vmatpush.msra.mxu0 %v816
          %1284 = vmatpush.msra.mxu0 %v808
          %1285 = vmatpush.msra.mxu0 %v800
          %1286 = vmatpush.msra.mxu0 %v792
          %1287 = vmatpush.msra.mxu0 %v784
          %1288 = vmatpush.msra.mxu0 %v776
          %1289 = vmatpush.msra.mxu0 %v768
          %1290 = vmatpush.msra.mxu0 %v760
          %1291 = vmatpush.msra.mxu0 %v752
          %1292 = vmatpush.msra.mxu0 %v744
          %1293 = vmatmul.f32.gmra.mxu0 %v483
          %v1294 = vpop.f32.mrf.mxu0
          %v1295 = vadd.f32 %v1275, %v1294
          %1296 = vdwg.mxu0
          %1297 = vmatpush.msra.mxu0 %v992
          %1298 = vmatpush.msra.mxu0 %v984
          %1299 = vmatpush.msra.mxu0 %v976
          %1300 = vmatpush.msra.mxu0 %v968
          %1301 = vmatpush.msra.mxu0 %v960
          %1302 = vmatpush.msra.mxu0 %v952
          %1303 = vmatpush.msra.mxu0 %v944
          %1304 = vmatpush.msra.mxu0 %v936
          %1305 = vmatpush.msra.mxu0 %v928
          %1306 = vmatpush.msra.mxu0 %v920
          %1307 = vmatpush.msra.mxu0 %v912
          %1308 = vmatpush.msra.mxu0 %v904
          %1309 = vmatpush.msra.mxu0 %v896
          %1310 = vmatpush.msra.mxu0 %v888
          %1311 = vmatpush.msra.mxu0 %v880
          %1312 = vmatpush.msra.mxu0 %v872
          %1313 = vmatmul.f32.gmra.mxu0 %v484
          %v1314 = vpop.f32.mrf.mxu0
          %v1315 = vadd.f32 %v1295, %v1314
          %1316 = vdwg.mxu0
          %1317 = vmatpush.msra.mxu0 %v609
          %1318 = vmatpush.msra.mxu0 %v601
          %1319 = vmatpush.msra.mxu0 %v593
          %1320 = vmatpush.msra.mxu0 %v585
          %1321 = vmatpush.msra.mxu0 %v577
          %1322 = vmatpush.msra.mxu0 %v569
          %1323 = vmatpush.msra.mxu0 %v561
          %1324 = vmatpush.msra.mxu0 %v553
          %1325 = vmatpush.msra.mxu0 %v545
          %1326 = vmatpush.msra.mxu0 %v537
          %1327 = vmatpush.msra.mxu0 %v529
          %1328 = vmatpush.msra.mxu0 %v521
          %1329 = vmatpush.msra.mxu0 %v513
          %1330 = vmatpush.msra.mxu0 %v505
          %1331 = vmatpush.msra.mxu0 %v497
          %1332 = vmatpush.msra.mxu0 %v489
          %1333 = vmatmul.f32.gmra.mxu0 %v481
          %v1334 = vpop.f32.mrf.mxu0
          %v1335 = vadd.f32 0.0, %v1334
          %1336 = vdwg.mxu0
          %1337 = vmatpush.msra.mxu0 %v737
          %1338 = vmatpush.msra.mxu0 %v729
          %1339 = vmatpush.msra.mxu0 %v721
          %1340 = vmatpush.msra.mxu0 %v713
          %1341 = vmatpush.msra.mxu0 %v705
          %1342 = vmatpush.msra.mxu0 %v697
          %1343 = vmatpush.msra.mxu0 %v689
          %1344 = vmatpush.msra.mxu0 %v681
          %1345 = vmatpush.msra.mxu0 %v673
          %1346 = vmatpush.msra.mxu0 %v665
          %1347 = vmatpush.msra.mxu0 %v657
          %1348 = vmatpush.msra.mxu0 %v649
          %1349 = vmatpush.msra.mxu0 %v641
          %1350 = vmatpush.msra.mxu0 %v633
          %1351 = vmatpush.msra.mxu0 %v625
          %1352 = vmatpush.msra.mxu0 %v617
          %1353 = vmatmul.f32.gmra.mxu0 %v482
          %v1354 = vpop.f32.mrf.mxu0
          %v1355 = vadd.f32 %v1335, %v1354
          %1356 = vdwg.mxu0
          %1357 = vmatpush.msra.mxu0 %v865
          %1358 = vmatpush.msra.mxu0 %v857
          %1359 = vmatpush.msra.mxu0 %v849
          %1360 = vmatpush.msra.mxu0 %v841
          %1361 = vmatpush.msra.mxu0 %v833
          %1362 = vmatpush.msra.mxu0 %v825
          %1363 = vmatpush.msra.mxu0 %v817
          %1364 = vmatpush.msra.mxu0 %v809
          %1365 = vmatpush.msra.mxu0 %v801
          %1366 = vmatpush.msra.mxu0 %v793
          %1367 = vmatpush.msra.mxu0 %v785
          %1368 = vmatpush.msra.mxu0 %v777
          %1369 = vmatpush.msra.mxu0 %v769
          %1370 = vmatpush.msra.mxu0 %v761
          %1371 = vmatpush.msra.mxu0 %v753
          %1372 = vmatpush.msra.mxu0 %v745
          %1373 = vmatmul.f32.gmra.mxu0 %v483
          %v1374 = vpop.f32.mrf.mxu0
          %v1375 = vadd.f32 %v1355, %v1374
          %1376 = vdwg.mxu0
          %1377 = vmatpush.msra.mxu0 %v993
          %1378 = vmatpush.msra.mxu0 %v985
          %1379 = vmatpush.msra.mxu0 %v977
          %1380 = vmatpush.msra.mxu0 %v969
          %1381 = vmatpush.msra.mxu0 %v961
          %1382 = vmatpush.msra.mxu0 %v953
          %1383 = vmatpush.msra.mxu0 %v945
          %1384 = vmatpush.msra.mxu0 %v937
          %1385 = vmatpush.msra.mxu0 %v929
          %1386 = vmatpush.msra.mxu0 %v921
          %1387 = vmatpush.msra.mxu0 %v913
          %1388 = vmatpush.msra.mxu0 %v905
          %1389 = vmatpush.msra.mxu0 %v897
          %1390 = vmatpush.msra.mxu0 %v889
          %1391 = vmatpush.msra.mxu0 %v881
          %1392 = vmatpush.msra.mxu0 %v873
          %1393 = vmatmul.f32.gmra.mxu0 %v484
          %v1394 = vpop.f32.mrf.mxu0
          %v1395 = vadd.f32 %v1375, %v1394
          %1396 = vdwg.mxu0
          %1397 = vmatpush.msra.mxu0 %v610
          %1398 = vmatpush.msra.mxu0 %v602
          %1399 = vmatpush.msra.mxu0 %v594
          %1400 = vmatpush.msra.mxu0 %v586
          %1401 = vmatpush.msra.mxu0 %v578
          %1402 = vmatpush.msra.mxu0 %v570
          %1403 = vmatpush.msra.mxu0 %v562
          %1404 = vmatpush.msra.mxu0 %v554
          %1405 = vmatpush.msra.mxu0 %v546
          %1406 = vmatpush.msra.mxu0 %v538
          %1407 = vmatpush.msra.mxu0 %v530
          %1408 = vmatpush.msra.mxu0 %v522
          %1409 = vmatpush.msra.mxu0 %v514
          %1410 = vmatpush.msra.mxu0 %v506
          %1411 = vmatpush.msra.mxu0 %v498
          %1412 = vmatpush.msra.mxu0 %v490
          %1413 = vmatmul.f32.gmra.mxu0 %v481
          %v1414 = vpop.f32.mrf.mxu0
          %v1415 = vadd.f32 0.0, %v1414
          %1416 = vdwg.mxu0
          %1417 = vmatpush.msra.mxu0 %v738
          %1418 = vmatpush.msra.mxu0 %v730
          %1419 = vmatpush.msra.mxu0 %v722
          %1420 = vmatpush.msra.mxu0 %v714
          %1421 = vmatpush.msra.mxu0 %v706
          %1422 = vmatpush.msra.mxu0 %v698
          %1423 = vmatpush.msra.mxu0 %v690
          %1424 = vmatpush.msra.mxu0 %v682
          %1425 = vmatpush.msra.mxu0 %v674
          %1426 = vmatpush.msra.mxu0 %v666
          %1427 = vmatpush.msra.mxu0 %v658
          %1428 = vmatpush.msra.mxu0 %v650
          %1429 = vmatpush.msra.mxu0 %v642
          %1430 = vmatpush.msra.mxu0 %v634
          %1431 = vmatpush.msra.mxu0 %v626
          %1432 = vmatpush.msra.mxu0 %v618
          %1433 = vmatmul.f32.gmra.mxu0 %v482
          %v1434 = vpop.f32.mrf.mxu0
          %v1435 = vadd.f32 %v1415, %v1434
          %1436 = vdwg.mxu0
          %1437 = vmatpush.msra.mxu0 %v866
          %1438 = vmatpush.msra.mxu0 %v858
          %1439 = vmatpush.msra.mxu0 %v850
          %1440 = vmatpush.msra.mxu0 %v842
          %1441 = vmatpush.msra.mxu0 %v834
          %1442 = vmatpush.msra.mxu0 %v826
          %1443 = vmatpush.msra.mxu0 %v818
          %1444 = vmatpush.msra.mxu0 %v810
          %1445 = vmatpush.msra.mxu0 %v802
          %1446 = vmatpush.msra.mxu0 %v794
          %1447 = vmatpush.msra.mxu0 %v786
          %1448 = vmatpush.msra.mxu0 %v778
          %1449 = vmatpush.msra.mxu0 %v770
          %1450 = vmatpush.msra.mxu0 %v762
          %1451 = vmatpush.msra.mxu0 %v754
          %1452 = vmatpush.msra.mxu0 %v746
          %1453 = vmatmul.f32.gmra.mxu0 %v483
          %v1454 = vpop.f32.mrf.mxu0
          %v1455 = vadd.f32 %v1435, %v1454
          %1456 = vdwg.mxu0
          %1457 = vmatpush.msra.mxu0 %v994
          %1458 = vmatpush.msra.mxu0 %v986
          %1459 = vmatpush.msra.mxu0 %v978
          %1460 = vmatpush.msra.mxu0 %v970
          %1461 = vmatpush.msra.mxu0 %v962
          %1462 = vmatpush.msra.mxu0 %v954
          %1463 = vmatpush.msra.mxu0 %v946
          %1464 = vmatpush.msra.mxu0 %v938
          %1465 = vmatpush.msra.mxu0 %v930
          %1466 = vmatpush.msra.mxu0 %v922
          %1467 = vmatpush.msra.mxu0 %v914
          %1468 = vmatpush.msra.mxu0 %v906
          %1469 = vmatpush.msra.mxu0 %v898
          %1470 = vmatpush.msra.mxu0 %v890
          %1471 = vmatpush.msra.mxu0 %v882
          %1472 = vmatpush.msra.mxu0 %v874
          %1473 = vmatmul.f32.gmra.mxu0 %v484
          %v1474 = vpop.f32.mrf.mxu0
          %v1475 = vadd.f32 %v1455, %v1474
          %1476 = vdwg.mxu0
          %1477 = vmatpush.msra.mxu0 %v611
          %1478 = vmatpush.msra.mxu0 %v603
          %1479 = vmatpush.msra.mxu0 %v595
          %1480 = vmatpush.msra.mxu0 %v587
          %1481 = vmatpush.msra.mxu0 %v579
          %1482 = vmatpush.msra.mxu0 %v571
          %1483 = vmatpush.msra.mxu0 %v563
          %1484 = vmatpush.msra.mxu0 %v555
          %1485 = vmatpush.msra.mxu0 %v547
          %1486 = vmatpush.msra.mxu0 %v539
          %1487 = vmatpush.msra.mxu0 %v531
          %1488 = vmatpush.msra.mxu0 %v523
          %1489 = vmatpush.msra.mxu0 %v515
          %1490 = vmatpush.msra.mxu0 %v507
          %1491 = vmatpush.msra.mxu0 %v499
          %1492 = vmatpush.msra.mxu0 %v491
          %1493 = vmatmul.f32.gmra.mxu0 %v481
          %v1494 = vpop.f32.mrf.mxu0
          %v1495 = vadd.f32 0.0, %v1494
          %1496 = vdwg.mxu0
          %1497 = vmatpush.msra.mxu0 %v739
          %1498 = vmatpush.msra.mxu0 %v731
          %1499 = vmatpush.msra.mxu0 %v723
          %1500 = vmatpush.msra.mxu0 %v715
          %1501 = vmatpush.msra.mxu0 %v707
          %1502 = vmatpush.msra.mxu0 %v699
          %1503 = vmatpush.msra.mxu0 %v691
          %1504 = vmatpush.msra.mxu0 %v683
          %1505 = vmatpush.msra.mxu0 %v675
          %1506 = vmatpush.msra.mxu0 %v667
          %1507 = vmatpush.msra.mxu0 %v659
          %1508 = vmatpush.msra.mxu0 %v651
          %1509 = vmatpush.msra.mxu0 %v643
          %1510 = vmatpush.msra.mxu0 %v635
          %1511 = vmatpush.msra.mxu0 %v627
          %1512 = vmatpush.msra.mxu0 %v619
          %1513 = vmatmul.f32.gmra.mxu0 %v482
          %v1514 = vpop.f32.mrf.mxu0
          %v1515 = vadd.f32 %v1495, %v1514
          %1516 = vdwg.mxu0
          %1517 = vmatpush.msra.mxu0 %v867
          %1518 = vmatpush.msra.mxu0 %v859
          %1519 = vmatpush.msra.mxu0 %v851
          %1520 = vmatpush.msra.mxu0 %v843
          %1521 = vmatpush.msra.mxu0 %v835
          %1522 = vmatpush.msra.mxu0 %v827
          %1523 = vmatpush.msra.mxu0 %v819
          %1524 = vmatpush.msra.mxu0 %v811
          %1525 = vmatpush.msra.mxu0 %v803
          %1526 = vmatpush.msra.mxu0 %v795
          %1527 = vmatpush.msra.mxu0 %v787
          %1528 = vmatpush.msra.mxu0 %v779
          %1529 = vmatpush.msra.mxu0 %v771
          %1530 = vmatpush.msra.mxu0 %v763
          %1531 = vmatpush.msra.mxu0 %v755
          %1532 = vmatpush.msra.mxu0 %v747
          %1533 = vmatmul.f32.gmra.mxu0 %v483
          %v1534 = vpop.f32.mrf.mxu0
          %v1535 = vadd.f32 %v1515, %v1534
          %1536 = vdwg.mxu0
          %1537 = vmatpush.msra.mxu0 %v995
          %1538 = vmatpush.msra.mxu0 %v987
          %1539 = vmatpush.msra.mxu0 %v979
          %1540 = vmatpush.msra.mxu0 %v971
          %1541 = vmatpush.msra.mxu0 %v963
          %1542 = vmatpush.msra.mxu0 %v955
          %1543 = vmatpush.msra.mxu0 %v947
          %1544 = vmatpush.msra.mxu0 %v939
          %1545 = vmatpush.msra.mxu0 %v931
          %1546 = vmatpush.msra.mxu0 %v923
          %1547 = vmatpush.msra.mxu0 %v915
          %1548 = vmatpush.msra.mxu0 %v907
          %1549 = vmatpush.msra.mxu0 %v899
          %1550 = vmatpush.msra.mxu0 %v891
          %1551 = vmatpush.msra.mxu0 %v883
          %1552 = vmatpush.msra.mxu0 %v875
          %1553 = vmatmul.f32.gmra.mxu0 %v484
          %v1554 = vpop.f32.mrf.mxu0
          %v1555 = vadd.f32 %v1535, %v1554
          %1556 = vdwg.mxu0
          %1557 = vmatpush.msra.mxu0 %v612
          %1558 = vmatpush.msra.mxu0 %v604
          %1559 = vmatpush.msra.mxu0 %v596
          %1560 = vmatpush.msra.mxu0 %v588
          %1561 = vmatpush.msra.mxu0 %v580
          %1562 = vmatpush.msra.mxu0 %v572
          %1563 = vmatpush.msra.mxu0 %v564
          %1564 = vmatpush.msra.mxu0 %v556
          %1565 = vmatpush.msra.mxu0 %v548
          %1566 = vmatpush.msra.mxu0 %v540
          %1567 = vmatpush.msra.mxu0 %v532
          %1568 = vmatpush.msra.mxu0 %v524
          %1569 = vmatpush.msra.mxu0 %v516
          %1570 = vmatpush.msra.mxu0 %v508
          %1571 = vmatpush.msra.mxu0 %v500
          %1572 = vmatpush.msra.mxu0 %v492
          %1573 = vmatmul.f32.gmra.mxu0 %v481
          %v1574 = vpop.f32.mrf.mxu0
          %v1575 = vadd.f32 0.0, %v1574
          %1576 = vdwg.mxu0
          %1577 = vmatpush.msra.mxu0 %v740
          %1578 = vmatpush.msra.mxu0 %v732
          %1579 = vmatpush.msra.mxu0 %v724
          %1580 = vmatpush.msra.mxu0 %v716
          %1581 = vmatpush.msra.mxu0 %v708
          %1582 = vmatpush.msra.mxu0 %v700
          %1583 = vmatpush.msra.mxu0 %v692
          %1584 = vmatpush.msra.mxu0 %v684
          %1585 = vmatpush.msra.mxu0 %v676
          %1586 = vmatpush.msra.mxu0 %v668
          %1587 = vmatpush.msra.mxu0 %v660
          %1588 = vmatpush.msra.mxu0 %v652
          %1589 = vmatpush.msra.mxu0 %v644
          %1590 = vmatpush.msra.mxu0 %v636
          %1591 = vmatpush.msra.mxu0 %v628
          %1592 = vmatpush.msra.mxu0 %v620
          %1593 = vmatmul.f32.gmra.mxu0 %v482
          %v1594 = vpop.f32.mrf.mxu0
          %v1595 = vadd.f32 %v1575, %v1594
          %1596 = vdwg.mxu0
          %1597 = vmatpush.msra.mxu0 %v868
          %1598 = vmatpush.msra.mxu0 %v860
          %1599 = vmatpush.msra.mxu0 %v852
          %1600 = vmatpush.msra.mxu0 %v844
          %1601 = vmatpush.msra.mxu0 %v836
          %1602 = vmatpush.msra.mxu0 %v828
          %1603 = vmatpush.msra.mxu0 %v820
          %1604 = vmatpush.msra.mxu0 %v812
          %1605 = vmatpush.msra.mxu0 %v804
          %1606 = vmatpush.msra.mxu0 %v796
          %1607 = vmatpush.msra.mxu0 %v788
          %1608 = vmatpush.msra.mxu0 %v780
          %1609 = vmatpush.msra.mxu0 %v772
          %1610 = vmatpush.msra.mxu0 %v764
          %1611 = vmatpush.msra.mxu0 %v756
          %1612 = vmatpush.msra.mxu0 %v748
          %1613 = vmatmul.f32.gmra.mxu0 %v483
          %v1614 = vpop.f32.mrf.mxu0
          %v1615 = vadd.f32 %v1595, %v1614
          %1616 = vdwg.mxu0
          %1617 = vmatpush.msra.mxu0 %v996
          %1618 = vmatpush.msra.mxu0 %v988
          %1619 = vmatpush.msra.mxu0 %v980
          %1620 = vmatpush.msra.mxu0 %v972
          %1621 = vmatpush.msra.mxu0 %v964
          %1622 = vmatpush.msra.mxu0 %v956
          %1623 = vmatpush.msra.mxu0 %v948
          %1624 = vmatpush.msra.mxu0 %v940
          %1625 = vmatpush.msra.mxu0 %v932
          %1626 = vmatpush.msra.mxu0 %v924
          %1627 = vmatpush.msra.mxu0 %v916
          %1628 = vmatpush.msra.mxu0 %v908
          %1629 = vmatpush.msra.mxu0 %v900
          %1630 = vmatpush.msra.mxu0 %v892
          %1631 = vmatpush.msra.mxu0 %v884
          %1632 = vmatpush.msra.mxu0 %v876
          %1633 = vmatmul.f32.gmra.mxu0 %v484
          %v1634 = vpop.f32.mrf.mxu0
          %v1635 = vadd.f32 %v1615, %v1634
          %1636 = vdwg.mxu0
          %1637 = vst [vmem:[#allocation2] sm:$0xff] %v1075
          %1638 = vst [vmem:[#allocation2 + $0x8] sm:$0xff] %v1155
          %1639 = vst [vmem:[#allocation2 + $0x10] sm:$0xff] %v1235
          %1640 = vst [vmem:[#allocation2 + $0x18] sm:$0xff] %v1315
          %1641 = vst [vmem:[#allocation2 + $0x20] sm:$0xff] %v1395
          %1642 = vst [vmem:[#allocation2 + $0x28] sm:$0xff] %v1475
          %1643 = vst [vmem:[#allocation2 + $0x30] sm:$0xff] %v1555
          %1644 = vst [vmem:[#allocation2 + $0x38] sm:$0xff] %v1635
        $region80: #{encoder_layer.1} parent=47 // pred_fallthru
          _
        %v1645 = vld [vmem:[%s398] sm:$0xff]
        %v1646 = vld [vmem:[%s398 + $0x8] sm:$0xff]
        %v1647 = vld [vmem:[%s398 + $0x10] sm:$0xff]
        %v1648 = vld [vmem:[%s398 + $0x18] sm:$0xff]
        %v1649 = vld [vmem:[#allocation9] sm:$0xff]
        %v1650 = vld [vmem:[#allocation9 + $0x8] sm:$0xff]
        %v1651 = vld [vmem:[#allocation9 + $0x10] sm:$0xff]
        %v1652 = vld [vmem:[#allocation9 + $0x18] sm:$0xff]
        %v1653 = vld [vmem:[#allocation9 + $0x20] sm:$0xff]
        %v1654 = vld [vmem:[#allocation9 + $0x28] sm:$0xff]
        %v1655 = vld [vmem:[#allocation9 + $0x30] sm:$0xff]
        %v1656 = vld [vmem:[#allocation9 + $0x38] sm:$0xff]
        %v1657 = vld [vmem:[#allocation9 + $0x40] sm:$0xff]
        %v1658 = vld [vmem:[#allocation9 + $0x48] sm:$0xff]
        %v1659 = vld [vmem:[#allocation9 + $0x50] sm:$0xff]
        %v1660 = vld [vmem:[#allocation9 + $0x58] sm:$0xff]
        %v1661 = vld [vmem:[#allocation9 + $0x60] sm:$0xff]
        %v1662 = vld [vmem:[#allocation9 + $0x68] sm:$0xff]
        %v1663 = vld [vmem:[#allocation9 + $0x70] sm:$0xff]
        %v1664 = vld [vmem:[#allocation9 + $0x78] sm:$0xff]
        %v1665 = vld [vmem:[#allocation9 + $0x80] sm:$0xff]
        %v1666 = vld [vmem:[#allocation9 + $0x88] sm:$0xff]
        %v1667 = vld [vmem:[#allocation9 + $0x90] sm:$0xff]
        %v1668 = vld [vmem:[#allocation9 + $0x98] sm:$0xff]
        %v1669 = vld [vmem:[#allocation9 + $0xa0] sm:$0xff]
        %v1670 = vld [vmem:[#allocation9 + $0xa8] sm:$0xff]
        %v1671 = vld [vmem:[#allocation9 + $0xb0] sm:$0xff]
        %v1672 = vld [vmem:[#allocation9 + $0xb8] sm:$0xff]
        %v1673 = vld [vmem:[#allocation9 + $0xc0] sm:$0xff]
        %v1674 = vld [vmem:[#allocation9 + $0xc8] sm:$0xff]
        %v1675 = vld [vmem:[#allocation9 + $0xd0] sm:$0xff]
        %v1676 = vld [vmem:[#allocation9 + $0xd8] sm:$0xff]
        %v1677 = vld [vmem:[#allocation9 + $0xe0] sm:$0xff]
        %v1678 = vld [vmem:[#allocation9 + $0xe8] sm:$0xff]
        %v1679 = vld [vmem:[#allocation9 + $0xf0] sm:$0xff]
        %v1680 = vld [vmem:[#allocation9 + $0xf8] sm:$0xff]
        %v1681 = vld [vmem:[#allocation9 + $0x100] sm:$0xff]
        %v1682 = vld [vmem:[#allocation9 + $0x108] sm:$0xff]
        %v1683 = vld [vmem:[#allocation9 + $0x110] sm:$0xff]
        %v1684 = vld [vmem:[#allocation9 + $0x118] sm:$0xff]
        %v1685 = vld [vmem:[#allocation9 + $0x120] sm:$0xff]
        %v1686 = vld [vmem:[#allocation9 + $0x128] sm:$0xff]
        %v1687 = vld [vmem:[#allocation9 + $0x130] sm:$0xff]
        %v1688 = vld [vmem:[#allocation9 + $0x138] sm:$0xff]
        %v1689 = vld [vmem:[#allocation9 + $0x140] sm:$0xff]
        %v1690 = vld [vmem:[#allocation9 + $0x148] sm:$0xff]
        %v1691 = vld [vmem:[#allocation9 + $0x150] sm:$0xff]
        %v1692 = vld [vmem:[#allocation9 + $0x158] sm:$0xff]
        %v1693 = vld [vmem:[#allocation9 + $0x160] sm:$0xff]
        %v1694 = vld [vmem:[#allocation9 + $0x168] sm:$0xff]
        %v1695 = vld [vmem:[#allocation9 + $0x170] sm:$0xff]
        %v1696 = vld [vmem:[#allocation9 + $0x178] sm:$0xff]
        %v1697 = vld [vmem:[#allocation9 + $0x180] sm:$0xff]
        %v1698 = vld [vmem:[#allocation9 + $0x188] sm:$0xff]
        %v1699 = vld [vmem:[#allocation9 + $0x190] sm:$0xff]
        %v1700 = vld [vmem:[#allocation9 + $0x198] sm:$0xff]
        %v1701 = vld [vmem:[#allocation9 + $0x1a0] sm:$0xff]
        %v1702 = vld [vmem:[#allocation9 + $0x1a8] sm:$0xff]
        %v1703 = vld [vmem:[#allocation9 + $0x1b0] sm:$0xff]
        %v1704 = vld [vmem:[#allocation9 + $0x1b8] sm:$0xff]
        %v1705 = vld [vmem:[#allocation9 + $0x1c0] sm:$0xff]
        %v1706 = vld [vmem:[#allocation9 + $0x1c8] sm:$0xff]
        %v1707 = vld [vmem:[#allocation9 + $0x1d0] sm:$0xff]
        %v1708 = vld [vmem:[#allocation9 + $0x1d8] sm:$0xff]
        %v1709 = vld [vmem:[#allocation9 + $0x1e0] sm:$0xff]
        %v1710 = vld [vmem:[#allocation9 + $0x1e8] sm:$0xff]
        %v1711 = vld [vmem:[#allocation9 + $0x1f0] sm:$0xff]
        %v1712 = vld [vmem:[#allocation9 + $0x1f8] sm:$0xff]
        %v1713 = vld [vmem:[#allocation9 + $0x200] sm:$0xff]
        %v1714 = vld [vmem:[#allocation9 + $0x208] sm:$0xff]
        %v1715 = vld [vmem:[#allocation9 + $0x210] sm:$0xff]
        %v1716 = vld [vmem:[#allocation9 + $0x218] sm:$0xff]
        %v1717 = vld [vmem:[#allocation9 + $0x220] sm:$0xff]
        %v1718 = vld [vmem:[#allocation9 + $0x228] sm:$0xff]
        %v1719 = vld [vmem:[#allocation9 + $0x230] sm:$0xff]
        %v1720 = vld [vmem:[#allocation9 + $0x238] sm:$0xff]
        %v1721 = vld [vmem:[#allocation9 + $0x240] sm:$0xff]
        %v1722 = vld [vmem:[#allocation9 + $0x248] sm:$0xff]
        %v1723 = vld [vmem:[#allocation9 + $0x250] sm:$0xff]
        %v1724 = vld [vmem:[#allocation9 + $0x258] sm:$0xff]
        %v1725 = vld [vmem:[#allocation9 + $0x260] sm:$0xff]
        %v1726 = vld [vmem:[#allocation9 + $0x268] sm:$0xff]
        %v1727 = vld [vmem:[#allocation9 + $0x270] sm:$0xff]
        %v1728 = vld [vmem:[#allocation9 + $0x278] sm:$0xff]
        %v1729 = vld [vmem:[#allocation9 + $0x280] sm:$0xff]
        %v1730 = vld [vmem:[#allocation9 + $0x288] sm:$0xff]
        %v1731 = vld [vmem:[#allocation9 + $0x290] sm:$0xff]
        %v1732 = vld [vmem:[#allocation9 + $0x298] sm:$0xff]
        %v1733 = vld [vmem:[#allocation9 + $0x2a0] sm:$0xff]
        %v1734 = vld [vmem:[#allocation9 + $0x2a8] sm:$0xff]
        %v1735 = vld [vmem:[#allocation9 + $0x2b0] sm:$0xff]
        %v1736 = vld [vmem:[#allocation9 + $0x2b8] sm:$0xff]
        %v1737 = vld [vmem:[#allocation9 + $0x2c0] sm:$0xff]
        %v1738 = vld [vmem:[#allocation9 + $0x2c8] sm:$0xff]
        %v1739 = vld [vmem:[#allocation9 + $0x2d0] sm:$0xff]
        %v1740 = vld [vmem:[#allocation9 + $0x2d8] sm:$0xff]
        %v1741 = vld [vmem:[#allocation9 + $0x2e0] sm:$0xff]
        %v1742 = vld [vmem:[#allocation9 + $0x2e8] sm:$0xff]
        %v1743 = vld [vmem:[#allocation9 + $0x2f0] sm:$0xff]
        %v1744 = vld [vmem:[#allocation9 + $0x2f8] sm:$0xff]
        %v1745 = vld [vmem:[#allocation9 + $0x300] sm:$0xff]
        %v1746 = vld [vmem:[#allocation9 + $0x308] sm:$0xff]
        %v1747 = vld [vmem:[#allocation9 + $0x310] sm:$0xff]
        %v1748 = vld [vmem:[#allocation9 + $0x318] sm:$0xff]
        %v1749 = vld [vmem:[#allocation9 + $0x320] sm:$0xff]
        %v1750 = vld [vmem:[#allocation9 + $0x328] sm:$0xff]
        %v1751 = vld [vmem:[#allocation9 + $0x330] sm:$0xff]
        %v1752 = vld [vmem:[#allocation9 + $0x338] sm:$0xff]
        %v1753 = vld [vmem:[#allocation9 + $0x340] sm:$0xff]
        %v1754 = vld [vmem:[#allocation9 + $0x348] sm:$0xff]
        %v1755 = vld [vmem:[#allocation9 + $0x350] sm:$0xff]
        %v1756 = vld [vmem:[#allocation9 + $0x358] sm:$0xff]
        %v1757 = vld [vmem:[#allocation9 + $0x360] sm:$0xff]
        %v1758 = vld [vmem:[#allocation9 + $0x368] sm:$0xff]
        %v1759 = vld [vmem:[#allocation9 + $0x370] sm:$0xff]
        %v1760 = vld [vmem:[#allocation9 + $0x378] sm:$0xff]
        %v1761 = vld [vmem:[#allocation9 + $0x380] sm:$0xff]
        %v1762 = vld [vmem:[#allocation9 + $0x388] sm:$0xff]
        %v1763 = vld [vmem:[#allocation9 + $0x390] sm:$0xff]
        %v1764 = vld [vmem:[#allocation9 + $0x398] sm:$0xff]
        %v1765 = vld [vmem:[#allocation9 + $0x3a0] sm:$0xff]
        %v1766 = vld [vmem:[#allocation9 + $0x3a8] sm:$0xff]
        %v1767 = vld [vmem:[#allocation9 + $0x3b0] sm:$0xff]
        %v1768 = vld [vmem:[#allocation9 + $0x3b8] sm:$0xff]
        %v1769 = vld [vmem:[#allocation9 + $0x3c0] sm:$0xff]
        %v1770 = vld [vmem:[#allocation9 + $0x3c8] sm:$0xff]
        %v1771 = vld [vmem:[#allocation9 + $0x3d0] sm:$0xff]
        %v1772 = vld [vmem:[#allocation9 + $0x3d8] sm:$0xff]
        %v1773 = vld [vmem:[#allocation9 + $0x3e0] sm:$0xff]
        %v1774 = vld [vmem:[#allocation9 + $0x3e8] sm:$0xff]
        %v1775 = vld [vmem:[#allocation9 + $0x3f0] sm:$0xff]
        %v1776 = vld [vmem:[#allocation9 + $0x3f8] sm:$0xff]
        %v1777 = vld [vmem:[#allocation9 + $0x400] sm:$0xff]
        %v1778 = vld [vmem:[#allocation9 + $0x408] sm:$0xff]
        %v1779 = vld [vmem:[#allocation9 + $0x410] sm:$0xff]
        %v1780 = vld [vmem:[#allocation9 + $0x418] sm:$0xff]
        %v1781 = vld [vmem:[#allocation9 + $0x420] sm:$0xff]
        %v1782 = vld [vmem:[#allocation9 + $0x428] sm:$0xff]
        %v1783 = vld [vmem:[#allocation9 + $0x430] sm:$0xff]
        %v1784 = vld [vmem:[#allocation9 + $0x438] sm:$0xff]
        %v1785 = vld [vmem:[#allocation9 + $0x440] sm:$0xff]
        %v1786 = vld [vmem:[#allocation9 + $0x448] sm:$0xff]
        %v1787 = vld [vmem:[#allocation9 + $0x450] sm:$0xff]
        %v1788 = vld [vmem:[#allocation9 + $0x458] sm:$0xff]
        %v1789 = vld [vmem:[#allocation9 + $0x460] sm:$0xff]
        %v1790 = vld [vmem:[#allocation9 + $0x468] sm:$0xff]
        %v1791 = vld [vmem:[#allocation9 + $0x470] sm:$0xff]
        %v1792 = vld [vmem:[#allocation9 + $0x478] sm:$0xff]
        %v1793 = vld [vmem:[#allocation9 + $0x480] sm:$0xff]
        %v1794 = vld [vmem:[#allocation9 + $0x488] sm:$0xff]
        %v1795 = vld [vmem:[#allocation9 + $0x490] sm:$0xff]
        %v1796 = vld [vmem:[#allocation9 + $0x498] sm:$0xff]
        %v1797 = vld [vmem:[#allocation9 + $0x4a0] sm:$0xff]
        %v1798 = vld [vmem:[#allocation9 + $0x4a8] sm:$0xff]
        %v1799 = vld [vmem:[#allocation9 + $0x4b0] sm:$0xff]
        %v1800 = vld [vmem:[#allocation9 + $0x4b8] sm:$0xff]
        %v1801 = vld [vmem:[#allocation9 + $0x4c0] sm:$0xff]
        %v1802 = vld [vmem:[#allocation9 + $0x4c8] sm:$0xff]
        %v1803 = vld [vmem:[#allocation9 + $0x4d0] sm:$0xff]
        %v1804 = vld [vmem:[#allocation9 + $0x4d8] sm:$0xff]
        %v1805 = vld [vmem:[#allocation9 + $0x4e0] sm:$0xff]
        %v1806 = vld [vmem:[#allocation9 + $0x4e8] sm:$0xff]
        %v1807 = vld [vmem:[#allocation9 + $0x4f0] sm:$0xff]
        %v1808 = vld [vmem:[#allocation9 + $0x4f8] sm:$0xff]
        %v1809 = vld [vmem:[#allocation9 + $0x500] sm:$0xff]
        %v1810 = vld [vmem:[#allocation9 + $0x508] sm:$0xff]
        %v1811 = vld [vmem:[#allocation9 + $0x510] sm:$0xff]
        %v1812 = vld [vmem:[#allocation9 + $0x518] sm:$0xff]
        %v1813 = vld [vmem:[#allocation9 + $0x520] sm:$0xff]
        %v1814 = vld [vmem:[#allocation9 + $0x528] sm:$0xff]
        %v1815 = vld [vmem:[#allocation9 + $0x530] sm:$0xff]
        %v1816 = vld [vmem:[#allocation9 + $0x538] sm:$0xff]
        %v1817 = vld [vmem:[#allocation9 + $0x540] sm:$0xff]
        %v1818 = vld [vmem:[#allocation9 + $0x548] sm:$0xff]
        %v1819 = vld [vmem:[#allocation9 + $0x550] sm:$0xff]
        %v1820 = vld [vmem:[#allocation9 + $0x558] sm:$0xff]
        %v1821 = vld [vmem:[#allocation9 + $0x560] sm:$0xff]
        %v1822 = vld [vmem:[#allocation9 + $0x568] sm:$0xff]
        %v1823 = vld [vmem:[#allocation9 + $0x570] sm:$0xff]
        %v1824 = vld [vmem:[#allocation9 + $0x578] sm:$0xff]
        %v1825 = vld [vmem:[#allocation9 + $0x580] sm:$0xff]
        %v1826 = vld [vmem:[#allocation9 + $0x588] sm:$0xff]
        %v1827 = vld [vmem:[#allocation9 + $0x590] sm:$0xff]
        %v1828 = vld [vmem:[#allocation9 + $0x598] sm:$0xff]
        %v1829 = vld [vmem:[#allocation9 + $0x5a0] sm:$0xff]
        %v1830 = vld [vmem:[#allocation9 + $0x5a8] sm:$0xff]
        %v1831 = vld [vmem:[#allocation9 + $0x5b0] sm:$0xff]
        %v1832 = vld [vmem:[#allocation9 + $0x5b8] sm:$0xff]
        %v1833 = vld [vmem:[#allocation9 + $0x5c0] sm:$0xff]
        %v1834 = vld [vmem:[#allocation9 + $0x5c8] sm:$0xff]
        %v1835 = vld [vmem:[#allocation9 + $0x5d0] sm:$0xff]
        %v1836 = vld [vmem:[#allocation9 + $0x5d8] sm:$0xff]
        %v1837 = vld [vmem:[#allocation9 + $0x5e0] sm:$0xff]
        %v1838 = vld [vmem:[#allocation9 + $0x5e8] sm:$0xff]
        %v1839 = vld [vmem:[#allocation9 + $0x5f0] sm:$0xff]
        %v1840 = vld [vmem:[#allocation9 + $0x5f8] sm:$0xff]
        %v1841 = vld [vmem:[#allocation9 + $0x600] sm:$0xff]
        %v1842 = vld [vmem:[#allocation9 + $0x608] sm:$0xff]
        %v1843 = vld [vmem:[#allocation9 + $0x610] sm:$0xff]
        %v1844 = vld [vmem:[#allocation9 + $0x618] sm:$0xff]
        %v1845 = vld [vmem:[#allocation9 + $0x620] sm:$0xff]
        %v1846 = vld [vmem:[#allocation9 + $0x628] sm:$0xff]
        %v1847 = vld [vmem:[#allocation9 + $0x630] sm:$0xff]
        %v1848 = vld [vmem:[#allocation9 + $0x638] sm:$0xff]
        %v1849 = vld [vmem:[#allocation9 + $0x640] sm:$0xff]
        %v1850 = vld [vmem:[#allocation9 + $0x648] sm:$0xff]
        %v1851 = vld [vmem:[#allocation9 + $0x650] sm:$0xff]
        %v1852 = vld [vmem:[#allocation9 + $0x658] sm:$0xff]
        %v1853 = vld [vmem:[#allocation9 + $0x660] sm:$0xff]
        %v1854 = vld [vmem:[#allocation9 + $0x668] sm:$0xff]
        %v1855 = vld [vmem:[#allocation9 + $0x670] sm:$0xff]
        %v1856 = vld [vmem:[#allocation9 + $0x678] sm:$0xff]
        %v1857 = vld [vmem:[#allocation9 + $0x680] sm:$0xff]
        %v1858 = vld [vmem:[#allocation9 + $0x688] sm:$0xff]
        %v1859 = vld [vmem:[#allocation9 + $0x690] sm:$0xff]
        %v1860 = vld [vmem:[#allocation9 + $0x698] sm:$0xff]
        %v1861 = vld [vmem:[#allocation9 + $0x6a0] sm:$0xff]
        %v1862 = vld [vmem:[#allocation9 + $0x6a8] sm:$0xff]
        %v1863 = vld [vmem:[#allocation9 + $0x6b0] sm:$0xff]
        %v1864 = vld [vmem:[#allocation9 + $0x6b8] sm:$0xff]
        %v1865 = vld [vmem:[#allocation9 + $0x6c0] sm:$0xff]
        %v1866 = vld [vmem:[#allocation9 + $0x6c8] sm:$0xff]
        %v1867 = vld [vmem:[#allocation9 + $0x6d0] sm:$0xff]
        %v1868 = vld [vmem:[#allocation9 + $0x6d8] sm:$0xff]
        %v1869 = vld [vmem:[#allocation9 + $0x6e0] sm:$0xff]
        %v1870 = vld [vmem:[#allocation9 + $0x6e8] sm:$0xff]
        %v1871 = vld [vmem:[#allocation9 + $0x6f0] sm:$0xff]
        %v1872 = vld [vmem:[#allocation9 + $0x6f8] sm:$0xff]
        %v1873 = vld [vmem:[#allocation9 + $0x700] sm:$0xff]
        %v1874 = vld [vmem:[#allocation9 + $0x708] sm:$0xff]
        %v1875 = vld [vmem:[#allocation9 + $0x710] sm:$0xff]
        %v1876 = vld [vmem:[#allocation9 + $0x718] sm:$0xff]
        %v1877 = vld [vmem:[#allocation9 + $0x720] sm:$0xff]
        %v1878 = vld [vmem:[#allocation9 + $0x728] sm:$0xff]
        %v1879 = vld [vmem:[#allocation9 + $0x730] sm:$0xff]
        %v1880 = vld [vmem:[#allocation9 + $0x738] sm:$0xff]
        %v1881 = vld [vmem:[#allocation9 + $0x740] sm:$0xff]
        %v1882 = vld [vmem:[#allocation9 + $0x748] sm:$0xff]
        %v1883 = vld [vmem:[#allocation9 + $0x750] sm:$0xff]
        %v1884 = vld [vmem:[#allocation9 + $0x758] sm:$0xff]
        %v1885 = vld [vmem:[#allocation9 + $0x760] sm:$0xff]
        %v1886 = vld [vmem:[#allocation9 + $0x768] sm:$0xff]
        %v1887 = vld [vmem:[#allocation9 + $0x770] sm:$0xff]
        %v1888 = vld [vmem:[#allocation9 + $0x778] sm:$0xff]
        %v1889 = vld [vmem:[#allocation9 + $0x780] sm:$0xff]
        %v1890 = vld [vmem:[#allocation9 + $0x788] sm:$0xff]
        %v1891 = vld [vmem:[#allocation9 + $0x790] sm:$0xff]
        %v1892 = vld [vmem:[#allocation9 + $0x798] sm:$0xff]
        %v1893 = vld [vmem:[#allocation9 + $0x7a0] sm:$0xff]
        %v1894 = vld [vmem:[#allocation9 + $0x7a8] sm:$0xff]
        %v1895 = vld [vmem:[#allocation9 + $0x7b0] sm:$0xff]
        %v1896 = vld [vmem:[#allocation9 + $0x7b8] sm:$0xff]
        %v1897 = vld [vmem:[#allocation9 + $0x7c0] sm:$0xff]
        %v1898 = vld [vmem:[#allocation9 + $0x7c8] sm:$0xff]
        %v1899 = vld [vmem:[#allocation9 + $0x7d0] sm:$0xff]
        %v1900 = vld [vmem:[#allocation9 + $0x7d8] sm:$0xff]
        %v1901 = vld [vmem:[#allocation9 + $0x7e0] sm:$0xff]
        %v1902 = vld [vmem:[#allocation9 + $0x7e8] sm:$0xff]
        %v1903 = vld [vmem:[#allocation9 + $0x7f0] sm:$0xff]
        %v1904 = vld [vmem:[#allocation9 + $0x7f8] sm:$0xff]
        %1905 = vmatpush.msra.mxu0 %v1709
        %1906 = vmatpush.msra.mxu0 %v1705
        %1907 = vmatpush.msra.mxu0 %v1701
        %1908 = vmatpush.msra.mxu0 %v1697
        %1909 = vmatpush.msra.mxu0 %v1693
        %1910 = vmatpush.msra.mxu0 %v1689
        %1911 = vmatpush.msra.mxu0 %v1685
        %1912 = vmatpush.msra.mxu0 %v1681
        %1913 = vmatpush.msra.mxu0 %v1677
        %1914 = vmatpush.msra.mxu0 %v1673
        %1915 = vmatpush.msra.mxu0 %v1669
        %1916 = vmatpush.msra.mxu0 %v1665
        %1917 = vmatpush.msra.mxu0 %v1661
        %1918 = vmatpush.msra.mxu0 %v1657
        %1919 = vmatpush.msra.mxu0 %v1653
        %1920 = vmatpush.msra.mxu0 %v1649
        %1921 = vmatmul.f32.gmra.mxu0 %v1645
        %v1922 = vpop.f32.mrf.mxu0
        %v1923 = vadd.f32 0.0, %v1922
        %1924 = vdwg.mxu0
        %1925 = vmatpush.msra.mxu0 %v1773
        %1926 = vmatpush.msra.mxu0 %v1769
        %1927 = vmatpush.msra.mxu0 %v1765
        %1928 = vmatpush.msra.mxu0 %v1761
        %1929 = vmatpush.msra.mxu0 %v1757
        %1930 = vmatpush.msra.mxu0 %v1753
        %1931 = vmatpush.msra.mxu0 %v1749
        %1932 = vmatpush.msra.mxu0 %v1745
        %1933 = vmatpush.msra.mxu0 %v1741
        %1934 = vmatpush.msra.mxu0 %v1737
        %1935 = vmatpush.msra.mxu0 %v1733
        %1936 = vmatpush.msra.mxu0 %v1729
        %1937 = vmatpush.msra.mxu0 %v1725
        %1938 = vmatpush.msra.mxu0 %v1721
        %1939 = vmatpush.msra.mxu0 %v1717
        %1940 = vmatpush.msra.mxu0 %v1713
        %1941 = vmatmul.f32.gmra.mxu0 %v1646
        %v1942 = vpop.f32.mrf.mxu0
        %v1943 = vadd.f32 %v1923, %v1942
        %1944 = vdwg.mxu0
        %1945 = vmatpush.msra.mxu0 %v1837
        %1946 = vmatpush.msra.mxu0 %v1833
        %1947 = vmatpush.msra.mxu0 %v1829
        %1948 = vmatpush.msra.mxu0 %v1825
        %1949 = vmatpush.msra.mxu0 %v1821
        %1950 = vmatpush.msra.mxu0 %v1817
        %1951 = vmatpush.msra.mxu0 %v1813
        %1952 = vmatpush.msra.mxu0 %v1809
        %1953 = vmatpush.msra.mxu0 %v1805
        %1954 = vmatpush.msra.mxu0 %v1801
        %1955 = vmatpush.msra.mxu0 %v1797
        %1956 = vmatpush.msra.mxu0 %v1793
        %1957 = vmatpush.msra.mxu0 %v1789
        %1958 = vmatpush.msra.mxu0 %v1785
        %1959 = vmatpush.msra.mxu0 %v1781
        %1960 = vmatpush.msra.mxu0 %v1777
        %1961 = vmatmul.f32.gmra.mxu0 %v1647
        %v1962 = vpop.f32.mrf.mxu0
        %v1963 = vadd.f32 %v1943, %v1962
        %1964 = vdwg.mxu0
        %1965 = vmatpush.msra.mxu0 %v1901
        %1966 = vmatpush.msra.mxu0 %v1897
        %1967 = vmatpush.msra.mxu0 %v1893
        %1968 = vmatpush.msra.mxu0 %v1889
        %1969 = vmatpush.msra.mxu0 %v1885
        %1970 = vmatpush.msra.mxu0 %v1881
        %1971 = vmatpush.msra.mxu0 %v1877
        %1972 = vmatpush.msra.mxu0 %v1873
        %1973 = vmatpush.msra.mxu0 %v1869
        %1974 = vmatpush.msra.mxu0 %v1865
        %1975 = vmatpush.msra.mxu0 %v1861
        %1976 = vmatpush.msra.mxu0 %v1857
        %1977 = vmatpush.msra.mxu0 %v1853
        %1978 = vmatpush.msra.mxu0 %v1849
        %1979 = vmatpush.msra.mxu0 %v1845
        %1980 = vmatpush.msra.mxu0 %v1841
        %1981 = vmatmul.f32.gmra.mxu0 %v1648
        %v1982 = vpop.f32.mrf.mxu0
        %v1983 = vadd.f32 %v1963, %v1982
        %1984 = vdwg.mxu0
        %1985 = vmatpush.msra.mxu0 %v1710
        %1986 = vmatpush.msra.mxu0 %v1706
        %1987 = vmatpush.msra.mxu0 %v1702
        %1988 = vmatpush.msra.mxu0 %v1698
        %1989 = vmatpush.msra.mxu0 %v1694
        %1990 = vmatpush.msra.mxu0 %v1690
        %1991 = vmatpush.msra.mxu0 %v1686
        %1992 = vmatpush.msra.mxu0 %v1682
        %1993 = vmatpush.msra.mxu0 %v1678
        %1994 = vmatpush.msra.mxu0 %v1674
        %1995 = vmatpush.msra.mxu0 %v1670
        %1996 = vmatpush.msra.mxu0 %v1666
        %1997 = vmatpush.msra.mxu0 %v1662
        %1998 = vmatpush.msra.mxu0 %v1658
        %1999 = vmatpush.msra.mxu0 %v1654
        %2000 = vmatpush.msra.mxu0 %v1650
        %2001 = vmatmul.f32.gmra.mxu0 %v1645
        %v2002 = vpop.f32.mrf.mxu0
        %v2003 = vadd.f32 0.0, %v2002
        %2004 = vdwg.mxu0
        %2005 = vmatpush.msra.mxu0 %v1774
        %2006 = vmatpush.msra.mxu0 %v1770
        %2007 = vmatpush.msra.mxu0 %v1766
        %2008 = vmatpush.msra.mxu0 %v1762
        %2009 = vmatpush.msra.mxu0 %v1758
        %2010 = vmatpush.msra.mxu0 %v1754
        %2011 = vmatpush.msra.mxu0 %v1750
        %2012 = vmatpush.msra.mxu0 %v1746
        %2013 = vmatpush.msra.mxu0 %v1742
        %2014 = vmatpush.msra.mxu0 %v1738
        %2015 = vmatpush.msra.mxu0 %v1734
        %2016 = vmatpush.msra.mxu0 %v1730
        %2017 = vmatpush.msra.mxu0 %v1726
        %2018 = vmatpush.msra.mxu0 %v1722
        %2019 = vmatpush.msra.mxu0 %v1718
        %2020 = vmatpush.msra.mxu0 %v1714
        %2021 = vmatmul.f32.gmra.mxu0 %v1646
        %v2022 = vpop.f32.mrf.mxu0
        %v2023 = vadd.f32 %v2003, %v2022
        %2024 = vdwg.mxu0
        %2025 = vmatpush.msra.mxu0 %v1838
        %2026 = vmatpush.msra.mxu0 %v1834
        %2027 = vmatpush.msra.mxu0 %v1830
        %2028 = vmatpush.msra.mxu0 %v1826
        %2029 = vmatpush.msra.mxu0 %v1822
        %2030 = vmatpush.msra.mxu0 %v1818
        %2031 = vmatpush.msra.mxu0 %v1814
        %2032 = vmatpush.msra.mxu0 %v1810
        %2033 = vmatpush.msra.mxu0 %v1806
        %2034 = vmatpush.msra.mxu0 %v1802
        %2035 = vmatpush.msra.mxu0 %v1798
        %2036 = vmatpush.msra.mxu0 %v1794
        %2037 = vmatpush.msra.mxu0 %v1790
        %2038 = vmatpush.msra.mxu0 %v1786
        %2039 = vmatpush.msra.mxu0 %v1782
        %2040 = vmatpush.msra.mxu0 %v1778
        %2041 = vmatmul.f32.gmra.mxu0 %v1647
        %v2042 = vpop.f32.mrf.mxu0
        %v2043 = vadd.f32 %v2023, %v2042
        %2044 = vdwg.mxu0
        %2045 = vmatpush.msra.mxu0 %v1902
        %2046 = vmatpush.msra.mxu0 %v1898
        %2047 = vmatpush.msra.mxu0 %v1894
        %2048 = vmatpush.msra.mxu0 %v1890
        %2049 = vmatpush.msra.mxu0 %v1886
        %2050 = vmatpush.msra.mxu0 %v1882
        %2051 = vmatpush.msra.mxu0 %v1878
        %2052 = vmatpush.msra.mxu0 %v1874
        %2053 = vmatpush.msra.mxu0 %v1870
        %2054 = vmatpush.msra.mxu0 %v1866
        %2055 = vmatpush.msra.mxu0 %v1862
        %2056 = vmatpush.msra.mxu0 %v1858
        %2057 = vmatpush.msra.mxu0 %v1854
        %2058 = vmatpush.msra.mxu0 %v1850
        %2059 = vmatpush.msra.mxu0 %v1846
        %2060 = vmatpush.msra.mxu0 %v1842
        %2061 = vmatmul.f32.gmra.mxu0 %v1648
        %v2062 = vpop.f32.mrf.mxu0
        %v2063 = vadd.f32 %v2043, %v2062
        %2064 = vdwg.mxu0
        %2065 = vmatpush.msra.mxu0 %v1711
        %2066 = vmatpush.msra.mxu0 %v1707
        %2067 = vmatpush.msra.mxu0 %v1703
        %2068 = vmatpush.msra.mxu0 %v1699
        %2069 = vmatpush.msra.mxu0 %v1695
        %2070 = vmatpush.msra.mxu0 %v1691
        %2071 = vmatpush.msra.mxu0 %v1687
        %2072 = vmatpush.msra.mxu0 %v1683
        %2073 = vmatpush.msra.mxu0 %v1679
        %2074 = vmatpush.msra.mxu0 %v1675
        %2075 = vmatpush.msra.mxu0 %v1671
        %2076 = vmatpush.msra.mxu0 %v1667
        %2077 = vmatpush.msra.mxu0 %v1663
        %2078 = vmatpush.msra.mxu0 %v1659
        %2079 = vmatpush.msra.mxu0 %v1655
        %2080 = vmatpush.msra.mxu0 %v1651
        %2081 = vmatmul.f32.gmra.mxu0 %v1645
        %v2082 = vpop.f32.mrf.mxu0
        %v2083 = vadd.f32 0.0, %v2082
        %2084 = vdwg.mxu0
        %2085 = vmatpush.msra.mxu0 %v1775
        %2086 = vmatpush.msra.mxu0 %v1771
        %2087 = vmatpush.msra.mxu0 %v1767
        %2088 = vmatpush.msra.mxu0 %v1763
        %2089 = vmatpush.msra.mxu0 %v1759
        %2090 = vmatpush.msra.mxu0 %v1755
        %2091 = vmatpush.msra.mxu0 %v1751
        %2092 = vmatpush.msra.mxu0 %v1747
        %2093 = vmatpush.msra.mxu0 %v1743
        %2094 = vmatpush.msra.mxu0 %v1739
        %2095 = vmatpush.msra.mxu0 %v1735
        %2096 = vmatpush.msra.mxu0 %v1731
        %2097 = vmatpush.msra.mxu0 %v1727
        %2098 = vmatpush.msra.mxu0 %v1723
        %2099 = vmatpush.msra.mxu0 %v1719
        %2100 = vmatpush.msra.mxu0 %v1715
        %2101 = vmatmul.f32.gmra.mxu0 %v1646
        %v2102 = vpop.f32.mrf.mxu0
        %v2103 = vadd.f32 %v2083, %v2102
        %2104 = vdwg.mxu0
        %2105 = vmatpush.msra.mxu0 %v1839
        %2106 = vmatpush.msra.mxu0 %v1835
        %2107 = vmatpush.msra.mxu0 %v1831
        %2108 = vmatpush.msra.mxu0 %v1827
        %2109 = vmatpush.msra.mxu0 %v1823
        %2110 = vmatpush.msra.mxu0 %v1819
        %2111 = vmatpush.msra.mxu0 %v1815
        %2112 = vmatpush.msra.mxu0 %v1811
        %2113 = vmatpush.msra.mxu0 %v1807
        %2114 = vmatpush.msra.mxu0 %v1803
        %2115 = vmatpush.msra.mxu0 %v1799
        %2116 = vmatpush.msra.mxu0 %v1795
        %2117 = vmatpush.msra.mxu0 %v1791
        %2118 = vmatpush.msra.mxu0 %v1787
        %2119 = vmatpush.msra.mxu0 %v1783
        %2120 = vmatpush.msra.mxu0 %v1779
        %2121 = vmatmul.f32.gmra.mxu0 %v1647
        %v2122 = vpop.f32.mrf.mxu0
        %v2123 = vadd.f32 %v2103, %v2122
        %2124 = vdwg.mxu0
        %2125 = vmatpush.msra.mxu0 %v1903
        %2126 = vmatpush.msra.mxu0 %v1899
        %2127 = vmatpush.msra.mxu0 %v1895
        %2128 = vmatpush.msra.mxu0 %v1891
        %2129 = vmatpush.msra.mxu0 %v1887
        %2130 = vmatpush.msra.mxu0 %v1883
        %2131 = vmatpush.msra.mxu0 %v1879
        %2132 = vmatpush.msra.mxu0 %v1875
        %2133 = vmatpush.msra.mxu0 %v1871
        %2134 = vmatpush.msra.mxu0 %v1867
        %2135 = vmatpush.msra.mxu0 %v1863
        %2136 = vmatpush.msra.mxu0 %v1859
        %2137 = vmatpush.msra.mxu0 %v1855
        %2138 = vmatpush.msra.mxu0 %v1851
        %2139 = vmatpush.msra.mxu0 %v1847
        %2140 = vmatpush.msra.mxu0 %v1843
        %2141 = vmatmul.f32.gmra.mxu0 %v1648
        %v2142 = vpop.f32.mrf.mxu0
        %v2143 = vadd.f32 %v2123, %v2142
        %2144 = vdwg.mxu0
        %2145 = vmatpush.msra.mxu0 %v1712
        %2146 = vmatpush.msra.mxu0 %v1708
        %2147 = vmatpush.msra.mxu0 %v1704
        %2148 = vmatpush.msra.mxu0 %v1700
        %2149 = vmatpush.msra.mxu0 %v1696
        %2150 = vmatpush.msra.mxu0 %v1692
        %2151 = vmatpush.msra.mxu0 %v1688
        %2152 = vmatpush.msra.mxu0 %v1684
        %2153 = vmatpush.msra.mxu0 %v1680
        %2154 = vmatpush.msra.mxu0 %v1676
        %2155 = vmatpush.msra.mxu0 %v1672
        %2156 = vmatpush.msra.mxu0 %v1668
        %2157 = vmatpush.msra.mxu0 %v1664
        %2158 = vmatpush.msra.mxu0 %v1660
        %2159 = vmatpush.msra.mxu0 %v1656
        %2160 = vmatpush.msra.mxu0 %v1652
        %2161 = vmatmul.f32.gmra.mxu0 %v1645
        %v2162 = vpop.f32.mrf.mxu0
        %v2163 = vadd.f32 0.0, %v2162
        %2164 = vdwg.mxu0
        %2165 = vmatpush.msra.mxu0 %v1776
        %2166 = vmatpush.msra.mxu0 %v1772
        %2167 = vmatpush.msra.mxu0 %v1768
        %2168 = vmatpush.msra.mxu0 %v1764
        %2169 = vmatpush.msra.mxu0 %v1760
        %2170 = vmatpush.msra.mxu0 %v1756
        %2171 = vmatpush.msra.mxu0 %v1752
        %2172 = vmatpush.msra.mxu0 %v1748
        %2173 = vmatpush.msra.mxu0 %v1744
        %2174 = vmatpush.msra.mxu0 %v1740
        %2175 = vmatpush.msra.mxu0 %v1736
        %2176 = vmatpush.msra.mxu0 %v1732
        %2177 = vmatpush.msra.mxu0 %v1728
        %2178 = vmatpush.msra.mxu0 %v1724
        %2179 = vmatpush.msra.mxu0 %v1720
        %2180 = vmatpush.msra.mxu0 %v1716
        %2181 = vmatmul.f32.gmra.mxu0 %v1646
        %v2182 = vpop.f32.mrf.mxu0
        %v2183 = vadd.f32 %v2163, %v2182
        %2184 = vdwg.mxu0
        %2185 = vmatpush.msra.mxu0 %v1840
        %2186 = vmatpush.msra.mxu0 %v1836
        %2187 = vmatpush.msra.mxu0 %v1832
        %2188 = vmatpush.msra.mxu0 %v1828
        %2189 = vmatpush.msra.mxu0 %v1824
        %2190 = vmatpush.msra.mxu0 %v1820
        %2191 = vmatpush.msra.mxu0 %v1816
        %2192 = vmatpush.msra.mxu0 %v1812
        %2193 = vmatpush.msra.mxu0 %v1808
        %2194 = vmatpush.msra.mxu0 %v1804
        %2195 = vmatpush.msra.mxu0 %v1800
        %2196 = vmatpush.msra.mxu0 %v1796
        %2197 = vmatpush.msra.mxu0 %v1792
        %2198 = vmatpush.msra.mxu0 %v1788
        %2199 = vmatpush.msra.mxu0 %v1784
        %2200 = vmatpush.msra.mxu0 %v1780
        %2201 = vmatmul.f32.gmra.mxu0 %v1647
        %v2202 = vpop.f32.mrf.mxu0
        %v2203 = vadd.f32 %v2183, %v2202
        %2204 = vdwg.mxu0
        %2205 = vmatpush.msra.mxu0 %v1904
        %2206 = vmatpush.msra.mxu0 %v1900
        %2207 = vmatpush.msra.mxu0 %v1896
        %2208 = vmatpush.msra.mxu0 %v1892
        %2209 = vmatpush.msra.mxu0 %v1888
        %2210 = vmatpush.msra.mxu0 %v1884
        %2211 = vmatpush.msra.mxu0 %v1880
        %2212 = vmatpush.msra.mxu0 %v1876
        %2213 = vmatpush.msra.mxu0 %v1872
        %2214 = vmatpush.msra.mxu0 %v1868
        %2215 = vmatpush.msra.mxu0 %v1864
        %2216 = vmatpush.msra.mxu0 %v1860
        %2217 = vmatpush.msra.mxu0 %v1856
        %2218 = vmatpush.msra.mxu0 %v1852
        %2219 = vmatpush.msra.mxu0 %v1848
        %2220 = vmatpush.msra.mxu0 %v1844
        %2221 = vmatmul.f32.gmra.mxu0 %v1648
        %v2222 = vpop.f32.mrf.mxu0
        %v2223 = vadd.f32 %v2203, %v2222
        %2224 = vdwg.mxu0
        %v2225 = vmul.f32 %v1983, 0.125
        %v2226 = vmul.f32 %v2063, 0.125
        %v2227 = vmul.f32 %v2143, 0.125
        %v2228 = vmul.f32 %v2223, 0.125
        %v2229 = vld [vmem:[#allocation2] sm:$0xff]
        %v2230 = vld [vmem:[#allocation2 + $0x20] sm:$0xff]
        %vm2231 = vcmask 523264
        %v2233 = vsel %vm2231, %v2225, 0
        %v2236 = vsel %vm2231, %v2229, 0
        %2238 = vmatpush.xpose.msra.mxu0 0.0
        %2239 = vmatpush.xpose.msra.mxu0 0.0
        %2240 = vmatpush.xpose.msra.mxu0 0.0
        %2241 = vmatpush.xpose.msra.mxu0 0.0
        %2242 = vmatpush.xpose.msra.mxu0 0.0
        %2243 = vmatpush.xpose.msra.mxu0 0.0
        %2244 = vmatpush.xpose.msra.mxu0 0.0
        %2245 = vmatpush.xpose.msra.mxu0 0.0
        %2246 = vmatpush.xpose.msra.mxu0 0.0
        %2247 = vmatpush.xpose.msra.mxu0 0.0
        %2248 = vmatpush.xpose.msra.mxu0 0.0
        %2249 = vmatpush.xpose.msra.mxu0 0.0
        %2250 = vmatpush.xpose.msra.mxu0 0.0
        %2251 = vmatpush.xpose.msra.mxu0 0.0
        %2252 = vmatpush.xpose.msra.mxu0 0.0
        %2253 = vmatpush.xpose.msra.mxu0 %v2236
        %2254 = vmatmul.f32.gmra.mxu0 %v2233
        %v2255 = vpop.f32.mrf.mxu0
        %v2256 = vadd.f32 0.0, %v2255
        %2257 = vdwg.mxu0
        %vm2258 = vcmask 64512
        %v2259 = vsel %vm2258, %v2256, -inf
        %2260 = vmax.xlane.f32.xlu0 %v2259
        %v2261 = vpop.xlane.xlu0 %2260
        %v2262 = vsub.f32 %v2256, %v2261
        %v2263 = vmul.f32 %v2262, 1.442695
        %v2264 = vpow.pop %v2263
        %v2265 = vsel %vm2258, %v2264, 0.0
        %2266 = vadd.xlane.f32.xlu0 %v2265
        %v2267 = vpop.xlane.xlu0 %2266
        %v2268 = vrcp.pop %v2267
        %v2269 = vmul.f32 %v2267, %v2268
        %v2270 = vsub.f32 1.0, %v2269
        %v2271 = vmul.f32 %v2268, %v2270
        %v2272 = vadd.f32 %v2268, %v2271
        %vm2273 = vweird.f32 %v2267
        %vm2274 = vweird.f32 %v2268
        %vm2275 = vmor %vm2273, %vm2274
        %v2276 = vsel %vm2275, %v2268, %v2272
        %v2277 = vand.u32 2147483647, %v2267
        %vm2278 = vcmp.eq.f32.partialorder %v2277, 8.507059e+37
        %v2279 = vand.u32 %v2267, 2147483648
        %v2280 = vor.u32 1.1754944e-38, %v2279
        %v2281 = vsel %vm2278, %v2280, %v2276
        %v2282 = vmul.f32 1.0, %v2281
        %v2283 = vmul.f32 %v2264, %v2282
        %2284 = vst.msk [vmem:[%s476] sm:$0xff] %vm2258, %v2283
        %v2286 = vsel %vm2258, %v2283, 0
        %2288 = vmatpush.msra.mxu0 0.0
        %2289 = vmatpush.msra.mxu0 0.0
        %2290 = vmatpush.msra.mxu0 0.0
        %2291 = vmatpush.msra.mxu0 0.0
        %2292 = vmatpush.msra.mxu0 0.0
        %2293 = vmatpush.msra.mxu0 0.0
        %2294 = vmatpush.msra.mxu0 0.0
        %2295 = vmatpush.msra.mxu0 0.0
        %2296 = vmatpush.msra.mxu0 0.0
        %2297 = vmatpush.msra.mxu0 0.0
        %2298 = vmatpush.msra.mxu0 0.0
        %2299 = vmatpush.msra.mxu0 0.0
        %2300 = vmatpush.msra.mxu0 0.0
        %2301 = vmatpush.msra.mxu0 0.0
        %2302 = vmatpush.msra.mxu0 0.0
        %2303 = vmatpush.msra.mxu0 %v2230
        %2304 = vmatmul.f32.gmra.mxu0 %v2286
        %v2305 = vpop.f32.mrf.mxu0
        %v2306 = vadd.f32 0.0, %v2305
        %2307 = vdwg.mxu0
        %2308 = vst.msk [vmem:[#allocation3] sm:$0xff] %vm2231, %v2306
        %v2309 = vld [vmem:[#allocation2] sm:$0xff]
        %v2310 = vld [vmem:[#allocation2 + $0x20] sm:$0xff]
        %2311 = vrot.lane.b32.xlu0 %v2225, 64
        %v2312 = vpop.permute.xlu0 %2311
        %2314 = vrot.lane.b32.xlu0 %v2309, 64
        %v2315 = vpop.permute.xlu0 %2314
        %v2316 = vsel %vm2231, %v2312, 0
        %v2318 = vsel %vm2231, %v2315, 0
        %2320 = vmatpush.xpose.msra.mxu0 0.0
        %2321 = vmatpush.xpose.msra.mxu0 0.0
        %2322 = vmatpush.xpose.msra.mxu0 0.0
        %2323 = vmatpush.xpose.msra.mxu0 0.0
        %2324 = vmatpush.xpose.msra.mxu0 0.0
        %2325 = vmatpush.xpose.msra.mxu0 0.0
        %2326 = vmatpush.xpose.msra.mxu0 0.0
        %2327 = vmatpush.xpose.msra.mxu0 0.0
        %2328 = vmatpush.xpose.msra.mxu0 0.0
        %2329 = vmatpush.xpose.msra.mxu0 0.0
        %2330 = vmatpush.xpose.msra.mxu0 0.0
        %2331 = vmatpush.xpose.msra.mxu0 0.0
        %2332 = vmatpush.xpose.msra.mxu0 0.0
        %2333 = vmatpush.xpose.msra.mxu0 0.0
        %2334 = vmatpush.xpose.msra.mxu0 0.0
        %2335 = vmatpush.xpose.msra.mxu0 %v2318
        %2336 = vmatmul.f32.gmra.mxu0 %v2316
        %v2337 = vpop.f32.mrf.mxu0
        %v2338 = vadd.f32 0.0, %v2337
        %2339 = vdwg.mxu0
        %v2340 = vsel %vm2258, %v2338, -inf
        %2341 = vmax.xlane.f32.xlu0 %v2340
        %v2342 = vpop.xlane.xlu0 %2341
        %v2343 = vsub.f32 %v2338, %v2342
        %v2344 = vmul.f32 %v2343, 1.442695
        %v2345 = vpow.pop %v2344
        %v2346 = vsel %vm2258, %v2345, 0.0
        %2347 = vadd.xlane.f32.xlu0 %v2346
        %v2348 = vpop.xlane.xlu0 %2347
        %v2349 = vrcp.pop %v2348
        %v2350 = vmul.f32 %v2348, %v2349
        %v2351 = vsub.f32 1.0, %v2350
        %v2352 = vmul.f32 %v2349, %v2351
        %v2353 = vadd.f32 %v2349, %v2352
        %vm2354 = vweird.f32 %v2348
        %vm2355 = vweird.f32 %v2349
        %vm2356 = vmor %vm2354, %vm2355
        %v2357 = vsel %vm2356, %v2349, %v2353
        %v2358 = vand.u32 2147483647, %v2348
        %vm2359 = vcmp.eq.f32.partialorder %v2358, 8.507059e+37
        %v2360 = vand.u32 %v2348, 2147483648
        %v2361 = vor.u32 1.1754944e-38, %v2360
        %v2362 = vsel %vm2359, %v2361, %v2357
        %v2363 = vmul.f32 1.0, %v2362
        %v2364 = vmul.f32 %v2345, %v2363
        %s2365 = scalar_lea.vmem %s476, 8 [#allocation17]
        %2366 = vst.msk [vmem:[%s2365] sm:$0xff] %vm2258, %v2364
        %2368 = vrot.lane.b32.xlu0 %v2310, 64
        %v2369 = vpop.permute.xlu0 %2368
        %v2372 = vsel %vm2258, %v2364, 0
        %2374 = vmatpush.msra.mxu0 0.0
        %2375 = vmatpush.msra.mxu0 0.0
        %2376 = vmatpush.msra.mxu0 0.0
        %2377 = vmatpush.msra.mxu0 0.0
        %2378 = vmatpush.msra.mxu0 0.0
        %2379 = vmatpush.msra.mxu0 0.0
        %2380 = vmatpush.msra.mxu0 0.0
        %2381 = vmatpush.msra.mxu0 0.0
        %2382 = vmatpush.msra.mxu0 0.0
        %2383 = vmatpush.msra.mxu0 0.0
        %2384 = vmatpush.msra.mxu0 0.0
        %2385 = vmatpush.msra.mxu0 0.0
        %2386 = vmatpush.msra.mxu0 0.0
        %2387 = vmatpush.msra.mxu0 0.0
        %2388 = vmatpush.msra.mxu0 0.0
        %2389 = vmatpush.msra.mxu0 %v2369
        %2390 = vmatmul.f32.gmra.mxu0 %v2372
        %v2391 = vpop.f32.mrf.mxu0
        %v2392 = vadd.f32 0.0, %v2391
        %2393 = vdwg.mxu0
        %2395 = vrot.lane.b32.xlu0 %v2392, 64
        %v2396 = vpop.permute.xlu0 %2395
        %vm2398 = vcmask 1048064
        %2399 = vst.msk [vmem:[#allocation3] sm:$0xff] %vm2398, %v2396
        %v2400 = vld [vmem:[#allocation2 + $0x8] sm:$0xff]
        %v2401 = vld [vmem:[#allocation2 + $0x28] sm:$0xff]
        %v2403 = vsel %vm2231, %v2226, 0
        %v2406 = vsel %vm2231, %v2400, 0
        %2408 = vmatpush.xpose.msra.mxu0 0.0
        %2409 = vmatpush.xpose.msra.mxu0 0.0
        %2410 = vmatpush.xpose.msra.mxu0 0.0
        %2411 = vmatpush.xpose.msra.mxu0 0.0
        %2412 = vmatpush.xpose.msra.mxu0 0.0
        %2413 = vmatpush.xpose.msra.mxu0 0.0
        %2414 = vmatpush.xpose.msra.mxu0 0.0
        %2415 = vmatpush.xpose.msra.mxu0 0.0
        %2416 = vmatpush.xpose.msra.mxu0 0.0
        %2417 = vmatpush.xpose.msra.mxu0 0.0
        %2418 = vmatpush.xpose.msra.mxu0 0.0
        %2419 = vmatpush.xpose.msra.mxu0 0.0
        %2420 = vmatpush.xpose.msra.mxu0 0.0
        %2421 = vmatpush.xpose.msra.mxu0 0.0
        %2422 = vmatpush.xpose.msra.mxu0 0.0
        %2423 = vmatpush.xpose.msra.mxu0 %v2406
        %2424 = vmatmul.f32.gmra.mxu0 %v2403
        %v2425 = vpop.f32.mrf.mxu0
        %v2426 = vadd.f32 0.0, %v2425
        %2427 = vdwg.mxu0
        %v2428 = vsel %vm2258, %v2426, -inf
        %2429 = vmax.xlane.f32.xlu0 %v2428
        %v2430 = vpop.xlane.xlu0 %2429
        %v2431 = vsub.f32 %v2426, %v2430
        %v2432 = vmul.f32 %v2431, 1.442695
        %v2433 = vpow.pop %v2432
        %v2434 = vsel %vm2258, %v2433, 0.0
        %2435 = vadd.xlane.f32.xlu0 %v2434
        %v2436 = vpop.xlane.xlu0 %2435
        %v2437 = vrcp.pop %v2436
        %v2438 = vmul.f32 %v2436, %v2437
        %v2439 = vsub.f32 1.0, %v2438
        %v2440 = vmul.f32 %v2437, %v2439
        %v2441 = vadd.f32 %v2437, %v2440
        %vm2442 = vweird.f32 %v2436
        %vm2443 = vweird.f32 %v2437
        %vm2444 = vmor %vm2442, %vm2443
        %v2445 = vsel %vm2444, %v2437, %v2441
        %v2446 = vand.u32 2147483647, %v2436
        %vm2447 = vcmp.eq.f32.partialorder %v2446, 8.507059e+37
        %v2448 = vand.u32 %v2436, 2147483648
        %v2449 = vor.u32 1.1754944e-38, %v2448
        %v2450 = vsel %vm2447, %v2449, %v2445
        %v2451 = vmul.f32 1.0, %v2450
        %v2452 = vmul.f32 %v2433, %v2451
        %s2453 = scalar_lea.vmem %s476, 16 [#allocation17]
        %2454 = vst.msk [vmem:[%s2453] sm:$0xff] %vm2258, %v2452
        %v2456 = vsel %vm2258, %v2452, 0
        %2458 = vmatpush.msra.mxu0 0.0
        %2459 = vmatpush.msra.mxu0 0.0
        %2460 = vmatpush.msra.mxu0 0.0
        %2461 = vmatpush.msra.mxu0 0.0
        %2462 = vmatpush.msra.mxu0 0.0
        %2463 = vmatpush.msra.mxu0 0.0
        %2464 = vmatpush.msra.mxu0 0.0
        %2465 = vmatpush.msra.mxu0 0.0
        %2466 = vmatpush.msra.mxu0 0.0
        %2467 = vmatpush.msra.mxu0 0.0
        %2468 = vmatpush.msra.mxu0 0.0
        %2469 = vmatpush.msra.mxu0 0.0
        %2470 = vmatpush.msra.mxu0 0.0
        %2471 = vmatpush.msra.mxu0 0.0
        %2472 = vmatpush.msra.mxu0 0.0
        %2473 = vmatpush.msra.mxu0 %v2401
        %2474 = vmatmul.f32.gmra.mxu0 %v2456
        %v2475 = vpop.f32.mrf.mxu0
        %v2476 = vadd.f32 0.0, %v2475
        %2477 = vdwg.mxu0
        %2478 = vst.msk [vmem:[#allocation3 + $0x8] sm:$0xff] %vm2231, %v2476
        %v2479 = vld [vmem:[#allocation2 + $0x8] sm:$0xff]
        %v2480 = vld [vmem:[#allocation2 + $0x28] sm:$0xff]
        %2481 = vrot.lane.b32.xlu0 %v2226, 64
        %v2482 = vpop.permute.xlu0 %2481
        %2484 = vrot.lane.b32.xlu0 %v2479, 64
        %v2485 = vpop.permute.xlu0 %2484
        %v2486 = vsel %vm2231, %v2482, 0
        %v2488 = vsel %vm2231, %v2485, 0
        %2490 = vmatpush.xpose.msra.mxu0 0.0
        %2491 = vmatpush.xpose.msra.mxu0 0.0
        %2492 = vmatpush.xpose.msra.mxu0 0.0
        %2493 = vmatpush.xpose.msra.mxu0 0.0
        %2494 = vmatpush.xpose.msra.mxu0 0.0
        %2495 = vmatpush.xpose.msra.mxu0 0.0
        %2496 = vmatpush.xpose.msra.mxu0 0.0
        %2497 = vmatpush.xpose.msra.mxu0 0.0
        %2498 = vmatpush.xpose.msra.mxu0 0.0
        %2499 = vmatpush.xpose.msra.mxu0 0.0
        %2500 = vmatpush.xpose.msra.mxu0 0.0
        %2501 = vmatpush.xpose.msra.mxu0 0.0
        %2502 = vmatpush.xpose.msra.mxu0 0.0
        %2503 = vmatpush.xpose.msra.mxu0 0.0
        %2504 = vmatpush.xpose.msra.mxu0 0.0
        %2505 = vmatpush.xpose.msra.mxu0 %v2488
        %2506 = vmatmul.f32.gmra.mxu0 %v2486
        %v2507 = vpop.f32.mrf.mxu0
        %v2508 = vadd.f32 0.0, %v2507
        %2509 = vdwg.mxu0
        %v2510 = vsel %vm2258, %v2508, -inf
        %2511 = vmax.xlane.f32.xlu0 %v2510
        %v2512 = vpop.xlane.xlu0 %2511
        %v2513 = vsub.f32 %v2508, %v2512
        %v2514 = vmul.f32 %v2513, 1.442695
        %v2515 = vpow.pop %v2514
        %v2516 = vsel %vm2258, %v2515, 0.0
        %2517 = vadd.xlane.f32.xlu0 %v2516
        %v2518 = vpop.xlane.xlu0 %2517
        %v2519 = vrcp.pop %v2518
        %v2520 = vmul.f32 %v2518, %v2519
        %v2521 = vsub.f32 1.0, %v2520
        %v2522 = vmul.f32 %v2519, %v2521
        %v2523 = vadd.f32 %v2519, %v2522
        %vm2524 = vweird.f32 %v2518
        %vm2525 = vweird.f32 %v2519
        %vm2526 = vmor %vm2524, %vm2525
        %v2527 = vsel %vm2526, %v2519, %v2523
        %v2528 = vand.u32 2147483647, %v2518
        %vm2529 = vcmp.eq.f32.partialorder %v2528, 8.507059e+37
        %v2530 = vand.u32 %v2518, 2147483648
        %v2531 = vor.u32 1.1754944e-38, %v2530
        %v2532 = vsel %vm2529, %v2531, %v2527
        %v2533 = vmul.f32 1.0, %v2532
        %v2534 = vmul.f32 %v2515, %v2533
        %s2535 = scalar_lea.vmem %s476, 24 [#allocation17]
        %2536 = vst.msk [vmem:[%s2535] sm:$0xff] %vm2258, %v2534
        %2538 = vrot.lane.b32.xlu0 %v2480, 64
        %v2539 = vpop.permute.xlu0 %2538
        %v2542 = vsel %vm2258, %v2534, 0
        %2544 = vmatpush.msra.mxu0 0.0
        %2545 = vmatpush.msra.mxu0 0.0
        %2546 = vmatpush.msra.mxu0 0.0
        %2547 = vmatpush.msra.mxu0 0.0
        %2548 = vmatpush.msra.mxu0 0.0
        %2549 = vmatpush.msra.mxu0 0.0
        %2550 = vmatpush.msra.mxu0 0.0
        %2551 = vmatpush.msra.mxu0 0.0
        %2552 = vmatpush.msra.mxu0 0.0
        %2553 = vmatpush.msra.mxu0 0.0
        %2554 = vmatpush.msra.mxu0 0.0
        %2555 = vmatpush.msra.mxu0 0.0
        %2556 = vmatpush.msra.mxu0 0.0
        %2557 = vmatpush.msra.mxu0 0.0
        %2558 = vmatpush.msra.mxu0 0.0
        %2559 = vmatpush.msra.mxu0 %v2539
        %2560 = vmatmul.f32.gmra.mxu0 %v2542
        %v2561 = vpop.f32.mrf.mxu0
        %v2562 = vadd.f32 0.0, %v2561
        %2563 = vdwg.mxu0
        %2565 = vrot.lane.b32.xlu0 %v2562, 64
        %v2566 = vpop.permute.xlu0 %2565
        %2568 = vst.msk [vmem:[#allocation3 + $0x8] sm:$0xff] %vm2398, %v2566
        %v2569 = vld [vmem:[#allocation2 + $0x10] sm:$0xff]
        %v2570 = vld [vmem:[#allocation2 + $0x30] sm:$0xff]
        %v2572 = vsel %vm2231, %v2227, 0
        %v2575 = vsel %vm2231, %v2569, 0
        %2577 = vmatpush.xpose.msra.mxu0 0.0
        %2578 = vmatpush.xpose.msra.mxu0 0.0
        %2579 = vmatpush.xpose.msra.mxu0 0.0
        %2580 = vmatpush.xpose.msra.mxu0 0.0
        %2581 = vmatpush.xpose.msra.mxu0 0.0
        %2582 = vmatpush.xpose.msra.mxu0 0.0
        %2583 = vmatpush.xpose.msra.mxu0 0.0
        %2584 = vmatpush.xpose.msra.mxu0 0.0
        %2585 = vmatpush.xpose.msra.mxu0 0.0
        %2586 = vmatpush.xpose.msra.mxu0 0.0
        %2587 = vmatpush.xpose.msra.mxu0 0.0
        %2588 = vmatpush.xpose.msra.mxu0 0.0
        %2589 = vmatpush.xpose.msra.mxu0 0.0
        %2590 = vmatpush.xpose.msra.mxu0 0.0
        %2591 = vmatpush.xpose.msra.mxu0 0.0
        %2592 = vmatpush.xpose.msra.mxu0 %v2575
        %2593 = vmatmul.f32.gmra.mxu0 %v2572
        %v2594 = vpop.f32.mrf.mxu0
        %v2595 = vadd.f32 0.0, %v2594
        %2596 = vdwg.mxu0
        %v2597 = vsel %vm2258, %v2595, -inf
        %2598 = vmax.xlane.f32.xlu0 %v2597
        %v2599 = vpop.xlane.xlu0 %2598
        %v2600 = vsub.f32 %v2595, %v2599
        %v2601 = vmul.f32 %v2600, 1.442695
        %v2602 = vpow.pop %v2601
        %v2603 = vsel %vm2258, %v2602, 0.0
        %2604 = vadd.xlane.f32.xlu0 %v2603
        %v2605 = vpop.xlane.xlu0 %2604
        %v2606 = vrcp.pop %v2605
        %v2607 = vmul.f32 %v2605, %v2606
        %v2608 = vsub.f32 1.0, %v2607
        %v2609 = vmul.f32 %v2606, %v2608
        %v2610 = vadd.f32 %v2606, %v2609
        %vm2611 = vweird.f32 %v2605
        %vm2612 = vweird.f32 %v2606
        %vm2613 = vmor %vm2611, %vm2612
        %v2614 = vsel %vm2613, %v2606, %v2610
        %v2615 = vand.u32 2147483647, %v2605
        %vm2616 = vcmp.eq.f32.partialorder %v2615, 8.507059e+37
        %v2617 = vand.u32 %v2605, 2147483648
        %v2618 = vor.u32 1.1754944e-38, %v2617
        %v2619 = vsel %vm2616, %v2618, %v2614
        %v2620 = vmul.f32 1.0, %v2619
        %v2621 = vmul.f32 %v2602, %v2620
        %s2622 = scalar_lea.vmem %s476, 32 [#allocation17]
        %2623 = vst.msk [vmem:[%s2622] sm:$0xff] %vm2258, %v2621
        %v2625 = vsel %vm2258, %v2621, 0
        %2627 = vmatpush.msra.mxu0 0.0
        %2628 = vmatpush.msra.mxu0 0.0
        %2629 = vmatpush.msra.mxu0 0.0
        %2630 = vmatpush.msra.mxu0 0.0
        %2631 = vmatpush.msra.mxu0 0.0
        %2632 = vmatpush.msra.mxu0 0.0
        %2633 = vmatpush.msra.mxu0 0.0
        %2634 = vmatpush.msra.mxu0 0.0
        %2635 = vmatpush.msra.mxu0 0.0
        %2636 = vmatpush.msra.mxu0 0.0
        %2637 = vmatpush.msra.mxu0 0.0
        %2638 = vmatpush.msra.mxu0 0.0
        %2639 = vmatpush.msra.mxu0 0.0
        %2640 = vmatpush.msra.mxu0 0.0
        %2641 = vmatpush.msra.mxu0 0.0
        %2642 = vmatpush.msra.mxu0 %v2570
        %2643 = vmatmul.f32.gmra.mxu0 %v2625
        %v2644 = vpop.f32.mrf.mxu0
        %v2645 = vadd.f32 0.0, %v2644
        %2646 = vdwg.mxu0
        %2647 = vst.msk [vmem:[#allocation3 + $0x10] sm:$0xff] %vm2231, %v2645
        %v2648 = vld [vmem:[#allocation2 + $0x10] sm:$0xff]
        %v2649 = vld [vmem:[#allocation2 + $0x30] sm:$0xff]
        %2650 = vrot.lane.b32.xlu0 %v2227, 64
        %v2651 = vpop.permute.xlu0 %2650
        %2653 = vrot.lane.b32.xlu0 %v2648, 64
        %v2654 = vpop.permute.xlu0 %2653
        %v2655 = vsel %vm2231, %v2651, 0
        %v2657 = vsel %vm2231, %v2654, 0
        %2659 = vmatpush.xpose.msra.mxu0 0.0
        %2660 = vmatpush.xpose.msra.mxu0 0.0
        %2661 = vmatpush.xpose.msra.mxu0 0.0
        %2662 = vmatpush.xpose.msra.mxu0 0.0
        %2663 = vmatpush.xpose.msra.mxu0 0.0
        %2664 = vmatpush.xpose.msra.mxu0 0.0
        %2665 = vmatpush.xpose.msra.mxu0 0.0
        %2666 = vmatpush.xpose.msra.mxu0 0.0
        %2667 = vmatpush.xpose.msra.mxu0 0.0
        %2668 = vmatpush.xpose.msra.mxu0 0.0
        %2669 = vmatpush.xpose.msra.mxu0 0.0
        %2670 = vmatpush.xpose.msra.mxu0 0.0
        %2671 = vmatpush.xpose.msra.mxu0 0.0
        %2672 = vmatpush.xpose.msra.mxu0 0.0
        %2673 = vmatpush.xpose.msra.mxu0 0.0
        %2674 = vmatpush.xpose.msra.mxu0 %v2657
        %2675 = vmatmul.f32.gmra.mxu0 %v2655
        %v2676 = vpop.f32.mrf.mxu0
        %v2677 = vadd.f32 0.0, %v2676
        %2678 = vdwg.mxu0
        %v2679 = vsel %vm2258, %v2677, -inf
        %2680 = vmax.xlane.f32.xlu0 %v2679
        %v2681 = vpop.xlane.xlu0 %2680
        %v2682 = vsub.f32 %v2677, %v2681
        %v2683 = vmul.f32 %v2682, 1.442695
        %v2684 = vpow.pop %v2683
        %v2685 = vsel %vm2258, %v2684, 0.0
        %2686 = vadd.xlane.f32.xlu0 %v2685
        %v2687 = vpop.xlane.xlu0 %2686
        %v2688 = vrcp.pop %v2687
        %v2689 = vmul.f32 %v2687, %v2688
        %v2690 = vsub.f32 1.0, %v2689
        %v2691 = vmul.f32 %v2688, %v2690
        %v2692 = vadd.f32 %v2688, %v2691
        %vm2693 = vweird.f32 %v2687
        %vm2694 = vweird.f32 %v2688
        %vm2695 = vmor %vm2693, %vm2694
        %v2696 = vsel %vm2695, %v2688, %v2692
        %v2697 = vand.u32 2147483647, %v2687
        %vm2698 = vcmp.eq.f32.partialorder %v2697, 8.507059e+37
        %v2699 = vand.u32 %v2687, 2147483648
        %v2700 = vor.u32 1.1754944e-38, %v2699
        %v2701 = vsel %vm2698, %v2700, %v2696
        %v2702 = vmul.f32 1.0, %v2701
        %v2703 = vmul.f32 %v2684, %v2702
        %s2704 = scalar_lea.vmem %s476, 40 [#allocation17]
        %2705 = vst.msk [vmem:[%s2704] sm:$0xff] %vm2258, %v2703
        %2707 = vrot.lane.b32.xlu0 %v2649, 64
        %v2708 = vpop.permute.xlu0 %2707
        %v2711 = vsel %vm2258, %v2703, 0
        %2713 = vmatpush.msra.mxu0 0.0
        %2714 = vmatpush.msra.mxu0 0.0
        %2715 = vmatpush.msra.mxu0 0.0
        %2716 = vmatpush.msra.mxu0 0.0
        %2717 = vmatpush.msra.mxu0 0.0
        %2718 = vmatpush.msra.mxu0 0.0
        %2719 = vmatpush.msra.mxu0 0.0
        %2720 = vmatpush.msra.mxu0 0.0
        %2721 = vmatpush.msra.mxu0 0.0
        %2722 = vmatpush.msra.mxu0 0.0
        %2723 = vmatpush.msra.mxu0 0.0
        %2724 = vmatpush.msra.mxu0 0.0
        %2725 = vmatpush.msra.mxu0 0.0
        %2726 = vmatpush.msra.mxu0 0.0
        %2727 = vmatpush.msra.mxu0 0.0
        %2728 = vmatpush.msra.mxu0 %v2708
        %2729 = vmatmul.f32.gmra.mxu0 %v2711
        %v2730 = vpop.f32.mrf.mxu0
        %v2731 = vadd.f32 0.0, %v2730
        %2732 = vdwg.mxu0
        %2734 = vrot.lane.b32.xlu0 %v2731, 64
        %v2735 = vpop.permute.xlu0 %2734
        %2737 = vst.msk [vmem:[#allocation3 + $0x10] sm:$0xff] %vm2398, %v2735
        %v2738 = vld [vmem:[#allocation2 + $0x18] sm:$0xff]
        %v2739 = vld [vmem:[#allocation2 + $0x38] sm:$0xff]
        %v2741 = vsel %vm2231, %v2228, 0
        %v2744 = vsel %vm2231, %v2738, 0
        %2746 = vmatpush.xpose.msra.mxu0 0.0
        %2747 = vmatpush.xpose.msra.mxu0 0.0
        %2748 = vmatpush.xpose.msra.mxu0 0.0
        %2749 = vmatpush.xpose.msra.mxu0 0.0
        %2750 = vmatpush.xpose.msra.mxu0 0.0
        %2751 = vmatpush.xpose.msra.mxu0 0.0
        %2752 = vmatpush.xpose.msra.mxu0 0.0
        %2753 = vmatpush.xpose.msra.mxu0 0.0
        %2754 = vmatpush.xpose.msra.mxu0 0.0
        %2755 = vmatpush.xpose.msra.mxu0 0.0
        %2756 = vmatpush.xpose.msra.mxu0 0.0
        %2757 = vmatpush.xpose.msra.mxu0 0.0
        %2758 = vmatpush.xpose.msra.mxu0 0.0
        %2759 = vmatpush.xpose.msra.mxu0 0.0
        %2760 = vmatpush.xpose.msra.mxu0 0.0
        %2761 = vmatpush.xpose.msra.mxu0 %v2744
        %2762 = vmatmul.f32.gmra.mxu0 %v2741
        %v2763 = vpop.f32.mrf.mxu0
        %v2764 = vadd.f32 0.0, %v2763
        %2765 = vdwg.mxu0
        %v2766 = vsel %vm2258, %v2764, -inf
        %2767 = vmax.xlane.f32.xlu0 %v2766
        %v2768 = vpop.xlane.xlu0 %2767
        %v2769 = vsub.f32 %v2764, %v2768
        %v2770 = vmul.f32 %v2769, 1.442695
        %v2771 = vpow.pop %v2770
        %v2772 = vsel %vm2258, %v2771, 0.0
        %2773 = vadd.xlane.f32.xlu0 %v2772
        %v2774 = vpop.xlane.xlu0 %2773
        %v2775 = vrcp.pop %v2774
        %v2776 = vmul.f32 %v2774, %v2775
        %v2777 = vsub.f32 1.0, %v2776
        %v2778 = vmul.f32 %v2775, %v2777
        %v2779 = vadd.f32 %v2775, %v2778
        %vm2780 = vweird.f32 %v2774
        %vm2781 = vweird.f32 %v2775
        %vm2782 = vmor %vm2780, %vm2781
        %v2783 = vsel %vm2782, %v2775, %v2779
        %v2784 = vand.u32 2147483647, %v2774
        %vm2785 = vcmp.eq.f32.partialorder %v2784, 8.507059e+37
        %v2786 = vand.u32 %v2774, 2147483648
        %v2787 = vor.u32 1.1754944e-38, %v2786
        %v2788 = vsel %vm2785, %v2787, %v2783
        %v2789 = vmul.f32 1.0, %v2788
        %v2790 = vmul.f32 %v2771, %v2789
        %s2791 = scalar_lea.vmem %s476, 48 [#allocation17]
        %2792 = vst.msk [vmem:[%s2791] sm:$0xff] %vm2258, %v2790
        %v2794 = vsel %vm2258, %v2790, 0
        %2796 = vmatpush.msra.mxu0 0.0
        %2797 = vmatpush.msra.mxu0 0.0
        %2798 = vmatpush.msra.mxu0 0.0
        %2799 = vmatpush.msra.mxu0 0.0
        %2800 = vmatpush.msra.mxu0 0.0
        %2801 = vmatpush.msra.mxu0 0.0
        %2802 = vmatpush.msra.mxu0 0.0
        %2803 = vmatpush.msra.mxu0 0.0
        %2804 = vmatpush.msra.mxu0 0.0
        %2805 = vmatpush.msra.mxu0 0.0
        %2806 = vmatpush.msra.mxu0 0.0
        %2807 = vmatpush.msra.mxu0 0.0
        %2808 = vmatpush.msra.mxu0 0.0
        %2809 = vmatpush.msra.mxu0 0.0
        %2810 = vmatpush.msra.mxu0 0.0
        %2811 = vmatpush.msra.mxu0 %v2739
        %2812 = vmatmul.f32.gmra.mxu0 %v2794
        %v2813 = vpop.f32.mrf.mxu0
        %v2814 = vadd.f32 0.0, %v2813
        %2815 = vdwg.mxu0
        %2816 = vst.msk [vmem:[#allocation3 + $0x18] sm:$0xff] %vm2231, %v2814
        %v2817 = vld [vmem:[#allocation2 + $0x18] sm:$0xff]
        %v2818 = vld [vmem:[#allocation2 + $0x38] sm:$0xff]
        %2819 = vrot.lane.b32.xlu0 %v2228, 64
        %v2820 = vpop.permute.xlu0 %2819
        %2822 = vrot.lane.b32.xlu0 %v2817, 64
        %v2823 = vpop.permute.xlu0 %2822
        %v2824 = vsel %vm2231, %v2820, 0
        %v2826 = vsel %vm2231, %v2823, 0
        %2828 = vmatpush.xpose.msra.mxu0 0.0
        %2829 = vmatpush.xpose.msra.mxu0 0.0
        %2830 = vmatpush.xpose.msra.mxu0 0.0
        %2831 = vmatpush.xpose.msra.mxu0 0.0
        %2832 = vmatpush.xpose.msra.mxu0 0.0
        %2833 = vmatpush.xpose.msra.mxu0 0.0
        %2834 = vmatpush.xpose.msra.mxu0 0.0
        %2835 = vmatpush.xpose.msra.mxu0 0.0
        %2836 = vmatpush.xpose.msra.mxu0 0.0
        %2837 = vmatpush.xpose.msra.mxu0 0.0
        %2838 = vmatpush.xpose.msra.mxu0 0.0
        %2839 = vmatpush.xpose.msra.mxu0 0.0
        %2840 = vmatpush.xpose.msra.mxu0 0.0
        %2841 = vmatpush.xpose.msra.mxu0 0.0
        %2842 = vmatpush.xpose.msra.mxu0 0.0
        %2843 = vmatpush.xpose.msra.mxu0 %v2826
        %2844 = vmatmul.f32.gmra.mxu0 %v2824
        %v2845 = vpop.f32.mrf.mxu0
        %v2846 = vadd.f32 0.0, %v2845
        %2847 = vdwg.mxu0
        %v2848 = vsel %vm2258, %v2846, -inf
        %2849 = vmax.xlane.f32.xlu0 %v2848
        %v2850 = vpop.xlane.xlu0 %2849
        %v2851 = vsub.f32 %v2846, %v2850
        %v2852 = vmul.f32 %v2851, 1.442695
        %v2853 = vpow.pop %v2852
        %v2854 = vsel %vm2258, %v2853, 0.0
        %2855 = vadd.xlane.f32.xlu0 %v2854
        %v2856 = vpop.xlane.xlu0 %2855
        %v2857 = vrcp.pop %v2856
        %v2858 = vmul.f32 %v2856, %v2857
        %v2859 = vsub.f32 1.0, %v2858
        %v2860 = vmul.f32 %v2857, %v2859
        %v2861 = vadd.f32 %v2857, %v2860
        %vm2862 = vweird.f32 %v2856
        %vm2863 = vweird.f32 %v2857
        %vm2864 = vmor %vm2862, %vm2863
        %v2865 = vsel %vm2864, %v2857, %v2861
        %v2866 = vand.u32 2147483647, %v2856
        %vm2867 = vcmp.eq.f32.partialorder %v2866, 8.507059e+37
        %v2868 = vand.u32 %v2856, 2147483648
        %v2869 = vor.u32 1.1754944e-38, %v2868
        %v2870 = vsel %vm2867, %v2869, %v2865
        %v2871 = vmul.f32 1.0, %v2870
        %v2872 = vmul.f32 %v2853, %v2871
        %s2873 = scalar_lea.vmem %s476, 56 [#allocation17]
        %2874 = vst.msk [vmem:[%s2873] sm:$0xff] %vm2258, %v2872
        %2876 = vrot.lane.b32.xlu0 %v2818, 64
        %v2877 = vpop.permute.xlu0 %2876
        %v2880 = vsel %vm2258, %v2872, 0
        %2882 = vmatpush.msra.mxu0 0.0
        %2883 = vmatpush.msra.mxu0 0.0
        %2884 = vmatpush.msra.mxu0 0.0
        %2885 = vmatpush.msra.mxu0 0.0
        %2886 = vmatpush.msra.mxu0 0.0
        %2887 = vmatpush.msra.mxu0 0.0
        %2888 = vmatpush.msra.mxu0 0.0
        %2889 = vmatpush.msra.mxu0 0.0
        %2890 = vmatpush.msra.mxu0 0.0
        %2891 = vmatpush.msra.mxu0 0.0
        %2892 = vmatpush.msra.mxu0 0.0
        %2893 = vmatpush.msra.mxu0 0.0
        %2894 = vmatpush.msra.mxu0 0.0
        %2895 = vmatpush.msra.mxu0 0.0
        %2896 = vmatpush.msra.mxu0 0.0
        %2897 = vmatpush.msra.mxu0 %v2877
        %2898 = vmatmul.f32.gmra.mxu0 %v2880
        %v2899 = vpop.f32.mrf.mxu0
        %v2900 = vadd.f32 0.0, %v2899
        %2901 = vdwg.mxu0
        %2903 = vrot.lane.b32.xlu0 %v2900, 64
        %v2904 = vpop.permute.xlu0 %2903
        %2906 = vst.msk [vmem:[#allocation3 + $0x18] sm:$0xff] %vm2398, %v2904
        %v2907 = vld [vmem:[#allocation3] sm:$0xff]
        %v2908 = vld [vmem:[#allocation3 + $0x8] sm:$0xff]
        %v2909 = vld [vmem:[#allocation3 + $0x10] sm:$0xff]
        %v2910 = vld [vmem:[#allocation3 + $0x18] sm:$0xff]
        %v2911 = vld [vmem:[#allocation12] sm:$0xff]
        %v2912 = vld [vmem:[#allocation12 + $0x8] sm:$0xff]
        %v2913 = vld [vmem:[#allocation12 + $0x10] sm:$0xff]
        %v2914 = vld [vmem:[#allocation12 + $0x18] sm:$0xff]
        %v2915 = vld [vmem:[#allocation12 + $0x20] sm:$0xff]
        %v2916 = vld [vmem:[#allocation12 + $0x28] sm:$0xff]
        %v2917 = vld [vmem:[#allocation12 + $0x30] sm:$0xff]
        %v2918 = vld [vmem:[#allocation12 + $0x38] sm:$0xff]
        %v2919 = vld [vmem:[#allocation12 + $0x40] sm:$0xff]
        %v2920 = vld [vmem:[#allocation12 + $0x48] sm:$0xff]
        %v2921 = vld [vmem:[#allocation12 + $0x50] sm:$0xff]
        %v2922 = vld [vmem:[#allocation12 + $0x58] sm:$0xff]
        %v2923 = vld [vmem:[#allocation12 + $0x60] sm:$0xff]
        %v2924 = vld [vmem:[#allocation12 + $0x68] sm:$0xff]
        %v2925 = vld [vmem:[#allocation12 + $0x70] sm:$0xff]
        %v2926 = vld [vmem:[#allocation12 + $0x78] sm:$0xff]
        %v2927 = vld [vmem:[#allocation12 + $0x80] sm:$0xff]
        %v2928 = vld [vmem:[#allocation12 + $0x88] sm:$0xff]
        %v2929 = vld [vmem:[#allocation12 + $0x90] sm:$0xff]
        %v2930 = vld [vmem:[#allocation12 + $0x98] sm:$0xff]
        %v2931 = vld [vmem:[#allocation12 + $0xa0] sm:$0xff]
        %v2932 = vld [vmem:[#allocation12 + $0xa8] sm:$0xff]
        %v2933 = vld [vmem:[#allocation12 + $0xb0] sm:$0xff]
        %v2934 = vld [vmem:[#allocation12 + $0xb8] sm:$0xff]
        %v2935 = vld [vmem:[#allocation12 + $0xc0] sm:$0xff]
        %v2936 = vld [vmem:[#allocation12 + $0xc8] sm:$0xff]
        %v2937 = vld [vmem:[#allocation12 + $0xd0] sm:$0xff]
        %v2938 = vld [vmem:[#allocation12 + $0xd8] sm:$0xff]
        %v2939 = vld [vmem:[#allocation12 + $0xe0] sm:$0xff]
        %v2940 = vld [vmem:[#allocation12 + $0xe8] sm:$0xff]
        %v2941 = vld [vmem:[#allocation12 + $0xf0] sm:$0xff]
        %v2942 = vld [vmem:[#allocation12 + $0xf8] sm:$0xff]
        %v2943 = vld [vmem:[#allocation12 + $0x100] sm:$0xff]
        %v2944 = vld [vmem:[#allocation12 + $0x108] sm:$0xff]
        %v2945 = vld [vmem:[#allocation12 + $0x110] sm:$0xff]
        %v2946 = vld [vmem:[#allocation12 + $0x118] sm:$0xff]
        %v2947 = vld [vmem:[#allocation12 + $0x120] sm:$0xff]
        %v2948 = vld [vmem:[#allocation12 + $0x128] sm:$0xff]
        %v2949 = vld [vmem:[#allocation12 + $0x130] sm:$0xff]
        %v2950 = vld [vmem:[#allocation12 + $0x138] sm:$0xff]
        %v2951 = vld [vmem:[#allocation12 + $0x140] sm:$0xff]
        %v2952 = vld [vmem:[#allocation12 + $0x148] sm:$0xff]
        %v2953 = vld [vmem:[#allocation12 + $0x150] sm:$0xff]
        %v2954 = vld [vmem:[#allocation12 + $0x158] sm:$0xff]
        %v2955 = vld [vmem:[#allocation12 + $0x160] sm:$0xff]
        %v2956 = vld [vmem:[#allocation12 + $0x168] sm:$0xff]
        %v2957 = vld [vmem:[#allocation12 + $0x170] sm:$0xff]
        %v2958 = vld [vmem:[#allocation12 + $0x178] sm:$0xff]
        %v2959 = vld [vmem:[#allocation12 + $0x180] sm:$0xff]
        %v2960 = vld [vmem:[#allocation12 + $0x188] sm:$0xff]
        %v2961 = vld [vmem:[#allocation12 + $0x190] sm:$0xff]
        %v2962 = vld [vmem:[#allocation12 + $0x198] sm:$0xff]
        %v2963 = vld [vmem:[#allocation12 + $0x1a0] sm:$0xff]
        %v2964 = vld [vmem:[#allocation12 + $0x1a8] sm:$0xff]
        %v2965 = vld [vmem:[#allocation12 + $0x1b0] sm:$0xff]
        %v2966 = vld [vmem:[#allocation12 + $0x1b8] sm:$0xff]
        %v2967 = vld [vmem:[#allocation12 + $0x1c0] sm:$0xff]
        %v2968 = vld [vmem:[#allocation12 + $0x1c8] sm:$0xff]
        %v2969 = vld [vmem:[#allocation12 + $0x1d0] sm:$0xff]
        %v2970 = vld [vmem:[#allocation12 + $0x1d8] sm:$0xff]
        %v2971 = vld [vmem:[#allocation12 + $0x1e0] sm:$0xff]
        %v2972 = vld [vmem:[#allocation12 + $0x1e8] sm:$0xff]
        %v2973 = vld [vmem:[#allocation12 + $0x1f0] sm:$0xff]
        %v2974 = vld [vmem:[#allocation12 + $0x1f8] sm:$0xff]
        %v2975 = vld [vmem:[#allocation12 + $0x200] sm:$0xff]
        %v2976 = vld [vmem:[#allocation12 + $0x208] sm:$0xff]
        %v2977 = vld [vmem:[#allocation12 + $0x210] sm:$0xff]
        %v2978 = vld [vmem:[#allocation12 + $0x218] sm:$0xff]
        %v2979 = vld [vmem:[#allocation12 + $0x220] sm:$0xff]
        %v2980 = vld [vmem:[#allocation12 + $0x228] sm:$0xff]
        %v2981 = vld [vmem:[#allocation12 + $0x230] sm:$0xff]
        %v2982 = vld [vmem:[#allocation12 + $0x238] sm:$0xff]
        %v2983 = vld [vmem:[#allocation12 + $0x240] sm:$0xff]
        %v2984 = vld [vmem:[#allocation12 + $0x248] sm:$0xff]
        %v2985 = vld [vmem:[#allocation12 + $0x250] sm:$0xff]
        %v2986 = vld [vmem:[#allocation12 + $0x258] sm:$0xff]
        %v2987 = vld [vmem:[#allocation12 + $0x260] sm:$0xff]
        %v2988 = vld [vmem:[#allocation12 + $0x268] sm:$0xff]
        %v2989 = vld [vmem:[#allocation12 + $0x270] sm:$0xff]
        %v2990 = vld [vmem:[#allocation12 + $0x278] sm:$0xff]
        %v2991 = vld [vmem:[#allocation12 + $0x280] sm:$0xff]
        %v2992 = vld [vmem:[#allocation12 + $0x288] sm:$0xff]
        %v2993 = vld [vmem:[#allocation12 + $0x290] sm:$0xff]
        %v2994 = vld [vmem:[#allocation12 + $0x298] sm:$0xff]
        %v2995 = vld [vmem:[#allocation12 + $0x2a0] sm:$0xff]
        %v2996 = vld [vmem:[#allocation12 + $0x2a8] sm:$0xff]
        %v2997 = vld [vmem:[#allocation12 + $0x2b0] sm:$0xff]
        %v2998 = vld [vmem:[#allocation12 + $0x2b8] sm:$0xff]
        %v2999 = vld [vmem:[#allocation12 + $0x2c0] sm:$0xff]
        %v3000 = vld [vmem:[#allocation12 + $0x2c8] sm:$0xff]
        %v3001 = vld [vmem:[#allocation12 + $0x2d0] sm:$0xff]
        %v3002 = vld [vmem:[#allocation12 + $0x2d8] sm:$0xff]
        %v3003 = vld [vmem:[#allocation12 + $0x2e0] sm:$0xff]
        %v3004 = vld [vmem:[#allocation12 + $0x2e8] sm:$0xff]
        %v3005 = vld [vmem:[#allocation12 + $0x2f0] sm:$0xff]
        %v3006 = vld [vmem:[#allocation12 + $0x2f8] sm:$0xff]
        %v3007 = vld [vmem:[#allocation12 + $0x300] sm:$0xff]
        %v3008 = vld [vmem:[#allocation12 + $0x308] sm:$0xff]
        %v3009 = vld [vmem:[#allocation12 + $0x310] sm:$0xff]
        %v3010 = vld [vmem:[#allocation12 + $0x318] sm:$0xff]
        %v3011 = vld [vmem:[#allocation12 + $0x320] sm:$0xff]
        %v3012 = vld [vmem:[#allocation12 + $0x328] sm:$0xff]
        %v3013 = vld [vmem:[#allocation12 + $0x330] sm:$0xff]
        %v3014 = vld [vmem:[#allocation12 + $0x338] sm:$0xff]
        %v3015 = vld [vmem:[#allocation12 + $0x340] sm:$0xff]
        %v3016 = vld [vmem:[#allocation12 + $0x348] sm:$0xff]
        %v3017 = vld [vmem:[#allocation12 + $0x350] sm:$0xff]
        %v3018 = vld [vmem:[#allocation12 + $0x358] sm:$0xff]
        %v3019 = vld [vmem:[#allocation12 + $0x360] sm:$0xff]
        %v3020 = vld [vmem:[#allocation12 + $0x368] sm:$0xff]
        %v3021 = vld [vmem:[#allocation12 + $0x370] sm:$0xff]
        %v3022 = vld [vmem:[#allocation12 + $0x378] sm:$0xff]
        %v3023 = vld [vmem:[#allocation12 + $0x380] sm:$0xff]
        %v3024 = vld [vmem:[#allocation12 + $0x388] sm:$0xff]
        %v3025 = vld [vmem:[#allocation12 + $0x390] sm:$0xff]
        %v3026 = vld [vmem:[#allocation12 + $0x398] sm:$0xff]
        %v3027 = vld [vmem:[#allocation12 + $0x3a0] sm:$0xff]
        %v3028 = vld [vmem:[#allocation12 + $0x3a8] sm:$0xff]
        %v3029 = vld [vmem:[#allocation12 + $0x3b0] sm:$0xff]
        %v3030 = vld [vmem:[#allocation12 + $0x3b8] sm:$0xff]
        %v3031 = vld [vmem:[#allocation12 + $0x3c0] sm:$0xff]
        %v3032 = vld [vmem:[#allocation12 + $0x3c8] sm:$0xff]
        %v3033 = vld [vmem:[#allocation12 + $0x3d0] sm:$0xff]
        %v3034 = vld [vmem:[#allocation12 + $0x3d8] sm:$0xff]
        %v3035 = vld [vmem:[#allocation12 + $0x3e0] sm:$0xff]
        %v3036 = vld [vmem:[#allocation12 + $0x3e8] sm:$0xff]
        %v3037 = vld [vmem:[#allocation12 + $0x3f0] sm:$0xff]
        %v3038 = vld [vmem:[#allocation12 + $0x3f8] sm:$0xff]
        %v3039 = vld [vmem:[#allocation12 + $0x400] sm:$0xff]
        %v3040 = vld [vmem:[#allocation12 + $0x408] sm:$0xff]
        %v3041 = vld [vmem:[#allocation12 + $0x410] sm:$0xff]
        %v3042 = vld [vmem:[#allocation12 + $0x418] sm:$0xff]
        %v3043 = vld [vmem:[#allocation12 + $0x420] sm:$0xff]
        %v3044 = vld [vmem:[#allocation12 + $0x428] sm:$0xff]
        %v3045 = vld [vmem:[#allocation12 + $0x430] sm:$0xff]
        %v3046 = vld [vmem:[#allocation12 + $0x438] sm:$0xff]
        %v3047 = vld [vmem:[#allocation12 + $0x440] sm:$0xff]
        %v3048 = vld [vmem:[#allocation12 + $0x448] sm:$0xff]
        %v3049 = vld [vmem:[#allocation12 + $0x450] sm:$0xff]
        %v3050 = vld [vmem:[#allocation12 + $0x458] sm:$0xff]
        %v3051 = vld [vmem:[#allocation12 + $0x460] sm:$0xff]
        %v3052 = vld [vmem:[#allocation12 + $0x468] sm:$0xff]
        %v3053 = vld [vmem:[#allocation12 + $0x470] sm:$0xff]
        %v3054 = vld [vmem:[#allocation12 + $0x478] sm:$0xff]
        %v3055 = vld [vmem:[#allocation12 + $0x480] sm:$0xff]
        %v3056 = vld [vmem:[#allocation12 + $0x488] sm:$0xff]
        %v3057 = vld [vmem:[#allocation12 + $0x490] sm:$0xff]
        %v3058 = vld [vmem:[#allocation12 + $0x498] sm:$0xff]
        %v3059 = vld [vmem:[#allocation12 + $0x4a0] sm:$0xff]
        %v3060 = vld [vmem:[#allocation12 + $0x4a8] sm:$0xff]
        %v3061 = vld [vmem:[#allocation12 + $0x4b0] sm:$0xff]
        %v3062 = vld [vmem:[#allocation12 + $0x4b8] sm:$0xff]
        %v3063 = vld [vmem:[#allocation12 + $0x4c0] sm:$0xff]
        %v3064 = vld [vmem:[#allocation12 + $0x4c8] sm:$0xff]
        %v3065 = vld [vmem:[#allocation12 + $0x4d0] sm:$0xff]
        %v3066 = vld [vmem:[#allocation12 + $0x4d8] sm:$0xff]
        %v3067 = vld [vmem:[#allocation12 + $0x4e0] sm:$0xff]
        %v3068 = vld [vmem:[#allocation12 + $0x4e8] sm:$0xff]
        %v3069 = vld [vmem:[#allocation12 + $0x4f0] sm:$0xff]
        %v3070 = vld [vmem:[#allocation12 + $0x4f8] sm:$0xff]
        %v3071 = vld [vmem:[#allocation12 + $0x500] sm:$0xff]
        %v3072 = vld [vmem:[#allocation12 + $0x508] sm:$0xff]
        %v3073 = vld [vmem:[#allocation12 + $0x510] sm:$0xff]
        %v3074 = vld [vmem:[#allocation12 + $0x518] sm:$0xff]
        %v3075 = vld [vmem:[#allocation12 + $0x520] sm:$0xff]
        %v3076 = vld [vmem:[#allocation12 + $0x528] sm:$0xff]
        %v3077 = vld [vmem:[#allocation12 + $0x530] sm:$0xff]
        %v3078 = vld [vmem:[#allocation12 + $0x538] sm:$0xff]
        %v3079 = vld [vmem:[#allocation12 + $0x540] sm:$0xff]
        %v3080 = vld [vmem:[#allocation12 + $0x548] sm:$0xff]
        %v3081 = vld [vmem:[#allocation12 + $0x550] sm:$0xff]
        %v3082 = vld [vmem:[#allocation12 + $0x558] sm:$0xff]
        %v3083 = vld [vmem:[#allocation12 + $0x560] sm:$0xff]
        %v3084 = vld [vmem:[#allocation12 + $0x568] sm:$0xff]
        %v3085 = vld [vmem:[#allocation12 + $0x570] sm:$0xff]
        %v3086 = vld [vmem:[#allocation12 + $0x578] sm:$0xff]
        %v3087 = vld [vmem:[#allocation12 + $0x580] sm:$0xff]
        %v3088 = vld [vmem:[#allocation12 + $0x588] sm:$0xff]
        %v3089 = vld [vmem:[#allocation12 + $0x590] sm:$0xff]
        %v3090 = vld [vmem:[#allocation12 + $0x598] sm:$0xff]
        %v3091 = vld [vmem:[#allocation12 + $0x5a0] sm:$0xff]
        %v3092 = vld [vmem:[#allocation12 + $0x5a8] sm:$0xff]
        %v3093 = vld [vmem:[#allocation12 + $0x5b0] sm:$0xff]
        %v3094 = vld [vmem:[#allocation12 + $0x5b8] sm:$0xff]
        %v3095 = vld [vmem:[#allocation12 + $0x5c0] sm:$0xff]
        %v3096 = vld [vmem:[#allocation12 + $0x5c8] sm:$0xff]
        %v3097 = vld [vmem:[#allocation12 + $0x5d0] sm:$0xff]
        %v3098 = vld [vmem:[#allocation12 + $0x5d8] sm:$0xff]
        %v3099 = vld [vmem:[#allocation12 + $0x5e0] sm:$0xff]
        %v3100 = vld [vmem:[#allocation12 + $0x5e8] sm:$0xff]
        %v3101 = vld [vmem:[#allocation12 + $0x5f0] sm:$0xff]
        %v3102 = vld [vmem:[#allocation12 + $0x5f8] sm:$0xff]
        %v3103 = vld [vmem:[#allocation12 + $0x600] sm:$0xff]
        %v3104 = vld [vmem:[#allocation12 + $0x608] sm:$0xff]
        %v3105 = vld [vmem:[#allocation12 + $0x610] sm:$0xff]
        %v3106 = vld [vmem:[#allocation12 + $0x618] sm:$0xff]
        %v3107 = vld [vmem:[#allocation12 + $0x620] sm:$0xff]
        %v3108 = vld [vmem:[#allocation12 + $0x628] sm:$0xff]
        %v3109 = vld [vmem:[#allocation12 + $0x630] sm:$0xff]
        %v3110 = vld [vmem:[#allocation12 + $0x638] sm:$0xff]
        %v3111 = vld [vmem:[#allocation12 + $0x640] sm:$0xff]
        %v3112 = vld [vmem:[#allocation12 + $0x648] sm:$0xff]
        %v3113 = vld [vmem:[#allocation12 + $0x650] sm:$0xff]
        %v3114 = vld [vmem:[#allocation12 + $0x658] sm:$0xff]
        %v3115 = vld [vmem:[#allocation12 + $0x660] sm:$0xff]
        %v3116 = vld [vmem:[#allocation12 + $0x668] sm:$0xff]
        %v3117 = vld [vmem:[#allocation12 + $0x670] sm:$0xff]
        %v3118 = vld [vmem:[#allocation12 + $0x678] sm:$0xff]
        %v3119 = vld [vmem:[#allocation12 + $0x680] sm:$0xff]
        %v3120 = vld [vmem:[#allocation12 + $0x688] sm:$0xff]
        %v3121 = vld [vmem:[#allocation12 + $0x690] sm:$0xff]
        %v3122 = vld [vmem:[#allocation12 + $0x698] sm:$0xff]
        %v3123 = vld [vmem:[#allocation12 + $0x6a0] sm:$0xff]
        %v3124 = vld [vmem:[#allocation12 + $0x6a8] sm:$0xff]
        %v3125 = vld [vmem:[#allocation12 + $0x6b0] sm:$0xff]
        %v3126 = vld [vmem:[#allocation12 + $0x6b8] sm:$0xff]
        %v3127 = vld [vmem:[#allocation12 + $0x6c0] sm:$0xff]
        %v3128 = vld [vmem:[#allocation12 + $0x6c8] sm:$0xff]
        %v3129 = vld [vmem:[#allocation12 + $0x6d0] sm:$0xff]
        %v3130 = vld [vmem:[#allocation12 + $0x6d8] sm:$0xff]
        %v3131 = vld [vmem:[#allocation12 + $0x6e0] sm:$0xff]
        %v3132 = vld [vmem:[#allocation12 + $0x6e8] sm:$0xff]
        %v3133 = vld [vmem:[#allocation12 + $0x6f0] sm:$0xff]
        %v3134 = vld [vmem:[#allocation12 + $0x6f8] sm:$0xff]
        %v3135 = vld [vmem:[#allocation12 + $0x700] sm:$0xff]
        %v3136 = vld [vmem:[#allocation12 + $0x708] sm:$0xff]
        %v3137 = vld [vmem:[#allocation12 + $0x710] sm:$0xff]
        %v3138 = vld [vmem:[#allocation12 + $0x718] sm:$0xff]
        %v3139 = vld [vmem:[#allocation12 + $0x720] sm:$0xff]
        %v3140 = vld [vmem:[#allocation12 + $0x728] sm:$0xff]
        %v3141 = vld [vmem:[#allocation12 + $0x730] sm:$0xff]
        %v3142 = vld [vmem:[#allocation12 + $0x738] sm:$0xff]
        %v3143 = vld [vmem:[#allocation12 + $0x740] sm:$0xff]
        %v3144 = vld [vmem:[#allocation12 + $0x748] sm:$0xff]
        %v3145 = vld [vmem:[#allocation12 + $0x750] sm:$0xff]
        %v3146 = vld [vmem:[#allocation12 + $0x758] sm:$0xff]
        %v3147 = vld [vmem:[#allocation12 + $0x760] sm:$0xff]
        %v3148 = vld [vmem:[#allocation12 + $0x768] sm:$0xff]
        %v3149 = vld [vmem:[#allocation12 + $0x770] sm:$0xff]
        %v3150 = vld [vmem:[#allocation12 + $0x778] sm:$0xff]
        %v3151 = vld [vmem:[#allocation12 + $0x780] sm:$0xff]
        %v3152 = vld [vmem:[#allocation12 + $0x788] sm:$0xff]
        %v3153 = vld [vmem:[#allocation12 + $0x790] sm:$0xff]
        %v3154 = vld [vmem:[#allocation12 + $0x798] sm:$0xff]
        %v3155 = vld [vmem:[#allocation12 + $0x7a0] sm:$0xff]
        %v3156 = vld [vmem:[#allocation12 + $0x7a8] sm:$0xff]
        %v3157 = vld [vmem:[#allocation12 + $0x7b0] sm:$0xff]
        %v3158 = vld [vmem:[#allocation12 + $0x7b8] sm:$0xff]
        %v3159 = vld [vmem:[#allocation12 + $0x7c0] sm:$0xff]
        %v3160 = vld [vmem:[#allocation12 + $0x7c8] sm:$0xff]
        %v3161 = vld [vmem:[#allocation12 + $0x7d0] sm:$0xff]
        %v3162 = vld [vmem:[#allocation12 + $0x7d8] sm:$0xff]
        %v3163 = vld [vmem:[#allocation12 + $0x7e0] sm:$0xff]
        %v3164 = vld [vmem:[#allocation12 + $0x7e8] sm:$0xff]
        %v3165 = vld [vmem:[#allocation12 + $0x7f0] sm:$0xff]
        %v3166 = vld [vmem:[#allocation12 + $0x7f8] sm:$0xff]
        %3167 = vmatpush.msra.mxu0 %v2971
        %3168 = vmatpush.msra.mxu0 %v2967
        %3169 = vmatpush.msra.mxu0 %v2963
        %3170 = vmatpush.msra.mxu0 %v2959
        %3171 = vmatpush.msra.mxu0 %v2955
        %3172 = vmatpush.msra.mxu0 %v2951
        %3173 = vmatpush.msra.mxu0 %v2947
        %3174 = vmatpush.msra.mxu0 %v2943
        %3175 = vmatpush.msra.mxu0 %v2939
        %3176 = vmatpush.msra.mxu0 %v2935
        %3177 = vmatpush.msra.mxu0 %v2931
        %3178 = vmatpush.msra.mxu0 %v2927
        %3179 = vmatpush.msra.mxu0 %v2923
        %3180 = vmatpush.msra.mxu0 %v2919
        %3181 = vmatpush.msra.mxu0 %v2915
        %3182 = vmatpush.msra.mxu0 %v2911
        %3183 = vmatmul.f32.gmra.mxu0 %v2907
        %v3184 = vpop.f32.mrf.mxu0
        %v3185 = vadd.f32 %v1645, %v3184
        %3186 = vdwg.mxu0
        %3187 = vmatpush.msra.mxu0 %v3035
        %3188 = vmatpush.msra.mxu0 %v3031
        %3189 = vmatpush.msra.mxu0 %v3027
        %3190 = vmatpush.msra.mxu0 %v3023
        %3191 = vmatpush.msra.mxu0 %v3019
        %3192 = vmatpush.msra.mxu0 %v3015
        %3193 = vmatpush.msra.mxu0 %v3011
        %3194 = vmatpush.msra.mxu0 %v3007
        %3195 = vmatpush.msra.mxu0 %v3003
        %3196 = vmatpush.msra.mxu0 %v2999
        %3197 = vmatpush.msra.mxu0 %v2995
        %3198 = vmatpush.msra.mxu0 %v2991
        %3199 = vmatpush.msra.mxu0 %v2987
        %3200 = vmatpush.msra.mxu0 %v2983
        %3201 = vmatpush.msra.mxu0 %v2979
        %3202 = vmatpush.msra.mxu0 %v2975
        %3203 = vmatmul.f32.gmra.mxu0 %v2908
        %v3204 = vpop.f32.mrf.mxu0
        %v3205 = vadd.f32 %v3185, %v3204
        %3206 = vdwg.mxu0
        %3207 = vmatpush.msra.mxu0 %v3099
        %3208 = vmatpush.msra.mxu0 %v3095
        %3209 = vmatpush.msra.mxu0 %v3091
        %3210 = vmatpush.msra.mxu0 %v3087
        %3211 = vmatpush.msra.mxu0 %v3083
        %3212 = vmatpush.msra.mxu0 %v3079
        %3213 = vmatpush.msra.mxu0 %v3075
        %3214 = vmatpush.msra.mxu0 %v3071
        %3215 = vmatpush.msra.mxu0 %v3067
        %3216 = vmatpush.msra.mxu0 %v3063
        %3217 = vmatpush.msra.mxu0 %v3059
        %3218 = vmatpush.msra.mxu0 %v3055
        %3219 = vmatpush.msra.mxu0 %v3051
        %3220 = vmatpush.msra.mxu0 %v3047
        %3221 = vmatpush.msra.mxu0 %v3043
        %3222 = vmatpush.msra.mxu0 %v3039
        %3223 = vmatmul.f32.gmra.mxu0 %v2909
        %v3224 = vpop.f32.mrf.mxu0
        %v3225 = vadd.f32 %v3205, %v3224
        %3226 = vdwg.mxu0
        %3227 = vmatpush.msra.mxu0 %v3163
        %3228 = vmatpush.msra.mxu0 %v3159
        %3229 = vmatpush.msra.mxu0 %v3155
        %3230 = vmatpush.msra.mxu0 %v3151
        %3231 = vmatpush.msra.mxu0 %v3147
        %3232 = vmatpush.msra.mxu0 %v3143
        %3233 = vmatpush.msra.mxu0 %v3139
        %3234 = vmatpush.msra.mxu0 %v3135
        %3235 = vmatpush.msra.mxu0 %v3131
        %3236 = vmatpush.msra.mxu0 %v3127
        %3237 = vmatpush.msra.mxu0 %v3123
        %3238 = vmatpush.msra.mxu0 %v3119
        %3239 = vmatpush.msra.mxu0 %v3115
        %3240 = vmatpush.msra.mxu0 %v3111
        %3241 = vmatpush.msra.mxu0 %v3107
        %3242 = vmatpush.msra.mxu0 %v3103
        %3243 = vmatmul.f32.gmra.mxu0 %v2910
        %v3244 = vpop.f32.mrf.mxu0
        %v3245 = vadd.f32 %v3225, %v3244
        %3246 = vdwg.mxu0
        %3247 = vmatpush.msra.mxu0 %v2972
        %3248 = vmatpush.msra.mxu0 %v2968
        %3249 = vmatpush.msra.mxu0 %v2964
        %3250 = vmatpush.msra.mxu0 %v2960
        %3251 = vmatpush.msra.mxu0 %v2956
        %3252 = vmatpush.msra.mxu0 %v2952
        %3253 = vmatpush.msra.mxu0 %v2948
        %3254 = vmatpush.msra.mxu0 %v2944
        %3255 = vmatpush.msra.mxu0 %v2940
        %3256 = vmatpush.msra.mxu0 %v2936
        %3257 = vmatpush.msra.mxu0 %v2932
        %3258 = vmatpush.msra.mxu0 %v2928
        %3259 = vmatpush.msra.mxu0 %v2924
        %3260 = vmatpush.msra.mxu0 %v2920
        %3261 = vmatpush.msra.mxu0 %v2916
        %3262 = vmatpush.msra.mxu0 %v2912
        %3263 = vmatmul.f32.gmra.mxu0 %v2907
        %v3264 = vpop.f32.mrf.mxu0
        %v3265 = vadd.f32 %v1646, %v3264
        %3266 = vdwg.mxu0
        %3267 = vmatpush.msra.mxu0 %v3036
        %3268 = vmatpush.msra.mxu0 %v3032
        %3269 = vmatpush.msra.mxu0 %v3028
        %3270 = vmatpush.msra.mxu0 %v3024
        %3271 = vmatpush.msra.mxu0 %v3020
        %3272 = vmatpush.msra.mxu0 %v3016
        %3273 = vmatpush.msra.mxu0 %v3012
        %3274 = vmatpush.msra.mxu0 %v3008
        %3275 = vmatpush.msra.mxu0 %v3004
        %3276 = vmatpush.msra.mxu0 %v3000
        %3277 = vmatpush.msra.mxu0 %v2996
        %3278 = vmatpush.msra.mxu0 %v2992
        %3279 = vmatpush.msra.mxu0 %v2988
        %3280 = vmatpush.msra.mxu0 %v2984
        %3281 = vmatpush.msra.mxu0 %v2980
        %3282 = vmatpush.msra.mxu0 %v2976
        %3283 = vmatmul.f32.gmra.mxu0 %v2908
        %v3284 = vpop.f32.mrf.mxu0
        %v3285 = vadd.f32 %v3265, %v3284
        %3286 = vdwg.mxu0
        %3287 = vmatpush.msra.mxu0 %v3100
        %3288 = vmatpush.msra.mxu0 %v3096
        %3289 = vmatpush.msra.mxu0 %v3092
        %3290 = vmatpush.msra.mxu0 %v3088
        %3291 = vmatpush.msra.mxu0 %v3084
        %3292 = vmatpush.msra.mxu0 %v3080
        %3293 = vmatpush.msra.mxu0 %v3076
        %3294 = vmatpush.msra.mxu0 %v3072
        %3295 = vmatpush.msra.mxu0 %v3068
        %3296 = vmatpush.msra.mxu0 %v3064
        %3297 = vmatpush.msra.mxu0 %v3060
        %3298 = vmatpush.msra.mxu0 %v3056
        %3299 = vmatpush.msra.mxu0 %v3052
        %3300 = vmatpush.msra.mxu0 %v3048
        %3301 = vmatpush.msra.mxu0 %v3044
        %3302 = vmatpush.msra.mxu0 %v3040
        %3303 = vmatmul.f32.gmra.mxu0 %v2909
        %v3304 = vpop.f32.mrf.mxu0
        %v3305 = vadd.f32 %v3285, %v3304
        %3306 = vdwg.mxu0
        %3307 = vmatpush.msra.mxu0 %v3164
        %3308 = vmatpush.msra.mxu0 %v3160
        %3309 = vmatpush.msra.mxu0 %v3156
        %3310 = vmatpush.msra.mxu0 %v3152
        %3311 = vmatpush.msra.mxu0 %v3148
        %3312 = vmatpush.msra.mxu0 %v3144
        %3313 = vmatpush.msra.mxu0 %v3140
        %3314 = vmatpush.msra.mxu0 %v3136
        %3315 = vmatpush.msra.mxu0 %v3132
        %3316 = vmatpush.msra.mxu0 %v3128
        %3317 = vmatpush.msra.mxu0 %v3124
        %3318 = vmatpush.msra.mxu0 %v3120
        %3319 = vmatpush.msra.mxu0 %v3116
        %3320 = vmatpush.msra.mxu0 %v3112
        %3321 = vmatpush.msra.mxu0 %v3108
        %3322 = vmatpush.msra.mxu0 %v3104
        %3323 = vmatmul.f32.gmra.mxu0 %v2910
        %v3324 = vpop.f32.mrf.mxu0
        %v3325 = vadd.f32 %v3305, %v3324
        %3326 = vdwg.mxu0
        %3327 = vmatpush.msra.mxu0 %v2973
        %3328 = vmatpush.msra.mxu0 %v2969
        %3329 = vmatpush.msra.mxu0 %v2965
        %3330 = vmatpush.msra.mxu0 %v2961
        %3331 = vmatpush.msra.mxu0 %v2957
        %3332 = vmatpush.msra.mxu0 %v2953
        %3333 = vmatpush.msra.mxu0 %v2949
        %3334 = vmatpush.msra.mxu0 %v2945
        %3335 = vmatpush.msra.mxu0 %v2941
        %3336 = vmatpush.msra.mxu0 %v2937
        %3337 = vmatpush.msra.mxu0 %v2933
        %3338 = vmatpush.msra.mxu0 %v2929
        %3339 = vmatpush.msra.mxu0 %v2925
        %3340 = vmatpush.msra.mxu0 %v2921
        %3341 = vmatpush.msra.mxu0 %v2917
        %3342 = vmatpush.msra.mxu0 %v2913
        %3343 = vmatmul.f32.gmra.mxu0 %v2907
        %v3344 = vpop.f32.mrf.mxu0
        %v3345 = vadd.f32 %v1647, %v3344
        %3346 = vdwg.mxu0
        %3347 = vmatpush.msra.mxu0 %v3037
        %3348 = vmatpush.msra.mxu0 %v3033
        %3349 = vmatpush.msra.mxu0 %v3029
        %3350 = vmatpush.msra.mxu0 %v3025
        %3351 = vmatpush.msra.mxu0 %v3021
        %3352 = vmatpush.msra.mxu0 %v3017
        %3353 = vmatpush.msra.mxu0 %v3013
        %3354 = vmatpush.msra.mxu0 %v3009
        %3355 = vmatpush.msra.mxu0 %v3005
        %3356 = vmatpush.msra.mxu0 %v3001
        %3357 = vmatpush.msra.mxu0 %v2997
        %3358 = vmatpush.msra.mxu0 %v2993
        %3359 = vmatpush.msra.mxu0 %v2989
        %3360 = vmatpush.msra.mxu0 %v2985
        %3361 = vmatpush.msra.mxu0 %v2981
        %3362 = vmatpush.msra.mxu0 %v2977
        %3363 = vmatmul.f32.gmra.mxu0 %v2908
        %v3364 = vpop.f32.mrf.mxu0
        %v3365 = vadd.f32 %v3345, %v3364
        %3366 = vdwg.mxu0
        %3367 = vmatpush.msra.mxu0 %v3101
        %3368 = vmatpush.msra.mxu0 %v3097
        %3369 = vmatpush.msra.mxu0 %v3093
        %3370 = vmatpush.msra.mxu0 %v3089
        %3371 = vmatpush.msra.mxu0 %v3085
        %3372 = vmatpush.msra.mxu0 %v3081
        %3373 = vmatpush.msra.mxu0 %v3077
        %3374 = vmatpush.msra.mxu0 %v3073
        %3375 = vmatpush.msra.mxu0 %v3069
        %3376 = vmatpush.msra.mxu0 %v3065
        %3377 = vmatpush.msra.mxu0 %v3061
        %3378 = vmatpush.msra.mxu0 %v3057
        %3379 = vmatpush.msra.mxu0 %v3053
        %3380 = vmatpush.msra.mxu0 %v3049
        %3381 = vmatpush.msra.mxu0 %v3045
        %3382 = vmatpush.msra.mxu0 %v3041
        %3383 = vmatmul.f32.gmra.mxu0 %v2909
        %v3384 = vpop.f32.mrf.mxu0
        %v3385 = vadd.f32 %v3365, %v3384
        %3386 = vdwg.mxu0
        %3387 = vmatpush.msra.mxu0 %v3165
        %3388 = vmatpush.msra.mxu0 %v3161
        %3389 = vmatpush.msra.mxu0 %v3157
        %3390 = vmatpush.msra.mxu0 %v3153
        %3391 = vmatpush.msra.mxu0 %v3149
        %3392 = vmatpush.msra.mxu0 %v3145
        %3393 = vmatpush.msra.mxu0 %v3141
        %3394 = vmatpush.msra.mxu0 %v3137
        %3395 = vmatpush.msra.mxu0 %v3133
        %3396 = vmatpush.msra.mxu0 %v3129
        %3397 = vmatpush.msra.mxu0 %v3125
        %3398 = vmatpush.msra.mxu0 %v3121
        %3399 = vmatpush.msra.mxu0 %v3117
        %3400 = vmatpush.msra.mxu0 %v3113
        %3401 = vmatpush.msra.mxu0 %v3109
        %3402 = vmatpush.msra.mxu0 %v3105
        %3403 = vmatmul.f32.gmra.mxu0 %v2910
        %v3404 = vpop.f32.mrf.mxu0
        %v3405 = vadd.f32 %v3385, %v3404
        %3406 = vdwg.mxu0
        %3407 = vmatpush.msra.mxu0 %v2974
        %3408 = vmatpush.msra.mxu0 %v2970
        %3409 = vmatpush.msra.mxu0 %v2966
        %3410 = vmatpush.msra.mxu0 %v2962
        %3411 = vmatpush.msra.mxu0 %v2958
        %3412 = vmatpush.msra.mxu0 %v2954
        %3413 = vmatpush.msra.mxu0 %v2950
        %3414 = vmatpush.msra.mxu0 %v2946
        %3415 = vmatpush.msra.mxu0 %v2942
        %3416 = vmatpush.msra.mxu0 %v2938
        %3417 = vmatpush.msra.mxu0 %v2934
        %3418 = vmatpush.msra.mxu0 %v2930
        %3419 = vmatpush.msra.mxu0 %v2926
        %3420 = vmatpush.msra.mxu0 %v2922
        %3421 = vmatpush.msra.mxu0 %v2918
        %3422 = vmatpush.msra.mxu0 %v2914
        %3423 = vmatmul.f32.gmra.mxu0 %v2907
        %v3424 = vpop.f32.mrf.mxu0
        %v3425 = vadd.f32 %v1648, %v3424
        %3426 = vdwg.mxu0
        %3427 = vmatpush.msra.mxu0 %v3038
        %3428 = vmatpush.msra.mxu0 %v3034
        %3429 = vmatpush.msra.mxu0 %v3030
        %3430 = vmatpush.msra.mxu0 %v3026
        %3431 = vmatpush.msra.mxu0 %v3022
        %3432 = vmatpush.msra.mxu0 %v3018
        %3433 = vmatpush.msra.mxu0 %v3014
        %3434 = vmatpush.msra.mxu0 %v3010
        %3435 = vmatpush.msra.mxu0 %v3006
        %3436 = vmatpush.msra.mxu0 %v3002
        %3437 = vmatpush.msra.mxu0 %v2998
        %3438 = vmatpush.msra.mxu0 %v2994
        %3439 = vmatpush.msra.mxu0 %v2990
        %3440 = vmatpush.msra.mxu0 %v2986
        %3441 = vmatpush.msra.mxu0 %v2982
        %3442 = vmatpush.msra.mxu0 %v2978
        %3443 = vmatmul.f32.gmra.mxu0 %v2908
        %v3444 = vpop.f32.mrf.mxu0
        %v3445 = vadd.f32 %v3425, %v3444
        %3446 = vdwg.mxu0
        %3447 = vmatpush.msra.mxu0 %v3102
        %3448 = vmatpush.msra.mxu0 %v3098
        %3449 = vmatpush.msra.mxu0 %v3094
        %3450 = vmatpush.msra.mxu0 %v3090
        %3451 = vmatpush.msra.mxu0 %v3086
        %3452 = vmatpush.msra.mxu0 %v3082
        %3453 = vmatpush.msra.mxu0 %v3078
        %3454 = vmatpush.msra.mxu0 %v3074
        %3455 = vmatpush.msra.mxu0 %v3070
        %3456 = vmatpush.msra.mxu0 %v3066
        %3457 = vmatpush.msra.mxu0 %v3062
        %3458 = vmatpush.msra.mxu0 %v3058
        %3459 = vmatpush.msra.mxu0 %v3054
        %3460 = vmatpush.msra.mxu0 %v3050
        %3461 = vmatpush.msra.mxu0 %v3046
        %3462 = vmatpush.msra.mxu0 %v3042
        %3463 = vmatmul.f32.gmra.mxu0 %v2909
        %v3464 = vpop.f32.mrf.mxu0
        %v3465 = vadd.f32 %v3445, %v3464
        %3466 = vdwg.mxu0
        %3467 = vmatpush.msra.mxu0 %v3166
        %3468 = vmatpush.msra.mxu0 %v3162
        %3469 = vmatpush.msra.mxu0 %v3158
        %3470 = vmatpush.msra.mxu0 %v3154
        %3471 = vmatpush.msra.mxu0 %v3150
        %3472 = vmatpush.msra.mxu0 %v3146
        %3473 = vmatpush.msra.mxu0 %v3142
        %3474 = vmatpush.msra.mxu0 %v3138
        %3475 = vmatpush.msra.mxu0 %v3134
        %3476 = vmatpush.msra.mxu0 %v3130
        %3477 = vmatpush.msra.mxu0 %v3126
        %3478 = vmatpush.msra.mxu0 %v3122
        %3479 = vmatpush.msra.mxu0 %v3118
        %3480 = vmatpush.msra.mxu0 %v3114
        %3481 = vmatpush.msra.mxu0 %v3110
        %3482 = vmatpush.msra.mxu0 %v3106
        %3483 = vmatmul.f32.gmra.mxu0 %v2910
        %v3484 = vpop.f32.mrf.mxu0
        %v3485 = vadd.f32 %v3465, %v3484
        %3486 = vdwg.mxu0
        %v3487 = vadd.f32 %v3245, %v3325
        %v3488 = vadd.f32 %v3487, %v3405
        %v3489 = vadd.f32 %v3488, %v3485
        %3490 = vadd.xlane.f32.xlu0 %v3489
        %v3491 = vpop.xlane.xlu0 %3490
        %v3492 = vrcp.pop 512.0
        %v3493 = vmul.f32 512.0, %v3492
        %v3494 = vsub.f32 1.0, %v3493
        %v3495 = vmul.f32 %v3492, %v3494
        %v3496 = vadd.f32 %v3492, %v3495
        %vm3497 = vweird.f32 %v3492
        %v3498 = vsel %vm3497, %v3492, %v3496
        %v3499 = vmul.f32 %v3491, %v3498
        %v3500 = vsub.f32 %v3245, %v3499
        %v3501 = vsub.f32 %v3325, %v3499
        %v3502 = vsub.f32 %v3405, %v3499
        %v3503 = vsub.f32 %v3485, %v3499
        %v3504 = vmul.f32 %v3500, %v3500
        %v3505 = vmul.f32 %v3501, %v3501
        %v3506 = vmul.f32 %v3502, %v3502
        %v3507 = vmul.f32 %v3503, %v3503
        %v3508 = vadd.f32 %v3504, %v3505
        %v3509 = vadd.f32 %v3508, %v3506
        %v3510 = vadd.f32 %v3509, %v3507
        %3511 = vadd.xlane.f32.xlu0 %v3510
        %v3512 = vpop.xlane.xlu0 %3511
        %v3513 = vmul.f32 %v3512, %v3498
        %v3514 = vadd.f32 %v3513, 1e-05
        %v3515 = vrsqrt.pop %v3514
        %v3516 = vmul.f32 %v3515, %v3514
        %v3517 = vmul.f32 %v3516, %v3515
        %v3518 = vmul.f32 0.5, %v3517
        %v3519 = vsub.f32 1.5, %v3518
        %v3520 = vmul.f32 %v3515, %v3519
        %vm3521 = vweird.f32 %v3514
        %vm3522 = vweird.f32 %v3515
        %vm3523 = vmor %vm3521, %vm3522
        %v3524 = vsel %vm3523, %v3515, %v3520
        %v3525 = vmul.f32 %v3500, %v3524
        %v3526 = vmul.f32 %v3501, %v3524
        %v3527 = vmul.f32 %v3502, %v3524
        %v3528 = vmul.f32 %v3503, %v3524
        %v3529 = vld [vmem:[#allocation13] sm:$0xff]
        %v3530 = vld [vmem:[#allocation13 + $0x8] sm:$0xff]
        %v3531 = vld [vmem:[#allocation13 + $0x10] sm:$0xff]
        %v3532 = vld [vmem:[#allocation13 + $0x18] sm:$0xff]
        %v3533 = vld [vmem:[#allocation13 + $0x20] sm:$0xff]
        %v3534 = vld [vmem:[#allocation13 + $0x28] sm:$0xff]
        %v3535 = vld [vmem:[#allocation13 + $0x30] sm:$0xff]
        %v3536 = vld [vmem:[#allocation13 + $0x38] sm:$0xff]
        %v3537 = vld [vmem:[#allocation13 + $0x40] sm:$0xff]
        %v3538 = vld [vmem:[#allocation13 + $0x48] sm:$0xff]
        %v3539 = vld [vmem:[#allocation13 + $0x50] sm:$0xff]
        %v3540 = vld [vmem:[#allocation13 + $0x58] sm:$0xff]
        %v3541 = vld [vmem:[#allocation13 + $0x60] sm:$0xff]
        %v3542 = vld [vmem:[#allocation13 + $0x68] sm:$0xff]
        %v3543 = vld [vmem:[#allocation13 + $0x70] sm:$0xff]
        %v3544 = vld [vmem:[#allocation13 + $0x78] sm:$0xff]
        %v3545 = vld [vmem:[#allocation13 + $0x80] sm:$0xff]
        %v3546 = vld [vmem:[#allocation13 + $0x88] sm:$0xff]
        %v3547 = vld [vmem:[#allocation13 + $0x90] sm:$0xff]
        %v3548 = vld [vmem:[#allocation13 + $0x98] sm:$0xff]
        %v3549 = vld [vmem:[#allocation13 + $0xa0] sm:$0xff]
        %v3550 = vld [vmem:[#allocation13 + $0xa8] sm:$0xff]
        %v3551 = vld [vmem:[#allocation13 + $0xb0] sm:$0xff]
        %v3552 = vld [vmem:[#allocation13 + $0xb8] sm:$0xff]
        %v3553 = vld [vmem:[#allocation13 + $0xc0] sm:$0xff]
        %v3554 = vld [vmem:[#allocation13 + $0xc8] sm:$0xff]
        %v3555 = vld [vmem:[#allocation13 + $0xd0] sm:$0xff]
        %v3556 = vld [vmem:[#allocation13 + $0xd8] sm:$0xff]
        %v3557 = vld [vmem:[#allocation13 + $0xe0] sm:$0xff]
        %v3558 = vld [vmem:[#allocation13 + $0xe8] sm:$0xff]
        %v3559 = vld [vmem:[#allocation13 + $0xf0] sm:$0xff]
        %v3560 = vld [vmem:[#allocation13 + $0xf8] sm:$0xff]
        %v3561 = vld [vmem:[#allocation13 + $0x100] sm:$0xff]
        %v3562 = vld [vmem:[#allocation13 + $0x108] sm:$0xff]
        %v3563 = vld [vmem:[#allocation13 + $0x110] sm:$0xff]
        %v3564 = vld [vmem:[#allocation13 + $0x118] sm:$0xff]
        %v3565 = vld [vmem:[#allocation13 + $0x120] sm:$0xff]
        %v3566 = vld [vmem:[#allocation13 + $0x128] sm:$0xff]
        %v3567 = vld [vmem:[#allocation13 + $0x130] sm:$0xff]
        %v3568 = vld [vmem:[#allocation13 + $0x138] sm:$0xff]
        %v3569 = vld [vmem:[#allocation13 + $0x140] sm:$0xff]
        %v3570 = vld [vmem:[#allocation13 + $0x148] sm:$0xff]
        %v3571 = vld [vmem:[#allocation13 + $0x150] sm:$0xff]
        %v3572 = vld [vmem:[#allocation13 + $0x158] sm:$0xff]
        %v3573 = vld [vmem:[#allocation13 + $0x160] sm:$0xff]
        %v3574 = vld [vmem:[#allocation13 + $0x168] sm:$0xff]
        %v3575 = vld [vmem:[#allocation13 + $0x170] sm:$0xff]
        %v3576 = vld [vmem:[#allocation13 + $0x178] sm:$0xff]
        %v3577 = vld [vmem:[#allocation13 + $0x180] sm:$0xff]
        %v3578 = vld [vmem:[#allocation13 + $0x188] sm:$0xff]
        %v3579 = vld [vmem:[#allocation13 + $0x190] sm:$0xff]
        %v3580 = vld [vmem:[#allocation13 + $0x198] sm:$0xff]
        %v3581 = vld [vmem:[#allocation13 + $0x1a0] sm:$0xff]
        %v3582 = vld [vmem:[#allocation13 + $0x1a8] sm:$0xff]
        %v3583 = vld [vmem:[#allocation13 + $0x1b0] sm:$0xff]
        %v3584 = vld [vmem:[#allocation13 + $0x1b8] sm:$0xff]
        %v3585 = vld [vmem:[#allocation13 + $0x1c0] sm:$0xff]
        %v3586 = vld [vmem:[#allocation13 + $0x1c8] sm:$0xff]
        %v3587 = vld [vmem:[#allocation13 + $0x1d0] sm:$0xff]
        %v3588 = vld [vmem:[#allocation13 + $0x1d8] sm:$0xff]
        %v3589 = vld [vmem:[#allocation13 + $0x1e0] sm:$0xff]
        %v3590 = vld [vmem:[#allocation13 + $0x1e8] sm:$0xff]
        %v3591 = vld [vmem:[#allocation13 + $0x1f0] sm:$0xff]
        %v3592 = vld [vmem:[#allocation13 + $0x1f8] sm:$0xff]
        %v3593 = vld [vmem:[#allocation13 + $0x200] sm:$0xff]
        %v3594 = vld [vmem:[#allocation13 + $0x208] sm:$0xff]
        %v3595 = vld [vmem:[#allocation13 + $0x210] sm:$0xff]
        %v3596 = vld [vmem:[#allocation13 + $0x218] sm:$0xff]
        %v3597 = vld [vmem:[#allocation13 + $0x220] sm:$0xff]
        %v3598 = vld [vmem:[#allocation13 + $0x228] sm:$0xff]
        %v3599 = vld [vmem:[#allocation13 + $0x230] sm:$0xff]
        %v3600 = vld [vmem:[#allocation13 + $0x238] sm:$0xff]
        %v3601 = vld [vmem:[#allocation13 + $0x240] sm:$0xff]
        %v3602 = vld [vmem:[#allocation13 + $0x248] sm:$0xff]
        %v3603 = vld [vmem:[#allocation13 + $0x250] sm:$0xff]
        %v3604 = vld [vmem:[#allocation13 + $0x258] sm:$0xff]
        %v3605 = vld [vmem:[#allocation13 + $0x260] sm:$0xff]
        %v3606 = vld [vmem:[#allocation13 + $0x268] sm:$0xff]
        %v3607 = vld [vmem:[#allocation13 + $0x270] sm:$0xff]
        %v3608 = vld [vmem:[#allocation13 + $0x278] sm:$0xff]
        %v3609 = vld [vmem:[#allocation13 + $0x280] sm:$0xff]
        %v3610 = vld [vmem:[#allocation13 + $0x288] sm:$0xff]
        %v3611 = vld [vmem:[#allocation13 + $0x290] sm:$0xff]
        %v3612 = vld [vmem:[#allocation13 + $0x298] sm:$0xff]
        %v3613 = vld [vmem:[#allocation13 + $0x2a0] sm:$0xff]
        %v3614 = vld [vmem:[#allocation13 + $0x2a8] sm:$0xff]
        %v3615 = vld [vmem:[#allocation13 + $0x2b0] sm:$0xff]
        %v3616 = vld [vmem:[#allocation13 + $0x2b8] sm:$0xff]
        %v3617 = vld [vmem:[#allocation13 + $0x2c0] sm:$0xff]
        %v3618 = vld [vmem:[#allocation13 + $0x2c8] sm:$0xff]
        %v3619 = vld [vmem:[#allocation13 + $0x2d0] sm:$0xff]
        %v3620 = vld [vmem:[#allocation13 + $0x2d8] sm:$0xff]
        %v3621 = vld [vmem:[#allocation13 + $0x2e0] sm:$0xff]
        %v3622 = vld [vmem:[#allocation13 + $0x2e8] sm:$0xff]
        %v3623 = vld [vmem:[#allocation13 + $0x2f0] sm:$0xff]
        %v3624 = vld [vmem:[#allocation13 + $0x2f8] sm:$0xff]
        %v3625 = vld [vmem:[#allocation13 + $0x300] sm:$0xff]
        %v3626 = vld [vmem:[#allocation13 + $0x308] sm:$0xff]
        %v3627 = vld [vmem:[#allocation13 + $0x310] sm:$0xff]
        %v3628 = vld [vmem:[#allocation13 + $0x318] sm:$0xff]
        %v3629 = vld [vmem:[#allocation13 + $0x320] sm:$0xff]
        %v3630 = vld [vmem:[#allocation13 + $0x328] sm:$0xff]
        %v3631 = vld [vmem:[#allocation13 + $0x330] sm:$0xff]
        %v3632 = vld [vmem:[#allocation13 + $0x338] sm:$0xff]
        %v3633 = vld [vmem:[#allocation13 + $0x340] sm:$0xff]
        %v3634 = vld [vmem:[#allocation13 + $0x348] sm:$0xff]
        %v3635 = vld [vmem:[#allocation13 + $0x350] sm:$0xff]
        %v3636 = vld [vmem:[#allocation13 + $0x358] sm:$0xff]
        %v3637 = vld [vmem:[#allocation13 + $0x360] sm:$0xff]
        %v3638 = vld [vmem:[#allocation13 + $0x368] sm:$0xff]
        %v3639 = vld [vmem:[#allocation13 + $0x370] sm:$0xff]
        %v3640 = vld [vmem:[#allocation13 + $0x378] sm:$0xff]
        %v3641 = vld [vmem:[#allocation13 + $0x380] sm:$0xff]
        %v3642 = vld [vmem:[#allocation13 + $0x388] sm:$0xff]
        %v3643 = vld [vmem:[#allocation13 + $0x390] sm:$0xff]
        %v3644 = vld [vmem:[#allocation13 + $0x398] sm:$0xff]
        %v3645 = vld [vmem:[#allocation13 + $0x3a0] sm:$0xff]
        %v3646 = vld [vmem:[#allocation13 + $0x3a8] sm:$0xff]
        %v3647 = vld [vmem:[#allocation13 + $0x3b0] sm:$0xff]
        %v3648 = vld [vmem:[#allocation13 + $0x3b8] sm:$0xff]
        %v3649 = vld [vmem:[#allocation13 + $0x3c0] sm:$0xff]
        %v3650 = vld [vmem:[#allocation13 + $0x3c8] sm:$0xff]
        %v3651 = vld [vmem:[#allocation13 + $0x3d0] sm:$0xff]
        %v3652 = vld [vmem:[#allocation13 + $0x3d8] sm:$0xff]
        %v3653 = vld [vmem:[#allocation13 + $0x3e0] sm:$0xff]
        %v3654 = vld [vmem:[#allocation13 + $0x3e8] sm:$0xff]
        %v3655 = vld [vmem:[#allocation13 + $0x3f0] sm:$0xff]
        %v3656 = vld [vmem:[#allocation13 + $0x3f8] sm:$0xff]
        %v3657 = vld [vmem:[#allocation13 + $0x400] sm:$0xff]
        %v3658 = vld [vmem:[#allocation13 + $0x408] sm:$0xff]
        %v3659 = vld [vmem:[#allocation13 + $0x410] sm:$0xff]
        %v3660 = vld [vmem:[#allocation13 + $0x418] sm:$0xff]
        %v3661 = vld [vmem:[#allocation13 + $0x420] sm:$0xff]
        %v3662 = vld [vmem:[#allocation13 + $0x428] sm:$0xff]
        %v3663 = vld [vmem:[#allocation13 + $0x430] sm:$0xff]
        %v3664 = vld [vmem:[#allocation13 + $0x438] sm:$0xff]
        %v3665 = vld [vmem:[#allocation13 + $0x440] sm:$0xff]
        %v3666 = vld [vmem:[#allocation13 + $0x448] sm:$0xff]
        %v3667 = vld [vmem:[#allocation13 + $0x450] sm:$0xff]
        %v3668 = vld [vmem:[#allocation13 + $0x458] sm:$0xff]
        %v3669 = vld [vmem:[#allocation13 + $0x460] sm:$0xff]
        %v3670 = vld [vmem:[#allocation13 + $0x468] sm:$0xff]
        %v3671 = vld [vmem:[#allocation13 + $0x470] sm:$0xff]
        %v3672 = vld [vmem:[#allocation13 + $0x478] sm:$0xff]
        %v3673 = vld [vmem:[#allocation13 + $0x480] sm:$0xff]
        %v3674 = vld [vmem:[#allocation13 + $0x488] sm:$0xff]
        %v3675 = vld [vmem:[#allocation13 + $0x490] sm:$0xff]
        %v3676 = vld [vmem:[#allocation13 + $0x498] sm:$0xff]
        %v3677 = vld [vmem:[#allocation13 + $0x4a0] sm:$0xff]
        %v3678 = vld [vmem:[#allocation13 + $0x4a8] sm:$0xff]
        %v3679 = vld [vmem:[#allocation13 + $0x4b0] sm:$0xff]
        %v3680 = vld [vmem:[#allocation13 + $0x4b8] sm:$0xff]
        %v3681 = vld [vmem:[#allocation13 + $0x4c0] sm:$0xff]
        %v3682 = vld [vmem:[#allocation13 + $0x4c8] sm:$0xff]
        %v3683 = vld [vmem:[#allocation13 + $0x4d0] sm:$0xff]
        %v3684 = vld [vmem:[#allocation13 + $0x4d8] sm:$0xff]
        %v3685 = vld [vmem:[#allocation13 + $0x4e0] sm:$0xff]
        %v3686 = vld [vmem:[#allocation13 + $0x4e8] sm:$0xff]
        %v3687 = vld [vmem:[#allocation13 + $0x4f0] sm:$0xff]
        %v3688 = vld [vmem:[#allocation13 + $0x4f8] sm:$0xff]
        %v3689 = vld [vmem:[#allocation13 + $0x500] sm:$0xff]
        %v3690 = vld [vmem:[#allocation13 + $0x508] sm:$0xff]
        %v3691 = vld [vmem:[#allocation13 + $0x510] sm:$0xff]
        %v3692 = vld [vmem:[#allocation13 + $0x518] sm:$0xff]
        %v3693 = vld [vmem:[#allocation13 + $0x520] sm:$0xff]
        %v3694 = vld [vmem:[#allocation13 + $0x528] sm:$0xff]
        %v3695 = vld [vmem:[#allocation13 + $0x530] sm:$0xff]
        %v3696 = vld [vmem:[#allocation13 + $0x538] sm:$0xff]
        %v3697 = vld [vmem:[#allocation13 + $0x540] sm:$0xff]
        %v3698 = vld [vmem:[#allocation13 + $0x548] sm:$0xff]
        %v3699 = vld [vmem:[#allocation13 + $0x550] sm:$0xff]
        %v3700 = vld [vmem:[#allocation13 + $0x558] sm:$0xff]
        %v3701 = vld [vmem:[#allocation13 + $0x560] sm:$0xff]
        %v3702 = vld [vmem:[#allocation13 + $0x568] sm:$0xff]
        %v3703 = vld [vmem:[#allocation13 + $0x570] sm:$0xff]
        %v3704 = vld [vmem:[#allocation13 + $0x578] sm:$0xff]
        %v3705 = vld [vmem:[#allocation13 + $0x580] sm:$0xff]
        %v3706 = vld [vmem:[#allocation13 + $0x588] sm:$0xff]
        %v3707 = vld [vmem:[#allocation13 + $0x590] sm:$0xff]
        %v3708 = vld [vmem:[#allocation13 + $0x598] sm:$0xff]
        %v3709 = vld [vmem:[#allocation13 + $0x5a0] sm:$0xff]
        %v3710 = vld [vmem:[#allocation13 + $0x5a8] sm:$0xff]
        %v3711 = vld [vmem:[#allocation13 + $0x5b0] sm:$0xff]
        %v3712 = vld [vmem:[#allocation13 + $0x5b8] sm:$0xff]
        %v3713 = vld [vmem:[#allocation13 + $0x5c0] sm:$0xff]
        %v3714 = vld [vmem:[#allocation13 + $0x5c8] sm:$0xff]
        %v3715 = vld [vmem:[#allocation13 + $0x5d0] sm:$0xff]
        %v3716 = vld [vmem:[#allocation13 + $0x5d8] sm:$0xff]
        %v3717 = vld [vmem:[#allocation13 + $0x5e0] sm:$0xff]
        %v3718 = vld [vmem:[#allocation13 + $0x5e8] sm:$0xff]
        %v3719 = vld [vmem:[#allocation13 + $0x5f0] sm:$0xff]
        %v3720 = vld [vmem:[#allocation13 + $0x5f8] sm:$0xff]
        %v3721 = vld [vmem:[#allocation13 + $0x600] sm:$0xff]
        %v3722 = vld [vmem:[#allocation13 + $0x608] sm:$0xff]
        %v3723 = vld [vmem:[#allocation13 + $0x610] sm:$0xff]
        %v3724 = vld [vmem:[#allocation13 + $0x618] sm:$0xff]
        %v3725 = vld [vmem:[#allocation13 + $0x620] sm:$0xff]
        %v3726 = vld [vmem:[#allocation13 + $0x628] sm:$0xff]
        %v3727 = vld [vmem:[#allocation13 + $0x630] sm:$0xff]
        %v3728 = vld [vmem:[#allocation13 + $0x638] sm:$0xff]
        %v3729 = vld [vmem:[#allocation13 + $0x640] sm:$0xff]
        %v3730 = vld [vmem:[#allocation13 + $0x648] sm:$0xff]
        %v3731 = vld [vmem:[#allocation13 + $0x650] sm:$0xff]
        %v3732 = vld [vmem:[#allocation13 + $0x658] sm:$0xff]
        %v3733 = vld [vmem:[#allocation13 + $0x660] sm:$0xff]
        %v3734 = vld [vmem:[#allocation13 + $0x668] sm:$0xff]
        %v3735 = vld [vmem:[#allocation13 + $0x670] sm:$0xff]
        %v3736 = vld [vmem:[#allocation13 + $0x678] sm:$0xff]
        %v3737 = vld [vmem:[#allocation13 + $0x680] sm:$0xff]
        %v3738 = vld [vmem:[#allocation13 + $0x688] sm:$0xff]
        %v3739 = vld [vmem:[#allocation13 + $0x690] sm:$0xff]
        %v3740 = vld [vmem:[#allocation13 + $0x698] sm:$0xff]
        %v3741 = vld [vmem:[#allocation13 + $0x6a0] sm:$0xff]
        %v3742 = vld [vmem:[#allocation13 + $0x6a8] sm:$0xff]
        %v3743 = vld [vmem:[#allocation13 + $0x6b0] sm:$0xff]
        %v3744 = vld [vmem:[#allocation13 + $0x6b8] sm:$0xff]
        %v3745 = vld [vmem:[#allocation13 + $0x6c0] sm:$0xff]
        %v3746 = vld [vmem:[#allocation13 + $0x6c8] sm:$0xff]
        %v3747 = vld [vmem:[#allocation13 + $0x6d0] sm:$0xff]
        %v3748 = vld [vmem:[#allocation13 + $0x6d8] sm:$0xff]
        %v3749 = vld [vmem:[#allocation13 + $0x6e0] sm:$0xff]
        %v3750 = vld [vmem:[#allocation13 + $0x6e8] sm:$0xff]
        %v3751 = vld [vmem:[#allocation13 + $0x6f0] sm:$0xff]
        %v3752 = vld [vmem:[#allocation13 + $0x6f8] sm:$0xff]
        %v3753 = vld [vmem:[#allocation13 + $0x700] sm:$0xff]
        %v3754 = vld [vmem:[#allocation13 + $0x708] sm:$0xff]
        %v3755 = vld [vmem:[#allocation13 + $0x710] sm:$0xff]
        %v3756 = vld [vmem:[#allocation13 + $0x718] sm:$0xff]
        %v3757 = vld [vmem:[#allocation13 + $0x720] sm:$0xff]
        %v3758 = vld [vmem:[#allocation13 + $0x728] sm:$0xff]
        %v3759 = vld [vmem:[#allocation13 + $0x730] sm:$0xff]
        %v3760 = vld [vmem:[#allocation13 + $0x738] sm:$0xff]
        %v3761 = vld [vmem:[#allocation13 + $0x740] sm:$0xff]
        %v3762 = vld [vmem:[#allocation13 + $0x748] sm:$0xff]
        %v3763 = vld [vmem:[#allocation13 + $0x750] sm:$0xff]
        %v3764 = vld [vmem:[#allocation13 + $0x758] sm:$0xff]
        %v3765 = vld [vmem:[#allocation13 + $0x760] sm:$0xff]
        %v3766 = vld [vmem:[#allocation13 + $0x768] sm:$0xff]
        %v3767 = vld [vmem:[#allocation13 + $0x770] sm:$0xff]
        %v3768 = vld [vmem:[#allocation13 + $0x778] sm:$0xff]
        %v3769 = vld [vmem:[#allocation13 + $0x780] sm:$0xff]
        %v3770 = vld [vmem:[#allocation13 + $0x788] sm:$0xff]
        %v3771 = vld [vmem:[#allocation13 + $0x790] sm:$0xff]
        %v3772 = vld [vmem:[#allocation13 + $0x798] sm:$0xff]
        %v3773 = vld [vmem:[#allocation13 + $0x7a0] sm:$0xff]
        %v3774 = vld [vmem:[#allocation13 + $0x7a8] sm:$0xff]
        %v3775 = vld [vmem:[#allocation13 + $0x7b0] sm:$0xff]
        %v3776 = vld [vmem:[#allocation13 + $0x7b8] sm:$0xff]
        %v3777 = vld [vmem:[#allocation13 + $0x7c0] sm:$0xff]
        %v3778 = vld [vmem:[#allocation13 + $0x7c8] sm:$0xff]
        %v3779 = vld [vmem:[#allocation13 + $0x7d0] sm:$0xff]
        %v3780 = vld [vmem:[#allocation13 + $0x7d8] sm:$0xff]
        %v3781 = vld [vmem:[#allocation13 + $0x7e0] sm:$0xff]
        %v3782 = vld [vmem:[#allocation13 + $0x7e8] sm:$0xff]
        %v3783 = vld [vmem:[#allocation13 + $0x7f0] sm:$0xff]
        %v3784 = vld [vmem:[#allocation13 + $0x7f8] sm:$0xff]
        %v3785 = vld [vmem:[#allocation13 + $0x800] sm:$0xff]
        %v3786 = vld [vmem:[#allocation13 + $0x808] sm:$0xff]
        %v3787 = vld [vmem:[#allocation13 + $0x810] sm:$0xff]
        %v3788 = vld [vmem:[#allocation13 + $0x818] sm:$0xff]
        %v3789 = vld [vmem:[#allocation13 + $0x820] sm:$0xff]
        %v3790 = vld [vmem:[#allocation13 + $0x828] sm:$0xff]
        %v3791 = vld [vmem:[#allocation13 + $0x830] sm:$0xff]
        %v3792 = vld [vmem:[#allocation13 + $0x838] sm:$0xff]
        %v3793 = vld [vmem:[#allocation13 + $0x840] sm:$0xff]
        %v3794 = vld [vmem:[#allocation13 + $0x848] sm:$0xff]
        %v3795 = vld [vmem:[#allocation13 + $0x850] sm:$0xff]
        %v3796 = vld [vmem:[#allocation13 + $0x858] sm:$0xff]
        %v3797 = vld [vmem:[#allocation13 + $0x860] sm:$0xff]
        %v3798 = vld [vmem:[#allocation13 + $0x868] sm:$0xff]
        %v3799 = vld [vmem:[#allocation13 + $0x870] sm:$0xff]
        %v3800 = vld [vmem:[#allocation13 + $0x878] sm:$0xff]
        %v3801 = vld [vmem:[#allocation13 + $0x880] sm:$0xff]
        %v3802 = vld [vmem:[#allocation13 + $0x888] sm:$0xff]
        %v3803 = vld [vmem:[#allocation13 + $0x890] sm:$0xff]
        %v3804 = vld [vmem:[#allocation13 + $0x898] sm:$0xff]
        %v3805 = vld [vmem:[#allocation13 + $0x8a0] sm:$0xff]
        %v3806 = vld [vmem:[#allocation13 + $0x8a8] sm:$0xff]
        %v3807 = vld [vmem:[#allocation13 + $0x8b0] sm:$0xff]
        %v3808 = vld [vmem:[#allocation13 + $0x8b8] sm:$0xff]
        %v3809 = vld [vmem:[#allocation13 + $0x8c0] sm:$0xff]
        %v3810 = vld [vmem:[#allocation13 + $0x8c8] sm:$0xff]
        %v3811 = vld [vmem:[#allocation13 + $0x8d0] sm:$0xff]
        %v3812 = vld [vmem:[#allocation13 + $0x8d8] sm:$0xff]
        %v3813 = vld [vmem:[#allocation13 + $0x8e0] sm:$0xff]
        %v3814 = vld [vmem:[#allocation13 + $0x8e8] sm:$0xff]
        %v3815 = vld [vmem:[#allocation13 + $0x8f0] sm:$0xff]
        %v3816 = vld [vmem:[#allocation13 + $0x8f8] sm:$0xff]
        %v3817 = vld [vmem:[#allocation13 + $0x900] sm:$0xff]
        %v3818 = vld [vmem:[#allocation13 + $0x908] sm:$0xff]
        %v3819 = vld [vmem:[#allocation13 + $0x910] sm:$0xff]
        %v3820 = vld [vmem:[#allocation13 + $0x918] sm:$0xff]
        %v3821 = vld [vmem:[#allocation13 + $0x920] sm:$0xff]
        %v3822 = vld [vmem:[#allocation13 + $0x928] sm:$0xff]
        %v3823 = vld [vmem:[#allocation13 + $0x930] sm:$0xff]
        %v3824 = vld [vmem:[#allocation13 + $0x938] sm:$0xff]
        %v3825 = vld [vmem:[#allocation13 + $0x940] sm:$0xff]
        %v3826 = vld [vmem:[#allocation13 + $0x948] sm:$0xff]
        %v3827 = vld [vmem:[#allocation13 + $0x950] sm:$0xff]
        %v3828 = vld [vmem:[#allocation13 + $0x958] sm:$0xff]
        %v3829 = vld [vmem:[#allocation13 + $0x960] sm:$0xff]
        %v3830 = vld [vmem:[#allocation13 + $0x968] sm:$0xff]
        %v3831 = vld [vmem:[#allocation13 + $0x970] sm:$0xff]
        %v3832 = vld [vmem:[#allocation13 + $0x978] sm:$0xff]
        %v3833 = vld [vmem:[#allocation13 + $0x980] sm:$0xff]
        %v3834 = vld [vmem:[#allocation13 + $0x988] sm:$0xff]
        %v3835 = vld [vmem:[#allocation13 + $0x990] sm:$0xff]
        %v3836 = vld [vmem:[#allocation13 + $0x998] sm:$0xff]
        %v3837 = vld [vmem:[#allocation13 + $0x9a0] sm:$0xff]
        %v3838 = vld [vmem:[#allocation13 + $0x9a8] sm:$0xff]
        %v3839 = vld [vmem:[#allocation13 + $0x9b0] sm:$0xff]
        %v3840 = vld [vmem:[#allocation13 + $0x9b8] sm:$0xff]
        %v3841 = vld [vmem:[#allocation13 + $0x9c0] sm:$0xff]
        %v3842 = vld [vmem:[#allocation13 + $0x9c8] sm:$0xff]
        %v3843 = vld [vmem:[#allocation13 + $0x9d0] sm:$0xff]
        %v3844 = vld [vmem:[#allocation13 + $0x9d8] sm:$0xff]
        %v3845 = vld [vmem:[#allocation13 + $0x9e0] sm:$0xff]
        %v3846 = vld [vmem:[#allocation13 + $0x9e8] sm:$0xff]
        %v3847 = vld [vmem:[#allocation13 + $0x9f0] sm:$0xff]
        %v3848 = vld [vmem:[#allocation13 + $0x9f8] sm:$0xff]
        %v3849 = vld [vmem:[#allocation13 + $0xa00] sm:$0xff]
        %v3850 = vld [vmem:[#allocation13 + $0xa08] sm:$0xff]
        %v3851 = vld [vmem:[#allocation13 + $0xa10] sm:$0xff]
        %v3852 = vld [vmem:[#allocation13 + $0xa18] sm:$0xff]
        %v3853 = vld [vmem:[#allocation13 + $0xa20] sm:$0xff]
        %v3854 = vld [vmem:[#allocation13 + $0xa28] sm:$0xff]
        %v3855 = vld [vmem:[#allocation13 + $0xa30] sm:$0xff]
        %v3856 = vld [vmem:[#allocation13 + $0xa38] sm:$0xff]
        %v3857 = vld [vmem:[#allocation13 + $0xa40] sm:$0xff]
        %v3858 = vld [vmem:[#allocation13 + $0xa48] sm:$0xff]
        %v3859 = vld [vmem:[#allocation13 + $0xa50] sm:$0xff]
        %v3860 = vld [vmem:[#allocation13 + $0xa58] sm:$0xff]
        %v3861 = vld [vmem:[#allocation13 + $0xa60] sm:$0xff]
        %v3862 = vld [vmem:[#allocation13 + $0xa68] sm:$0xff]
        %v3863 = vld [vmem:[#allocation13 + $0xa70] sm:$0xff]
        %v3864 = vld [vmem:[#allocation13 + $0xa78] sm:$0xff]
        %v3865 = vld [vmem:[#allocation13 + $0xa80] sm:$0xff]
        %v3866 = vld [vmem:[#allocation13 + $0xa88] sm:$0xff]
        %v3867 = vld [vmem:[#allocation13 + $0xa90] sm:$0xff]
        %v3868 = vld [vmem:[#allocation13 + $0xa98] sm:$0xff]
        %v3869 = vld [vmem:[#allocation13 + $0xaa0] sm:$0xff]
        %v3870 = vld [vmem:[#allocation13 + $0xaa8] sm:$0xff]
        %v3871 = vld [vmem:[#allocation13 + $0xab0] sm:$0xff]
        %v3872 = vld [vmem:[#allocation13 + $0xab8] sm:$0xff]
        %v3873 = vld [vmem:[#allocation13 + $0xac0] sm:$0xff]
        %v3874 = vld [vmem:[#allocation13 + $0xac8] sm:$0xff]
        %v3875 = vld [vmem:[#allocation13 + $0xad0] sm:$0xff]
        %v3876 = vld [vmem:[#allocation13 + $0xad8] sm:$0xff]
        %v3877 = vld [vmem:[#allocation13 + $0xae0] sm:$0xff]
        %v3878 = vld [vmem:[#allocation13 + $0xae8] sm:$0xff]
        %v3879 = vld [vmem:[#allocation13 + $0xaf0] sm:$0xff]
        %v3880 = vld [vmem:[#allocation13 + $0xaf8] sm:$0xff]
        %v3881 = vld [vmem:[#allocation13 + $0xb00] sm:$0xff]
        %v3882 = vld [vmem:[#allocation13 + $0xb08] sm:$0xff]
        %v3883 = vld [vmem:[#allocation13 + $0xb10] sm:$0xff]
        %v3884 = vld [vmem:[#allocation13 + $0xb18] sm:$0xff]
        %v3885 = vld [vmem:[#allocation13 + $0xb20] sm:$0xff]
        %v3886 = vld [vmem:[#allocation13 + $0xb28] sm:$0xff]
        %v3887 = vld [vmem:[#allocation13 + $0xb30] sm:$0xff]
        %v3888 = vld [vmem:[#allocation13 + $0xb38] sm:$0xff]
        %v3889 = vld [vmem:[#allocation13 + $0xb40] sm:$0xff]
        %v3890 = vld [vmem:[#allocation13 + $0xb48] sm:$0xff]
        %v3891 = vld [vmem:[#allocation13 + $0xb50] sm:$0xff]
        %v3892 = vld [vmem:[#allocation13 + $0xb58] sm:$0xff]
        %v3893 = vld [vmem:[#allocation13 + $0xb60] sm:$0xff]
        %v3894 = vld [vmem:[#allocation13 + $0xb68] sm:$0xff]
        %v3895 = vld [vmem:[#allocation13 + $0xb70] sm:$0xff]
        %v3896 = vld [vmem:[#allocation13 + $0xb78] sm:$0xff]
        %v3897 = vld [vmem:[#allocation13 + $0xb80] sm:$0xff]
        %v3898 = vld [vmem:[#allocation13 + $0xb88] sm:$0xff]
        %v3899 = vld [vmem:[#allocation13 + $0xb90] sm:$0xff]
        %v3900 = vld [vmem:[#allocation13 + $0xb98] sm:$0xff]
        %v3901 = vld [vmem:[#allocation13 + $0xba0] sm:$0xff]
        %v3902 = vld [vmem:[#allocation13 + $0xba8] sm:$0xff]
        %v3903 = vld [vmem:[#allocation13 + $0xbb0] sm:$0xff]
        %v3904 = vld [vmem:[#allocation13 + $0xbb8] sm:$0xff]
        %v3905 = vld [vmem:[#allocation13 + $0xbc0] sm:$0xff]
        %v3906 = vld [vmem:[#allocation13 + $0xbc8] sm:$0xff]
        %v3907 = vld [vmem:[#allocation13 + $0xbd0] sm:$0xff]
        %v3908 = vld [vmem:[#allocation13 + $0xbd8] sm:$0xff]
        %v3909 = vld [vmem:[#allocation13 + $0xbe0] sm:$0xff]
        %v3910 = vld [vmem:[#allocation13 + $0xbe8] sm:$0xff]
        %v3911 = vld [vmem:[#allocation13 + $0xbf0] sm:$0xff]
        %v3912 = vld [vmem:[#allocation13 + $0xbf8] sm:$0xff]
        %v3913 = vld [vmem:[#allocation13 + $0xc00] sm:$0xff]
        %v3914 = vld [vmem:[#allocation13 + $0xc08] sm:$0xff]
        %v3915 = vld [vmem:[#allocation13 + $0xc10] sm:$0xff]
        %v3916 = vld [vmem:[#allocation13 + $0xc18] sm:$0xff]
        %v3917 = vld [vmem:[#allocation13 + $0xc20] sm:$0xff]
        %v3918 = vld [vmem:[#allocation13 + $0xc28] sm:$0xff]
        %v3919 = vld [vmem:[#allocation13 + $0xc30] sm:$0xff]
        %v3920 = vld [vmem:[#allocation13 + $0xc38] sm:$0xff]
        %v3921 = vld [vmem:[#allocation13 + $0xc40] sm:$0xff]
        %v3922 = vld [vmem:[#allocation13 + $0xc48] sm:$0xff]
        %v3923 = vld [vmem:[#allocation13 + $0xc50] sm:$0xff]
        %v3924 = vld [vmem:[#allocation13 + $0xc58] sm:$0xff]
        %v3925 = vld [vmem:[#allocation13 + $0xc60] sm:$0xff]
        %v3926 = vld [vmem:[#allocation13 + $0xc68] sm:$0xff]
        %v3927 = vld [vmem:[#allocation13 + $0xc70] sm:$0xff]
        %v3928 = vld [vmem:[#allocation13 + $0xc78] sm:$0xff]
        %v3929 = vld [vmem:[#allocation13 + $0xc80] sm:$0xff]
        %v3930 = vld [vmem:[#allocation13 + $0xc88] sm:$0xff]
        %v3931 = vld [vmem:[#allocation13 + $0xc90] sm:$0xff]
        %v3932 = vld [vmem:[#allocation13 + $0xc98] sm:$0xff]
        %v3933 = vld [vmem:[#allocation13 + $0xca0] sm:$0xff]
        %v3934 = vld [vmem:[#allocation13 + $0xca8] sm:$0xff]
        %v3935 = vld [vmem:[#allocation13 + $0xcb0] sm:$0xff]
        %v3936 = vld [vmem:[#allocation13 + $0xcb8] sm:$0xff]
        %v3937 = vld [vmem:[#allocation13 + $0xcc0] sm:$0xff]
        %v3938 = vld [vmem:[#allocation13 + $0xcc8] sm:$0xff]
        %v3939 = vld [vmem:[#allocation13 + $0xcd0] sm:$0xff]
        %v3940 = vld [vmem:[#allocation13 + $0xcd8] sm:$0xff]
        %v3941 = vld [vmem:[#allocation13 + $0xce0] sm:$0xff]
        %v3942 = vld [vmem:[#allocation13 + $0xce8] sm:$0xff]
        %v3943 = vld [vmem:[#allocation13 + $0xcf0] sm:$0xff]
        %v3944 = vld [vmem:[#allocation13 + $0xcf8] sm:$0xff]
        %v3945 = vld [vmem:[#allocation13 + $0xd00] sm:$0xff]
        %v3946 = vld [vmem:[#allocation13 + $0xd08] sm:$0xff]
        %v3947 = vld [vmem:[#allocation13 + $0xd10] sm:$0xff]
        %v3948 = vld [vmem:[#allocation13 + $0xd18] sm:$0xff]
        %v3949 = vld [vmem:[#allocation13 + $0xd20] sm:$0xff]
        %v3950 = vld [vmem:[#allocation13 + $0xd28] sm:$0xff]
        %v3951 = vld [vmem:[#allocation13 + $0xd30] sm:$0xff]
        %v3952 = vld [vmem:[#allocation13 + $0xd38] sm:$0xff]
        %v3953 = vld [vmem:[#allocation13 + $0xd40] sm:$0xff]
        %v3954 = vld [vmem:[#allocation13 + $0xd48] sm:$0xff]
        %v3955 = vld [vmem:[#allocation13 + $0xd50] sm:$0xff]
        %v3956 = vld [vmem:[#allocation13 + $0xd58] sm:$0xff]
        %v3957 = vld [vmem:[#allocation13 + $0xd60] sm:$0xff]
        %v3958 = vld [vmem:[#allocation13 + $0xd68] sm:$0xff]
        %v3959 = vld [vmem:[#allocation13 + $0xd70] sm:$0xff]
        %v3960 = vld [vmem:[#allocation13 + $0xd78] sm:$0xff]
        %v3961 = vld [vmem:[#allocation13 + $0xd80] sm:$0xff]
        %v3962 = vld [vmem:[#allocation13 + $0xd88] sm:$0xff]
        %v3963 = vld [vmem:[#allocation13 + $0xd90] sm:$0xff]
        %v3964 = vld [vmem:[#allocation13 + $0xd98] sm:$0xff]
        %v3965 = vld [vmem:[#allocation13 + $0xda0] sm:$0xff]
        %v3966 = vld [vmem:[#allocation13 + $0xda8] sm:$0xff]
        %v3967 = vld [vmem:[#allocation13 + $0xdb0] sm:$0xff]
        %v3968 = vld [vmem:[#allocation13 + $0xdb8] sm:$0xff]
        %v3969 = vld [vmem:[#allocation13 + $0xdc0] sm:$0xff]
        %v3970 = vld [vmem:[#allocation13 + $0xdc8] sm:$0xff]
        %v3971 = vld [vmem:[#allocation13 + $0xdd0] sm:$0xff]
        %v3972 = vld [vmem:[#allocation13 + $0xdd8] sm:$0xff]
        %v3973 = vld [vmem:[#allocation13 + $0xde0] sm:$0xff]
        %v3974 = vld [vmem:[#allocation13 + $0xde8] sm:$0xff]
        %v3975 = vld [vmem:[#allocation13 + $0xdf0] sm:$0xff]
        %v3976 = vld [vmem:[#allocation13 + $0xdf8] sm:$0xff]
        %v3977 = vld [vmem:[#allocation13 + $0xe00] sm:$0xff]
        %v3978 = vld [vmem:[#allocation13 + $0xe08] sm:$0xff]
        %v3979 = vld [vmem:[#allocation13 + $0xe10] sm:$0xff]
        %v3980 = vld [vmem:[#allocation13 + $0xe18] sm:$0xff]
        %v3981 = vld [vmem:[#allocation13 + $0xe20] sm:$0xff]
        %v3982 = vld [vmem:[#allocation13 + $0xe28] sm:$0xff]
        %v3983 = vld [vmem:[#allocation13 + $0xe30] sm:$0xff]
        %v3984 = vld [vmem:[#allocation13 + $0xe38] sm:$0xff]
        %v3985 = vld [vmem:[#allocation13 + $0xe40] sm:$0xff]
        %v3986 = vld [vmem:[#allocation13 + $0xe48] sm:$0xff]
        %v3987 = vld [vmem:[#allocation13 + $0xe50] sm:$0xff]
        %v3988 = vld [vmem:[#allocation13 + $0xe58] sm:$0xff]
        %v3989 = vld [vmem:[#allocation13 + $0xe60] sm:$0xff]
        %v3990 = vld [vmem:[#allocation13 + $0xe68] sm:$0xff]
        %v3991 = vld [vmem:[#allocation13 + $0xe70] sm:$0xff]
        %v3992 = vld [vmem:[#allocation13 + $0xe78] sm:$0xff]
        %v3993 = vld [vmem:[#allocation13 + $0xe80] sm:$0xff]
        %v3994 = vld [vmem:[#allocation13 + $0xe88] sm:$0xff]
        %v3995 = vld [vmem:[#allocation13 + $0xe90] sm:$0xff]
        %v3996 = vld [vmem:[#allocation13 + $0xe98] sm:$0xff]
        %v3997 = vld [vmem:[#allocation13 + $0xea0] sm:$0xff]
        %v3998 = vld [vmem:[#allocation13 + $0xea8] sm:$0xff]
        %v3999 = vld [vmem:[#allocation13 + $0xeb0] sm:$0xff]
        %v4000 = vld [vmem:[#allocation13 + $0xeb8] sm:$0xff]
        %v4001 = vld [vmem:[#allocation13 + $0xec0] sm:$0xff]
        %v4002 = vld [vmem:[#allocation13 + $0xec8] sm:$0xff]
        %v4003 = vld [vmem:[#allocation13 + $0xed0] sm:$0xff]
        %v4004 = vld [vmem:[#allocation13 + $0xed8] sm:$0xff]
        %v4005 = vld [vmem:[#allocation13 + $0xee0] sm:$0xff]
        %v4006 = vld [vmem:[#allocation13 + $0xee8] sm:$0xff]
        %v4007 = vld [vmem:[#allocation13 + $0xef0] sm:$0xff]
        %v4008 = vld [vmem:[#allocation13 + $0xef8] sm:$0xff]
        %v4009 = vld [vmem:[#allocation13 + $0xf00] sm:$0xff]
        %v4010 = vld [vmem:[#allocation13 + $0xf08] sm:$0xff]
        %v4011 = vld [vmem:[#allocation13 + $0xf10] sm:$0xff]
        %v4012 = vld [vmem:[#allocation13 + $0xf18] sm:$0xff]
        %v4013 = vld [vmem:[#allocation13 + $0xf20] sm:$0xff]
        %v4014 = vld [vmem:[#allocation13 + $0xf28] sm:$0xff]
        %v4015 = vld [vmem:[#allocation13 + $0xf30] sm:$0xff]
        %v4016 = vld [vmem:[#allocation13 + $0xf38] sm:$0xff]
        %v4017 = vld [vmem:[#allocation13 + $0xf40] sm:$0xff]
        %v4018 = vld [vmem:[#allocation13 + $0xf48] sm:$0xff]
        %v4019 = vld [vmem:[#allocation13 + $0xf50] sm:$0xff]
        %v4020 = vld [vmem:[#allocation13 + $0xf58] sm:$0xff]
        %v4021 = vld [vmem:[#allocation13 + $0xf60] sm:$0xff]
        %v4022 = vld [vmem:[#allocation13 + $0xf68] sm:$0xff]
        %v4023 = vld [vmem:[#allocation13 + $0xf70] sm:$0xff]
        %v4024 = vld [vmem:[#allocation13 + $0xf78] sm:$0xff]
        %v4025 = vld [vmem:[#allocation13 + $0xf80] sm:$0xff]
        %v4026 = vld [vmem:[#allocation13 + $0xf88] sm:$0xff]
        %v4027 = vld [vmem:[#allocation13 + $0xf90] sm:$0xff]
        %v4028 = vld [vmem:[#allocation13 + $0xf98] sm:$0xff]
        %v4029 = vld [vmem:[#allocation13 + $0xfa0] sm:$0xff]
        %v4030 = vld [vmem:[#allocation13 + $0xfa8] sm:$0xff]
        %v4031 = vld [vmem:[#allocation13 + $0xfb0] sm:$0xff]
        %v4032 = vld [vmem:[#allocation13 + $0xfb8] sm:$0xff]
        %v4033 = vld [vmem:[#allocation13 + $0xfc0] sm:$0xff]
        %v4034 = vld [vmem:[#allocation13 + $0xfc8] sm:$0xff]
        %v4035 = vld [vmem:[#allocation13 + $0xfd0] sm:$0xff]
        %v4036 = vld [vmem:[#allocation13 + $0xfd8] sm:$0xff]
        %v4037 = vld [vmem:[#allocation13 + $0xfe0] sm:$0xff]
        %v4038 = vld [vmem:[#allocation13 + $0xfe8] sm:$0xff]
        %v4039 = vld [vmem:[#allocation13 + $0xff0] sm:$0xff]
        %v4040 = vld [vmem:[#allocation13 + $0xff8] sm:$0xff]
        %v4041 = vld [vmem:[#allocation13 + $0x1000] sm:$0xff]
        %v4042 = vld [vmem:[#allocation13 + $0x1008] sm:$0xff]
        %v4043 = vld [vmem:[#allocation13 + $0x1010] sm:$0xff]
        %v4044 = vld [vmem:[#allocation13 + $0x1018] sm:$0xff]
        %v4045 = vld [vmem:[#allocation13 + $0x1020] sm:$0xff]
        %v4046 = vld [vmem:[#allocation13 + $0x1028] sm:$0xff]
        %v4047 = vld [vmem:[#allocation13 + $0x1030] sm:$0xff]
        %v4048 = vld [vmem:[#allocation13 + $0x1038] sm:$0xff]
        %v4049 = vld [vmem:[#allocation13 + $0x1040] sm:$0xff]
        %v4050 = vld [vmem:[#allocation13 + $0x1048] sm:$0xff]
        %v4051 = vld [vmem:[#allocation13 + $0x1050] sm:$0xff]
        %v4052 = vld [vmem:[#allocation13 + $0x1058] sm:$0xff]
        %v4053 = vld [vmem:[#allocation13 + $0x1060] sm:$0xff]
        %v4054 = vld [vmem:[#allocation13 + $0x1068] sm:$0xff]
        %v4055 = vld [vmem:[#allocation13 + $0x1070] sm:$0xff]
        %v4056 = vld [vmem:[#allocation13 + $0x1078] sm:$0xff]
        %v4057 = vld [vmem:[#allocation13 + $0x1080] sm:$0xff]
        %v4058 = vld [vmem:[#allocation13 + $0x1088] sm:$0xff]
        %v4059 = vld [vmem:[#allocation13 + $0x1090] sm:$0xff]
        %v4060 = vld [vmem:[#allocation13 + $0x1098] sm:$0xff]
        %v4061 = vld [vmem:[#allocation13 + $0x10a0] sm:$0xff]
        %v4062 = vld [vmem:[#allocation13 + $0x10a8] sm:$0xff]
        %v4063 = vld [vmem:[#allocation13 + $0x10b0] sm:$0xff]
        %v4064 = vld [vmem:[#allocation13 + $0x10b8] sm:$0xff]
        %v4065 = vld [vmem:[#allocation13 + $0x10c0] sm:$0xff]
        %v4066 = vld [vmem:[#allocation13 + $0x10c8] sm:$0xff]
        %v4067 = vld [vmem:[#allocation13 + $0x10d0] sm:$0xff]
        %v4068 = vld [vmem:[#allocation13 + $0x10d8] sm:$0xff]
        %v4069 = vld [vmem:[#allocation13 + $0x10e0] sm:$0xff]
        %v4070 = vld [vmem:[#allocation13 + $0x10e8] sm:$0xff]
        %v4071 = vld [vmem:[#allocation13 + $0x10f0] sm:$0xff]
        %v4072 = vld [vmem:[#allocation13 + $0x10f8] sm:$0xff]
        %v4073 = vld [vmem:[#allocation13 + $0x1100] sm:$0xff]
        %v4074 = vld [vmem:[#allocation13 + $0x1108] sm:$0xff]
        %v4075 = vld [vmem:[#allocation13 + $0x1110] sm:$0xff]
        %v4076 = vld [vmem:[#allocation13 + $0x1118] sm:$0xff]
        %v4077 = vld [vmem:[#allocation13 + $0x1120] sm:$0xff]
        %v4078 = vld [vmem:[#allocation13 + $0x1128] sm:$0xff]
        %v4079 = vld [vmem:[#allocation13 + $0x1130] sm:$0xff]
        %v4080 = vld [vmem:[#allocation13 + $0x1138] sm:$0xff]
        %v4081 = vld [vmem:[#allocation13 + $0x1140] sm:$0xff]
        %v4082 = vld [vmem:[#allocation13 + $0x1148] sm:$0xff]
        %v4083 = vld [vmem:[#allocation13 + $0x1150] sm:$0xff]
        %v4084 = vld [vmem:[#allocation13 + $0x1158] sm:$0xff]
        %v4085 = vld [vmem:[#allocation13 + $0x1160] sm:$0xff]
        %v4086 = vld [vmem:[#allocation13 + $0x1168] sm:$0xff]
        %v4087 = vld [vmem:[#allocation13 + $0x1170] sm:$0xff]
        %v4088 = vld [vmem:[#allocation13 + $0x1178] sm:$0xff]
        %v4089 = vld [vmem:[#allocation13 + $0x1180] sm:$0xff]
        %v4090 = vld [vmem:[#allocation13 + $0x1188] sm:$0xff]
        %v4091 = vld [vmem:[#allocation13 + $0x1190] sm:$0xff]
        %v4092 = vld [vmem:[#allocation13 + $0x1198] sm:$0xff]
        %v4093 = vld [vmem:[#allocation13 + $0x11a0] sm:$0xff]
        %v4094 = vld [vmem:[#allocation13 + $0x11a8] sm:$0xff]
        %v4095 = vld [vmem:[#allocation13 + $0x11b0] sm:$0xff]
        %v4096 = vld [vmem:[#allocation13 + $0x11b8] sm:$0xff]
        %v4097 = vld [vmem:[#allocation13 + $0x11c0] sm:$0xff]
        %v4098 = vld [vmem:[#allocation13 + $0x11c8] sm:$0xff]
        %v4099 = vld [vmem:[#allocation13 + $0x11d0] sm:$0xff]
        %v4100 = vld [vmem:[#allocation13 + $0x11d8] sm:$0xff]
        %v4101 = vld [vmem:[#allocation13 + $0x11e0] sm:$0xff]
        %v4102 = vld [vmem:[#allocation13 + $0x11e8] sm:$0xff]
        %v4103 = vld [vmem:[#allocation13 + $0x11f0] sm:$0xff]
        %v4104 = vld [vmem:[#allocation13 + $0x11f8] sm:$0xff]
        %v4105 = vld [vmem:[#allocation13 + $0x1200] sm:$0xff]
        %v4106 = vld [vmem:[#allocation13 + $0x1208] sm:$0xff]
        %v4107 = vld [vmem:[#allocation13 + $0x1210] sm:$0xff]
        %v4108 = vld [vmem:[#allocation13 + $0x1218] sm:$0xff]
        %v4109 = vld [vmem:[#allocation13 + $0x1220] sm:$0xff]
        %v4110 = vld [vmem:[#allocation13 + $0x1228] sm:$0xff]
        %v4111 = vld [vmem:[#allocation13 + $0x1230] sm:$0xff]
        %v4112 = vld [vmem:[#allocation13 + $0x1238] sm:$0xff]
        %v4113 = vld [vmem:[#allocation13 + $0x1240] sm:$0xff]
        %v4114 = vld [vmem:[#allocation13 + $0x1248] sm:$0xff]
        %v4115 = vld [vmem:[#allocation13 + $0x1250] sm:$0xff]
        %v4116 = vld [vmem:[#allocation13 + $0x1258] sm:$0xff]
        %v4117 = vld [vmem:[#allocation13 + $0x1260] sm:$0xff]
        %v4118 = vld [vmem:[#allocation13 + $0x1268] sm:$0xff]
        %v4119 = vld [vmem:[#allocation13 + $0x1270] sm:$0xff]
        %v4120 = vld [vmem:[#allocation13 + $0x1278] sm:$0xff]
        %v4121 = vld [vmem:[#allocation13 + $0x1280] sm:$0xff]
        %v4122 = vld [vmem:[#allocation13 + $0x1288] sm:$0xff]
        %v4123 = vld [vmem:[#allocation13 + $0x1290] sm:$0xff]
        %v4124 = vld [vmem:[#allocation13 + $0x1298] sm:$0xff]
        %v4125 = vld [vmem:[#allocation13 + $0x12a0] sm:$0xff]
        %v4126 = vld [vmem:[#allocation13 + $0x12a8] sm:$0xff]
        %v4127 = vld [vmem:[#allocation13 + $0x12b0] sm:$0xff]
        %v4128 = vld [vmem:[#allocation13 + $0x12b8] sm:$0xff]
        %v4129 = vld [vmem:[#allocation13 + $0x12c0] sm:$0xff]
        %v4130 = vld [vmem:[#allocation13 + $0x12c8] sm:$0xff]
        %v4131 = vld [vmem:[#allocation13 + $0x12d0] sm:$0xff]
        %v4132 = vld [vmem:[#allocation13 + $0x12d8] sm:$0xff]
        %v4133 = vld [vmem:[#allocation13 + $0x12e0] sm:$0xff]
        %v4134 = vld [vmem:[#allocation13 + $0x12e8] sm:$0xff]
        %v4135 = vld [vmem:[#allocation13 + $0x12f0] sm:$0xff]
        %v4136 = vld [vmem:[#allocation13 + $0x12f8] sm:$0xff]
        %v4137 = vld [vmem:[#allocation13 + $0x1300] sm:$0xff]
        %v4138 = vld [vmem:[#allocation13 + $0x1308] sm:$0xff]
        %v4139 = vld [vmem:[#allocation13 + $0x1310] sm:$0xff]
        %v4140 = vld [vmem:[#allocation13 + $0x1318] sm:$0xff]
        %v4141 = vld [vmem:[#allocation13 + $0x1320] sm:$0xff]
        %v4142 = vld [vmem:[#allocation13 + $0x1328] sm:$0xff]
        %v4143 = vld [vmem:[#allocation13 + $0x1330] sm:$0xff]
        %v4144 = vld [vmem:[#allocation13 + $0x1338] sm:$0xff]
        %v4145 = vld [vmem:[#allocation13 + $0x1340] sm:$0xff]
        %v4146 = vld [vmem:[#allocation13 + $0x1348] sm:$0xff]
        %v4147 = vld [vmem:[#allocation13 + $0x1350] sm:$0xff]
        %v4148 = vld [vmem:[#allocation13 + $0x1358] sm:$0xff]
        %v4149 = vld [vmem:[#allocation13 + $0x1360] sm:$0xff]
        %v4150 = vld [vmem:[#allocation13 + $0x1368] sm:$0xff]
        %v4151 = vld [vmem:[#allocation13 + $0x1370] sm:$0xff]
        %v4152 = vld [vmem:[#allocation13 + $0x1378] sm:$0xff]
        %v4153 = vld [vmem:[#allocation13 + $0x1380] sm:$0xff]
        %v4154 = vld [vmem:[#allocation13 + $0x1388] sm:$0xff]
        %v4155 = vld [vmem:[#allocation13 + $0x1390] sm:$0xff]
        %v4156 = vld [vmem:[#allocation13 + $0x1398] sm:$0xff]
        %v4157 = vld [vmem:[#allocation13 + $0x13a0] sm:$0xff]
        %v4158 = vld [vmem:[#allocation13 + $0x13a8] sm:$0xff]
        %v4159 = vld [vmem:[#allocation13 + $0x13b0] sm:$0xff]
        %v4160 = vld [vmem:[#allocation13 + $0x13b8] sm:$0xff]
        %v4161 = vld [vmem:[#allocation13 + $0x13c0] sm:$0xff]
        %v4162 = vld [vmem:[#allocation13 + $0x13c8] sm:$0xff]
        %v4163 = vld [vmem:[#allocation13 + $0x13d0] sm:$0xff]
        %v4164 = vld [vmem:[#allocation13 + $0x13d8] sm:$0xff]
        %v4165 = vld [vmem:[#allocation13 + $0x13e0] sm:$0xff]
        %v4166 = vld [vmem:[#allocation13 + $0x13e8] sm:$0xff]
        %v4167 = vld [vmem:[#allocation13 + $0x13f0] sm:$0xff]
        %v4168 = vld [vmem:[#allocation13 + $0x13f8] sm:$0xff]
        %v4169 = vld [vmem:[#allocation13 + $0x1400] sm:$0xff]
        %v4170 = vld [vmem:[#allocation13 + $0x1408] sm:$0xff]
        %v4171 = vld [vmem:[#allocation13 + $0x1410] sm:$0xff]
        %v4172 = vld [vmem:[#allocation13 + $0x1418] sm:$0xff]
        %v4173 = vld [vmem:[#allocation13 + $0x1420] sm:$0xff]
        %v4174 = vld [vmem:[#allocation13 + $0x1428] sm:$0xff]
        %v4175 = vld [vmem:[#allocation13 + $0x1430] sm:$0xff]
        %v4176 = vld [vmem:[#allocation13 + $0x1438] sm:$0xff]
        %v4177 = vld [vmem:[#allocation13 + $0x1440] sm:$0xff]
        %v4178 = vld [vmem:[#allocation13 + $0x1448] sm:$0xff]
        %v4179 = vld [vmem:[#allocation13 + $0x1450] sm:$0xff]
        %v4180 = vld [vmem:[#allocation13 + $0x1458] sm:$0xff]
        %v4181 = vld [vmem:[#allocation13 + $0x1460] sm:$0xff]
        %v4182 = vld [vmem:[#allocation13 + $0x1468] sm:$0xff]
        %v4183 = vld [vmem:[#allocation13 + $0x1470] sm:$0xff]
        %v4184 = vld [vmem:[#allocation13 + $0x1478] sm:$0xff]
        %v4185 = vld [vmem:[#allocation13 + $0x1480] sm:$0xff]
        %v4186 = vld [vmem:[#allocation13 + $0x1488] sm:$0xff]
        %v4187 = vld [vmem:[#allocation13 + $0x1490] sm:$0xff]
        %v4188 = vld [vmem:[#allocation13 + $0x1498] sm:$0xff]
        %v4189 = vld [vmem:[#allocation13 + $0x14a0] sm:$0xff]
        %v4190 = vld [vmem:[#allocation13 + $0x14a8] sm:$0xff]
        %v4191 = vld [vmem:[#allocation13 + $0x14b0] sm:$0xff]
        %v4192 = vld [vmem:[#allocation13 + $0x14b8] sm:$0xff]
        %v4193 = vld [vmem:[#allocation13 + $0x14c0] sm:$0xff]
        %v4194 = vld [vmem:[#allocation13 + $0x14c8] sm:$0xff]
        %v4195 = vld [vmem:[#allocation13 + $0x14d0] sm:$0xff]
        %v4196 = vld [vmem:[#allocation13 + $0x14d8] sm:$0xff]
        %v4197 = vld [vmem:[#allocation13 + $0x14e0] sm:$0xff]
        %v4198 = vld [vmem:[#allocation13 + $0x14e8] sm:$0xff]
        %v4199 = vld [vmem:[#allocation13 + $0x14f0] sm:$0xff]
        %v4200 = vld [vmem:[#allocation13 + $0x14f8] sm:$0xff]
        %v4201 = vld [vmem:[#allocation13 + $0x1500] sm:$0xff]
        %v4202 = vld [vmem:[#allocation13 + $0x1508] sm:$0xff]
        %v4203 = vld [vmem:[#allocation13 + $0x1510] sm:$0xff]
        %v4204 = vld [vmem:[#allocation13 + $0x1518] sm:$0xff]
        %v4205 = vld [vmem:[#allocation13 + $0x1520] sm:$0xff]
        %v4206 = vld [vmem:[#allocation13 + $0x1528] sm:$0xff]
        %v4207 = vld [vmem:[#allocation13 + $0x1530] sm:$0xff]
        %v4208 = vld [vmem:[#allocation13 + $0x1538] sm:$0xff]
        %v4209 = vld [vmem:[#allocation13 + $0x1540] sm:$0xff]
        %v4210 = vld [vmem:[#allocation13 + $0x1548] sm:$0xff]
        %v4211 = vld [vmem:[#allocation13 + $0x1550] sm:$0xff]
        %v4212 = vld [vmem:[#allocation13 + $0x1558] sm:$0xff]
        %v4213 = vld [vmem:[#allocation13 + $0x1560] sm:$0xff]
        %v4214 = vld [vmem:[#allocation13 + $0x1568] sm:$0xff]
        %v4215 = vld [vmem:[#allocation13 + $0x1570] sm:$0xff]
        %v4216 = vld [vmem:[#allocation13 + $0x1578] sm:$0xff]
        %v4217 = vld [vmem:[#allocation13 + $0x1580] sm:$0xff]
        %v4218 = vld [vmem:[#allocation13 + $0x1588] sm:$0xff]
        %v4219 = vld [vmem:[#allocation13 + $0x1590] sm:$0xff]
        %v4220 = vld [vmem:[#allocation13 + $0x1598] sm:$0xff]
        %v4221 = vld [vmem:[#allocation13 + $0x15a0] sm:$0xff]
        %v4222 = vld [vmem:[#allocation13 + $0x15a8] sm:$0xff]
        %v4223 = vld [vmem:[#allocation13 + $0x15b0] sm:$0xff]
        %v4224 = vld [vmem:[#allocation13 + $0x15b8] sm:$0xff]
        %v4225 = vld [vmem:[#allocation13 + $0x15c0] sm:$0xff]
        %v4226 = vld [vmem:[#allocation13 + $0x15c8] sm:$0xff]
        %v4227 = vld [vmem:[#allocation13 + $0x15d0] sm:$0xff]
        %v4228 = vld [vmem:[#allocation13 + $0x15d8] sm:$0xff]
        %v4229 = vld [vmem:[#allocation13 + $0x15e0] sm:$0xff]
        %v4230 = vld [vmem:[#allocation13 + $0x15e8] sm:$0xff]
        %v4231 = vld [vmem:[#allocation13 + $0x15f0] sm:$0xff]
        %v4232 = vld [vmem:[#allocation13 + $0x15f8] sm:$0xff]
        %v4233 = vld [vmem:[#allocation13 + $0x1600] sm:$0xff]
        %v4234 = vld [vmem:[#allocation13 + $0x1608] sm:$0xff]
        %v4235 = vld [vmem:[#allocation13 + $0x1610] sm:$0xff]
        %v4236 = vld [vmem:[#allocation13 + $0x1618] sm:$0xff]
        %v4237 = vld [vmem:[#allocation13 + $0x1620] sm:$0xff]
        %v4238 = vld [vmem:[#allocation13 + $0x1628] sm:$0xff]
        %v4239 = vld [vmem:[#allocation13 + $0x1630] sm:$0xff]
        %v4240 = vld [vmem:[#allocation13 + $0x1638] sm:$0xff]
        %v4241 = vld [vmem:[#allocation13 + $0x1640] sm:$0xff]
        %v4242 = vld [vmem:[#allocation13 + $0x1648] sm:$0xff]
        %v4243 = vld [vmem:[#allocation13 + $0x1650] sm:$0xff]
        %v4244 = vld [vmem:[#allocation13 + $0x1658] sm:$0xff]
        %v4245 = vld [vmem:[#allocation13 + $0x1660] sm:$0xff]
        %v4246 = vld [vmem:[#allocation13 + $0x1668] sm:$0xff]
        %v4247 = vld [vmem:[#allocation13 + $0x1670] sm:$0xff]
        %v4248 = vld [vmem:[#allocation13 + $0x1678] sm:$0xff]
        %v4249 = vld [vmem:[#allocation13 + $0x1680] sm:$0xff]
        %v4250 = vld [vmem:[#allocation13 + $0x1688] sm:$0xff]
        %v4251 = vld [vmem:[#allocation13 + $0x1690] sm:$0xff]
        %v4252 = vld [vmem:[#allocation13 + $0x1698] sm:$0xff]
        %v4253 = vld [vmem:[#allocation13 + $0x16a0] sm:$0xff]
        %v4254 = vld [vmem:[#allocation13 + $0x16a8] sm:$0xff]
        %v4255 = vld [vmem:[#allocation13 + $0x16b0] sm:$0xff]
        %v4256 = vld [vmem:[#allocation13 + $0x16b8] sm:$0xff]
        %v4257 = vld [vmem:[#allocation13 + $0x16c0] sm:$0xff]
        %v4258 = vld [vmem:[#allocation13 + $0x16c8] sm:$0xff]
        %v4259 = vld [vmem:[#allocation13 + $0x16d0] sm:$0xff]
        %v4260 = vld [vmem:[#allocation13 + $0x16d8] sm:$0xff]
        %v4261 = vld [vmem:[#allocation13 + $0x16e0] sm:$0xff]
        %v4262 = vld [vmem:[#allocation13 + $0x16e8] sm:$0xff]
        %v4263 = vld [vmem:[#allocation13 + $0x16f0] sm:$0xff]
        %v4264 = vld [vmem:[#allocation13 + $0x16f8] sm:$0xff]
        %v4265 = vld [vmem:[#allocation13 + $0x1700] sm:$0xff]
        %v4266 = vld [vmem:[#allocation13 + $0x1708] sm:$0xff]
        %v4267 = vld [vmem:[#allocation13 + $0x1710] sm:$0xff]
        %v4268 = vld [vmem:[#allocation13 + $0x1718] sm:$0xff]
        %v4269 = vld [vmem:[#allocation13 + $0x1720] sm:$0xff]
        %v4270 = vld [vmem:[#allocation13 + $0x1728] sm:$0xff]
        %v4271 = vld [vmem:[#allocation13 + $0x1730] sm:$0xff]
        %v4272 = vld [vmem:[#allocation13 + $0x1738] sm:$0xff]
        %v4273 = vld [vmem:[#allocation13 + $0x1740] sm:$0xff]
        %v4274 = vld [vmem:[#allocation13 + $0x1748] sm:$0xff]
        %v4275 = vld [vmem:[#allocation13 + $0x1750] sm:$0xff]
        %v4276 = vld [vmem:[#allocation13 + $0x1758] sm:$0xff]
        %v4277 = vld [vmem:[#allocation13 + $0x1760] sm:$0xff]
        %v4278 = vld [vmem:[#allocation13 + $0x1768] sm:$0xff]
        %v4279 = vld [vmem:[#allocation13 + $0x1770] sm:$0xff]
        %v4280 = vld [vmem:[#allocation13 + $0x1778] sm:$0xff]
        %v4281 = vld [vmem:[#allocation13 + $0x1780] sm:$0xff]
        %v4282 = vld [vmem:[#allocation13 + $0x1788] sm:$0xff]
        %v4283 = vld [vmem:[#allocation13 + $0x1790] sm:$0xff]
        %v4284 = vld [vmem:[#allocation13 + $0x1798] sm:$0xff]
        %v4285 = vld [vmem:[#allocation13 + $0x17a0] sm:$0xff]
        %v4286 = vld [vmem:[#allocation13 + $0x17a8] sm:$0xff]
        %v4287 = vld [vmem:[#allocation13 + $0x17b0] sm:$0xff]
        %v4288 = vld [vmem:[#allocation13 + $0x17b8] sm:$0xff]
        %v4289 = vld [vmem:[#allocation13 + $0x17c0] sm:$0xff]
        %v4290 = vld [vmem:[#allocation13 + $0x17c8] sm:$0xff]
        %v4291 = vld [vmem:[#allocation13 + $0x17d0] sm:$0xff]
        %v4292 = vld [vmem:[#allocation13 + $0x17d8] sm:$0xff]
        %v4293 = vld [vmem:[#allocation13 + $0x17e0] sm:$0xff]
        %v4294 = vld [vmem:[#allocation13 + $0x17e8] sm:$0xff]
        %v4295 = vld [vmem:[#allocation13 + $0x17f0] sm:$0xff]
        %v4296 = vld [vmem:[#allocation13 + $0x17f8] sm:$0xff]
        %v4297 = vld [vmem:[#allocation13 + $0x1800] sm:$0xff]
        %v4298 = vld [vmem:[#allocation13 + $0x1808] sm:$0xff]
        %v4299 = vld [vmem:[#allocation13 + $0x1810] sm:$0xff]
        %v4300 = vld [vmem:[#allocation13 + $0x1818] sm:$0xff]
        %v4301 = vld [vmem:[#allocation13 + $0x1820] sm:$0xff]
        %v4302 = vld [vmem:[#allocation13 + $0x1828] sm:$0xff]
        %v4303 = vld [vmem:[#allocation13 + $0x1830] sm:$0xff]
        %v4304 = vld [vmem:[#allocation13 + $0x1838] sm:$0xff]
        %v4305 = vld [vmem:[#allocation13 + $0x1840] sm:$0xff]
        %v4306 = vld [vmem:[#allocation13 + $0x1848] sm:$0xff]
        %v4307 = vld [vmem:[#allocation13 + $0x1850] sm:$0xff]
        %v4308 = vld [vmem:[#allocation13 + $0x1858] sm:$0xff]
        %v4309 = vld [vmem:[#allocation13 + $0x1860] sm:$0xff]
        %v4310 = vld [vmem:[#allocation13 + $0x1868] sm:$0xff]
        %v4311 = vld [vmem:[#allocation13 + $0x1870] sm:$0xff]
        %v4312 = vld [vmem:[#allocation13 + $0x1878] sm:$0xff]
        %v4313 = vld [vmem:[#allocation13 + $0x1880] sm:$0xff]
        %v4314 = vld [vmem:[#allocation13 + $0x1888] sm:$0xff]
        %v4315 = vld [vmem:[#allocation13 + $0x1890] sm:$0xff]
        %v4316 = vld [vmem:[#allocation13 + $0x1898] sm:$0xff]
        %v4317 = vld [vmem:[#allocation13 + $0x18a0] sm:$0xff]
        %v4318 = vld [vmem:[#allocation13 + $0x18a8] sm:$0xff]
        %v4319 = vld [vmem:[#allocation13 + $0x18b0] sm:$0xff]
        %v4320 = vld [vmem:[#allocation13 + $0x18b8] sm:$0xff]
        %v4321 = vld [vmem:[#allocation13 + $0x18c0] sm:$0xff]
        %v4322 = vld [vmem:[#allocation13 + $0x18c8] sm:$0xff]
        %v4323 = vld [vmem:[#allocation13 + $0x18d0] sm:$0xff]
        %v4324 = vld [vmem:[#allocation13 + $0x18d8] sm:$0xff]
        %v4325 = vld [vmem:[#allocation13 + $0x18e0] sm:$0xff]
        %v4326 = vld [vmem:[#allocation13 + $0x18e8] sm:$0xff]
        %v4327 = vld [vmem:[#allocation13 + $0x18f0] sm:$0xff]
        %v4328 = vld [vmem:[#allocation13 + $0x18f8] sm:$0xff]
        %v4329 = vld [vmem:[#allocation13 + $0x1900] sm:$0xff]
        %v4330 = vld [vmem:[#allocation13 + $0x1908] sm:$0xff]
        %v4331 = vld [vmem:[#allocation13 + $0x1910] sm:$0xff]
        %v4332 = vld [vmem:[#allocation13 + $0x1918] sm:$0xff]
        %v4333 = vld [vmem:[#allocation13 + $0x1920] sm:$0xff]
        %v4334 = vld [vmem:[#allocation13 + $0x1928] sm:$0xff]
        %v4335 = vld [vmem:[#allocation13 + $0x1930] sm:$0xff]
        %v4336 = vld [vmem:[#allocation13 + $0x1938] sm:$0xff]
        %v4337 = vld [vmem:[#allocation13 + $0x1940] sm:$0xff]
        %v4338 = vld [vmem:[#allocation13 + $0x1948] sm:$0xff]
        %v4339 = vld [vmem:[#allocation13 + $0x1950] sm:$0xff]
        %v4340 = vld [vmem:[#allocation13 + $0x1958] sm:$0xff]
        %v4341 = vld [vmem:[#allocation13 + $0x1960] sm:$0xff]
        %v4342 = vld [vmem:[#allocation13 + $0x1968] sm:$0xff]
        %v4343 = vld [vmem:[#allocation13 + $0x1970] sm:$0xff]
        %v4344 = vld [vmem:[#allocation13 + $0x1978] sm:$0xff]
        %v4345 = vld [vmem:[#allocation13 + $0x1980] sm:$0xff]
        %v4346 = vld [vmem:[#allocation13 + $0x1988] sm:$0xff]
        %v4347 = vld [vmem:[#allocation13 + $0x1990] sm:$0xff]
        %v4348 = vld [vmem:[#allocation13 + $0x1998] sm:$0xff]
        %v4349 = vld [vmem:[#allocation13 + $0x19a0] sm:$0xff]
        %v4350 = vld [vmem:[#allocation13 + $0x19a8] sm:$0xff]
        %v4351 = vld [vmem:[#allocation13 + $0x19b0] sm:$0xff]
        %v4352 = vld [vmem:[#allocation13 + $0x19b8] sm:$0xff]
        %v4353 = vld [vmem:[#allocation13 + $0x19c0] sm:$0xff]
        %v4354 = vld [vmem:[#allocation13 + $0x19c8] sm:$0xff]
        %v4355 = vld [vmem:[#allocation13 + $0x19d0] sm:$0xff]
        %v4356 = vld [vmem:[#allocation13 + $0x19d8] sm:$0xff]
        %v4357 = vld [vmem:[#allocation13 + $0x19e0] sm:$0xff]
        %v4358 = vld [vmem:[#allocation13 + $0x19e8] sm:$0xff]
        %v4359 = vld [vmem:[#allocation13 + $0x19f0] sm:$0xff]
        %v4360 = vld [vmem:[#allocation13 + $0x19f8] sm:$0xff]
        %v4361 = vld [vmem:[#allocation13 + $0x1a00] sm:$0xff]
        %v4362 = vld [vmem:[#allocation13 + $0x1a08] sm:$0xff]
        %v4363 = vld [vmem:[#allocation13 + $0x1a10] sm:$0xff]
        %v4364 = vld [vmem:[#allocation13 + $0x1a18] sm:$0xff]
        %v4365 = vld [vmem:[#allocation13 + $0x1a20] sm:$0xff]
        %v4366 = vld [vmem:[#allocation13 + $0x1a28] sm:$0xff]
        %v4367 = vld [vmem:[#allocation13 + $0x1a30] sm:$0xff]
        %v4368 = vld [vmem:[#allocation13 + $0x1a38] sm:$0xff]
        %v4369 = vld [vmem:[#allocation13 + $0x1a40] sm:$0xff]
        %v4370 = vld [vmem:[#allocation13 + $0x1a48] sm:$0xff]
        %v4371 = vld [vmem:[#allocation13 + $0x1a50] sm:$0xff]
        %v4372 = vld [vmem:[#allocation13 + $0x1a58] sm:$0xff]
        %v4373 = vld [vmem:[#allocation13 + $0x1a60] sm:$0xff]
        %v4374 = vld [vmem:[#allocation13 + $0x1a68] sm:$0xff]
        %v4375 = vld [vmem:[#allocation13 + $0x1a70] sm:$0xff]
        %v4376 = vld [vmem:[#allocation13 + $0x1a78] sm:$0xff]
        %v4377 = vld [vmem:[#allocation13 + $0x1a80] sm:$0xff]
        %v4378 = vld [vmem:[#allocation13 + $0x1a88] sm:$0xff]
        %v4379 = vld [vmem:[#allocation13 + $0x1a90] sm:$0xff]
        %v4380 = vld [vmem:[#allocation13 + $0x1a98] sm:$0xff]
        %v4381 = vld [vmem:[#allocation13 + $0x1aa0] sm:$0xff]
        %v4382 = vld [vmem:[#allocation13 + $0x1aa8] sm:$0xff]
        %v4383 = vld [vmem:[#allocation13 + $0x1ab0] sm:$0xff]
        %v4384 = vld [vmem:[#allocation13 + $0x1ab8] sm:$0xff]
        %v4385 = vld [vmem:[#allocation13 + $0x1ac0] sm:$0xff]
        %v4386 = vld [vmem:[#allocation13 + $0x1ac8] sm:$0xff]
        %v4387 = vld [vmem:[#allocation13 + $0x1ad0] sm:$0xff]
        %v4388 = vld [vmem:[#allocation13 + $0x1ad8] sm:$0xff]
        %v4389 = vld [vmem:[#allocation13 + $0x1ae0] sm:$0xff]
        %v4390 = vld [vmem:[#allocation13 + $0x1ae8] sm:$0xff]
        %v4391 = vld [vmem:[#allocation13 + $0x1af0] sm:$0xff]
        %v4392 = vld [vmem:[#allocation13 + $0x1af8] sm:$0xff]
        %v4393 = vld [vmem:[#allocation13 + $0x1b00] sm:$0xff]
        %v4394 = vld [vmem:[#allocation13 + $0x1b08] sm:$0xff]
        %v4395 = vld [vmem:[#allocation13 + $0x1b10] sm:$0xff]
        %v4396 = vld [vmem:[#allocation13 + $0x1b18] sm:$0xff]
        %v4397 = vld [vmem:[#allocation13 + $0x1b20] sm:$0xff]
        %v4398 = vld [vmem:[#allocation13 + $0x1b28] sm:$0xff]
        %v4399 = vld [vmem:[#allocation13 + $0x1b30] sm:$0xff]
        %v4400 = vld [vmem:[#allocation13 + $0x1b38] sm:$0xff]
        %v4401 = vld [vmem:[#allocation13 + $0x1b40] sm:$0xff]
        %v4402 = vld [vmem:[#allocation13 + $0x1b48] sm:$0xff]
        %v4403 = vld [vmem:[#allocation13 + $0x1b50] sm:$0xff]
        %v4404 = vld [vmem:[#allocation13 + $0x1b58] sm:$0xff]
        %v4405 = vld [vmem:[#allocation13 + $0x1b60] sm:$0xff]
        %v4406 = vld [vmem:[#allocation13 + $0x1b68] sm:$0xff]
        %v4407 = vld [vmem:[#allocation13 + $0x1b70] sm:$0xff]
        %v4408 = vld [vmem:[#allocation13 + $0x1b78] sm:$0xff]
        %v4409 = vld [vmem:[#allocation13 + $0x1b80] sm:$0xff]
        %v4410 = vld [vmem:[#allocation13 + $0x1b88] sm:$0xff]
        %v4411 = vld [vmem:[#allocation13 + $0x1b90] sm:$0xff]
        %v4412 = vld [vmem:[#allocation13 + $0x1b98] sm:$0xff]
        %v4413 = vld [vmem:[#allocation13 + $0x1ba0] sm:$0xff]
        %v4414 = vld [vmem:[#allocation13 + $0x1ba8] sm:$0xff]
        %v4415 = vld [vmem:[#allocation13 + $0x1bb0] sm:$0xff]
        %v4416 = vld [vmem:[#allocation13 + $0x1bb8] sm:$0xff]
        %v4417 = vld [vmem:[#allocation13 + $0x1bc0] sm:$0xff]
        %v4418 = vld [vmem:[#allocation13 + $0x1bc8] sm:$0xff]
        %v4419 = vld [vmem:[#allocation13 + $0x1bd0] sm:$0xff]
        %v4420 = vld [vmem:[#allocation13 + $0x1bd8] sm:$0xff]
        %v4421 = vld [vmem:[#allocation13 + $0x1be0] sm:$0xff]
        %v4422 = vld [vmem:[#allocation13 + $0x1be8] sm:$0xff]
        %v4423 = vld [vmem:[#allocation13 + $0x1bf0] sm:$0xff]
        %v4424 = vld [vmem:[#allocation13 + $0x1bf8] sm:$0xff]
        %v4425 = vld [vmem:[#allocation13 + $0x1c00] sm:$0xff]
        %v4426 = vld [vmem:[#allocation13 + $0x1c08] sm:$0xff]
        %v4427 = vld [vmem:[#allocation13 + $0x1c10] sm:$0xff]
        %v4428 = vld [vmem:[#allocation13 + $0x1c18] sm:$0xff]
        %v4429 = vld [vmem:[#allocation13 + $0x1c20] sm:$0xff]
        %v4430 = vld [vmem:[#allocation13 + $0x1c28] sm:$0xff]
        %v4431 = vld [vmem:[#allocation13 + $0x1c30] sm:$0xff]
        %v4432 = vld [vmem:[#allocation13 + $0x1c38] sm:$0xff]
        %v4433 = vld [vmem:[#allocation13 + $0x1c40] sm:$0xff]
        %v4434 = vld [vmem:[#allocation13 + $0x1c48] sm:$0xff]
        %v4435 = vld [vmem:[#allocation13 + $0x1c50] sm:$0xff]
        %v4436 = vld [vmem:[#allocation13 + $0x1c58] sm:$0xff]
        %v4437 = vld [vmem:[#allocation13 + $0x1c60] sm:$0xff]
        %v4438 = vld [vmem:[#allocation13 + $0x1c68] sm:$0xff]
        %v4439 = vld [vmem:[#allocation13 + $0x1c70] sm:$0xff]
        %v4440 = vld [vmem:[#allocation13 + $0x1c78] sm:$0xff]
        %v4441 = vld [vmem:[#allocation13 + $0x1c80] sm:$0xff]
        %v4442 = vld [vmem:[#allocation13 + $0x1c88] sm:$0xff]
        %v4443 = vld [vmem:[#allocation13 + $0x1c90] sm:$0xff]
        %v4444 = vld [vmem:[#allocation13 + $0x1c98] sm:$0xff]
        %v4445 = vld [vmem:[#allocation13 + $0x1ca0] sm:$0xff]
        %v4446 = vld [vmem:[#allocation13 + $0x1ca8] sm:$0xff]
        %v4447 = vld [vmem:[#allocation13 + $0x1cb0] sm:$0xff]
        %v4448 = vld [vmem:[#allocation13 + $0x1cb8] sm:$0xff]
        %v4449 = vld [vmem:[#allocation13 + $0x1cc0] sm:$0xff]
        %v4450 = vld [vmem:[#allocation13 + $0x1cc8] sm:$0xff]
        %v4451 = vld [vmem:[#allocation13 + $0x1cd0] sm:$0xff]
        %v4452 = vld [vmem:[#allocation13 + $0x1cd8] sm:$0xff]
        %v4453 = vld [vmem:[#allocation13 + $0x1ce0] sm:$0xff]
        %v4454 = vld [vmem:[#allocation13 + $0x1ce8] sm:$0xff]
        %v4455 = vld [vmem:[#allocation13 + $0x1cf0] sm:$0xff]
        %v4456 = vld [vmem:[#allocation13 + $0x1cf8] sm:$0xff]
        %v4457 = vld [vmem:[#allocation13 + $0x1d00] sm:$0xff]
        %v4458 = vld [vmem:[#allocation13 + $0x1d08] sm:$0xff]
        %v4459 = vld [vmem:[#allocation13 + $0x1d10] sm:$0xff]
        %v4460 = vld [vmem:[#allocation13 + $0x1d18] sm:$0xff]
        %v4461 = vld [vmem:[#allocation13 + $0x1d20] sm:$0xff]
        %v4462 = vld [vmem:[#allocation13 + $0x1d28] sm:$0xff]
        %v4463 = vld [vmem:[#allocation13 + $0x1d30] sm:$0xff]
        %v4464 = vld [vmem:[#allocation13 + $0x1d38] sm:$0xff]
        %v4465 = vld [vmem:[#allocation13 + $0x1d40] sm:$0xff]
        %v4466 = vld [vmem:[#allocation13 + $0x1d48] sm:$0xff]
        %v4467 = vld [vmem:[#allocation13 + $0x1d50] sm:$0xff]
        %v4468 = vld [vmem:[#allocation13 + $0x1d58] sm:$0xff]
        %v4469 = vld [vmem:[#allocation13 + $0x1d60] sm:$0xff]
        %v4470 = vld [vmem:[#allocation13 + $0x1d68] sm:$0xff]
        %v4471 = vld [vmem:[#allocation13 + $0x1d70] sm:$0xff]
        %v4472 = vld [vmem:[#allocation13 + $0x1d78] sm:$0xff]
        %v4473 = vld [vmem:[#allocation13 + $0x1d80] sm:$0xff]
        %v4474 = vld [vmem:[#allocation13 + $0x1d88] sm:$0xff]
        %v4475 = vld [vmem:[#allocation13 + $0x1d90] sm:$0xff]
        %v4476 = vld [vmem:[#allocation13 + $0x1d98] sm:$0xff]
        %v4477 = vld [vmem:[#allocation13 + $0x1da0] sm:$0xff]
        %v4478 = vld [vmem:[#allocation13 + $0x1da8] sm:$0xff]
        %v4479 = vld [vmem:[#allocation13 + $0x1db0] sm:$0xff]
        %v4480 = vld [vmem:[#allocation13 + $0x1db8] sm:$0xff]
        %v4481 = vld [vmem:[#allocation13 + $0x1dc0] sm:$0xff]
        %v4482 = vld [vmem:[#allocation13 + $0x1dc8] sm:$0xff]
        %v4483 = vld [vmem:[#allocation13 + $0x1dd0] sm:$0xff]
        %v4484 = vld [vmem:[#allocation13 + $0x1dd8] sm:$0xff]
        %v4485 = vld [vmem:[#allocation13 + $0x1de0] sm:$0xff]
        %v4486 = vld [vmem:[#allocation13 + $0x1de8] sm:$0xff]
        %v4487 = vld [vmem:[#allocation13 + $0x1df0] sm:$0xff]
        %v4488 = vld [vmem:[#allocation13 + $0x1df8] sm:$0xff]
        %v4489 = vld [vmem:[#allocation13 + $0x1e00] sm:$0xff]
        %v4490 = vld [vmem:[#allocation13 + $0x1e08] sm:$0xff]
        %v4491 = vld [vmem:[#allocation13 + $0x1e10] sm:$0xff]
        %v4492 = vld [vmem:[#allocation13 + $0x1e18] sm:$0xff]
        %v4493 = vld [vmem:[#allocation13 + $0x1e20] sm:$0xff]
        %v4494 = vld [vmem:[#allocation13 + $0x1e28] sm:$0xff]
        %v4495 = vld [vmem:[#allocation13 + $0x1e30] sm:$0xff]
        %v4496 = vld [vmem:[#allocation13 + $0x1e38] sm:$0xff]
        %v4497 = vld [vmem:[#allocation13 + $0x1e40] sm:$0xff]
        %v4498 = vld [vmem:[#allocation13 + $0x1e48] sm:$0xff]
        %v4499 = vld [vmem:[#allocation13 + $0x1e50] sm:$0xff]
        %v4500 = vld [vmem:[#allocation13 + $0x1e58] sm:$0xff]
        %v4501 = vld [vmem:[#allocation13 + $0x1e60] sm:$0xff]
        %v4502 = vld [vmem:[#allocation13 + $0x1e68] sm:$0xff]
        %v4503 = vld [vmem:[#allocation13 + $0x1e70] sm:$0xff]
        %v4504 = vld [vmem:[#allocation13 + $0x1e78] sm:$0xff]
        %v4505 = vld [vmem:[#allocation13 + $0x1e80] sm:$0xff]
        %v4506 = vld [vmem:[#allocation13 + $0x1e88] sm:$0xff]
        %v4507 = vld [vmem:[#allocation13 + $0x1e90] sm:$0xff]
        %v4508 = vld [vmem:[#allocation13 + $0x1e98] sm:$0xff]
        %v4509 = vld [vmem:[#allocation13 + $0x1ea0] sm:$0xff]
        %v4510 = vld [vmem:[#allocation13 + $0x1ea8] sm:$0xff]
        %v4511 = vld [vmem:[#allocation13 + $0x1eb0] sm:$0xff]
        %v4512 = vld [vmem:[#allocation13 + $0x1eb8] sm:$0xff]
        %v4513 = vld [vmem:[#allocation13 + $0x1ec0] sm:$0xff]
        %v4514 = vld [vmem:[#allocation13 + $0x1ec8] sm:$0xff]
        %v4515 = vld [vmem:[#allocation13 + $0x1ed0] sm:$0xff]
        %v4516 = vld [vmem:[#allocation13 + $0x1ed8] sm:$0xff]
        %v4517 = vld [vmem:[#allocation13 + $0x1ee0] sm:$0xff]
        %v4518 = vld [vmem:[#allocation13 + $0x1ee8] sm:$0xff]
        %v4519 = vld [vmem:[#allocation13 + $0x1ef0] sm:$0xff]
        %v4520 = vld [vmem:[#allocation13 + $0x1ef8] sm:$0xff]
        %v4521 = vld [vmem:[#allocation13 + $0x1f00] sm:$0xff]
        %v4522 = vld [vmem:[#allocation13 + $0x1f08] sm:$0xff]
        %v4523 = vld [vmem:[#allocation13 + $0x1f10] sm:$0xff]
        %v4524 = vld [vmem:[#allocation13 + $0x1f18] sm:$0xff]
        %v4525 = vld [vmem:[#allocation13 + $0x1f20] sm:$0xff]
        %v4526 = vld [vmem:[#allocation13 + $0x1f28] sm:$0xff]
        %v4527 = vld [vmem:[#allocation13 + $0x1f30] sm:$0xff]
        %v4528 = vld [vmem:[#allocation13 + $0x1f38] sm:$0xff]
        %v4529 = vld [vmem:[#allocation13 + $0x1f40] sm:$0xff]
        %v4530 = vld [vmem:[#allocation13 + $0x1f48] sm:$0xff]
        %v4531 = vld [vmem:[#allocation13 + $0x1f50] sm:$0xff]
        %v4532 = vld [vmem:[#allocation13 + $0x1f58] sm:$0xff]
        %v4533 = vld [vmem:[#allocation13 + $0x1f60] sm:$0xff]
        %v4534 = vld [vmem:[#allocation13 + $0x1f68] sm:$0xff]
        %v4535 = vld [vmem:[#allocation13 + $0x1f70] sm:$0xff]
        %v4536 = vld [vmem:[#allocation13 + $0x1f78] sm:$0xff]
        %v4537 = vld [vmem:[#allocation13 + $0x1f80] sm:$0xff]
        %v4538 = vld [vmem:[#allocation13 + $0x1f88] sm:$0xff]
        %v4539 = vld [vmem:[#allocation13 + $0x1f90] sm:$0xff]
        %v4540 = vld [vmem:[#allocation13 + $0x1f98] sm:$0xff]
        %v4541 = vld [vmem:[#allocation13 + $0x1fa0] sm:$0xff]
        %v4542 = vld [vmem:[#allocation13 + $0x1fa8] sm:$0xff]
        %v4543 = vld [vmem:[#allocation13 + $0x1fb0] sm:$0xff]
        %v4544 = vld [vmem:[#allocation13 + $0x1fb8] sm:$0xff]
        %v4545 = vld [vmem:[#allocation13 + $0x1fc0] sm:$0xff]
        %v4546 = vld [vmem:[#allocation13 + $0x1fc8] sm:$0xff]
        %v4547 = vld [vmem:[#allocation13 + $0x1fd0] sm:$0xff]
        %v4548 = vld [vmem:[#allocation13 + $0x1fd8] sm:$0xff]
        %v4549 = vld [vmem:[#allocation13 + $0x1fe0] sm:$0xff]
        %v4550 = vld [vmem:[#allocation13 + $0x1fe8] sm:$0xff]
        %v4551 = vld [vmem:[#allocation13 + $0x1ff0] sm:$0xff]
        %v4552 = vld [vmem:[#allocation13 + $0x1ff8] sm:$0xff]
        %4553 = vmatpush.msra.mxu0 %v3769
        %4554 = vmatpush.msra.mxu0 %v3753
        %4555 = vmatpush.msra.mxu0 %v3737
        %4556 = vmatpush.msra.mxu0 %v3721
        %4557 = vmatpush.msra.mxu0 %v3705
        %4558 = vmatpush.msra.mxu0 %v3689
        %4559 = vmatpush.msra.mxu0 %v3673
        %4560 = vmatpush.msra.mxu0 %v3657
        %4561 = vmatpush.msra.mxu0 %v3641
        %4562 = vmatpush.msra.mxu0 %v3625
        %4563 = vmatpush.msra.mxu0 %v3609
        %4564 = vmatpush.msra.mxu0 %v3593
        %4565 = vmatpush.msra.mxu0 %v3577
        %4566 = vmatpush.msra.mxu0 %v3561
        %4567 = vmatpush.msra.mxu0 %v3545
        %4568 = vmatpush.msra.mxu0 %v3529
        %4569 = vmatmul.f32.gmra.mxu0 %v3525
        %v4570 = vpop.f32.mrf.mxu0
        %v4571 = vadd.f32 0.0, %v4570
        %4572 = vdwg.mxu0
        %4573 = vmatpush.msra.mxu0 %v4025
        %4574 = vmatpush.msra.mxu0 %v4009
        %4575 = vmatpush.msra.mxu0 %v3993
        %4576 = vmatpush.msra.mxu0 %v3977
        %4577 = vmatpush.msra.mxu0 %v3961
        %4578 = vmatpush.msra.mxu0 %v3945
        %4579 = vmatpush.msra.mxu0 %v3929
        %4580 = vmatpush.msra.mxu0 %v3913
        %4581 = vmatpush.msra.mxu0 %v3897
        %4582 = vmatpush.msra.mxu0 %v3881
        %4583 = vmatpush.msra.mxu0 %v3865
        %4584 = vmatpush.msra.mxu0 %v3849
        %4585 = vmatpush.msra.mxu0 %v3833
        %4586 = vmatpush.msra.mxu0 %v3817
        %4587 = vmatpush.msra.mxu0 %v3801
        %4588 = vmatpush.msra.mxu0 %v3785
        %4589 = vmatmul.f32.gmra.mxu0 %v3526
        %v4590 = vpop.f32.mrf.mxu0
        %v4591 = vadd.f32 %v4571, %v4590
        %4592 = vdwg.mxu0
        %4593 = vmatpush.msra.mxu0 %v4281
        %4594 = vmatpush.msra.mxu0 %v4265
        %4595 = vmatpush.msra.mxu0 %v4249
        %4596 = vmatpush.msra.mxu0 %v4233
        %4597 = vmatpush.msra.mxu0 %v4217
        %4598 = vmatpush.msra.mxu0 %v4201
        %4599 = vmatpush.msra.mxu0 %v4185
        %4600 = vmatpush.msra.mxu0 %v4169
        %4601 = vmatpush.msra.mxu0 %v4153
        %4602 = vmatpush.msra.mxu0 %v4137
        %4603 = vmatpush.msra.mxu0 %v4121
        %4604 = vmatpush.msra.mxu0 %v4105
        %4605 = vmatpush.msra.mxu0 %v4089
        %4606 = vmatpush.msra.mxu0 %v4073
        %4607 = vmatpush.msra.mxu0 %v4057
        %4608 = vmatpush.msra.mxu0 %v4041
        %4609 = vmatmul.f32.gmra.mxu0 %v3527
        %v4610 = vpop.f32.mrf.mxu0
        %v4611 = vadd.f32 %v4591, %v4610
        %4612 = vdwg.mxu0
        %4613 = vmatpush.msra.mxu0 %v4537
        %4614 = vmatpush.msra.mxu0 %v4521
        %4615 = vmatpush.msra.mxu0 %v4505
        %4616 = vmatpush.msra.mxu0 %v4489
        %4617 = vmatpush.msra.mxu0 %v4473
        %4618 = vmatpush.msra.mxu0 %v4457
        %4619 = vmatpush.msra.mxu0 %v4441
        %4620 = vmatpush.msra.mxu0 %v4425
        %4621 = vmatpush.msra.mxu0 %v4409
        %4622 = vmatpush.msra.mxu0 %v4393
        %4623 = vmatpush.msra.mxu0 %v4377
        %4624 = vmatpush.msra.mxu0 %v4361
        %4625 = vmatpush.msra.mxu0 %v4345
        %4626 = vmatpush.msra.mxu0 %v4329
        %4627 = vmatpush.msra.mxu0 %v4313
        %4628 = vmatpush.msra.mxu0 %v4297
        %4629 = vmatmul.f32.gmra.mxu0 %v3528
        %v4630 = vpop.f32.mrf.mxu0
        %v4631 = vadd.f32 %v4611, %v4630
        %4632 = vdwg.mxu0
        %4633 = vmatpush.msra.mxu0 %v3770
        %4634 = vmatpush.msra.mxu0 %v3754
        %4635 = vmatpush.msra.mxu0 %v3738
        %4636 = vmatpush.msra.mxu0 %v3722
        %4637 = vmatpush.msra.mxu0 %v3706
        %4638 = vmatpush.msra.mxu0 %v3690
        %4639 = vmatpush.msra.mxu0 %v3674
        %4640 = vmatpush.msra.mxu0 %v3658
        %4641 = vmatpush.msra.mxu0 %v3642
        %4642 = vmatpush.msra.mxu0 %v3626
        %4643 = vmatpush.msra.mxu0 %v3610
        %4644 = vmatpush.msra.mxu0 %v3594
        %4645 = vmatpush.msra.mxu0 %v3578
        %4646 = vmatpush.msra.mxu0 %v3562
        %4647 = vmatpush.msra.mxu0 %v3546
        %4648 = vmatpush.msra.mxu0 %v3530
        %4649 = vmatmul.f32.gmra.mxu0 %v3525
        %v4650 = vpop.f32.mrf.mxu0
        %v4651 = vadd.f32 0.0, %v4650
        %4652 = vdwg.mxu0
        %4653 = vmatpush.msra.mxu0 %v4026
        %4654 = vmatpush.msra.mxu0 %v4010
        %4655 = vmatpush.msra.mxu0 %v3994
        %4656 = vmatpush.msra.mxu0 %v3978
        %4657 = vmatpush.msra.mxu0 %v3962
        %4658 = vmatpush.msra.mxu0 %v3946
        %4659 = vmatpush.msra.mxu0 %v3930
        %4660 = vmatpush.msra.mxu0 %v3914
        %4661 = vmatpush.msra.mxu0 %v3898
        %4662 = vmatpush.msra.mxu0 %v3882
        %4663 = vmatpush.msra.mxu0 %v3866
        %4664 = vmatpush.msra.mxu0 %v3850
        %4665 = vmatpush.msra.mxu0 %v3834
        %4666 = vmatpush.msra.mxu0 %v3818
        %4667 = vmatpush.msra.mxu0 %v3802
        %4668 = vmatpush.msra.mxu0 %v3786
        %4669 = vmatmul.f32.gmra.mxu0 %v3526
        %v4670 = vpop.f32.mrf.mxu0
        %v4671 = vadd.f32 %v4651, %v4670
        %4672 = vdwg.mxu0
        %4673 = vmatpush.msra.mxu0 %v4282
        %4674 = vmatpush.msra.mxu0 %v4266
        %4675 = vmatpush.msra.mxu0 %v4250
        %4676 = vmatpush.msra.mxu0 %v4234
        %4677 = vmatpush.msra.mxu0 %v4218
        %4678 = vmatpush.msra.mxu0 %v4202
        %4679 = vmatpush.msra.mxu0 %v4186
        %4680 = vmatpush.msra.mxu0 %v4170
        %4681 = vmatpush.msra.mxu0 %v4154
        %4682 = vmatpush.msra.mxu0 %v4138
        %4683 = vmatpush.msra.mxu0 %v4122
        %4684 = vmatpush.msra.mxu0 %v4106
        %4685 = vmatpush.msra.mxu0 %v4090
        %4686 = vmatpush.msra.mxu0 %v4074
        %4687 = vmatpush.msra.mxu0 %v4058
        %4688 = vmatpush.msra.mxu0 %v4042
        %4689 = vmatmul.f32.gmra.mxu0 %v3527
        %v4690 = vpop.f32.mrf.mxu0
        %v4691 = vadd.f32 %v4671, %v4690
        %4692 = vdwg.mxu0
        %4693 = vmatpush.msra.mxu0 %v4538
        %4694 = vmatpush.msra.mxu0 %v4522
        %4695 = vmatpush.msra.mxu0 %v4506
        %4696 = vmatpush.msra.mxu0 %v4490
        %4697 = vmatpush.msra.mxu0 %v4474
        %4698 = vmatpush.msra.mxu0 %v4458
        %4699 = vmatpush.msra.mxu0 %v4442
        %4700 = vmatpush.msra.mxu0 %v4426
        %4701 = vmatpush.msra.mxu0 %v4410
        %4702 = vmatpush.msra.mxu0 %v4394
        %4703 = vmatpush.msra.mxu0 %v4378
        %4704 = vmatpush.msra.mxu0 %v4362
        %4705 = vmatpush.msra.mxu0 %v4346
        %4706 = vmatpush.msra.mxu0 %v4330
        %4707 = vmatpush.msra.mxu0 %v4314
        %4708 = vmatpush.msra.mxu0 %v4298
        %4709 = vmatmul.f32.gmra.mxu0 %v3528
        %v4710 = vpop.f32.mrf.mxu0
        %v4711 = vadd.f32 %v4691, %v4710
        %4712 = vdwg.mxu0
        %4713 = vmatpush.msra.mxu0 %v3771
        %4714 = vmatpush.msra.mxu0 %v3755
        %4715 = vmatpush.msra.mxu0 %v3739
        %4716 = vmatpush.msra.mxu0 %v3723
        %4717 = vmatpush.msra.mxu0 %v3707
        %4718 = vmatpush.msra.mxu0 %v3691
        %4719 = vmatpush.msra.mxu0 %v3675
        %4720 = vmatpush.msra.mxu0 %v3659
        %4721 = vmatpush.msra.mxu0 %v3643
        %4722 = vmatpush.msra.mxu0 %v3627
        %4723 = vmatpush.msra.mxu0 %v3611
        %4724 = vmatpush.msra.mxu0 %v3595
        %4725 = vmatpush.msra.mxu0 %v3579
        %4726 = vmatpush.msra.mxu0 %v3563
        %4727 = vmatpush.msra.mxu0 %v3547
        %4728 = vmatpush.msra.mxu0 %v3531
        %4729 = vmatmul.f32.gmra.mxu0 %v3525
        %v4730 = vpop.f32.mrf.mxu0
        %v4731 = vadd.f32 0.0, %v4730
        %4732 = vdwg.mxu0
        %4733 = vmatpush.msra.mxu0 %v4027
        %4734 = vmatpush.msra.mxu0 %v4011
        %4735 = vmatpush.msra.mxu0 %v3995
        %4736 = vmatpush.msra.mxu0 %v3979
        %4737 = vmatpush.msra.mxu0 %v3963
        %4738 = vmatpush.msra.mxu0 %v3947
        %4739 = vmatpush.msra.mxu0 %v3931
        %4740 = vmatpush.msra.mxu0 %v3915
        %4741 = vmatpush.msra.mxu0 %v3899
        %4742 = vmatpush.msra.mxu0 %v3883
        %4743 = vmatpush.msra.mxu0 %v3867
        %4744 = vmatpush.msra.mxu0 %v3851
        %4745 = vmatpush.msra.mxu0 %v3835
        %4746 = vmatpush.msra.mxu0 %v3819
        %4747 = vmatpush.msra.mxu0 %v3803
        %4748 = vmatpush.msra.mxu0 %v3787
        %4749 = vmatmul.f32.gmra.mxu0 %v3526
        %v4750 = vpop.f32.mrf.mxu0
        %v4751 = vadd.f32 %v4731, %v4750
        %4752 = vdwg.mxu0
        %4753 = vmatpush.msra.mxu0 %v4283
        %4754 = vmatpush.msra.mxu0 %v4267
        %4755 = vmatpush.msra.mxu0 %v4251
        %4756 = vmatpush.msra.mxu0 %v4235
        %4757 = vmatpush.msra.mxu0 %v4219
        %4758 = vmatpush.msra.mxu0 %v4203
        %4759 = vmatpush.msra.mxu0 %v4187
        %4760 = vmatpush.msra.mxu0 %v4171
        %4761 = vmatpush.msra.mxu0 %v4155
        %4762 = vmatpush.msra.mxu0 %v4139
        %4763 = vmatpush.msra.mxu0 %v4123
        %4764 = vmatpush.msra.mxu0 %v4107
        %4765 = vmatpush.msra.mxu0 %v4091
        %4766 = vmatpush.msra.mxu0 %v4075
        %4767 = vmatpush.msra.mxu0 %v4059
        %4768 = vmatpush.msra.mxu0 %v4043
        %4769 = vmatmul.f32.gmra.mxu0 %v3527
        %v4770 = vpop.f32.mrf.mxu0
        %v4771 = vadd.f32 %v4751, %v4770
        %4772 = vdwg.mxu0
        %4773 = vmatpush.msra.mxu0 %v4539
        %4774 = vmatpush.msra.mxu0 %v4523
        %4775 = vmatpush.msra.mxu0 %v4507
        %4776 = vmatpush.msra.mxu0 %v4491
        %4777 = vmatpush.msra.mxu0 %v4475
        %4778 = vmatpush.msra.mxu0 %v4459
        %4779 = vmatpush.msra.mxu0 %v4443
        %4780 = vmatpush.msra.mxu0 %v4427
        %4781 = vmatpush.msra.mxu0 %v4411
        %4782 = vmatpush.msra.mxu0 %v4395
        %4783 = vmatpush.msra.mxu0 %v4379
        %4784 = vmatpush.msra.mxu0 %v4363
        %4785 = vmatpush.msra.mxu0 %v4347
        %4786 = vmatpush.msra.mxu0 %v4331
        %4787 = vmatpush.msra.mxu0 %v4315
        %4788 = vmatpush.msra.mxu0 %v4299
        %4789 = vmatmul.f32.gmra.mxu0 %v3528
        %v4790 = vpop.f32.mrf.mxu0
        %v4791 = vadd.f32 %v4771, %v4790
        %4792 = vdwg.mxu0
        %4793 = vmatpush.msra.mxu0 %v3772
        %4794 = vmatpush.msra.mxu0 %v3756
        %4795 = vmatpush.msra.mxu0 %v3740
        %4796 = vmatpush.msra.mxu0 %v3724
        %4797 = vmatpush.msra.mxu0 %v3708
        %4798 = vmatpush.msra.mxu0 %v3692
        %4799 = vmatpush.msra.mxu0 %v3676
        %4800 = vmatpush.msra.mxu0 %v3660
        %4801 = vmatpush.msra.mxu0 %v3644
        %4802 = vmatpush.msra.mxu0 %v3628
        %4803 = vmatpush.msra.mxu0 %v3612
        %4804 = vmatpush.msra.mxu0 %v3596
        %4805 = vmatpush.msra.mxu0 %v3580
        %4806 = vmatpush.msra.mxu0 %v3564
        %4807 = vmatpush.msra.mxu0 %v3548
        %4808 = vmatpush.msra.mxu0 %v3532
        %4809 = vmatmul.f32.gmra.mxu0 %v3525
        %v4810 = vpop.f32.mrf.mxu0
        %v4811 = vadd.f32 0.0, %v4810
        %4812 = vdwg.mxu0
        %4813 = vmatpush.msra.mxu0 %v4028
        %4814 = vmatpush.msra.mxu0 %v4012
        %4815 = vmatpush.msra.mxu0 %v3996
        %4816 = vmatpush.msra.mxu0 %v3980
        %4817 = vmatpush.msra.mxu0 %v3964
        %4818 = vmatpush.msra.mxu0 %v3948
        %4819 = vmatpush.msra.mxu0 %v3932
        %4820 = vmatpush.msra.mxu0 %v3916
        %4821 = vmatpush.msra.mxu0 %v3900
        %4822 = vmatpush.msra.mxu0 %v3884
        %4823 = vmatpush.msra.mxu0 %v3868
        %4824 = vmatpush.msra.mxu0 %v3852
        %4825 = vmatpush.msra.mxu0 %v3836
        %4826 = vmatpush.msra.mxu0 %v3820
        %4827 = vmatpush.msra.mxu0 %v3804
        %4828 = vmatpush.msra.mxu0 %v3788
        %4829 = vmatmul.f32.gmra.mxu0 %v3526
        %v4830 = vpop.f32.mrf.mxu0
        %v4831 = vadd.f32 %v4811, %v4830
        %4832 = vdwg.mxu0
        %4833 = vmatpush.msra.mxu0 %v4284
        %4834 = vmatpush.msra.mxu0 %v4268
        %4835 = vmatpush.msra.mxu0 %v4252
        %4836 = vmatpush.msra.mxu0 %v4236
        %4837 = vmatpush.msra.mxu0 %v4220
        %4838 = vmatpush.msra.mxu0 %v4204
        %4839 = vmatpush.msra.mxu0 %v4188
        %4840 = vmatpush.msra.mxu0 %v4172
        %4841 = vmatpush.msra.mxu0 %v4156
        %4842 = vmatpush.msra.mxu0 %v4140
        %4843 = vmatpush.msra.mxu0 %v4124
        %4844 = vmatpush.msra.mxu0 %v4108
        %4845 = vmatpush.msra.mxu0 %v4092
        %4846 = vmatpush.msra.mxu0 %v4076
        %4847 = vmatpush.msra.mxu0 %v4060
        %4848 = vmatpush.msra.mxu0 %v4044
        %4849 = vmatmul.f32.gmra.mxu0 %v3527
        %v4850 = vpop.f32.mrf.mxu0
        %v4851 = vadd.f32 %v4831, %v4850
        %4852 = vdwg.mxu0
        %4853 = vmatpush.msra.mxu0 %v4540
        %4854 = vmatpush.msra.mxu0 %v4524
        %4855 = vmatpush.msra.mxu0 %v4508
        %4856 = vmatpush.msra.mxu0 %v4492
        %4857 = vmatpush.msra.mxu0 %v4476
        %4858 = vmatpush.msra.mxu0 %v4460
        %4859 = vmatpush.msra.mxu0 %v4444
        %4860 = vmatpush.msra.mxu0 %v4428
        %4861 = vmatpush.msra.mxu0 %v4412
        %4862 = vmatpush.msra.mxu0 %v4396
        %4863 = vmatpush.msra.mxu0 %v4380
        %4864 = vmatpush.msra.mxu0 %v4364
        %4865 = vmatpush.msra.mxu0 %v4348
        %4866 = vmatpush.msra.mxu0 %v4332
        %4867 = vmatpush.msra.mxu0 %v4316
        %4868 = vmatpush.msra.mxu0 %v4300
        %4869 = vmatmul.f32.gmra.mxu0 %v3528
        %v4870 = vpop.f32.mrf.mxu0
        %v4871 = vadd.f32 %v4851, %v4870
        %4872 = vdwg.mxu0
        %4873 = vmatpush.msra.mxu0 %v3773
        %4874 = vmatpush.msra.mxu0 %v3757
        %4875 = vmatpush.msra.mxu0 %v3741
        %4876 = vmatpush.msra.mxu0 %v3725
        %4877 = vmatpush.msra.mxu0 %v3709
        %4878 = vmatpush.msra.mxu0 %v3693
        %4879 = vmatpush.msra.mxu0 %v3677
        %4880 = vmatpush.msra.mxu0 %v3661
        %4881 = vmatpush.msra.mxu0 %v3645
        %4882 = vmatpush.msra.mxu0 %v3629
        %4883 = vmatpush.msra.mxu0 %v3613
        %4884 = vmatpush.msra.mxu0 %v3597
        %4885 = vmatpush.msra.mxu0 %v3581
        %4886 = vmatpush.msra.mxu0 %v3565
        %4887 = vmatpush.msra.mxu0 %v3549
        %4888 = vmatpush.msra.mxu0 %v3533
        %4889 = vmatmul.f32.gmra.mxu0 %v3525
        %v4890 = vpop.f32.mrf.mxu0
        %v4891 = vadd.f32 0.0, %v4890
        %4892 = vdwg.mxu0
        %4893 = vmatpush.msra.mxu0 %v4029
        %4894 = vmatpush.msra.mxu0 %v4013
        %4895 = vmatpush.msra.mxu0 %v3997
        %4896 = vmatpush.msra.mxu0 %v3981
        %4897 = vmatpush.msra.mxu0 %v3965
        %4898 = vmatpush.msra.mxu0 %v3949
        %4899 = vmatpush.msra.mxu0 %v3933
        %4900 = vmatpush.msra.mxu0 %v3917
        %4901 = vmatpush.msra.mxu0 %v3901
        %4902 = vmatpush.msra.mxu0 %v3885
        %4903 = vmatpush.msra.mxu0 %v3869
        %4904 = vmatpush.msra.mxu0 %v3853
        %4905 = vmatpush.msra.mxu0 %v3837
        %4906 = vmatpush.msra.mxu0 %v3821
        %4907 = vmatpush.msra.mxu0 %v3805
        %4908 = vmatpush.msra.mxu0 %v3789
        %4909 = vmatmul.f32.gmra.mxu0 %v3526
        %v4910 = vpop.f32.mrf.mxu0
        %v4911 = vadd.f32 %v4891, %v4910
        %4912 = vdwg.mxu0
        %4913 = vmatpush.msra.mxu0 %v4285
        %4914 = vmatpush.msra.mxu0 %v4269
        %4915 = vmatpush.msra.mxu0 %v4253
        %4916 = vmatpush.msra.mxu0 %v4237
        %4917 = vmatpush.msra.mxu0 %v4221
        %4918 = vmatpush.msra.mxu0 %v4205
        %4919 = vmatpush.msra.mxu0 %v4189
        %4920 = vmatpush.msra.mxu0 %v4173
        %4921 = vmatpush.msra.mxu0 %v4157
        %4922 = vmatpush.msra.mxu0 %v4141
        %4923 = vmatpush.msra.mxu0 %v4125
        %4924 = vmatpush.msra.mxu0 %v4109
        %4925 = vmatpush.msra.mxu0 %v4093
        %4926 = vmatpush.msra.mxu0 %v4077
        %4927 = vmatpush.msra.mxu0 %v4061
        %4928 = vmatpush.msra.mxu0 %v4045
        %4929 = vmatmul.f32.gmra.mxu0 %v3527
        %v4930 = vpop.f32.mrf.mxu0
        %v4931 = vadd.f32 %v4911, %v4930
        %4932 = vdwg.mxu0
        %4933 = vmatpush.msra.mxu0 %v4541
        %4934 = vmatpush.msra.mxu0 %v4525
        %4935 = vmatpush.msra.mxu0 %v4509
        %4936 = vmatpush.msra.mxu0 %v4493
        %4937 = vmatpush.msra.mxu0 %v4477
        %4938 = vmatpush.msra.mxu0 %v4461
        %4939 = vmatpush.msra.mxu0 %v4445
        %4940 = vmatpush.msra.mxu0 %v4429
        %4941 = vmatpush.msra.mxu0 %v4413
        %4942 = vmatpush.msra.mxu0 %v4397
        %4943 = vmatpush.msra.mxu0 %v4381
        %4944 = vmatpush.msra.mxu0 %v4365
        %4945 = vmatpush.msra.mxu0 %v4349
        %4946 = vmatpush.msra.mxu0 %v4333
        %4947 = vmatpush.msra.mxu0 %v4317
        %4948 = vmatpush.msra.mxu0 %v4301
        %4949 = vmatmul.f32.gmra.mxu0 %v3528
        %v4950 = vpop.f32.mrf.mxu0
        %v4951 = vadd.f32 %v4931, %v4950
        %4952 = vdwg.mxu0
        %4953 = vmatpush.msra.mxu0 %v3774
        %4954 = vmatpush.msra.mxu0 %v3758
        %4955 = vmatpush.msra.mxu0 %v3742
        %4956 = vmatpush.msra.mxu0 %v3726
        %4957 = vmatpush.msra.mxu0 %v3710
        %4958 = vmatpush.msra.mxu0 %v3694
        %4959 = vmatpush.msra.mxu0 %v3678
        %4960 = vmatpush.msra.mxu0 %v3662
        %4961 = vmatpush.msra.mxu0 %v3646
        %4962 = vmatpush.msra.mxu0 %v3630
        %4963 = vmatpush.msra.mxu0 %v3614
        %4964 = vmatpush.msra.mxu0 %v3598
        %4965 = vmatpush.msra.mxu0 %v3582
        %4966 = vmatpush.msra.mxu0 %v3566
        %4967 = vmatpush.msra.mxu0 %v3550
        %4968 = vmatpush.msra.mxu0 %v3534
        %4969 = vmatmul.f32.gmra.mxu0 %v3525
        %v4970 = vpop.f32.mrf.mxu0
        %v4971 = vadd.f32 0.0, %v4970
        %4972 = vdwg.mxu0
        %4973 = vmatpush.msra.mxu0 %v4030
        %4974 = vmatpush.msra.mxu0 %v4014
        %4975 = vmatpush.msra.mxu0 %v3998
        %4976 = vmatpush.msra.mxu0 %v3982
        %4977 = vmatpush.msra.mxu0 %v3966
        %4978 = vmatpush.msra.mxu0 %v3950
        %4979 = vmatpush.msra.mxu0 %v3934
        %4980 = vmatpush.msra.mxu0 %v3918
        %4981 = vmatpush.msra.mxu0 %v3902
        %4982 = vmatpush.msra.mxu0 %v3886
        %4983 = vmatpush.msra.mxu0 %v3870
        %4984 = vmatpush.msra.mxu0 %v3854
        %4985 = vmatpush.msra.mxu0 %v3838
        %4986 = vmatpush.msra.mxu0 %v3822
        %4987 = vmatpush.msra.mxu0 %v3806
        %4988 = vmatpush.msra.mxu0 %v3790
        %4989 = vmatmul.f32.gmra.mxu0 %v3526
        %v4990 = vpop.f32.mrf.mxu0
        %v4991 = vadd.f32 %v4971, %v4990
        %4992 = vdwg.mxu0
        %4993 = vmatpush.msra.mxu0 %v4286
        %4994 = vmatpush.msra.mxu0 %v4270
        %4995 = vmatpush.msra.mxu0 %v4254
        %4996 = vmatpush.msra.mxu0 %v4238
        %4997 = vmatpush.msra.mxu0 %v4222
        %4998 = vmatpush.msra.mxu0 %v4206
        %4999 = vmatpush.msra.mxu0 %v4190
        %5000 = vmatpush.msra.mxu0 %v4174
        %5001 = vmatpush.msra.mxu0 %v4158
        %5002 = vmatpush.msra.mxu0 %v4142
        %5003 = vmatpush.msra.mxu0 %v4126
        %5004 = vmatpush.msra.mxu0 %v4110
        %5005 = vmatpush.msra.mxu0 %v4094
        %5006 = vmatpush.msra.mxu0 %v4078
        %5007 = vmatpush.msra.mxu0 %v4062
        %5008 = vmatpush.msra.mxu0 %v4046
        %5009 = vmatmul.f32.gmra.mxu0 %v3527
        %v5010 = vpop.f32.mrf.mxu0
        %v5011 = vadd.f32 %v4991, %v5010
        %5012 = vdwg.mxu0
        %5013 = vmatpush.msra.mxu0 %v4542
        %5014 = vmatpush.msra.mxu0 %v4526
        %5015 = vmatpush.msra.mxu0 %v4510
        %5016 = vmatpush.msra.mxu0 %v4494
        %5017 = vmatpush.msra.mxu0 %v4478
        %5018 = vmatpush.msra.mxu0 %v4462
        %5019 = vmatpush.msra.mxu0 %v4446
        %5020 = vmatpush.msra.mxu0 %v4430
        %5021 = vmatpush.msra.mxu0 %v4414
        %5022 = vmatpush.msra.mxu0 %v4398
        %5023 = vmatpush.msra.mxu0 %v4382
        %5024 = vmatpush.msra.mxu0 %v4366
        %5025 = vmatpush.msra.mxu0 %v4350
        %5026 = vmatpush.msra.mxu0 %v4334
        %5027 = vmatpush.msra.mxu0 %v4318
        %5028 = vmatpush.msra.mxu0 %v4302
        %5029 = vmatmul.f32.gmra.mxu0 %v3528
        %v5030 = vpop.f32.mrf.mxu0
        %v5031 = vadd.f32 %v5011, %v5030
        %5032 = vdwg.mxu0
        %5033 = vmatpush.msra.mxu0 %v3775
        %5034 = vmatpush.msra.mxu0 %v3759
        %5035 = vmatpush.msra.mxu0 %v3743
        %5036 = vmatpush.msra.mxu0 %v3727
        %5037 = vmatpush.msra.mxu0 %v3711
        %5038 = vmatpush.msra.mxu0 %v3695
        %5039 = vmatpush.msra.mxu0 %v3679
        %5040 = vmatpush.msra.mxu0 %v3663
        %5041 = vmatpush.msra.mxu0 %v3647
        %5042 = vmatpush.msra.mxu0 %v3631
        %5043 = vmatpush.msra.mxu0 %v3615
        %5044 = vmatpush.msra.mxu0 %v3599
        %5045 = vmatpush.msra.mxu0 %v3583
        %5046 = vmatpush.msra.mxu0 %v3567
        %5047 = vmatpush.msra.mxu0 %v3551
        %5048 = vmatpush.msra.mxu0 %v3535
        %5049 = vmatmul.f32.gmra.mxu0 %v3525
        %v5050 = vpop.f32.mrf.mxu0
        %v5051 = vadd.f32 0.0, %v5050
        %5052 = vdwg.mxu0
        %5053 = vmatpush.msra.mxu0 %v4031
        %5054 = vmatpush.msra.mxu0 %v4015
        %5055 = vmatpush.msra.mxu0 %v3999
        %5056 = vmatpush.msra.mxu0 %v3983
        %5057 = vmatpush.msra.mxu0 %v3967
        %5058 = vmatpush.msra.mxu0 %v3951
        %5059 = vmatpush.msra.mxu0 %v3935
        %5060 = vmatpush.msra.mxu0 %v3919
        %5061 = vmatpush.msra.mxu0 %v3903
        %5062 = vmatpush.msra.mxu0 %v3887
        %5063 = vmatpush.msra.mxu0 %v3871
        %5064 = vmatpush.msra.mxu0 %v3855
        %5065 = vmatpush.msra.mxu0 %v3839
        %5066 = vmatpush.msra.mxu0 %v3823
        %5067 = vmatpush.msra.mxu0 %v3807
        %5068 = vmatpush.msra.mxu0 %v3791
        %5069 = vmatmul.f32.gmra.mxu0 %v3526
        %v5070 = vpop.f32.mrf.mxu0
        %v5071 = vadd.f32 %v5051, %v5070
        %5072 = vdwg.mxu0
        %5073 = vmatpush.msra.mxu0 %v4287
        %5074 = vmatpush.msra.mxu0 %v4271
        %5075 = vmatpush.msra.mxu0 %v4255
        %5076 = vmatpush.msra.mxu0 %v4239
        %5077 = vmatpush.msra.mxu0 %v4223
        %5078 = vmatpush.msra.mxu0 %v4207
        %5079 = vmatpush.msra.mxu0 %v4191
        %5080 = vmatpush.msra.mxu0 %v4175
        %5081 = vmatpush.msra.mxu0 %v4159
        %5082 = vmatpush.msra.mxu0 %v4143
        %5083 = vmatpush.msra.mxu0 %v4127
        %5084 = vmatpush.msra.mxu0 %v4111
        %5085 = vmatpush.msra.mxu0 %v4095
        %5086 = vmatpush.msra.mxu0 %v4079
        %5087 = vmatpush.msra.mxu0 %v4063
        %5088 = vmatpush.msra.mxu0 %v4047
        %5089 = vmatmul.f32.gmra.mxu0 %v3527
        %v5090 = vpop.f32.mrf.mxu0
        %v5091 = vadd.f32 %v5071, %v5090
        %5092 = vdwg.mxu0
        %5093 = vmatpush.msra.mxu0 %v4543
        %5094 = vmatpush.msra.mxu0 %v4527
        %5095 = vmatpush.msra.mxu0 %v4511
        %5096 = vmatpush.msra.mxu0 %v4495
        %5097 = vmatpush.msra.mxu0 %v4479
        %5098 = vmatpush.msra.mxu0 %v4463
        %5099 = vmatpush.msra.mxu0 %v4447
        %5100 = vmatpush.msra.mxu0 %v4431
        %5101 = vmatpush.msra.mxu0 %v4415
        %5102 = vmatpush.msra.mxu0 %v4399
        %5103 = vmatpush.msra.mxu0 %v4383
        %5104 = vmatpush.msra.mxu0 %v4367
        %5105 = vmatpush.msra.mxu0 %v4351
        %5106 = vmatpush.msra.mxu0 %v4335
        %5107 = vmatpush.msra.mxu0 %v4319
        %5108 = vmatpush.msra.mxu0 %v4303
        %5109 = vmatmul.f32.gmra.mxu0 %v3528
        %v5110 = vpop.f32.mrf.mxu0
        %v5111 = vadd.f32 %v5091, %v5110
        %5112 = vdwg.mxu0
        %5113 = vmatpush.msra.mxu0 %v3776
        %5114 = vmatpush.msra.mxu0 %v3760
        %5115 = vmatpush.msra.mxu0 %v3744
        %5116 = vmatpush.msra.mxu0 %v3728
        %5117 = vmatpush.msra.mxu0 %v3712
        %5118 = vmatpush.msra.mxu0 %v3696
        %5119 = vmatpush.msra.mxu0 %v3680
        %5120 = vmatpush.msra.mxu0 %v3664
        %5121 = vmatpush.msra.mxu0 %v3648
        %5122 = vmatpush.msra.mxu0 %v3632
        %5123 = vmatpush.msra.mxu0 %v3616
        %5124 = vmatpush.msra.mxu0 %v3600
        %5125 = vmatpush.msra.mxu0 %v3584
        %5126 = vmatpush.msra.mxu0 %v3568
        %5127 = vmatpush.msra.mxu0 %v3552
        %5128 = vmatpush.msra.mxu0 %v3536
        %5129 = vmatmul.f32.gmra.mxu0 %v3525
        %v5130 = vpop.f32.mrf.mxu0
        %v5131 = vadd.f32 0.0, %v5130
        %5132 = vdwg.mxu0
        %5133 = vmatpush.msra.mxu0 %v4032
        %5134 = vmatpush.msra.mxu0 %v4016
        %5135 = vmatpush.msra.mxu0 %v4000
        %5136 = vmatpush.msra.mxu0 %v3984
        %5137 = vmatpush.msra.mxu0 %v3968
        %5138 = vmatpush.msra.mxu0 %v3952
        %5139 = vmatpush.msra.mxu0 %v3936
        %5140 = vmatpush.msra.mxu0 %v3920
        %5141 = vmatpush.msra.mxu0 %v3904
        %5142 = vmatpush.msra.mxu0 %v3888
        %5143 = vmatpush.msra.mxu0 %v3872
        %5144 = vmatpush.msra.mxu0 %v3856
        %5145 = vmatpush.msra.mxu0 %v3840
        %5146 = vmatpush.msra.mxu0 %v3824
        %5147 = vmatpush.msra.mxu0 %v3808
        %5148 = vmatpush.msra.mxu0 %v3792
        %5149 = vmatmul.f32.gmra.mxu0 %v3526
        %v5150 = vpop.f32.mrf.mxu0
        %v5151 = vadd.f32 %v5131, %v5150
        %5152 = vdwg.mxu0
        %5153 = vmatpush.msra.mxu0 %v4288
        %5154 = vmatpush.msra.mxu0 %v4272
        %5155 = vmatpush.msra.mxu0 %v4256
        %5156 = vmatpush.msra.mxu0 %v4240
        %5157 = vmatpush.msra.mxu0 %v4224
        %5158 = vmatpush.msra.mxu0 %v4208
        %5159 = vmatpush.msra.mxu0 %v4192
        %5160 = vmatpush.msra.mxu0 %v4176
        %5161 = vmatpush.msra.mxu0 %v4160
        %5162 = vmatpush.msra.mxu0 %v4144
        %5163 = vmatpush.msra.mxu0 %v4128
        %5164 = vmatpush.msra.mxu0 %v4112
        %5165 = vmatpush.msra.mxu0 %v4096
        %5166 = vmatpush.msra.mxu0 %v4080
        %5167 = vmatpush.msra.mxu0 %v4064
        %5168 = vmatpush.msra.mxu0 %v4048
        %5169 = vmatmul.f32.gmra.mxu0 %v3527
        %v5170 = vpop.f32.mrf.mxu0
        %v5171 = vadd.f32 %v5151, %v5170
        %5172 = vdwg.mxu0
        %5173 = vmatpush.msra.mxu0 %v4544
        %5174 = vmatpush.msra.mxu0 %v4528
        %5175 = vmatpush.msra.mxu0 %v4512
        %5176 = vmatpush.msra.mxu0 %v4496
        %5177 = vmatpush.msra.mxu0 %v4480
        %5178 = vmatpush.msra.mxu0 %v4464
        %5179 = vmatpush.msra.mxu0 %v4448
        %5180 = vmatpush.msra.mxu0 %v4432
        %5181 = vmatpush.msra.mxu0 %v4416
        %5182 = vmatpush.msra.mxu0 %v4400
        %5183 = vmatpush.msra.mxu0 %v4384
        %5184 = vmatpush.msra.mxu0 %v4368
        %5185 = vmatpush.msra.mxu0 %v4352
        %5186 = vmatpush.msra.mxu0 %v4336
        %5187 = vmatpush.msra.mxu0 %v4320
        %5188 = vmatpush.msra.mxu0 %v4304
        %5189 = vmatmul.f32.gmra.mxu0 %v3528
        %v5190 = vpop.f32.mrf.mxu0
        %v5191 = vadd.f32 %v5171, %v5190
        %5192 = vdwg.mxu0
        %5193 = vmatpush.msra.mxu0 %v3777
        %5194 = vmatpush.msra.mxu0 %v3761
        %5195 = vmatpush.msra.mxu0 %v3745
        %5196 = vmatpush.msra.mxu0 %v3729
        %5197 = vmatpush.msra.mxu0 %v3713
        %5198 = vmatpush.msra.mxu0 %v3697
        %5199 = vmatpush.msra.mxu0 %v3681
        %5200 = vmatpush.msra.mxu0 %v3665
        %5201 = vmatpush.msra.mxu0 %v3649
        %5202 = vmatpush.msra.mxu0 %v3633
        %5203 = vmatpush.msra.mxu0 %v3617
        %5204 = vmatpush.msra.mxu0 %v3601
        %5205 = vmatpush.msra.mxu0 %v3585
        %5206 = vmatpush.msra.mxu0 %v3569
        %5207 = vmatpush.msra.mxu0 %v3553
        %5208 = vmatpush.msra.mxu0 %v3537
        %5209 = vmatmul.f32.gmra.mxu0 %v3525
        %v5210 = vpop.f32.mrf.mxu0
        %v5211 = vadd.f32 0.0, %v5210
        %5212 = vdwg.mxu0
        %5213 = vmatpush.msra.mxu0 %v4033
        %5214 = vmatpush.msra.mxu0 %v4017
        %5215 = vmatpush.msra.mxu0 %v4001
        %5216 = vmatpush.msra.mxu0 %v3985
        %5217 = vmatpush.msra.mxu0 %v3969
        %5218 = vmatpush.msra.mxu0 %v3953
        %5219 = vmatpush.msra.mxu0 %v3937
        %5220 = vmatpush.msra.mxu0 %v3921
        %5221 = vmatpush.msra.mxu0 %v3905
        %5222 = vmatpush.msra.mxu0 %v3889
        %5223 = vmatpush.msra.mxu0 %v3873
        %5224 = vmatpush.msra.mxu0 %v3857
        %5225 = vmatpush.msra.mxu0 %v3841
        %5226 = vmatpush.msra.mxu0 %v3825
        %5227 = vmatpush.msra.mxu0 %v3809
        %5228 = vmatpush.msra.mxu0 %v3793
        %5229 = vmatmul.f32.gmra.mxu0 %v3526
        %v5230 = vpop.f32.mrf.mxu0
        %v5231 = vadd.f32 %v5211, %v5230
        %5232 = vdwg.mxu0
        %5233 = vmatpush.msra.mxu0 %v4289
        %5234 = vmatpush.msra.mxu0 %v4273
        %5235 = vmatpush.msra.mxu0 %v4257
        %5236 = vmatpush.msra.mxu0 %v4241
        %5237 = vmatpush.msra.mxu0 %v4225
        %5238 = vmatpush.msra.mxu0 %v4209
        %5239 = vmatpush.msra.mxu0 %v4193
        %5240 = vmatpush.msra.mxu0 %v4177
        %5241 = vmatpush.msra.mxu0 %v4161
        %5242 = vmatpush.msra.mxu0 %v4145
        %5243 = vmatpush.msra.mxu0 %v4129
        %5244 = vmatpush.msra.mxu0 %v4113
        %5245 = vmatpush.msra.mxu0 %v4097
        %5246 = vmatpush.msra.mxu0 %v4081
        %5247 = vmatpush.msra.mxu0 %v4065
        %5248 = vmatpush.msra.mxu0 %v4049
        %5249 = vmatmul.f32.gmra.mxu0 %v3527
        %v5250 = vpop.f32.mrf.mxu0
        %v5251 = vadd.f32 %v5231, %v5250
        %5252 = vdwg.mxu0
        %5253 = vmatpush.msra.mxu0 %v4545
        %5254 = vmatpush.msra.mxu0 %v4529
        %5255 = vmatpush.msra.mxu0 %v4513
        %5256 = vmatpush.msra.mxu0 %v4497
        %5257 = vmatpush.msra.mxu0 %v4481
        %5258 = vmatpush.msra.mxu0 %v4465
        %5259 = vmatpush.msra.mxu0 %v4449
        %5260 = vmatpush.msra.mxu0 %v4433
        %5261 = vmatpush.msra.mxu0 %v4417
        %5262 = vmatpush.msra.mxu0 %v4401
        %5263 = vmatpush.msra.mxu0 %v4385
        %5264 = vmatpush.msra.mxu0 %v4369
        %5265 = vmatpush.msra.mxu0 %v4353
        %5266 = vmatpush.msra.mxu0 %v4337
        %5267 = vmatpush.msra.mxu0 %v4321
        %5268 = vmatpush.msra.mxu0 %v4305
        %5269 = vmatmul.f32.gmra.mxu0 %v3528
        %v5270 = vpop.f32.mrf.mxu0
        %v5271 = vadd.f32 %v5251, %v5270
        %5272 = vdwg.mxu0
        %5273 = vmatpush.msra.mxu0 %v3778
        %5274 = vmatpush.msra.mxu0 %v3762
        %5275 = vmatpush.msra.mxu0 %v3746
        %5276 = vmatpush.msra.mxu0 %v3730
        %5277 = vmatpush.msra.mxu0 %v3714
        %5278 = vmatpush.msra.mxu0 %v3698
        %5279 = vmatpush.msra.mxu0 %v3682
        %5280 = vmatpush.msra.mxu0 %v3666
        %5281 = vmatpush.msra.mxu0 %v3650
        %5282 = vmatpush.msra.mxu0 %v3634
        %5283 = vmatpush.msra.mxu0 %v3618
        %5284 = vmatpush.msra.mxu0 %v3602
        %5285 = vmatpush.msra.mxu0 %v3586
        %5286 = vmatpush.msra.mxu0 %v3570
        %5287 = vmatpush.msra.mxu0 %v3554
        %5288 = vmatpush.msra.mxu0 %v3538
        %5289 = vmatmul.f32.gmra.mxu0 %v3525
        %v5290 = vpop.f32.mrf.mxu0
        %v5291 = vadd.f32 0.0, %v5290
        %5292 = vdwg.mxu0
        %5293 = vmatpush.msra.mxu0 %v4034
        %5294 = vmatpush.msra.mxu0 %v4018
        %5295 = vmatpush.msra.mxu0 %v4002
        %5296 = vmatpush.msra.mxu0 %v3986
        %5297 = vmatpush.msra.mxu0 %v3970
        %5298 = vmatpush.msra.mxu0 %v3954
        %5299 = vmatpush.msra.mxu0 %v3938
        %5300 = vmatpush.msra.mxu0 %v3922
        %5301 = vmatpush.msra.mxu0 %v3906
        %5302 = vmatpush.msra.mxu0 %v3890
        %5303 = vmatpush.msra.mxu0 %v3874
        %5304 = vmatpush.msra.mxu0 %v3858
        %5305 = vmatpush.msra.mxu0 %v3842
        %5306 = vmatpush.msra.mxu0 %v3826
        %5307 = vmatpush.msra.mxu0 %v3810
        %5308 = vmatpush.msra.mxu0 %v3794
        %5309 = vmatmul.f32.gmra.mxu0 %v3526
        %v5310 = vpop.f32.mrf.mxu0
        %v5311 = vadd.f32 %v5291, %v5310
        %5312 = vdwg.mxu0
        %5313 = vmatpush.msra.mxu0 %v4290
        %5314 = vmatpush.msra.mxu0 %v4274
        %5315 = vmatpush.msra.mxu0 %v4258
        %5316 = vmatpush.msra.mxu0 %v4242
        %5317 = vmatpush.msra.mxu0 %v4226
        %5318 = vmatpush.msra.mxu0 %v4210
        %5319 = vmatpush.msra.mxu0 %v4194
        %5320 = vmatpush.msra.mxu0 %v4178
        %5321 = vmatpush.msra.mxu0 %v4162
        %5322 = vmatpush.msra.mxu0 %v4146
        %5323 = vmatpush.msra.mxu0 %v4130
        %5324 = vmatpush.msra.mxu0 %v4114
        %5325 = vmatpush.msra.mxu0 %v4098
        %5326 = vmatpush.msra.mxu0 %v4082
        %5327 = vmatpush.msra.mxu0 %v4066
        %5328 = vmatpush.msra.mxu0 %v4050
        %5329 = vmatmul.f32.gmra.mxu0 %v3527
        %v5330 = vpop.f32.mrf.mxu0
        %v5331 = vadd.f32 %v5311, %v5330
        %5332 = vdwg.mxu0
        %5333 = vmatpush.msra.mxu0 %v4546
        %5334 = vmatpush.msra.mxu0 %v4530
        %5335 = vmatpush.msra.mxu0 %v4514
        %5336 = vmatpush.msra.mxu0 %v4498
        %5337 = vmatpush.msra.mxu0 %v4482
        %5338 = vmatpush.msra.mxu0 %v4466
        %5339 = vmatpush.msra.mxu0 %v4450
        %5340 = vmatpush.msra.mxu0 %v4434
        %5341 = vmatpush.msra.mxu0 %v4418
        %5342 = vmatpush.msra.mxu0 %v4402
        %5343 = vmatpush.msra.mxu0 %v4386
        %5344 = vmatpush.msra.mxu0 %v4370
        %5345 = vmatpush.msra.mxu0 %v4354
        %5346 = vmatpush.msra.mxu0 %v4338
        %5347 = vmatpush.msra.mxu0 %v4322
        %5348 = vmatpush.msra.mxu0 %v4306
        %5349 = vmatmul.f32.gmra.mxu0 %v3528
        %v5350 = vpop.f32.mrf.mxu0
        %v5351 = vadd.f32 %v5331, %v5350
        %5352 = vdwg.mxu0
        %5353 = vmatpush.msra.mxu0 %v3779
        %5354 = vmatpush.msra.mxu0 %v3763
        %5355 = vmatpush.msra.mxu0 %v3747
        %5356 = vmatpush.msra.mxu0 %v3731
        %5357 = vmatpush.msra.mxu0 %v3715
        %5358 = vmatpush.msra.mxu0 %v3699
        %5359 = vmatpush.msra.mxu0 %v3683
        %5360 = vmatpush.msra.mxu0 %v3667
        %5361 = vmatpush.msra.mxu0 %v3651
        %5362 = vmatpush.msra.mxu0 %v3635
        %5363 = vmatpush.msra.mxu0 %v3619
        %5364 = vmatpush.msra.mxu0 %v3603
        %5365 = vmatpush.msra.mxu0 %v3587
        %5366 = vmatpush.msra.mxu0 %v3571
        %5367 = vmatpush.msra.mxu0 %v3555
        %5368 = vmatpush.msra.mxu0 %v3539
        %5369 = vmatmul.f32.gmra.mxu0 %v3525
        %v5370 = vpop.f32.mrf.mxu0
        %v5371 = vadd.f32 0.0, %v5370
        %5372 = vdwg.mxu0
        %5373 = vmatpush.msra.mxu0 %v4035
        %5374 = vmatpush.msra.mxu0 %v4019
        %5375 = vmatpush.msra.mxu0 %v4003
        %5376 = vmatpush.msra.mxu0 %v3987
        %5377 = vmatpush.msra.mxu0 %v3971
        %5378 = vmatpush.msra.mxu0 %v3955
        %5379 = vmatpush.msra.mxu0 %v3939
        %5380 = vmatpush.msra.mxu0 %v3923
        %5381 = vmatpush.msra.mxu0 %v3907
        %5382 = vmatpush.msra.mxu0 %v3891
        %5383 = vmatpush.msra.mxu0 %v3875
        %5384 = vmatpush.msra.mxu0 %v3859
        %5385 = vmatpush.msra.mxu0 %v3843
        %5386 = vmatpush.msra.mxu0 %v3827
        %5387 = vmatpush.msra.mxu0 %v3811
        %5388 = vmatpush.msra.mxu0 %v3795
        %5389 = vmatmul.f32.gmra.mxu0 %v3526
        %v5390 = vpop.f32.mrf.mxu0
        %v5391 = vadd.f32 %v5371, %v5390
        %5392 = vdwg.mxu0
        %5393 = vmatpush.msra.mxu0 %v4291
        %5394 = vmatpush.msra.mxu0 %v4275
        %5395 = vmatpush.msra.mxu0 %v4259
        %5396 = vmatpush.msra.mxu0 %v4243
        %5397 = vmatpush.msra.mxu0 %v4227
        %5398 = vmatpush.msra.mxu0 %v4211
        %5399 = vmatpush.msra.mxu0 %v4195
        %5400 = vmatpush.msra.mxu0 %v4179
        %5401 = vmatpush.msra.mxu0 %v4163
        %5402 = vmatpush.msra.mxu0 %v4147
        %5403 = vmatpush.msra.mxu0 %v4131
        %5404 = vmatpush.msra.mxu0 %v4115
        %5405 = vmatpush.msra.mxu0 %v4099
        %5406 = vmatpush.msra.mxu0 %v4083
        %5407 = vmatpush.msra.mxu0 %v4067
        %5408 = vmatpush.msra.mxu0 %v4051
        %5409 = vmatmul.f32.gmra.mxu0 %v3527
        %v5410 = vpop.f32.mrf.mxu0
        %v5411 = vadd.f32 %v5391, %v5410
        %5412 = vdwg.mxu0
        %5413 = vmatpush.msra.mxu0 %v4547
        %5414 = vmatpush.msra.mxu0 %v4531
        %5415 = vmatpush.msra.mxu0 %v4515
        %5416 = vmatpush.msra.mxu0 %v4499
        %5417 = vmatpush.msra.mxu0 %v4483
        %5418 = vmatpush.msra.mxu0 %v4467
        %5419 = vmatpush.msra.mxu0 %v4451
        %5420 = vmatpush.msra.mxu0 %v4435
        %5421 = vmatpush.msra.mxu0 %v4419
        %5422 = vmatpush.msra.mxu0 %v4403
        %5423 = vmatpush.msra.mxu0 %v4387
        %5424 = vmatpush.msra.mxu0 %v4371
        %5425 = vmatpush.msra.mxu0 %v4355
        %5426 = vmatpush.msra.mxu0 %v4339
        %5427 = vmatpush.msra.mxu0 %v4323
        %5428 = vmatpush.msra.mxu0 %v4307
        %5429 = vmatmul.f32.gmra.mxu0 %v3528
        %v5430 = vpop.f32.mrf.mxu0
        %v5431 = vadd.f32 %v5411, %v5430
        %5432 = vdwg.mxu0
        %5433 = vmatpush.msra.mxu0 %v3780
        %5434 = vmatpush.msra.mxu0 %v3764
        %5435 = vmatpush.msra.mxu0 %v3748
        %5436 = vmatpush.msra.mxu0 %v3732
        %5437 = vmatpush.msra.mxu0 %v3716
        %5438 = vmatpush.msra.mxu0 %v3700
        %5439 = vmatpush.msra.mxu0 %v3684
        %5440 = vmatpush.msra.mxu0 %v3668
        %5441 = vmatpush.msra.mxu0 %v3652
        %5442 = vmatpush.msra.mxu0 %v3636
        %5443 = vmatpush.msra.mxu0 %v3620
        %5444 = vmatpush.msra.mxu0 %v3604
        %5445 = vmatpush.msra.mxu0 %v3588
        %5446 = vmatpush.msra.mxu0 %v3572
        %5447 = vmatpush.msra.mxu0 %v3556
        %5448 = vmatpush.msra.mxu0 %v3540
        %5449 = vmatmul.f32.gmra.mxu0 %v3525
        %v5450 = vpop.f32.mrf.mxu0
        %v5451 = vadd.f32 0.0, %v5450
        %5452 = vdwg.mxu0
        %5453 = vmatpush.msra.mxu0 %v4036
        %5454 = vmatpush.msra.mxu0 %v4020
        %5455 = vmatpush.msra.mxu0 %v4004
        %5456 = vmatpush.msra.mxu0 %v3988
        %5457 = vmatpush.msra.mxu0 %v3972
        %5458 = vmatpush.msra.mxu0 %v3956
        %5459 = vmatpush.msra.mxu0 %v3940
        %5460 = vmatpush.msra.mxu0 %v3924
        %5461 = vmatpush.msra.mxu0 %v3908
        %5462 = vmatpush.msra.mxu0 %v3892
        %5463 = vmatpush.msra.mxu0 %v3876
        %5464 = vmatpush.msra.mxu0 %v3860
        %5465 = vmatpush.msra.mxu0 %v3844
        %5466 = vmatpush.msra.mxu0 %v3828
        %5467 = vmatpush.msra.mxu0 %v3812
        %5468 = vmatpush.msra.mxu0 %v3796
        %5469 = vmatmul.f32.gmra.mxu0 %v3526
        %v5470 = vpop.f32.mrf.mxu0
        %v5471 = vadd.f32 %v5451, %v5470
        %5472 = vdwg.mxu0
        %5473 = vmatpush.msra.mxu0 %v4292
        %5474 = vmatpush.msra.mxu0 %v4276
        %5475 = vmatpush.msra.mxu0 %v4260
        %5476 = vmatpush.msra.mxu0 %v4244
        %5477 = vmatpush.msra.mxu0 %v4228
        %5478 = vmatpush.msra.mxu0 %v4212
        %5479 = vmatpush.msra.mxu0 %v4196
        %5480 = vmatpush.msra.mxu0 %v4180
        %5481 = vmatpush.msra.mxu0 %v4164
        %5482 = vmatpush.msra.mxu0 %v4148
        %5483 = vmatpush.msra.mxu0 %v4132
        %5484 = vmatpush.msra.mxu0 %v4116
        %5485 = vmatpush.msra.mxu0 %v4100
        %5486 = vmatpush.msra.mxu0 %v4084
        %5487 = vmatpush.msra.mxu0 %v4068
        %5488 = vmatpush.msra.mxu0 %v4052
        %5489 = vmatmul.f32.gmra.mxu0 %v3527
        %v5490 = vpop.f32.mrf.mxu0
        %v5491 = vadd.f32 %v5471, %v5490
        %5492 = vdwg.mxu0
        %5493 = vmatpush.msra.mxu0 %v4548
        %5494 = vmatpush.msra.mxu0 %v4532
        %5495 = vmatpush.msra.mxu0 %v4516
        %5496 = vmatpush.msra.mxu0 %v4500
        %5497 = vmatpush.msra.mxu0 %v4484
        %5498 = vmatpush.msra.mxu0 %v4468
        %5499 = vmatpush.msra.mxu0 %v4452
        %5500 = vmatpush.msra.mxu0 %v4436
        %5501 = vmatpush.msra.mxu0 %v4420
        %5502 = vmatpush.msra.mxu0 %v4404
        %5503 = vmatpush.msra.mxu0 %v4388
        %5504 = vmatpush.msra.mxu0 %v4372
        %5505 = vmatpush.msra.mxu0 %v4356
        %5506 = vmatpush.msra.mxu0 %v4340
        %5507 = vmatpush.msra.mxu0 %v4324
        %5508 = vmatpush.msra.mxu0 %v4308
        %5509 = vmatmul.f32.gmra.mxu0 %v3528
        %v5510 = vpop.f32.mrf.mxu0
        %v5511 = vadd.f32 %v5491, %v5510
        %5512 = vdwg.mxu0
        %5513 = vmatpush.msra.mxu0 %v3781
        %5514 = vmatpush.msra.mxu0 %v3765
        %5515 = vmatpush.msra.mxu0 %v3749
        %5516 = vmatpush.msra.mxu0 %v3733
        %5517 = vmatpush.msra.mxu0 %v3717
        %5518 = vmatpush.msra.mxu0 %v3701
        %5519 = vmatpush.msra.mxu0 %v3685
        %5520 = vmatpush.msra.mxu0 %v3669
        %5521 = vmatpush.msra.mxu0 %v3653
        %5522 = vmatpush.msra.mxu0 %v3637
        %5523 = vmatpush.msra.mxu0 %v3621
        %5524 = vmatpush.msra.mxu0 %v3605
        %5525 = vmatpush.msra.mxu0 %v3589
        %5526 = vmatpush.msra.mxu0 %v3573
        %5527 = vmatpush.msra.mxu0 %v3557
        %5528 = vmatpush.msra.mxu0 %v3541
        %5529 = vmatmul.f32.gmra.mxu0 %v3525
        %v5530 = vpop.f32.mrf.mxu0
        %v5531 = vadd.f32 0.0, %v5530
        %5532 = vdwg.mxu0
        %5533 = vmatpush.msra.mxu0 %v4037
        %5534 = vmatpush.msra.mxu0 %v4021
        %5535 = vmatpush.msra.mxu0 %v4005
        %5536 = vmatpush.msra.mxu0 %v3989
        %5537 = vmatpush.msra.mxu0 %v3973
        %5538 = vmatpush.msra.mxu0 %v3957
        %5539 = vmatpush.msra.mxu0 %v3941
        %5540 = vmatpush.msra.mxu0 %v3925
        %5541 = vmatpush.msra.mxu0 %v3909
        %5542 = vmatpush.msra.mxu0 %v3893
        %5543 = vmatpush.msra.mxu0 %v3877
        %5544 = vmatpush.msra.mxu0 %v3861
        %5545 = vmatpush.msra.mxu0 %v3845
        %5546 = vmatpush.msra.mxu0 %v3829
        %5547 = vmatpush.msra.mxu0 %v3813
        %5548 = vmatpush.msra.mxu0 %v3797
        %5549 = vmatmul.f32.gmra.mxu0 %v3526
        %v5550 = vpop.f32.mrf.mxu0
        %v5551 = vadd.f32 %v5531, %v5550
        %5552 = vdwg.mxu0
        %5553 = vmatpush.msra.mxu0 %v4293
        %5554 = vmatpush.msra.mxu0 %v4277
        %5555 = vmatpush.msra.mxu0 %v4261
        %5556 = vmatpush.msra.mxu0 %v4245
        %5557 = vmatpush.msra.mxu0 %v4229
        %5558 = vmatpush.msra.mxu0 %v4213
        %5559 = vmatpush.msra.mxu0 %v4197
        %5560 = vmatpush.msra.mxu0 %v4181
        %5561 = vmatpush.msra.mxu0 %v4165
        %5562 = vmatpush.msra.mxu0 %v4149
        %5563 = vmatpush.msra.mxu0 %v4133
        %5564 = vmatpush.msra.mxu0 %v4117
        %5565 = vmatpush.msra.mxu0 %v4101
        %5566 = vmatpush.msra.mxu0 %v4085
        %5567 = vmatpush.msra.mxu0 %v4069
        %5568 = vmatpush.msra.mxu0 %v4053
        %5569 = vmatmul.f32.gmra.mxu0 %v3527
        %v5570 = vpop.f32.mrf.mxu0
        %v5571 = vadd.f32 %v5551, %v5570
        %5572 = vdwg.mxu0
        %5573 = vmatpush.msra.mxu0 %v4549
        %5574 = vmatpush.msra.mxu0 %v4533
        %5575 = vmatpush.msra.mxu0 %v4517
        %5576 = vmatpush.msra.mxu0 %v4501
        %5577 = vmatpush.msra.mxu0 %v4485
        %5578 = vmatpush.msra.mxu0 %v4469
        %5579 = vmatpush.msra.mxu0 %v4453
        %5580 = vmatpush.msra.mxu0 %v4437
        %5581 = vmatpush.msra.mxu0 %v4421
        %5582 = vmatpush.msra.mxu0 %v4405
        %5583 = vmatpush.msra.mxu0 %v4389
        %5584 = vmatpush.msra.mxu0 %v4373
        %5585 = vmatpush.msra.mxu0 %v4357
        %5586 = vmatpush.msra.mxu0 %v4341
        %5587 = vmatpush.msra.mxu0 %v4325
        %5588 = vmatpush.msra.mxu0 %v4309
        %5589 = vmatmul.f32.gmra.mxu0 %v3528
        %v5590 = vpop.f32.mrf.mxu0
        %v5591 = vadd.f32 %v5571, %v5590
        %5592 = vdwg.mxu0
        %5593 = vmatpush.msra.mxu0 %v3782
        %5594 = vmatpush.msra.mxu0 %v3766
        %5595 = vmatpush.msra.mxu0 %v3750
        %5596 = vmatpush.msra.mxu0 %v3734
        %5597 = vmatpush.msra.mxu0 %v3718
        %5598 = vmatpush.msra.mxu0 %v3702
        %5599 = vmatpush.msra.mxu0 %v3686
        %5600 = vmatpush.msra.mxu0 %v3670
        %5601 = vmatpush.msra.mxu0 %v3654
        %5602 = vmatpush.msra.mxu0 %v3638
        %5603 = vmatpush.msra.mxu0 %v3622
        %5604 = vmatpush.msra.mxu0 %v3606
        %5605 = vmatpush.msra.mxu0 %v3590
        %5606 = vmatpush.msra.mxu0 %v3574
        %5607 = vmatpush.msra.mxu0 %v3558
        %5608 = vmatpush.msra.mxu0 %v3542
        %5609 = vmatmul.f32.gmra.mxu0 %v3525
        %v5610 = vpop.f32.mrf.mxu0
        %v5611 = vadd.f32 0.0, %v5610
        %5612 = vdwg.mxu0
        %5613 = vmatpush.msra.mxu0 %v4038
        %5614 = vmatpush.msra.mxu0 %v4022
        %5615 = vmatpush.msra.mxu0 %v4006
        %5616 = vmatpush.msra.mxu0 %v3990
        %5617 = vmatpush.msra.mxu0 %v3974
        %5618 = vmatpush.msra.mxu0 %v3958
        %5619 = vmatpush.msra.mxu0 %v3942
        %5620 = vmatpush.msra.mxu0 %v3926
        %5621 = vmatpush.msra.mxu0 %v3910
        %5622 = vmatpush.msra.mxu0 %v3894
        %5623 = vmatpush.msra.mxu0 %v3878
        %5624 = vmatpush.msra.mxu0 %v3862
        %5625 = vmatpush.msra.mxu0 %v3846
        %5626 = vmatpush.msra.mxu0 %v3830
        %5627 = vmatpush.msra.mxu0 %v3814
        %5628 = vmatpush.msra.mxu0 %v3798
        %5629 = vmatmul.f32.gmra.mxu0 %v3526
        %v5630 = vpop.f32.mrf.mxu0
        %v5631 = vadd.f32 %v5611, %v5630
        %5632 = vdwg.mxu0
        %5633 = vmatpush.msra.mxu0 %v4294
        %5634 = vmatpush.msra.mxu0 %v4278
        %5635 = vmatpush.msra.mxu0 %v4262
        %5636 = vmatpush.msra.mxu0 %v4246
        %5637 = vmatpush.msra.mxu0 %v4230
        %5638 = vmatpush.msra.mxu0 %v4214
        %5639 = vmatpush.msra.mxu0 %v4198
        %5640 = vmatpush.msra.mxu0 %v4182
        %5641 = vmatpush.msra.mxu0 %v4166
        %5642 = vmatpush.msra.mxu0 %v4150
        %5643 = vmatpush.msra.mxu0 %v4134
        %5644 = vmatpush.msra.mxu0 %v4118
        %5645 = vmatpush.msra.mxu0 %v4102
        %5646 = vmatpush.msra.mxu0 %v4086
        %5647 = vmatpush.msra.mxu0 %v4070
        %5648 = vmatpush.msra.mxu0 %v4054
        %5649 = vmatmul.f32.gmra.mxu0 %v3527
        %v5650 = vpop.f32.mrf.mxu0
        %v5651 = vadd.f32 %v5631, %v5650
        %5652 = vdwg.mxu0
        %5653 = vmatpush.msra.mxu0 %v4550
        %5654 = vmatpush.msra.mxu0 %v4534
        %5655 = vmatpush.msra.mxu0 %v4518
        %5656 = vmatpush.msra.mxu0 %v4502
        %5657 = vmatpush.msra.mxu0 %v4486
        %5658 = vmatpush.msra.mxu0 %v4470
        %5659 = vmatpush.msra.mxu0 %v4454
        %5660 = vmatpush.msra.mxu0 %v4438
        %5661 = vmatpush.msra.mxu0 %v4422
        %5662 = vmatpush.msra.mxu0 %v4406
        %5663 = vmatpush.msra.mxu0 %v4390
        %5664 = vmatpush.msra.mxu0 %v4374
        %5665 = vmatpush.msra.mxu0 %v4358
        %5666 = vmatpush.msra.mxu0 %v4342
        %5667 = vmatpush.msra.mxu0 %v4326
        %5668 = vmatpush.msra.mxu0 %v4310
        %5669 = vmatmul.f32.gmra.mxu0 %v3528
        %v5670 = vpop.f32.mrf.mxu0
        %v5671 = vadd.f32 %v5651, %v5670
        %5672 = vdwg.mxu0
        %5673 = vmatpush.msra.mxu0 %v3783
        %5674 = vmatpush.msra.mxu0 %v3767
        %5675 = vmatpush.msra.mxu0 %v3751
        %5676 = vmatpush.msra.mxu0 %v3735
        %5677 = vmatpush.msra.mxu0 %v3719
        %5678 = vmatpush.msra.mxu0 %v3703
        %5679 = vmatpush.msra.mxu0 %v3687
        %5680 = vmatpush.msra.mxu0 %v3671
        %5681 = vmatpush.msra.mxu0 %v3655
        %5682 = vmatpush.msra.mxu0 %v3639
        %5683 = vmatpush.msra.mxu0 %v3623
        %5684 = vmatpush.msra.mxu0 %v3607
        %5685 = vmatpush.msra.mxu0 %v3591
        %5686 = vmatpush.msra.mxu0 %v3575
        %5687 = vmatpush.msra.mxu0 %v3559
        %5688 = vmatpush.msra.mxu0 %v3543
        %5689 = vmatmul.f32.gmra.mxu0 %v3525
        %v5690 = vpop.f32.mrf.mxu0
        %v5691 = vadd.f32 0.0, %v5690
        %5692 = vdwg.mxu0
        %5693 = vmatpush.msra.mxu0 %v4039
        %5694 = vmatpush.msra.mxu0 %v4023
        %5695 = vmatpush.msra.mxu0 %v4007
        %5696 = vmatpush.msra.mxu0 %v3991
        %5697 = vmatpush.msra.mxu0 %v3975
        %5698 = vmatpush.msra.mxu0 %v3959
        %5699 = vmatpush.msra.mxu0 %v3943
        %5700 = vmatpush.msra.mxu0 %v3927
        %5701 = vmatpush.msra.mxu0 %v3911
        %5702 = vmatpush.msra.mxu0 %v3895
        %5703 = vmatpush.msra.mxu0 %v3879
        %5704 = vmatpush.msra.mxu0 %v3863
        %5705 = vmatpush.msra.mxu0 %v3847
        %5706 = vmatpush.msra.mxu0 %v3831
        %5707 = vmatpush.msra.mxu0 %v3815
        %5708 = vmatpush.msra.mxu0 %v3799
        %5709 = vmatmul.f32.gmra.mxu0 %v3526
        %v5710 = vpop.f32.mrf.mxu0
        %v5711 = vadd.f32 %v5691, %v5710
        %5712 = vdwg.mxu0
        %5713 = vmatpush.msra.mxu0 %v4295
        %5714 = vmatpush.msra.mxu0 %v4279
        %5715 = vmatpush.msra.mxu0 %v4263
        %5716 = vmatpush.msra.mxu0 %v4247
        %5717 = vmatpush.msra.mxu0 %v4231
        %5718 = vmatpush.msra.mxu0 %v4215
        %5719 = vmatpush.msra.mxu0 %v4199
        %5720 = vmatpush.msra.mxu0 %v4183
        %5721 = vmatpush.msra.mxu0 %v4167
        %5722 = vmatpush.msra.mxu0 %v4151
        %5723 = vmatpush.msra.mxu0 %v4135
        %5724 = vmatpush.msra.mxu0 %v4119
        %5725 = vmatpush.msra.mxu0 %v4103
        %5726 = vmatpush.msra.mxu0 %v4087
        %5727 = vmatpush.msra.mxu0 %v4071
        %5728 = vmatpush.msra.mxu0 %v4055
        %5729 = vmatmul.f32.gmra.mxu0 %v3527
        %v5730 = vpop.f32.mrf.mxu0
        %v5731 = vadd.f32 %v5711, %v5730
        %5732 = vdwg.mxu0
        %5733 = vmatpush.msra.mxu0 %v4551
        %5734 = vmatpush.msra.mxu0 %v4535
        %5735 = vmatpush.msra.mxu0 %v4519
        %5736 = vmatpush.msra.mxu0 %v4503
        %5737 = vmatpush.msra.mxu0 %v4487
        %5738 = vmatpush.msra.mxu0 %v4471
        %5739 = vmatpush.msra.mxu0 %v4455
        %5740 = vmatpush.msra.mxu0 %v4439
        %5741 = vmatpush.msra.mxu0 %v4423
        %5742 = vmatpush.msra.mxu0 %v4407
        %5743 = vmatpush.msra.mxu0 %v4391
        %5744 = vmatpush.msra.mxu0 %v4375
        %5745 = vmatpush.msra.mxu0 %v4359
        %5746 = vmatpush.msra.mxu0 %v4343
        %5747 = vmatpush.msra.mxu0 %v4327
        %5748 = vmatpush.msra.mxu0 %v4311
        %5749 = vmatmul.f32.gmra.mxu0 %v3528
        %v5750 = vpop.f32.mrf.mxu0
        %v5751 = vadd.f32 %v5731, %v5750
        %5752 = vdwg.mxu0
        %5753 = vmatpush.msra.mxu0 %v3784
        %5754 = vmatpush.msra.mxu0 %v3768
        %5755 = vmatpush.msra.mxu0 %v3752
        %5756 = vmatpush.msra.mxu0 %v3736
        %5757 = vmatpush.msra.mxu0 %v3720
        %5758 = vmatpush.msra.mxu0 %v3704
        %5759 = vmatpush.msra.mxu0 %v3688
        %5760 = vmatpush.msra.mxu0 %v3672
        %5761 = vmatpush.msra.mxu0 %v3656
        %5762 = vmatpush.msra.mxu0 %v3640
        %5763 = vmatpush.msra.mxu0 %v3624
        %5764 = vmatpush.msra.mxu0 %v3608
        %5765 = vmatpush.msra.mxu0 %v3592
        %5766 = vmatpush.msra.mxu0 %v3576
        %5767 = vmatpush.msra.mxu0 %v3560
        %5768 = vmatpush.msra.mxu0 %v3544
        %5769 = vmatmul.f32.gmra.mxu0 %v3525
        %v5770 = vpop.f32.mrf.mxu0
        %v5771 = vadd.f32 0.0, %v5770
        %5772 = vdwg.mxu0
        %5773 = vmatpush.msra.mxu0 %v4040
        %5774 = vmatpush.msra.mxu0 %v4024
        %5775 = vmatpush.msra.mxu0 %v4008
        %5776 = vmatpush.msra.mxu0 %v3992
        %5777 = vmatpush.msra.mxu0 %v3976
        %5778 = vmatpush.msra.mxu0 %v3960
        %5779 = vmatpush.msra.mxu0 %v3944
        %5780 = vmatpush.msra.mxu0 %v3928
        %5781 = vmatpush.msra.mxu0 %v3912
        %5782 = vmatpush.msra.mxu0 %v3896
        %5783 = vmatpush.msra.mxu0 %v3880
        %5784 = vmatpush.msra.mxu0 %v3864
        %5785 = vmatpush.msra.mxu0 %v3848
        %5786 = vmatpush.msra.mxu0 %v3832
        %5787 = vmatpush.msra.mxu0 %v3816
        %5788 = vmatpush.msra.mxu0 %v3800
        %5789 = vmatmul.f32.gmra.mxu0 %v3526
        %v5790 = vpop.f32.mrf.mxu0
        %v5791 = vadd.f32 %v5771, %v5790
        %5792 = vdwg.mxu0
        %5793 = vmatpush.msra.mxu0 %v4296
        %5794 = vmatpush.msra.mxu0 %v4280
        %5795 = vmatpush.msra.mxu0 %v4264
        %5796 = vmatpush.msra.mxu0 %v4248
        %5797 = vmatpush.msra.mxu0 %v4232
        %5798 = vmatpush.msra.mxu0 %v4216
        %5799 = vmatpush.msra.mxu0 %v4200
        %5800 = vmatpush.msra.mxu0 %v4184
        %5801 = vmatpush.msra.mxu0 %v4168
        %5802 = vmatpush.msra.mxu0 %v4152
        %5803 = vmatpush.msra.mxu0 %v4136
        %5804 = vmatpush.msra.mxu0 %v4120
        %5805 = vmatpush.msra.mxu0 %v4104
        %5806 = vmatpush.msra.mxu0 %v4088
        %5807 = vmatpush.msra.mxu0 %v4072
        %5808 = vmatpush.msra.mxu0 %v4056
        %5809 = vmatmul.f32.gmra.mxu0 %v3527
        %v5810 = vpop.f32.mrf.mxu0
        %v5811 = vadd.f32 %v5791, %v5810
        %5812 = vdwg.mxu0
        %5813 = vmatpush.msra.mxu0 %v4552
        %5814 = vmatpush.msra.mxu0 %v4536
        %5815 = vmatpush.msra.mxu0 %v4520
        %5816 = vmatpush.msra.mxu0 %v4504
        %5817 = vmatpush.msra.mxu0 %v4488
        %5818 = vmatpush.msra.mxu0 %v4472
        %5819 = vmatpush.msra.mxu0 %v4456
        %5820 = vmatpush.msra.mxu0 %v4440
        %5821 = vmatpush.msra.mxu0 %v4424
        %5822 = vmatpush.msra.mxu0 %v4408
        %5823 = vmatpush.msra.mxu0 %v4392
        %5824 = vmatpush.msra.mxu0 %v4376
        %5825 = vmatpush.msra.mxu0 %v4360
        %5826 = vmatpush.msra.mxu0 %v4344
        %5827 = vmatpush.msra.mxu0 %v4328
        %5828 = vmatpush.msra.mxu0 %v4312
        %5829 = vmatmul.f32.gmra.mxu0 %v3528
        %v5830 = vpop.f32.mrf.mxu0
        %v5831 = vadd.f32 %v5811, %v5830
        %5832 = vdwg.mxu0
        %v5833 = vmax.f32 %v4631, 0.0
        %v5834 = vmax.f32 %v4711, 0.0
        %v5835 = vmax.f32 %v4791, 0.0
        %v5836 = vmax.f32 %v4871, 0.0
        %v5837 = vmax.f32 %v4951, 0.0
        %v5838 = vmax.f32 %v5031, 0.0
        %v5839 = vmax.f32 %v5111, 0.0
        %v5840 = vmax.f32 %v5191, 0.0
        %v5841 = vmax.f32 %v5271, 0.0
        %v5842 = vmax.f32 %v5351, 0.0
        %v5843 = vmax.f32 %v5431, 0.0
        %v5844 = vmax.f32 %v5511, 0.0
        %v5845 = vmax.f32 %v5591, 0.0
        %v5846 = vmax.f32 %v5671, 0.0
        %v5847 = vmax.f32 %v5751, 0.0
        %v5848 = vmax.f32 %v5831, 0.0
        %v5849 = vld [vmem:[#allocation15] sm:$0xff]
        %v5850 = vld [vmem:[#allocation15 + $0x8] sm:$0xff]
        %v5851 = vld [vmem:[#allocation15 + $0x10] sm:$0xff]
        %v5852 = vld [vmem:[#allocation15 + $0x18] sm:$0xff]
        %v5853 = vld [vmem:[#allocation15 + $0x20] sm:$0xff]
        %v5854 = vld [vmem:[#allocation15 + $0x28] sm:$0xff]
        %v5855 = vld [vmem:[#allocation15 + $0x30] sm:$0xff]
        %v5856 = vld [vmem:[#allocation15 + $0x38] sm:$0xff]
        %v5857 = vld [vmem:[#allocation15 + $0x40] sm:$0xff]
        %v5858 = vld [vmem:[#allocation15 + $0x48] sm:$0xff]
        %v5859 = vld [vmem:[#allocation15 + $0x50] sm:$0xff]
        %v5860 = vld [vmem:[#allocation15 + $0x58] sm:$0xff]
        %v5861 = vld [vmem:[#allocation15 + $0x60] sm:$0xff]
        %v5862 = vld [vmem:[#allocation15 + $0x68] sm:$0xff]
        %v5863 = vld [vmem:[#allocation15 + $0x70] sm:$0xff]
        %v5864 = vld [vmem:[#allocation15 + $0x78] sm:$0xff]
        %v5865 = vld [vmem:[#allocation15 + $0x80] sm:$0xff]
        %v5866 = vld [vmem:[#allocation15 + $0x88] sm:$0xff]
        %v5867 = vld [vmem:[#allocation15 + $0x90] sm:$0xff]
        %v5868 = vld [vmem:[#allocation15 + $0x98] sm:$0xff]
        %v5869 = vld [vmem:[#allocation15 + $0xa0] sm:$0xff]
        %v5870 = vld [vmem:[#allocation15 + $0xa8] sm:$0xff]
        %v5871 = vld [vmem:[#allocation15 + $0xb0] sm:$0xff]
        %v5872 = vld [vmem:[#allocation15 + $0xb8] sm:$0xff]
        %v5873 = vld [vmem:[#allocation15 + $0xc0] sm:$0xff]
        %v5874 = vld [vmem:[#allocation15 + $0xc8] sm:$0xff]
        %v5875 = vld [vmem:[#allocation15 + $0xd0] sm:$0xff]
        %v5876 = vld [vmem:[#allocation15 + $0xd8] sm:$0xff]
        %v5877 = vld [vmem:[#allocation15 + $0xe0] sm:$0xff]
        %v5878 = vld [vmem:[#allocation15 + $0xe8] sm:$0xff]
        %v5879 = vld [vmem:[#allocation15 + $0xf0] sm:$0xff]
        %v5880 = vld [vmem:[#allocation15 + $0xf8] sm:$0xff]
        %v5881 = vld [vmem:[#allocation15 + $0x100] sm:$0xff]
        %v5882 = vld [vmem:[#allocation15 + $0x108] sm:$0xff]
        %v5883 = vld [vmem:[#allocation15 + $0x110] sm:$0xff]
        %v5884 = vld [vmem:[#allocation15 + $0x118] sm:$0xff]
        %v5885 = vld [vmem:[#allocation15 + $0x120] sm:$0xff]
        %v5886 = vld [vmem:[#allocation15 + $0x128] sm:$0xff]
        %v5887 = vld [vmem:[#allocation15 + $0x130] sm:$0xff]
        %v5888 = vld [vmem:[#allocation15 + $0x138] sm:$0xff]
        %v5889 = vld [vmem:[#allocation15 + $0x140] sm:$0xff]
        %v5890 = vld [vmem:[#allocation15 + $0x148] sm:$0xff]
        %v5891 = vld [vmem:[#allocation15 + $0x150] sm:$0xff]
        %v5892 = vld [vmem:[#allocation15 + $0x158] sm:$0xff]
        %v5893 = vld [vmem:[#allocation15 + $0x160] sm:$0xff]
        %v5894 = vld [vmem:[#allocation15 + $0x168] sm:$0xff]
        %v5895 = vld [vmem:[#allocation15 + $0x170] sm:$0xff]
        %v5896 = vld [vmem:[#allocation15 + $0x178] sm:$0xff]
        %v5897 = vld [vmem:[#allocation15 + $0x180] sm:$0xff]
        %v5898 = vld [vmem:[#allocation15 + $0x188] sm:$0xff]
        %v5899 = vld [vmem:[#allocation15 + $0x190] sm:$0xff]
        %v5900 = vld [vmem:[#allocation15 + $0x198] sm:$0xff]
        %v5901 = vld [vmem:[#allocation15 + $0x1a0] sm:$0xff]
        %v5902 = vld [vmem:[#allocation15 + $0x1a8] sm:$0xff]
        %v5903 = vld [vmem:[#allocation15 + $0x1b0] sm:$0xff]
        %v5904 = vld [vmem:[#allocation15 + $0x1b8] sm:$0xff]
        %v5905 = vld [vmem:[#allocation15 + $0x1c0] sm:$0xff]
        %v5906 = vld [vmem:[#allocation15 + $0x1c8] sm:$0xff]
        %v5907 = vld [vmem:[#allocation15 + $0x1d0] sm:$0xff]
        %v5908 = vld [vmem:[#allocation15 + $0x1d8] sm:$0xff]
        %v5909 = vld [vmem:[#allocation15 + $0x1e0] sm:$0xff]
        %v5910 = vld [vmem:[#allocation15 + $0x1e8] sm:$0xff]
        %v5911 = vld [vmem:[#allocation15 + $0x1f0] sm:$0xff]
        %v5912 = vld [vmem:[#allocation15 + $0x1f8] sm:$0xff]
        %v5913 = vld [vmem:[#allocation15 + $0x200] sm:$0xff]
        %v5914 = vld [vmem:[#allocation15 + $0x208] sm:$0xff]
        %v5915 = vld [vmem:[#allocation15 + $0x210] sm:$0xff]
        %v5916 = vld [vmem:[#allocation15 + $0x218] sm:$0xff]
        %v5917 = vld [vmem:[#allocation15 + $0x220] sm:$0xff]
        %v5918 = vld [vmem:[#allocation15 + $0x228] sm:$0xff]
        %v5919 = vld [vmem:[#allocation15 + $0x230] sm:$0xff]
        %v5920 = vld [vmem:[#allocation15 + $0x238] sm:$0xff]
        %v5921 = vld [vmem:[#allocation15 + $0x240] sm:$0xff]
        %v5922 = vld [vmem:[#allocation15 + $0x248] sm:$0xff]
        %v5923 = vld [vmem:[#allocation15 + $0x250] sm:$0xff]
        %v5924 = vld [vmem:[#allocation15 + $0x258] sm:$0xff]
        %v5925 = vld [vmem:[#allocation15 + $0x260] sm:$0xff]
        %v5926 = vld [vmem:[#allocation15 + $0x268] sm:$0xff]
        %v5927 = vld [vmem:[#allocation15 + $0x270] sm:$0xff]
        %v5928 = vld [vmem:[#allocation15 + $0x278] sm:$0xff]
        %v5929 = vld [vmem:[#allocation15 + $0x280] sm:$0xff]
        %v5930 = vld [vmem:[#allocation15 + $0x288] sm:$0xff]
        %v5931 = vld [vmem:[#allocation15 + $0x290] sm:$0xff]
        %v5932 = vld [vmem:[#allocation15 + $0x298] sm:$0xff]
        %v5933 = vld [vmem:[#allocation15 + $0x2a0] sm:$0xff]
        %v5934 = vld [vmem:[#allocation15 + $0x2a8] sm:$0xff]
        %v5935 = vld [vmem:[#allocation15 + $0x2b0] sm:$0xff]
        %v5936 = vld [vmem:[#allocation15 + $0x2b8] sm:$0xff]
        %v5937 = vld [vmem:[#allocation15 + $0x2c0] sm:$0xff]
        %v5938 = vld [vmem:[#allocation15 + $0x2c8] sm:$0xff]
        %v5939 = vld [vmem:[#allocation15 + $0x2d0] sm:$0xff]
        %v5940 = vld [vmem:[#allocation15 + $0x2d8] sm:$0xff]
        %v5941 = vld [vmem:[#allocation15 + $0x2e0] sm:$0xff]
        %v5942 = vld [vmem:[#allocation15 + $0x2e8] sm:$0xff]
        %v5943 = vld [vmem:[#allocation15 + $0x2f0] sm:$0xff]
        %v5944 = vld [vmem:[#allocation15 + $0x2f8] sm:$0xff]
        %v5945 = vld [vmem:[#allocation15 + $0x300] sm:$0xff]
        %v5946 = vld [vmem:[#allocation15 + $0x308] sm:$0xff]
        %v5947 = vld [vmem:[#allocation15 + $0x310] sm:$0xff]
        %v5948 = vld [vmem:[#allocation15 + $0x318] sm:$0xff]
        %v5949 = vld [vmem:[#allocation15 + $0x320] sm:$0xff]
        %v5950 = vld [vmem:[#allocation15 + $0x328] sm:$0xff]
        %v5951 = vld [vmem:[#allocation15 + $0x330] sm:$0xff]
        %v5952 = vld [vmem:[#allocation15 + $0x338] sm:$0xff]
        %v5953 = vld [vmem:[#allocation15 + $0x340] sm:$0xff]
        %v5954 = vld [vmem:[#allocation15 + $0x348] sm:$0xff]
        %v5955 = vld [vmem:[#allocation15 + $0x350] sm:$0xff]
        %v5956 = vld [vmem:[#allocation15 + $0x358] sm:$0xff]
        %v5957 = vld [vmem:[#allocation15 + $0x360] sm:$0xff]
        %v5958 = vld [vmem:[#allocation15 + $0x368] sm:$0xff]
        %v5959 = vld [vmem:[#allocation15 + $0x370] sm:$0xff]
        %v5960 = vld [vmem:[#allocation15 + $0x378] sm:$0xff]
        %v5961 = vld [vmem:[#allocation15 + $0x380] sm:$0xff]
        %v5962 = vld [vmem:[#allocation15 + $0x388] sm:$0xff]
        %v5963 = vld [vmem:[#allocation15 + $0x390] sm:$0xff]
        %v5964 = vld [vmem:[#allocation15 + $0x398] sm:$0xff]
        %v5965 = vld [vmem:[#allocation15 + $0x3a0] sm:$0xff]
        %v5966 = vld [vmem:[#allocation15 + $0x3a8] sm:$0xff]
        %v5967 = vld [vmem:[#allocation15 + $0x3b0] sm:$0xff]
        %v5968 = vld [vmem:[#allocation15 + $0x3b8] sm:$0xff]
        %v5969 = vld [vmem:[#allocation15 + $0x3c0] sm:$0xff]
        %v5970 = vld [vmem:[#allocation15 + $0x3c8] sm:$0xff]
        %v5971 = vld [vmem:[#allocation15 + $0x3d0] sm:$0xff]
        %v5972 = vld [vmem:[#allocation15 + $0x3d8] sm:$0xff]
        %v5973 = vld [vmem:[#allocation15 + $0x3e0] sm:$0xff]
        %v5974 = vld [vmem:[#allocation15 + $0x3e8] sm:$0xff]
        %v5975 = vld [vmem:[#allocation15 + $0x3f0] sm:$0xff]
        %v5976 = vld [vmem:[#allocation15 + $0x3f8] sm:$0xff]
        %v5977 = vld [vmem:[#allocation15 + $0x400] sm:$0xff]
        %v5978 = vld [vmem:[#allocation15 + $0x408] sm:$0xff]
        %v5979 = vld [vmem:[#allocation15 + $0x410] sm:$0xff]
        %v5980 = vld [vmem:[#allocation15 + $0x418] sm:$0xff]
        %v5981 = vld [vmem:[#allocation15 + $0x420] sm:$0xff]
        %v5982 = vld [vmem:[#allocation15 + $0x428] sm:$0xff]
        %v5983 = vld [vmem:[#allocation15 + $0x430] sm:$0xff]
        %v5984 = vld [vmem:[#allocation15 + $0x438] sm:$0xff]
        %v5985 = vld [vmem:[#allocation15 + $0x440] sm:$0xff]
        %v5986 = vld [vmem:[#allocation15 + $0x448] sm:$0xff]
        %v5987 = vld [vmem:[#allocation15 + $0x450] sm:$0xff]
        %v5988 = vld [vmem:[#allocation15 + $0x458] sm:$0xff]
        %v5989 = vld [vmem:[#allocation15 + $0x460] sm:$0xff]
        %v5990 = vld [vmem:[#allocation15 + $0x468] sm:$0xff]
        %v5991 = vld [vmem:[#allocation15 + $0x470] sm:$0xff]
        %v5992 = vld [vmem:[#allocation15 + $0x478] sm:$0xff]
        %v5993 = vld [vmem:[#allocation15 + $0x480] sm:$0xff]
        %v5994 = vld [vmem:[#allocation15 + $0x488] sm:$0xff]
        %v5995 = vld [vmem:[#allocation15 + $0x490] sm:$0xff]
        %v5996 = vld [vmem:[#allocation15 + $0x498] sm:$0xff]
        %v5997 = vld [vmem:[#allocation15 + $0x4a0] sm:$0xff]
        %v5998 = vld [vmem:[#allocation15 + $0x4a8] sm:$0xff]
        %v5999 = vld [vmem:[#allocation15 + $0x4b0] sm:$0xff]
        %v6000 = vld [vmem:[#allocation15 + $0x4b8] sm:$0xff]
        %v6001 = vld [vmem:[#allocation15 + $0x4c0] sm:$0xff]
        %v6002 = vld [vmem:[#allocation15 + $0x4c8] sm:$0xff]
        %v6003 = vld [vmem:[#allocation15 + $0x4d0] sm:$0xff]
        %v6004 = vld [vmem:[#allocation15 + $0x4d8] sm:$0xff]
        %v6005 = vld [vmem:[#allocation15 + $0x4e0] sm:$0xff]
        %v6006 = vld [vmem:[#allocation15 + $0x4e8] sm:$0xff]
        %v6007 = vld [vmem:[#allocation15 + $0x4f0] sm:$0xff]
        %v6008 = vld [vmem:[#allocation15 + $0x4f8] sm:$0xff]
        %v6009 = vld [vmem:[#allocation15 + $0x500] sm:$0xff]
        %v6010 = vld [vmem:[#allocation15 + $0x508] sm:$0xff]
        %v6011 = vld [vmem:[#allocation15 + $0x510] sm:$0xff]
        %v6012 = vld [vmem:[#allocation15 + $0x518] sm:$0xff]
        %v6013 = vld [vmem:[#allocation15 + $0x520] sm:$0xff]
        %v6014 = vld [vmem:[#allocation15 + $0x528] sm:$0xff]
        %v6015 = vld [vmem:[#allocation15 + $0x530] sm:$0xff]
        %v6016 = vld [vmem:[#allocation15 + $0x538] sm:$0xff]
        %v6017 = vld [vmem:[#allocation15 + $0x540] sm:$0xff]
        %v6018 = vld [vmem:[#allocation15 + $0x548] sm:$0xff]
        %v6019 = vld [vmem:[#allocation15 + $0x550] sm:$0xff]
        %v6020 = vld [vmem:[#allocation15 + $0x558] sm:$0xff]
        %v6021 = vld [vmem:[#allocation15 + $0x560] sm:$0xff]
        %v6022 = vld [vmem:[#allocation15 + $0x568] sm:$0xff]
        %v6023 = vld [vmem:[#allocation15 + $0x570] sm:$0xff]
        %v6024 = vld [vmem:[#allocation15 + $0x578] sm:$0xff]
        %v6025 = vld [vmem:[#allocation15 + $0x580] sm:$0xff]
        %v6026 = vld [vmem:[#allocation15 + $0x588] sm:$0xff]
        %v6027 = vld [vmem:[#allocation15 + $0x590] sm:$0xff]
        %v6028 = vld [vmem:[#allocation15 + $0x598] sm:$0xff]
        %v6029 = vld [vmem:[#allocation15 + $0x5a0] sm:$0xff]
        %v6030 = vld [vmem:[#allocation15 + $0x5a8] sm:$0xff]
        %v6031 = vld [vmem:[#allocation15 + $0x5b0] sm:$0xff]
        %v6032 = vld [vmem:[#allocation15 + $0x5b8] sm:$0xff]
        %v6033 = vld [vmem:[#allocation15 + $0x5c0] sm:$0xff]
        %v6034 = vld [vmem:[#allocation15 + $0x5c8] sm:$0xff]
        %v6035 = vld [vmem:[#allocation15 + $0x5d0] sm:$0xff]
        %v6036 = vld [vmem:[#allocation15 + $0x5d8] sm:$0xff]
        %v6037 = vld [vmem:[#allocation15 + $0x5e0] sm:$0xff]
        %v6038 = vld [vmem:[#allocation15 + $0x5e8] sm:$0xff]
        %v6039 = vld [vmem:[#allocation15 + $0x5f0] sm:$0xff]
        %v6040 = vld [vmem:[#allocation15 + $0x5f8] sm:$0xff]
        %v6041 = vld [vmem:[#allocation15 + $0x600] sm:$0xff]
        %v6042 = vld [vmem:[#allocation15 + $0x608] sm:$0xff]
        %v6043 = vld [vmem:[#allocation15 + $0x610] sm:$0xff]
        %v6044 = vld [vmem:[#allocation15 + $0x618] sm:$0xff]
        %v6045 = vld [vmem:[#allocation15 + $0x620] sm:$0xff]
        %v6046 = vld [vmem:[#allocation15 + $0x628] sm:$0xff]
        %v6047 = vld [vmem:[#allocation15 + $0x630] sm:$0xff]
        %v6048 = vld [vmem:[#allocation15 + $0x638] sm:$0xff]
        %v6049 = vld [vmem:[#allocation15 + $0x640] sm:$0xff]
        %v6050 = vld [vmem:[#allocation15 + $0x648] sm:$0xff]
        %v6051 = vld [vmem:[#allocation15 + $0x650] sm:$0xff]
        %v6052 = vld [vmem:[#allocation15 + $0x658] sm:$0xff]
        %v6053 = vld [vmem:[#allocation15 + $0x660] sm:$0xff]
        %v6054 = vld [vmem:[#allocation15 + $0x668] sm:$0xff]
        %v6055 = vld [vmem:[#allocation15 + $0x670] sm:$0xff]
        %v6056 = vld [vmem:[#allocation15 + $0x678] sm:$0xff]
        %v6057 = vld [vmem:[#allocation15 + $0x680] sm:$0xff]
        %v6058 = vld [vmem:[#allocation15 + $0x688] sm:$0xff]
        %v6059 = vld [vmem:[#allocation15 + $0x690] sm:$0xff]
        %v6060 = vld [vmem:[#allocation15 + $0x698] sm:$0xff]
        %v6061 = vld [vmem:[#allocation15 + $0x6a0] sm:$0xff]
        %v6062 = vld [vmem:[#allocation15 + $0x6a8] sm:$0xff]
        %v6063 = vld [vmem:[#allocation15 + $0x6b0] sm:$0xff]
        %v6064 = vld [vmem:[#allocation15 + $0x6b8] sm:$0xff]
        %v6065 = vld [vmem:[#allocation15 + $0x6c0] sm:$0xff]
        %v6066 = vld [vmem:[#allocation15 + $0x6c8] sm:$0xff]
        %v6067 = vld [vmem:[#allocation15 + $0x6d0] sm:$0xff]
        %v6068 = vld [vmem:[#allocation15 + $0x6d8] sm:$0xff]
        %v6069 = vld [vmem:[#allocation15 + $0x6e0] sm:$0xff]
        %v6070 = vld [vmem:[#allocation15 + $0x6e8] sm:$0xff]
        %v6071 = vld [vmem:[#allocation15 + $0x6f0] sm:$0xff]
        %v6072 = vld [vmem:[#allocation15 + $0x6f8] sm:$0xff]
        %v6073 = vld [vmem:[#allocation15 + $0x700] sm:$0xff]
        %v6074 = vld [vmem:[#allocation15 + $0x708] sm:$0xff]
        %v6075 = vld [vmem:[#allocation15 + $0x710] sm:$0xff]
        %v6076 = vld [vmem:[#allocation15 + $0x718] sm:$0xff]
        %v6077 = vld [vmem:[#allocation15 + $0x720] sm:$0xff]
        %v6078 = vld [vmem:[#allocation15 + $0x728] sm:$0xff]
        %v6079 = vld [vmem:[#allocation15 + $0x730] sm:$0xff]
        %v6080 = vld [vmem:[#allocation15 + $0x738] sm:$0xff]
        %v6081 = vld [vmem:[#allocation15 + $0x740] sm:$0xff]
        %v6082 = vld [vmem:[#allocation15 + $0x748] sm:$0xff]
        %v6083 = vld [vmem:[#allocation15 + $0x750] sm:$0xff]
        %v6084 = vld [vmem:[#allocation15 + $0x758] sm:$0xff]
        %v6085 = vld [vmem:[#allocation15 + $0x760] sm:$0xff]
        %v6086 = vld [vmem:[#allocation15 + $0x768] sm:$0xff]
        %v6087 = vld [vmem:[#allocation15 + $0x770] sm:$0xff]
        %v6088 = vld [vmem:[#allocation15 + $0x778] sm:$0xff]
        %v6089 = vld [vmem:[#allocation15 + $0x780] sm:$0xff]
        %v6090 = vld [vmem:[#allocation15 + $0x788] sm:$0xff]
        %v6091 = vld [vmem:[#allocation15 + $0x790] sm:$0xff]
        %v6092 = vld [vmem:[#allocation15 + $0x798] sm:$0xff]
        %v6093 = vld [vmem:[#allocation15 + $0x7a0] sm:$0xff]
        %v6094 = vld [vmem:[#allocation15 + $0x7a8] sm:$0xff]
        %v6095 = vld [vmem:[#allocation15 + $0x7b0] sm:$0xff]
        %v6096 = vld [vmem:[#allocation15 + $0x7b8] sm:$0xff]
        %v6097 = vld [vmem:[#allocation15 + $0x7c0] sm:$0xff]
        %v6098 = vld [vmem:[#allocation15 + $0x7c8] sm:$0xff]
        %v6099 = vld [vmem:[#allocation15 + $0x7d0] sm:$0xff]
        %v6100 = vld [vmem:[#allocation15 + $0x7d8] sm:$0xff]
        %v6101 = vld [vmem:[#allocation15 + $0x7e0] sm:$0xff]
        %v6102 = vld [vmem:[#allocation15 + $0x7e8] sm:$0xff]
        %v6103 = vld [vmem:[#allocation15 + $0x7f0] sm:$0xff]
        %v6104 = vld [vmem:[#allocation15 + $0x7f8] sm:$0xff]
        %v6105 = vld [vmem:[#allocation15 + $0x800] sm:$0xff]
        %v6106 = vld [vmem:[#allocation15 + $0x808] sm:$0xff]
        %v6107 = vld [vmem:[#allocation15 + $0x810] sm:$0xff]
        %v6108 = vld [vmem:[#allocation15 + $0x818] sm:$0xff]
        %v6109 = vld [vmem:[#allocation15 + $0x820] sm:$0xff]
        %v6110 = vld [vmem:[#allocation15 + $0x828] sm:$0xff]
        %v6111 = vld [vmem:[#allocation15 + $0x830] sm:$0xff]
        %v6112 = vld [vmem:[#allocation15 + $0x838] sm:$0xff]
        %v6113 = vld [vmem:[#allocation15 + $0x840] sm:$0xff]
        %v6114 = vld [vmem:[#allocation15 + $0x848] sm:$0xff]
        %v6115 = vld [vmem:[#allocation15 + $0x850] sm:$0xff]
        %v6116 = vld [vmem:[#allocation15 + $0x858] sm:$0xff]
        %v6117 = vld [vmem:[#allocation15 + $0x860] sm:$0xff]
        %v6118 = vld [vmem:[#allocation15 + $0x868] sm:$0xff]
        %v6119 = vld [vmem:[#allocation15 + $0x870] sm:$0xff]
        %v6120 = vld [vmem:[#allocation15 + $0x878] sm:$0xff]
        %v6121 = vld [vmem:[#allocation15 + $0x880] sm:$0xff]
        %v6122 = vld [vmem:[#allocation15 + $0x888] sm:$0xff]
        %v6123 = vld [vmem:[#allocation15 + $0x890] sm:$0xff]
        %v6124 = vld [vmem:[#allocation15 + $0x898] sm:$0xff]
        %v6125 = vld [vmem:[#allocation15 + $0x8a0] sm:$0xff]
        %v6126 = vld [vmem:[#allocation15 + $0x8a8] sm:$0xff]
        %v6127 = vld [vmem:[#allocation15 + $0x8b0] sm:$0xff]
        %v6128 = vld [vmem:[#allocation15 + $0x8b8] sm:$0xff]
        %v6129 = vld [vmem:[#allocation15 + $0x8c0] sm:$0xff]
        %v6130 = vld [vmem:[#allocation15 + $0x8c8] sm:$0xff]
        %v6131 = vld [vmem:[#allocation15 + $0x8d0] sm:$0xff]
        %v6132 = vld [vmem:[#allocation15 + $0x8d8] sm:$0xff]
        %v6133 = vld [vmem:[#allocation15 + $0x8e0] sm:$0xff]
        %v6134 = vld [vmem:[#allocation15 + $0x8e8] sm:$0xff]
        %v6135 = vld [vmem:[#allocation15 + $0x8f0] sm:$0xff]
        %v6136 = vld [vmem:[#allocation15 + $0x8f8] sm:$0xff]
        %v6137 = vld [vmem:[#allocation15 + $0x900] sm:$0xff]
        %v6138 = vld [vmem:[#allocation15 + $0x908] sm:$0xff]
        %v6139 = vld [vmem:[#allocation15 + $0x910] sm:$0xff]
        %v6140 = vld [vmem:[#allocation15 + $0x918] sm:$0xff]
        %v6141 = vld [vmem:[#allocation15 + $0x920] sm:$0xff]
        %v6142 = vld [vmem:[#allocation15 + $0x928] sm:$0xff]
        %v6143 = vld [vmem:[#allocation15 + $0x930] sm:$0xff]
        %v6144 = vld [vmem:[#allocation15 + $0x938] sm:$0xff]
        %v6145 = vld [vmem:[#allocation15 + $0x940] sm:$0xff]
        %v6146 = vld [vmem:[#allocation15 + $0x948] sm:$0xff]
        %v6147 = vld [vmem:[#allocation15 + $0x950] sm:$0xff]
        %v6148 = vld [vmem:[#allocation15 + $0x958] sm:$0xff]
        %v6149 = vld [vmem:[#allocation15 + $0x960] sm:$0xff]
        %v6150 = vld [vmem:[#allocation15 + $0x968] sm:$0xff]
        %v6151 = vld [vmem:[#allocation15 + $0x970] sm:$0xff]
        %v6152 = vld [vmem:[#allocation15 + $0x978] sm:$0xff]
        %v6153 = vld [vmem:[#allocation15 + $0x980] sm:$0xff]
        %v6154 = vld [vmem:[#allocation15 + $0x988] sm:$0xff]
        %v6155 = vld [vmem:[#allocation15 + $0x990] sm:$0xff]
        %v6156 = vld [vmem:[#allocation15 + $0x998] sm:$0xff]
        %v6157 = vld [vmem:[#allocation15 + $0x9a0] sm:$0xff]
        %v6158 = vld [vmem:[#allocation15 + $0x9a8] sm:$0xff]
        %v6159 = vld [vmem:[#allocation15 + $0x9b0] sm:$0xff]
        %v6160 = vld [vmem:[#allocation15 + $0x9b8] sm:$0xff]
        %v6161 = vld [vmem:[#allocation15 + $0x9c0] sm:$0xff]
        %v6162 = vld [vmem:[#allocation15 + $0x9c8] sm:$0xff]
        %v6163 = vld [vmem:[#allocation15 + $0x9d0] sm:$0xff]
        %v6164 = vld [vmem:[#allocation15 + $0x9d8] sm:$0xff]
        %v6165 = vld [vmem:[#allocation15 + $0x9e0] sm:$0xff]
        %v6166 = vld [vmem:[#allocation15 + $0x9e8] sm:$0xff]
        %v6167 = vld [vmem:[#allocation15 + $0x9f0] sm:$0xff]
        %v6168 = vld [vmem:[#allocation15 + $0x9f8] sm:$0xff]
        %v6169 = vld [vmem:[#allocation15 + $0xa00] sm:$0xff]
        %v6170 = vld [vmem:[#allocation15 + $0xa08] sm:$0xff]
        %v6171 = vld [vmem:[#allocation15 + $0xa10] sm:$0xff]
        %v6172 = vld [vmem:[#allocation15 + $0xa18] sm:$0xff]
        %v6173 = vld [vmem:[#allocation15 + $0xa20] sm:$0xff]
        %v6174 = vld [vmem:[#allocation15 + $0xa28] sm:$0xff]
        %v6175 = vld [vmem:[#allocation15 + $0xa30] sm:$0xff]
        %v6176 = vld [vmem:[#allocation15 + $0xa38] sm:$0xff]
        %v6177 = vld [vmem:[#allocation15 + $0xa40] sm:$0xff]
        %v6178 = vld [vmem:[#allocation15 + $0xa48] sm:$0xff]
        %v6179 = vld [vmem:[#allocation15 + $0xa50] sm:$0xff]
        %v6180 = vld [vmem:[#allocation15 + $0xa58] sm:$0xff]
        %v6181 = vld [vmem:[#allocation15 + $0xa60] sm:$0xff]
        %v6182 = vld [vmem:[#allocation15 + $0xa68] sm:$0xff]
        %v6183 = vld [vmem:[#allocation15 + $0xa70] sm:$0xff]
        %v6184 = vld [vmem:[#allocation15 + $0xa78] sm:$0xff]
        %v6185 = vld [vmem:[#allocation15 + $0xa80] sm:$0xff]
        %v6186 = vld [vmem:[#allocation15 + $0xa88] sm:$0xff]
        %v6187 = vld [vmem:[#allocation15 + $0xa90] sm:$0xff]
        %v6188 = vld [vmem:[#allocation15 + $0xa98] sm:$0xff]
        %v6189 = vld [vmem:[#allocation15 + $0xaa0] sm:$0xff]
        %v6190 = vld [vmem:[#allocation15 + $0xaa8] sm:$0xff]
        %v6191 = vld [vmem:[#allocation15 + $0xab0] sm:$0xff]
        %v6192 = vld [vmem:[#allocation15 + $0xab8] sm:$0xff]
        %v6193 = vld [vmem:[#allocation15 + $0xac0] sm:$0xff]
        %v6194 = vld [vmem:[#allocation15 + $0xac8] sm:$0xff]
        %v6195 = vld [vmem:[#allocation15 + $0xad0] sm:$0xff]
        %v6196 = vld [vmem:[#allocation15 + $0xad8] sm:$0xff]
        %v6197 = vld [vmem:[#allocation15 + $0xae0] sm:$0xff]
        %v6198 = vld [vmem:[#allocation15 + $0xae8] sm:$0xff]
        %v6199 = vld [vmem:[#allocation15 + $0xaf0] sm:$0xff]
        %v6200 = vld [vmem:[#allocation15 + $0xaf8] sm:$0xff]
        %v6201 = vld [vmem:[#allocation15 + $0xb00] sm:$0xff]
        %v6202 = vld [vmem:[#allocation15 + $0xb08] sm:$0xff]
        %v6203 = vld [vmem:[#allocation15 + $0xb10] sm:$0xff]
        %v6204 = vld [vmem:[#allocation15 + $0xb18] sm:$0xff]
        %v6205 = vld [vmem:[#allocation15 + $0xb20] sm:$0xff]
        %v6206 = vld [vmem:[#allocation15 + $0xb28] sm:$0xff]
        %v6207 = vld [vmem:[#allocation15 + $0xb30] sm:$0xff]
        %v6208 = vld [vmem:[#allocation15 + $0xb38] sm:$0xff]
        %v6209 = vld [vmem:[#allocation15 + $0xb40] sm:$0xff]
        %v6210 = vld [vmem:[#allocation15 + $0xb48] sm:$0xff]
        %v6211 = vld [vmem:[#allocation15 + $0xb50] sm:$0xff]
        %v6212 = vld [vmem:[#allocation15 + $0xb58] sm:$0xff]
        %v6213 = vld [vmem:[#allocation15 + $0xb60] sm:$0xff]
        %v6214 = vld [vmem:[#allocation15 + $0xb68] sm:$0xff]
        %v6215 = vld [vmem:[#allocation15 + $0xb70] sm:$0xff]
        %v6216 = vld [vmem:[#allocation15 + $0xb78] sm:$0xff]
        %v6217 = vld [vmem:[#allocation15 + $0xb80] sm:$0xff]
        %v6218 = vld [vmem:[#allocation15 + $0xb88] sm:$0xff]
        %v6219 = vld [vmem:[#allocation15 + $0xb90] sm:$0xff]
        %v6220 = vld [vmem:[#allocation15 + $0xb98] sm:$0xff]
        %v6221 = vld [vmem:[#allocation15 + $0xba0] sm:$0xff]
        %v6222 = vld [vmem:[#allocation15 + $0xba8] sm:$0xff]
        %v6223 = vld [vmem:[#allocation15 + $0xbb0] sm:$0xff]
        %v6224 = vld [vmem:[#allocation15 + $0xbb8] sm:$0xff]
        %v6225 = vld [vmem:[#allocation15 + $0xbc0] sm:$0xff]
        %v6226 = vld [vmem:[#allocation15 + $0xbc8] sm:$0xff]
        %v6227 = vld [vmem:[#allocation15 + $0xbd0] sm:$0xff]
        %v6228 = vld [vmem:[#allocation15 + $0xbd8] sm:$0xff]
        %v6229 = vld [vmem:[#allocation15 + $0xbe0] sm:$0xff]
        %v6230 = vld [vmem:[#allocation15 + $0xbe8] sm:$0xff]
        %v6231 = vld [vmem:[#allocation15 + $0xbf0] sm:$0xff]
        %v6232 = vld [vmem:[#allocation15 + $0xbf8] sm:$0xff]
        %v6233 = vld [vmem:[#allocation15 + $0xc00] sm:$0xff]
        %v6234 = vld [vmem:[#allocation15 + $0xc08] sm:$0xff]
        %v6235 = vld [vmem:[#allocation15 + $0xc10] sm:$0xff]
        %v6236 = vld [vmem:[#allocation15 + $0xc18] sm:$0xff]
        %v6237 = vld [vmem:[#allocation15 + $0xc20] sm:$0xff]
        %v6238 = vld [vmem:[#allocation15 + $0xc28] sm:$0xff]
        %v6239 = vld [vmem:[#allocation15 + $0xc30] sm:$0xff]
        %v6240 = vld [vmem:[#allocation15 + $0xc38] sm:$0xff]
        %v6241 = vld [vmem:[#allocation15 + $0xc40] sm:$0xff]
        %v6242 = vld [vmem:[#allocation15 + $0xc48] sm:$0xff]
        %v6243 = vld [vmem:[#allocation15 + $0xc50] sm:$0xff]
        %v6244 = vld [vmem:[#allocation15 + $0xc58] sm:$0xff]
        %v6245 = vld [vmem:[#allocation15 + $0xc60] sm:$0xff]
        %v6246 = vld [vmem:[#allocation15 + $0xc68] sm:$0xff]
        %v6247 = vld [vmem:[#allocation15 + $0xc70] sm:$0xff]
        %v6248 = vld [vmem:[#allocation15 + $0xc78] sm:$0xff]
        %v6249 = vld [vmem:[#allocation15 + $0xc80] sm:$0xff]
        %v6250 = vld [vmem:[#allocation15 + $0xc88] sm:$0xff]
        %v6251 = vld [vmem:[#allocation15 + $0xc90] sm:$0xff]
        %v6252 = vld [vmem:[#allocation15 + $0xc98] sm:$0xff]
        %v6253 = vld [vmem:[#allocation15 + $0xca0] sm:$0xff]
        %v6254 = vld [vmem:[#allocation15 + $0xca8] sm:$0xff]
        %v6255 = vld [vmem:[#allocation15 + $0xcb0] sm:$0xff]
        %v6256 = vld [vmem:[#allocation15 + $0xcb8] sm:$0xff]
        %v6257 = vld [vmem:[#allocation15 + $0xcc0] sm:$0xff]
        %v6258 = vld [vmem:[#allocation15 + $0xcc8] sm:$0xff]
        %v6259 = vld [vmem:[#allocation15 + $0xcd0] sm:$0xff]
        %v6260 = vld [vmem:[#allocation15 + $0xcd8] sm:$0xff]
        %v6261 = vld [vmem:[#allocation15 + $0xce0] sm:$0xff]
        %v6262 = vld [vmem:[#allocation15 + $0xce8] sm:$0xff]
        %v6263 = vld [vmem:[#allocation15 + $0xcf0] sm:$0xff]
        %v6264 = vld [vmem:[#allocation15 + $0xcf8] sm:$0xff]
        %v6265 = vld [vmem:[#allocation15 + $0xd00] sm:$0xff]
        %v6266 = vld [vmem:[#allocation15 + $0xd08] sm:$0xff]
        %v6267 = vld [vmem:[#allocation15 + $0xd10] sm:$0xff]
        %v6268 = vld [vmem:[#allocation15 + $0xd18] sm:$0xff]
        %v6269 = vld [vmem:[#allocation15 + $0xd20] sm:$0xff]
        %v6270 = vld [vmem:[#allocation15 + $0xd28] sm:$0xff]
        %v6271 = vld [vmem:[#allocation15 + $0xd30] sm:$0xff]
        %v6272 = vld [vmem:[#allocation15 + $0xd38] sm:$0xff]
        %v6273 = vld [vmem:[#allocation15 + $0xd40] sm:$0xff]
        %v6274 = vld [vmem:[#allocation15 + $0xd48] sm:$0xff]
        %v6275 = vld [vmem:[#allocation15 + $0xd50] sm:$0xff]
        %v6276 = vld [vmem:[#allocation15 + $0xd58] sm:$0xff]
        %v6277 = vld [vmem:[#allocation15 + $0xd60] sm:$0xff]
        %v6278 = vld [vmem:[#allocation15 + $0xd68] sm:$0xff]
        %v6279 = vld [vmem:[#allocation15 + $0xd70] sm:$0xff]
        %v6280 = vld [vmem:[#allocation15 + $0xd78] sm:$0xff]
        %v6281 = vld [vmem:[#allocation15 + $0xd80] sm:$0xff]
        %v6282 = vld [vmem:[#allocation15 + $0xd88] sm:$0xff]
        %v6283 = vld [vmem:[#allocation15 + $0xd90] sm:$0xff]
        %v6284 = vld [vmem:[#allocation15 + $0xd98] sm:$0xff]
        %v6285 = vld [vmem:[#allocation15 + $0xda0] sm:$0xff]
        %v6286 = vld [vmem:[#allocation15 + $0xda8] sm:$0xff]
        %v6287 = vld [vmem:[#allocation15 + $0xdb0] sm:$0xff]
        %v6288 = vld [vmem:[#allocation15 + $0xdb8] sm:$0xff]
        %v6289 = vld [vmem:[#allocation15 + $0xdc0] sm:$0xff]
        %v6290 = vld [vmem:[#allocation15 + $0xdc8] sm:$0xff]
        %v6291 = vld [vmem:[#allocation15 + $0xdd0] sm:$0xff]
        %v6292 = vld [vmem:[#allocation15 + $0xdd8] sm:$0xff]
        %v6293 = vld [vmem:[#allocation15 + $0xde0] sm:$0xff]
        %v6294 = vld [vmem:[#allocation15 + $0xde8] sm:$0xff]
        %v6295 = vld [vmem:[#allocation15 + $0xdf0] sm:$0xff]
        %v6296 = vld [vmem:[#allocation15 + $0xdf8] sm:$0xff]
        %v6297 = vld [vmem:[#allocation15 + $0xe00] sm:$0xff]
        %v6298 = vld [vmem:[#allocation15 + $0xe08] sm:$0xff]
        %v6299 = vld [vmem:[#allocation15 + $0xe10] sm:$0xff]
        %v6300 = vld [vmem:[#allocation15 + $0xe18] sm:$0xff]
        %v6301 = vld [vmem:[#allocation15 + $0xe20] sm:$0xff]
        %v6302 = vld [vmem:[#allocation15 + $0xe28] sm:$0xff]
        %v6303 = vld [vmem:[#allocation15 + $0xe30] sm:$0xff]
        %v6304 = vld [vmem:[#allocation15 + $0xe38] sm:$0xff]
        %v6305 = vld [vmem:[#allocation15 + $0xe40] sm:$0xff]
        %v6306 = vld [vmem:[#allocation15 + $0xe48] sm:$0xff]
        %v6307 = vld [vmem:[#allocation15 + $0xe50] sm:$0xff]
        %v6308 = vld [vmem:[#allocation15 + $0xe58] sm:$0xff]
        %v6309 = vld [vmem:[#allocation15 + $0xe60] sm:$0xff]
        %v6310 = vld [vmem:[#allocation15 + $0xe68] sm:$0xff]
        %v6311 = vld [vmem:[#allocation15 + $0xe70] sm:$0xff]
        %v6312 = vld [vmem:[#allocation15 + $0xe78] sm:$0xff]
        %v6313 = vld [vmem:[#allocation15 + $0xe80] sm:$0xff]
        %v6314 = vld [vmem:[#allocation15 + $0xe88] sm:$0xff]
        %v6315 = vld [vmem:[#allocation15 + $0xe90] sm:$0xff]
        %v6316 = vld [vmem:[#allocation15 + $0xe98] sm:$0xff]
        %v6317 = vld [vmem:[#allocation15 + $0xea0] sm:$0xff]
        %v6318 = vld [vmem:[#allocation15 + $0xea8] sm:$0xff]
        %v6319 = vld [vmem:[#allocation15 + $0xeb0] sm:$0xff]
        %v6320 = vld [vmem:[#allocation15 + $0xeb8] sm:$0xff]
        %v6321 = vld [vmem:[#allocation15 + $0xec0] sm:$0xff]
        %v6322 = vld [vmem:[#allocation15 + $0xec8] sm:$0xff]
        %v6323 = vld [vmem:[#allocation15 + $0xed0] sm:$0xff]
        %v6324 = vld [vmem:[#allocation15 + $0xed8] sm:$0xff]
        %v6325 = vld [vmem:[#allocation15 + $0xee0] sm:$0xff]
        %v6326 = vld [vmem:[#allocation15 + $0xee8] sm:$0xff]
        %v6327 = vld [vmem:[#allocation15 + $0xef0] sm:$0xff]
        %v6328 = vld [vmem:[#allocation15 + $0xef8] sm:$0xff]
        %v6329 = vld [vmem:[#allocation15 + $0xf00] sm:$0xff]
        %v6330 = vld [vmem:[#allocation15 + $0xf08] sm:$0xff]
        %v6331 = vld [vmem:[#allocation15 + $0xf10] sm:$0xff]
        %v6332 = vld [vmem:[#allocation15 + $0xf18] sm:$0xff]
        %v6333 = vld [vmem:[#allocation15 + $0xf20] sm:$0xff]
        %v6334 = vld [vmem:[#allocation15 + $0xf28] sm:$0xff]
        %v6335 = vld [vmem:[#allocation15 + $0xf30] sm:$0xff]
        %v6336 = vld [vmem:[#allocation15 + $0xf38] sm:$0xff]
        %v6337 = vld [vmem:[#allocation15 + $0xf40] sm:$0xff]
        %v6338 = vld [vmem:[#allocation15 + $0xf48] sm:$0xff]
        %v6339 = vld [vmem:[#allocation15 + $0xf50] sm:$0xff]
        %v6340 = vld [vmem:[#allocation15 + $0xf58] sm:$0xff]
        %v6341 = vld [vmem:[#allocation15 + $0xf60] sm:$0xff]
        %v6342 = vld [vmem:[#allocation15 + $0xf68] sm:$0xff]
        %v6343 = vld [vmem:[#allocation15 + $0xf70] sm:$0xff]
        %v6344 = vld [vmem:[#allocation15 + $0xf78] sm:$0xff]
        %v6345 = vld [vmem:[#allocation15 + $0xf80] sm:$0xff]
        %v6346 = vld [vmem:[#allocation15 + $0xf88] sm:$0xff]
        %v6347 = vld [vmem:[#allocation15 + $0xf90] sm:$0xff]
        %v6348 = vld [vmem:[#allocation15 + $0xf98] sm:$0xff]
        %v6349 = vld [vmem:[#allocation15 + $0xfa0] sm:$0xff]
        %v6350 = vld [vmem:[#allocation15 + $0xfa8] sm:$0xff]
        %v6351 = vld [vmem:[#allocation15 + $0xfb0] sm:$0xff]
        %v6352 = vld [vmem:[#allocation15 + $0xfb8] sm:$0xff]
        %v6353 = vld [vmem:[#allocation15 + $0xfc0] sm:$0xff]
        %v6354 = vld [vmem:[#allocation15 + $0xfc8] sm:$0xff]
        %v6355 = vld [vmem:[#allocation15 + $0xfd0] sm:$0xff]
        %v6356 = vld [vmem:[#allocation15 + $0xfd8] sm:$0xff]
        %v6357 = vld [vmem:[#allocation15 + $0xfe0] sm:$0xff]
        %v6358 = vld [vmem:[#allocation15 + $0xfe8] sm:$0xff]
        %v6359 = vld [vmem:[#allocation15 + $0xff0] sm:$0xff]
        %v6360 = vld [vmem:[#allocation15 + $0xff8] sm:$0xff]
        %v6361 = vld [vmem:[#allocation15 + $0x1000] sm:$0xff]
        %v6362 = vld [vmem:[#allocation15 + $0x1008] sm:$0xff]
        %v6363 = vld [vmem:[#allocation15 + $0x1010] sm:$0xff]
        %v6364 = vld [vmem:[#allocation15 + $0x1018] sm:$0xff]
        %v6365 = vld [vmem:[#allocation15 + $0x1020] sm:$0xff]
        %v6366 = vld [vmem:[#allocation15 + $0x1028] sm:$0xff]
        %v6367 = vld [vmem:[#allocation15 + $0x1030] sm:$0xff]
        %v6368 = vld [vmem:[#allocation15 + $0x1038] sm:$0xff]
        %v6369 = vld [vmem:[#allocation15 + $0x1040] sm:$0xff]
        %v6370 = vld [vmem:[#allocation15 + $0x1048] sm:$0xff]
        %v6371 = vld [vmem:[#allocation15 + $0x1050] sm:$0xff]
        %v6372 = vld [vmem:[#allocation15 + $0x1058] sm:$0xff]
        %v6373 = vld [vmem:[#allocation15 + $0x1060] sm:$0xff]
        %v6374 = vld [vmem:[#allocation15 + $0x1068] sm:$0xff]
        %v6375 = vld [vmem:[#allocation15 + $0x1070] sm:$0xff]
        %v6376 = vld [vmem:[#allocation15 + $0x1078] sm:$0xff]
        %v6377 = vld [vmem:[#allocation15 + $0x1080] sm:$0xff]
        %v6378 = vld [vmem:[#allocation15 + $0x1088] sm:$0xff]
        %v6379 = vld [vmem:[#allocation15 + $0x1090] sm:$0xff]
        %v6380 = vld [vmem:[#allocation15 + $0x1098] sm:$0xff]
        %v6381 = vld [vmem:[#allocation15 + $0x10a0] sm:$0xff]
        %v6382 = vld [vmem:[#allocation15 + $0x10a8] sm:$0xff]
        %v6383 = vld [vmem:[#allocation15 + $0x10b0] sm:$0xff]
        %v6384 = vld [vmem:[#allocation15 + $0x10b8] sm:$0xff]
        %v6385 = vld [vmem:[#allocation15 + $0x10c0] sm:$0xff]
        %v6386 = vld [vmem:[#allocation15 + $0x10c8] sm:$0xff]
        %v6387 = vld [vmem:[#allocation15 + $0x10d0] sm:$0xff]
        %v6388 = vld [vmem:[#allocation15 + $0x10d8] sm:$0xff]
        %v6389 = vld [vmem:[#allocation15 + $0x10e0] sm:$0xff]
        %v6390 = vld [vmem:[#allocation15 + $0x10e8] sm:$0xff]
        %v6391 = vld [vmem:[#allocation15 + $0x10f0] sm:$0xff]
        %v6392 = vld [vmem:[#allocation15 + $0x10f8] sm:$0xff]
        %v6393 = vld [vmem:[#allocation15 + $0x1100] sm:$0xff]
        %v6394 = vld [vmem:[#allocation15 + $0x1108] sm:$0xff]
        %v6395 = vld [vmem:[#allocation15 + $0x1110] sm:$0xff]
        %v6396 = vld [vmem:[#allocation15 + $0x1118] sm:$0xff]
        %v6397 = vld [vmem:[#allocation15 + $0x1120] sm:$0xff]
        %v6398 = vld [vmem:[#allocation15 + $0x1128] sm:$0xff]
        %v6399 = vld [vmem:[#allocation15 + $0x1130] sm:$0xff]
        %v6400 = vld [vmem:[#allocation15 + $0x1138] sm:$0xff]
        %v6401 = vld [vmem:[#allocation15 + $0x1140] sm:$0xff]
        %v6402 = vld [vmem:[#allocation15 + $0x1148] sm:$0xff]
        %v6403 = vld [vmem:[#allocation15 + $0x1150] sm:$0xff]
        %v6404 = vld [vmem:[#allocation15 + $0x1158] sm:$0xff]
        %v6405 = vld [vmem:[#allocation15 + $0x1160] sm:$0xff]
        %v6406 = vld [vmem:[#allocation15 + $0x1168] sm:$0xff]
        %v6407 = vld [vmem:[#allocation15 + $0x1170] sm:$0xff]
        %v6408 = vld [vmem:[#allocation15 + $0x1178] sm:$0xff]
        %v6409 = vld [vmem:[#allocation15 + $0x1180] sm:$0xff]
        %v6410 = vld [vmem:[#allocation15 + $0x1188] sm:$0xff]
        %v6411 = vld [vmem:[#allocation15 + $0x1190] sm:$0xff]
        %v6412 = vld [vmem:[#allocation15 + $0x1198] sm:$0xff]
        %v6413 = vld [vmem:[#allocation15 + $0x11a0] sm:$0xff]
        %v6414 = vld [vmem:[#allocation15 + $0x11a8] sm:$0xff]
        %v6415 = vld [vmem:[#allocation15 + $0x11b0] sm:$0xff]
        %v6416 = vld [vmem:[#allocation15 + $0x11b8] sm:$0xff]
        %v6417 = vld [vmem:[#allocation15 + $0x11c0] sm:$0xff]
        %v6418 = vld [vmem:[#allocation15 + $0x11c8] sm:$0xff]
        %v6419 = vld [vmem:[#allocation15 + $0x11d0] sm:$0xff]
        %v6420 = vld [vmem:[#allocation15 + $0x11d8] sm:$0xff]
        %v6421 = vld [vmem:[#allocation15 + $0x11e0] sm:$0xff]
        %v6422 = vld [vmem:[#allocation15 + $0x11e8] sm:$0xff]
        %v6423 = vld [vmem:[#allocation15 + $0x11f0] sm:$0xff]
        %v6424 = vld [vmem:[#allocation15 + $0x11f8] sm:$0xff]
        %v6425 = vld [vmem:[#allocation15 + $0x1200] sm:$0xff]
        %v6426 = vld [vmem:[#allocation15 + $0x1208] sm:$0xff]
        %v6427 = vld [vmem:[#allocation15 + $0x1210] sm:$0xff]
        %v6428 = vld [vmem:[#allocation15 + $0x1218] sm:$0xff]
        %v6429 = vld [vmem:[#allocation15 + $0x1220] sm:$0xff]
        %v6430 = vld [vmem:[#allocation15 + $0x1228] sm:$0xff]
        %v6431 = vld [vmem:[#allocation15 + $0x1230] sm:$0xff]
        %v6432 = vld [vmem:[#allocation15 + $0x1238] sm:$0xff]
        %v6433 = vld [vmem:[#allocation15 + $0x1240] sm:$0xff]
        %v6434 = vld [vmem:[#allocation15 + $0x1248] sm:$0xff]
        %v6435 = vld [vmem:[#allocation15 + $0x1250] sm:$0xff]
        %v6436 = vld [vmem:[#allocation15 + $0x1258] sm:$0xff]
        %v6437 = vld [vmem:[#allocation15 + $0x1260] sm:$0xff]
        %v6438 = vld [vmem:[#allocation15 + $0x1268] sm:$0xff]
        %v6439 = vld [vmem:[#allocation15 + $0x1270] sm:$0xff]
        %v6440 = vld [vmem:[#allocation15 + $0x1278] sm:$0xff]
        %v6441 = vld [vmem:[#allocation15 + $0x1280] sm:$0xff]
        %v6442 = vld [vmem:[#allocation15 + $0x1288] sm:$0xff]
        %v6443 = vld [vmem:[#allocation15 + $0x1290] sm:$0xff]
        %v6444 = vld [vmem:[#allocation15 + $0x1298] sm:$0xff]
        %v6445 = vld [vmem:[#allocation15 + $0x12a0] sm:$0xff]
        %v6446 = vld [vmem:[#allocation15 + $0x12a8] sm:$0xff]
        %v6447 = vld [vmem:[#allocation15 + $0x12b0] sm:$0xff]
        %v6448 = vld [vmem:[#allocation15 + $0x12b8] sm:$0xff]
        %v6449 = vld [vmem:[#allocation15 + $0x12c0] sm:$0xff]
        %v6450 = vld [vmem:[#allocation15 + $0x12c8] sm:$0xff]
        %v6451 = vld [vmem:[#allocation15 + $0x12d0] sm:$0xff]
        %v6452 = vld [vmem:[#allocation15 + $0x12d8] sm:$0xff]
        %v6453 = vld [vmem:[#allocation15 + $0x12e0] sm:$0xff]
        %v6454 = vld [vmem:[#allocation15 + $0x12e8] sm:$0xff]
        %v6455 = vld [vmem:[#allocation15 + $0x12f0] sm:$0xff]
        %v6456 = vld [vmem:[#allocation15 + $0x12f8] sm:$0xff]
        %v6457 = vld [vmem:[#allocation15 + $0x1300] sm:$0xff]
        %v6458 = vld [vmem:[#allocation15 + $0x1308] sm:$0xff]
        %v6459 = vld [vmem:[#allocation15 + $0x1310] sm:$0xff]
        %v6460 = vld [vmem:[#allocation15 + $0x1318] sm:$0xff]
        %v6461 = vld [vmem:[#allocation15 + $0x1320] sm:$0xff]
        %v6462 = vld [vmem:[#allocation15 + $0x1328] sm:$0xff]
        %v6463 = vld [vmem:[#allocation15 + $0x1330] sm:$0xff]
        %v6464 = vld [vmem:[#allocation15 + $0x1338] sm:$0xff]
        %v6465 = vld [vmem:[#allocation15 + $0x1340] sm:$0xff]
        %v6466 = vld [vmem:[#allocation15 + $0x1348] sm:$0xff]
        %v6467 = vld [vmem:[#allocation15 + $0x1350] sm:$0xff]
        %v6468 = vld [vmem:[#allocation15 + $0x1358] sm:$0xff]
        %v6469 = vld [vmem:[#allocation15 + $0x1360] sm:$0xff]
        %v6470 = vld [vmem:[#allocation15 + $0x1368] sm:$0xff]
        %v6471 = vld [vmem:[#allocation15 + $0x1370] sm:$0xff]
        %v6472 = vld [vmem:[#allocation15 + $0x1378] sm:$0xff]
        %v6473 = vld [vmem:[#allocation15 + $0x1380] sm:$0xff]
        %v6474 = vld [vmem:[#allocation15 + $0x1388] sm:$0xff]
        %v6475 = vld [vmem:[#allocation15 + $0x1390] sm:$0xff]
        %v6476 = vld [vmem:[#allocation15 + $0x1398] sm:$0xff]
        %v6477 = vld [vmem:[#allocation15 + $0x13a0] sm:$0xff]
        %v6478 = vld [vmem:[#allocation15 + $0x13a8] sm:$0xff]
        %v6479 = vld [vmem:[#allocation15 + $0x13b0] sm:$0xff]
        %v6480 = vld [vmem:[#allocation15 + $0x13b8] sm:$0xff]
        %v6481 = vld [vmem:[#allocation15 + $0x13c0] sm:$0xff]
        %v6482 = vld [vmem:[#allocation15 + $0x13c8] sm:$0xff]
        %v6483 = vld [vmem:[#allocation15 + $0x13d0] sm:$0xff]
        %v6484 = vld [vmem:[#allocation15 + $0x13d8] sm:$0xff]
        %v6485 = vld [vmem:[#allocation15 + $0x13e0] sm:$0xff]
        %v6486 = vld [vmem:[#allocation15 + $0x13e8] sm:$0xff]
        %v6487 = vld [vmem:[#allocation15 + $0x13f0] sm:$0xff]
        %v6488 = vld [vmem:[#allocation15 + $0x13f8] sm:$0xff]
        %v6489 = vld [vmem:[#allocation15 + $0x1400] sm:$0xff]
        %v6490 = vld [vmem:[#allocation15 + $0x1408] sm:$0xff]
        %v6491 = vld [vmem:[#allocation15 + $0x1410] sm:$0xff]
        %v6492 = vld [vmem:[#allocation15 + $0x1418] sm:$0xff]
        %v6493 = vld [vmem:[#allocation15 + $0x1420] sm:$0xff]
        %v6494 = vld [vmem:[#allocation15 + $0x1428] sm:$0xff]
        %v6495 = vld [vmem:[#allocation15 + $0x1430] sm:$0xff]
        %v6496 = vld [vmem:[#allocation15 + $0x1438] sm:$0xff]
        %v6497 = vld [vmem:[#allocation15 + $0x1440] sm:$0xff]
        %v6498 = vld [vmem:[#allocation15 + $0x1448] sm:$0xff]
        %v6499 = vld [vmem:[#allocation15 + $0x1450] sm:$0xff]
        %v6500 = vld [vmem:[#allocation15 + $0x1458] sm:$0xff]
        %v6501 = vld [vmem:[#allocation15 + $0x1460] sm:$0xff]
        %v6502 = vld [vmem:[#allocation15 + $0x1468] sm:$0xff]
        %v6503 = vld [vmem:[#allocation15 + $0x1470] sm:$0xff]
        %v6504 = vld [vmem:[#allocation15 + $0x1478] sm:$0xff]
        %v6505 = vld [vmem:[#allocation15 + $0x1480] sm:$0xff]
        %v6506 = vld [vmem:[#allocation15 + $0x1488] sm:$0xff]
        %v6507 = vld [vmem:[#allocation15 + $0x1490] sm:$0xff]
        %v6508 = vld [vmem:[#allocation15 + $0x1498] sm:$0xff]
        %v6509 = vld [vmem:[#allocation15 + $0x14a0] sm:$0xff]
        %v6510 = vld [vmem:[#allocation15 + $0x14a8] sm:$0xff]
        %v6511 = vld [vmem:[#allocation15 + $0x14b0] sm:$0xff]
        %v6512 = vld [vmem:[#allocation15 + $0x14b8] sm:$0xff]
        %v6513 = vld [vmem:[#allocation15 + $0x14c0] sm:$0xff]
        %v6514 = vld [vmem:[#allocation15 + $0x14c8] sm:$0xff]
        %v6515 = vld [vmem:[#allocation15 + $0x14d0] sm:$0xff]
        %v6516 = vld [vmem:[#allocation15 + $0x14d8] sm:$0xff]
        %v6517 = vld [vmem:[#allocation15 + $0x14e0] sm:$0xff]
        %v6518 = vld [vmem:[#allocation15 + $0x14e8] sm:$0xff]
        %v6519 = vld [vmem:[#allocation15 + $0x14f0] sm:$0xff]
        %v6520 = vld [vmem:[#allocation15 + $0x14f8] sm:$0xff]
        %v6521 = vld [vmem:[#allocation15 + $0x1500] sm:$0xff]
        %v6522 = vld [vmem:[#allocation15 + $0x1508] sm:$0xff]
        %v6523 = vld [vmem:[#allocation15 + $0x1510] sm:$0xff]
        %v6524 = vld [vmem:[#allocation15 + $0x1518] sm:$0xff]
        %v6525 = vld [vmem:[#allocation15 + $0x1520] sm:$0xff]
        %v6526 = vld [vmem:[#allocation15 + $0x1528] sm:$0xff]
        %v6527 = vld [vmem:[#allocation15 + $0x1530] sm:$0xff]
        %v6528 = vld [vmem:[#allocation15 + $0x1538] sm:$0xff]
        %v6529 = vld [vmem:[#allocation15 + $0x1540] sm:$0xff]
        %v6530 = vld [vmem:[#allocation15 + $0x1548] sm:$0xff]
        %v6531 = vld [vmem:[#allocation15 + $0x1550] sm:$0xff]
        %v6532 = vld [vmem:[#allocation15 + $0x1558] sm:$0xff]
        %v6533 = vld [vmem:[#allocation15 + $0x1560] sm:$0xff]
        %v6534 = vld [vmem:[#allocation15 + $0x1568] sm:$0xff]
        %v6535 = vld [vmem:[#allocation15 + $0x1570] sm:$0xff]
        %v6536 = vld [vmem:[#allocation15 + $0x1578] sm:$0xff]
        %v6537 = vld [vmem:[#allocation15 + $0x1580] sm:$0xff]
        %v6538 = vld [vmem:[#allocation15 + $0x1588] sm:$0xff]
        %v6539 = vld [vmem:[#allocation15 + $0x1590] sm:$0xff]
        %v6540 = vld [vmem:[#allocation15 + $0x1598] sm:$0xff]
        %v6541 = vld [vmem:[#allocation15 + $0x15a0] sm:$0xff]
        %v6542 = vld [vmem:[#allocation15 + $0x15a8] sm:$0xff]
        %v6543 = vld [vmem:[#allocation15 + $0x15b0] sm:$0xff]
        %v6544 = vld [vmem:[#allocation15 + $0x15b8] sm:$0xff]
        %v6545 = vld [vmem:[#allocation15 + $0x15c0] sm:$0xff]
        %v6546 = vld [vmem:[#allocation15 + $0x15c8] sm:$0xff]
        %v6547 = vld [vmem:[#allocation15 + $0x15d0] sm:$0xff]
        %v6548 = vld [vmem:[#allocation15 + $0x15d8] sm:$0xff]
        %v6549 = vld [vmem:[#allocation15 + $0x15e0] sm:$0xff]
        %v6550 = vld [vmem:[#allocation15 + $0x15e8] sm:$0xff]
        %v6551 = vld [vmem:[#allocation15 + $0x15f0] sm:$0xff]
        %v6552 = vld [vmem:[#allocation15 + $0x15f8] sm:$0xff]
        %v6553 = vld [vmem:[#allocation15 + $0x1600] sm:$0xff]
        %v6554 = vld [vmem:[#allocation15 + $0x1608] sm:$0xff]
        %v6555 = vld [vmem:[#allocation15 + $0x1610] sm:$0xff]
        %v6556 = vld [vmem:[#allocation15 + $0x1618] sm:$0xff]
        %v6557 = vld [vmem:[#allocation15 + $0x1620] sm:$0xff]
        %v6558 = vld [vmem:[#allocation15 + $0x1628] sm:$0xff]
        %v6559 = vld [vmem:[#allocation15 + $0x1630] sm:$0xff]
        %v6560 = vld [vmem:[#allocation15 + $0x1638] sm:$0xff]
        %v6561 = vld [vmem:[#allocation15 + $0x1640] sm:$0xff]
        %v6562 = vld [vmem:[#allocation15 + $0x1648] sm:$0xff]
        %v6563 = vld [vmem:[#allocation15 + $0x1650] sm:$0xff]
        %v6564 = vld [vmem:[#allocation15 + $0x1658] sm:$0xff]
        %v6565 = vld [vmem:[#allocation15 + $0x1660] sm:$0xff]
        %v6566 = vld [vmem:[#allocation15 + $0x1668] sm:$0xff]
        %v6567 = vld [vmem:[#allocation15 + $0x1670] sm:$0xff]
        %v6568 = vld [vmem:[#allocation15 + $0x1678] sm:$0xff]
        %v6569 = vld [vmem:[#allocation15 + $0x1680] sm:$0xff]
        %v6570 = vld [vmem:[#allocation15 + $0x1688] sm:$0xff]
        %v6571 = vld [vmem:[#allocation15 + $0x1690] sm:$0xff]
        %v6572 = vld [vmem:[#allocation15 + $0x1698] sm:$0xff]
        %v6573 = vld [vmem:[#allocation15 + $0x16a0] sm:$0xff]
        %v6574 = vld [vmem:[#allocation15 + $0x16a8] sm:$0xff]
        %v6575 = vld [vmem:[#allocation15 + $0x16b0] sm:$0xff]
        %v6576 = vld [vmem:[#allocation15 + $0x16b8] sm:$0xff]
        %v6577 = vld [vmem:[#allocation15 + $0x16c0] sm:$0xff]
        %v6578 = vld [vmem:[#allocation15 + $0x16c8] sm:$0xff]
        %v6579 = vld [vmem:[#allocation15 + $0x16d0] sm:$0xff]
        %v6580 = vld [vmem:[#allocation15 + $0x16d8] sm:$0xff]
        %v6581 = vld [vmem:[#allocation15 + $0x16e0] sm:$0xff]
        %v6582 = vld [vmem:[#allocation15 + $0x16e8] sm:$0xff]
        %v6583 = vld [vmem:[#allocation15 + $0x16f0] sm:$0xff]
        %v6584 = vld [vmem:[#allocation15 + $0x16f8] sm:$0xff]
        %v6585 = vld [vmem:[#allocation15 + $0x1700] sm:$0xff]
        %v6586 = vld [vmem:[#allocation15 + $0x1708] sm:$0xff]
        %v6587 = vld [vmem:[#allocation15 + $0x1710] sm:$0xff]
        %v6588 = vld [vmem:[#allocation15 + $0x1718] sm:$0xff]
        %v6589 = vld [vmem:[#allocation15 + $0x1720] sm:$0xff]
        %v6590 = vld [vmem:[#allocation15 + $0x1728] sm:$0xff]
        %v6591 = vld [vmem:[#allocation15 + $0x1730] sm:$0xff]
        %v6592 = vld [vmem:[#allocation15 + $0x1738] sm:$0xff]
        %v6593 = vld [vmem:[#allocation15 + $0x1740] sm:$0xff]
        %v6594 = vld [vmem:[#allocation15 + $0x1748] sm:$0xff]
        %v6595 = vld [vmem:[#allocation15 + $0x1750] sm:$0xff]
        %v6596 = vld [vmem:[#allocation15 + $0x1758] sm:$0xff]
        %v6597 = vld [vmem:[#allocation15 + $0x1760] sm:$0xff]
        %v6598 = vld [vmem:[#allocation15 + $0x1768] sm:$0xff]
        %v6599 = vld [vmem:[#allocation15 + $0x1770] sm:$0xff]
        %v6600 = vld [vmem:[#allocation15 + $0x1778] sm:$0xff]
        %v6601 = vld [vmem:[#allocation15 + $0x1780] sm:$0xff]
        %v6602 = vld [vmem:[#allocation15 + $0x1788] sm:$0xff]
        %v6603 = vld [vmem:[#allocation15 + $0x1790] sm:$0xff]
        %v6604 = vld [vmem:[#allocation15 + $0x1798] sm:$0xff]
        %v6605 = vld [vmem:[#allocation15 + $0x17a0] sm:$0xff]
        %v6606 = vld [vmem:[#allocation15 + $0x17a8] sm:$0xff]
        %v6607 = vld [vmem:[#allocation15 + $0x17b0] sm:$0xff]
        %v6608 = vld [vmem:[#allocation15 + $0x17b8] sm:$0xff]
        %v6609 = vld [vmem:[#allocation15 + $0x17c0] sm:$0xff]
        %v6610 = vld [vmem:[#allocation15 + $0x17c8] sm:$0xff]
        %v6611 = vld [vmem:[#allocation15 + $0x17d0] sm:$0xff]
        %v6612 = vld [vmem:[#allocation15 + $0x17d8] sm:$0xff]
        %v6613 = vld [vmem:[#allocation15 + $0x17e0] sm:$0xff]
        %v6614 = vld [vmem:[#allocation15 + $0x17e8] sm:$0xff]
        %v6615 = vld [vmem:[#allocation15 + $0x17f0] sm:$0xff]
        %v6616 = vld [vmem:[#allocation15 + $0x17f8] sm:$0xff]
        %v6617 = vld [vmem:[#allocation15 + $0x1800] sm:$0xff]
        %v6618 = vld [vmem:[#allocation15 + $0x1808] sm:$0xff]
        %v6619 = vld [vmem:[#allocation15 + $0x1810] sm:$0xff]
        %v6620 = vld [vmem:[#allocation15 + $0x1818] sm:$0xff]
        %v6621 = vld [vmem:[#allocation15 + $0x1820] sm:$0xff]
        %v6622 = vld [vmem:[#allocation15 + $0x1828] sm:$0xff]
        %v6623 = vld [vmem:[#allocation15 + $0x1830] sm:$0xff]
        %v6624 = vld [vmem:[#allocation15 + $0x1838] sm:$0xff]
        %v6625 = vld [vmem:[#allocation15 + $0x1840] sm:$0xff]
        %v6626 = vld [vmem:[#allocation15 + $0x1848] sm:$0xff]
        %v6627 = vld [vmem:[#allocation15 + $0x1850] sm:$0xff]
        %v6628 = vld [vmem:[#allocation15 + $0x1858] sm:$0xff]
        %v6629 = vld [vmem:[#allocation15 + $0x1860] sm:$0xff]
        %v6630 = vld [vmem:[#allocation15 + $0x1868] sm:$0xff]
        %v6631 = vld [vmem:[#allocation15 + $0x1870] sm:$0xff]
        %v6632 = vld [vmem:[#allocation15 + $0x1878] sm:$0xff]
        %v6633 = vld [vmem:[#allocation15 + $0x1880] sm:$0xff]
        %v6634 = vld [vmem:[#allocation15 + $0x1888] sm:$0xff]
        %v6635 = vld [vmem:[#allocation15 + $0x1890] sm:$0xff]
        %v6636 = vld [vmem:[#allocation15 + $0x1898] sm:$0xff]
        %v6637 = vld [vmem:[#allocation15 + $0x18a0] sm:$0xff]
        %v6638 = vld [vmem:[#allocation15 + $0x18a8] sm:$0xff]
        %v6639 = vld [vmem:[#allocation15 + $0x18b0] sm:$0xff]
        %v6640 = vld [vmem:[#allocation15 + $0x18b8] sm:$0xff]
        %v6641 = vld [vmem:[#allocation15 + $0x18c0] sm:$0xff]
        %v6642 = vld [vmem:[#allocation15 + $0x18c8] sm:$0xff]
        %v6643 = vld [vmem:[#allocation15 + $0x18d0] sm:$0xff]
        %v6644 = vld [vmem:[#allocation15 + $0x18d8] sm:$0xff]
        %v6645 = vld [vmem:[#allocation15 + $0x18e0] sm:$0xff]
        %v6646 = vld [vmem:[#allocation15 + $0x18e8] sm:$0xff]
        %v6647 = vld [vmem:[#allocation15 + $0x18f0] sm:$0xff]
        %v6648 = vld [vmem:[#allocation15 + $0x18f8] sm:$0xff]
        %v6649 = vld [vmem:[#allocation15 + $0x1900] sm:$0xff]
        %v6650 = vld [vmem:[#allocation15 + $0x1908] sm:$0xff]
        %v6651 = vld [vmem:[#allocation15 + $0x1910] sm:$0xff]
        %v6652 = vld [vmem:[#allocation15 + $0x1918] sm:$0xff]
        %v6653 = vld [vmem:[#allocation15 + $0x1920] sm:$0xff]
        %v6654 = vld [vmem:[#allocation15 + $0x1928] sm:$0xff]
        %v6655 = vld [vmem:[#allocation15 + $0x1930] sm:$0xff]
        %v6656 = vld [vmem:[#allocation15 + $0x1938] sm:$0xff]
        %v6657 = vld [vmem:[#allocation15 + $0x1940] sm:$0xff]
        %v6658 = vld [vmem:[#allocation15 + $0x1948] sm:$0xff]
        %v6659 = vld [vmem:[#allocation15 + $0x1950] sm:$0xff]
        %v6660 = vld [vmem:[#allocation15 + $0x1958] sm:$0xff]
        %v6661 = vld [vmem:[#allocation15 + $0x1960] sm:$0xff]
        %v6662 = vld [vmem:[#allocation15 + $0x1968] sm:$0xff]
        %v6663 = vld [vmem:[#allocation15 + $0x1970] sm:$0xff]
        %v6664 = vld [vmem:[#allocation15 + $0x1978] sm:$0xff]
        %v6665 = vld [vmem:[#allocation15 + $0x1980] sm:$0xff]
        %v6666 = vld [vmem:[#allocation15 + $0x1988] sm:$0xff]
        %v6667 = vld [vmem:[#allocation15 + $0x1990] sm:$0xff]
        %v6668 = vld [vmem:[#allocation15 + $0x1998] sm:$0xff]
        %v6669 = vld [vmem:[#allocation15 + $0x19a0] sm:$0xff]
        %v6670 = vld [vmem:[#allocation15 + $0x19a8] sm:$0xff]
        %v6671 = vld [vmem:[#allocation15 + $0x19b0] sm:$0xff]
        %v6672 = vld [vmem:[#allocation15 + $0x19b8] sm:$0xff]
        %v6673 = vld [vmem:[#allocation15 + $0x19c0] sm:$0xff]
        %v6674 = vld [vmem:[#allocation15 + $0x19c8] sm:$0xff]
        %v6675 = vld [vmem:[#allocation15 + $0x19d0] sm:$0xff]
        %v6676 = vld [vmem:[#allocation15 + $0x19d8] sm:$0xff]
        %v6677 = vld [vmem:[#allocation15 + $0x19e0] sm:$0xff]
        %v6678 = vld [vmem:[#allocation15 + $0x19e8] sm:$0xff]
        %v6679 = vld [vmem:[#allocation15 + $0x19f0] sm:$0xff]
        %v6680 = vld [vmem:[#allocation15 + $0x19f8] sm:$0xff]
        %v6681 = vld [vmem:[#allocation15 + $0x1a00] sm:$0xff]
        %v6682 = vld [vmem:[#allocation15 + $0x1a08] sm:$0xff]
        %v6683 = vld [vmem:[#allocation15 + $0x1a10] sm:$0xff]
        %v6684 = vld [vmem:[#allocation15 + $0x1a18] sm:$0xff]
        %v6685 = vld [vmem:[#allocation15 + $0x1a20] sm:$0xff]
        %v6686 = vld [vmem:[#allocation15 + $0x1a28] sm:$0xff]
        %v6687 = vld [vmem:[#allocation15 + $0x1a30] sm:$0xff]
        %v6688 = vld [vmem:[#allocation15 + $0x1a38] sm:$0xff]
        %v6689 = vld [vmem:[#allocation15 + $0x1a40] sm:$0xff]
        %v6690 = vld [vmem:[#allocation15 + $0x1a48] sm:$0xff]
        %v6691 = vld [vmem:[#allocation15 + $0x1a50] sm:$0xff]
        %v6692 = vld [vmem:[#allocation15 + $0x1a58] sm:$0xff]
        %v6693 = vld [vmem:[#allocation15 + $0x1a60] sm:$0xff]
        %v6694 = vld [vmem:[#allocation15 + $0x1a68] sm:$0xff]
        %v6695 = vld [vmem:[#allocation15 + $0x1a70] sm:$0xff]
        %v6696 = vld [vmem:[#allocation15 + $0x1a78] sm:$0xff]
        %v6697 = vld [vmem:[#allocation15 + $0x1a80] sm:$0xff]
        %v6698 = vld [vmem:[#allocation15 + $0x1a88] sm:$0xff]
        %v6699 = vld [vmem:[#allocation15 + $0x1a90] sm:$0xff]
        %v6700 = vld [vmem:[#allocation15 + $0x1a98] sm:$0xff]
        %v6701 = vld [vmem:[#allocation15 + $0x1aa0] sm:$0xff]
        %v6702 = vld [vmem:[#allocation15 + $0x1aa8] sm:$0xff]
        %v6703 = vld [vmem:[#allocation15 + $0x1ab0] sm:$0xff]
        %v6704 = vld [vmem:[#allocation15 + $0x1ab8] sm:$0xff]
        %v6705 = vld [vmem:[#allocation15 + $0x1ac0] sm:$0xff]
        %v6706 = vld [vmem:[#allocation15 + $0x1ac8] sm:$0xff]
        %v6707 = vld [vmem:[#allocation15 + $0x1ad0] sm:$0xff]
        %v6708 = vld [vmem:[#allocation15 + $0x1ad8] sm:$0xff]
        %v6709 = vld [vmem:[#allocation15 + $0x1ae0] sm:$0xff]
        %v6710 = vld [vmem:[#allocation15 + $0x1ae8] sm:$0xff]
        %v6711 = vld [vmem:[#allocation15 + $0x1af0] sm:$0xff]
        %v6712 = vld [vmem:[#allocation15 + $0x1af8] sm:$0xff]
        %v6713 = vld [vmem:[#allocation15 + $0x1b00] sm:$0xff]
        %v6714 = vld [vmem:[#allocation15 + $0x1b08] sm:$0xff]
        %v6715 = vld [vmem:[#allocation15 + $0x1b10] sm:$0xff]
        %v6716 = vld [vmem:[#allocation15 + $0x1b18] sm:$0xff]
        %v6717 = vld [vmem:[#allocation15 + $0x1b20] sm:$0xff]
        %v6718 = vld [vmem:[#allocation15 + $0x1b28] sm:$0xff]
        %v6719 = vld [vmem:[#allocation15 + $0x1b30] sm:$0xff]
        %v6720 = vld [vmem:[#allocation15 + $0x1b38] sm:$0xff]
        %v6721 = vld [vmem:[#allocation15 + $0x1b40] sm:$0xff]
        %v6722 = vld [vmem:[#allocation15 + $0x1b48] sm:$0xff]
        %v6723 = vld [vmem:[#allocation15 + $0x1b50] sm:$0xff]
        %v6724 = vld [vmem:[#allocation15 + $0x1b58] sm:$0xff]
        %v6725 = vld [vmem:[#allocation15 + $0x1b60] sm:$0xff]
        %v6726 = vld [vmem:[#allocation15 + $0x1b68] sm:$0xff]
        %v6727 = vld [vmem:[#allocation15 + $0x1b70] sm:$0xff]
        %v6728 = vld [vmem:[#allocation15 + $0x1b78] sm:$0xff]
        %v6729 = vld [vmem:[#allocation15 + $0x1b80] sm:$0xff]
        %v6730 = vld [vmem:[#allocation15 + $0x1b88] sm:$0xff]
        %v6731 = vld [vmem:[#allocation15 + $0x1b90] sm:$0xff]
        %v6732 = vld [vmem:[#allocation15 + $0x1b98] sm:$0xff]
        %v6733 = vld [vmem:[#allocation15 + $0x1ba0] sm:$0xff]
        %v6734 = vld [vmem:[#allocation15 + $0x1ba8] sm:$0xff]
        %v6735 = vld [vmem:[#allocation15 + $0x1bb0] sm:$0xff]
        %v6736 = vld [vmem:[#allocation15 + $0x1bb8] sm:$0xff]
        %v6737 = vld [vmem:[#allocation15 + $0x1bc0] sm:$0xff]
        %v6738 = vld [vmem:[#allocation15 + $0x1bc8] sm:$0xff]
        %v6739 = vld [vmem:[#allocation15 + $0x1bd0] sm:$0xff]
        %v6740 = vld [vmem:[#allocation15 + $0x1bd8] sm:$0xff]
        %v6741 = vld [vmem:[#allocation15 + $0x1be0] sm:$0xff]
        %v6742 = vld [vmem:[#allocation15 + $0x1be8] sm:$0xff]
        %v6743 = vld [vmem:[#allocation15 + $0x1bf0] sm:$0xff]
        %v6744 = vld [vmem:[#allocation15 + $0x1bf8] sm:$0xff]
        %v6745 = vld [vmem:[#allocation15 + $0x1c00] sm:$0xff]
        %v6746 = vld [vmem:[#allocation15 + $0x1c08] sm:$0xff]
        %v6747 = vld [vmem:[#allocation15 + $0x1c10] sm:$0xff]
        %v6748 = vld [vmem:[#allocation15 + $0x1c18] sm:$0xff]
        %v6749 = vld [vmem:[#allocation15 + $0x1c20] sm:$0xff]
        %v6750 = vld [vmem:[#allocation15 + $0x1c28] sm:$0xff]
        %v6751 = vld [vmem:[#allocation15 + $0x1c30] sm:$0xff]
        %v6752 = vld [vmem:[#allocation15 + $0x1c38] sm:$0xff]
        %v6753 = vld [vmem:[#allocation15 + $0x1c40] sm:$0xff]
        %v6754 = vld [vmem:[#allocation15 + $0x1c48] sm:$0xff]
        %v6755 = vld [vmem:[#allocation15 + $0x1c50] sm:$0xff]
        %v6756 = vld [vmem:[#allocation15 + $0x1c58] sm:$0xff]
        %v6757 = vld [vmem:[#allocation15 + $0x1c60] sm:$0xff]
        %v6758 = vld [vmem:[#allocation15 + $0x1c68] sm:$0xff]
        %v6759 = vld [vmem:[#allocation15 + $0x1c70] sm:$0xff]
        %v6760 = vld [vmem:[#allocation15 + $0x1c78] sm:$0xff]
        %v6761 = vld [vmem:[#allocation15 + $0x1c80] sm:$0xff]
        %v6762 = vld [vmem:[#allocation15 + $0x1c88] sm:$0xff]
        %v6763 = vld [vmem:[#allocation15 + $0x1c90] sm:$0xff]
        %v6764 = vld [vmem:[#allocation15 + $0x1c98] sm:$0xff]
        %v6765 = vld [vmem:[#allocation15 + $0x1ca0] sm:$0xff]
        %v6766 = vld [vmem:[#allocation15 + $0x1ca8] sm:$0xff]
        %v6767 = vld [vmem:[#allocation15 + $0x1cb0] sm:$0xff]
        %v6768 = vld [vmem:[#allocation15 + $0x1cb8] sm:$0xff]
        %v6769 = vld [vmem:[#allocation15 + $0x1cc0] sm:$0xff]
        %v6770 = vld [vmem:[#allocation15 + $0x1cc8] sm:$0xff]
        %v6771 = vld [vmem:[#allocation15 + $0x1cd0] sm:$0xff]
        %v6772 = vld [vmem:[#allocation15 + $0x1cd8] sm:$0xff]
        %v6773 = vld [vmem:[#allocation15 + $0x1ce0] sm:$0xff]
        %v6774 = vld [vmem:[#allocation15 + $0x1ce8] sm:$0xff]
        %v6775 = vld [vmem:[#allocation15 + $0x1cf0] sm:$0xff]
        %v6776 = vld [vmem:[#allocation15 + $0x1cf8] sm:$0xff]
        %v6777 = vld [vmem:[#allocation15 + $0x1d00] sm:$0xff]
        %v6778 = vld [vmem:[#allocation15 + $0x1d08] sm:$0xff]
        %v6779 = vld [vmem:[#allocation15 + $0x1d10] sm:$0xff]
        %v6780 = vld [vmem:[#allocation15 + $0x1d18] sm:$0xff]
        %v6781 = vld [vmem:[#allocation15 + $0x1d20] sm:$0xff]
        %v6782 = vld [vmem:[#allocation15 + $0x1d28] sm:$0xff]
        %v6783 = vld [vmem:[#allocation15 + $0x1d30] sm:$0xff]
        %v6784 = vld [vmem:[#allocation15 + $0x1d38] sm:$0xff]
        %v6785 = vld [vmem:[#allocation15 + $0x1d40] sm:$0xff]
        %v6786 = vld [vmem:[#allocation15 + $0x1d48] sm:$0xff]
        %v6787 = vld [vmem:[#allocation15 + $0x1d50] sm:$0xff]
        %v6788 = vld [vmem:[#allocation15 + $0x1d58] sm:$0xff]
        %v6789 = vld [vmem:[#allocation15 + $0x1d60] sm:$0xff]
        %v6790 = vld [vmem:[#allocation15 + $0x1d68] sm:$0xff]
        %v6791 = vld [vmem:[#allocation15 + $0x1d70] sm:$0xff]
        %v6792 = vld [vmem:[#allocation15 + $0x1d78] sm:$0xff]
        %v6793 = vld [vmem:[#allocation15 + $0x1d80] sm:$0xff]
        %v6794 = vld [vmem:[#allocation15 + $0x1d88] sm:$0xff]
        %v6795 = vld [vmem:[#allocation15 + $0x1d90] sm:$0xff]
        %v6796 = vld [vmem:[#allocation15 + $0x1d98] sm:$0xff]
        %v6797 = vld [vmem:[#allocation15 + $0x1da0] sm:$0xff]
        %v6798 = vld [vmem:[#allocation15 + $0x1da8] sm:$0xff]
        %v6799 = vld [vmem:[#allocation15 + $0x1db0] sm:$0xff]
        %v6800 = vld [vmem:[#allocation15 + $0x1db8] sm:$0xff]
        %v6801 = vld [vmem:[#allocation15 + $0x1dc0] sm:$0xff]
        %v6802 = vld [vmem:[#allocation15 + $0x1dc8] sm:$0xff]
        %v6803 = vld [vmem:[#allocation15 + $0x1dd0] sm:$0xff]
        %v6804 = vld [vmem:[#allocation15 + $0x1dd8] sm:$0xff]
        %v6805 = vld [vmem:[#allocation15 + $0x1de0] sm:$0xff]
        %v6806 = vld [vmem:[#allocation15 + $0x1de8] sm:$0xff]
        %v6807 = vld [vmem:[#allocation15 + $0x1df0] sm:$0xff]
        %v6808 = vld [vmem:[#allocation15 + $0x1df8] sm:$0xff]
        %v6809 = vld [vmem:[#allocation15 + $0x1e00] sm:$0xff]
        %v6810 = vld [vmem:[#allocation15 + $0x1e08] sm:$0xff]
        %v6811 = vld [vmem:[#allocation15 + $0x1e10] sm:$0xff]
        %v6812 = vld [vmem:[#allocation15 + $0x1e18] sm:$0xff]
        %v6813 = vld [vmem:[#allocation15 + $0x1e20] sm:$0xff]
        %v6814 = vld [vmem:[#allocation15 + $0x1e28] sm:$0xff]
        %v6815 = vld [vmem:[#allocation15 + $0x1e30] sm:$0xff]
        %v6816 = vld [vmem:[#allocation15 + $0x1e38] sm:$0xff]
        %v6817 = vld [vmem:[#allocation15 + $0x1e40] sm:$0xff]
        %v6818 = vld [vmem:[#allocation15 + $0x1e48] sm:$0xff]
        %v6819 = vld [vmem:[#allocation15 + $0x1e50] sm:$0xff]
        %v6820 = vld [vmem:[#allocation15 + $0x1e58] sm:$0xff]
        %v6821 = vld [vmem:[#allocation15 + $0x1e60] sm:$0xff]
        %v6822 = vld [vmem:[#allocation15 + $0x1e68] sm:$0xff]
        %v6823 = vld [vmem:[#allocation15 + $0x1e70] sm:$0xff]
        %v6824 = vld [vmem:[#allocation15 + $0x1e78] sm:$0xff]
        %v6825 = vld [vmem:[#allocation15 + $0x1e80] sm:$0xff]
        %v6826 = vld [vmem:[#allocation15 + $0x1e88] sm:$0xff]
        %v6827 = vld [vmem:[#allocation15 + $0x1e90] sm:$0xff]
        %v6828 = vld [vmem:[#allocation15 + $0x1e98] sm:$0xff]
        %v6829 = vld [vmem:[#allocation15 + $0x1ea0] sm:$0xff]
        %v6830 = vld [vmem:[#allocation15 + $0x1ea8] sm:$0xff]
        %v6831 = vld [vmem:[#allocation15 + $0x1eb0] sm:$0xff]
        %v6832 = vld [vmem:[#allocation15 + $0x1eb8] sm:$0xff]
        %v6833 = vld [vmem:[#allocation15 + $0x1ec0] sm:$0xff]
        %v6834 = vld [vmem:[#allocation15 + $0x1ec8] sm:$0xff]
        %v6835 = vld [vmem:[#allocation15 + $0x1ed0] sm:$0xff]
        %v6836 = vld [vmem:[#allocation15 + $0x1ed8] sm:$0xff]
        %v6837 = vld [vmem:[#allocation15 + $0x1ee0] sm:$0xff]
        %v6838 = vld [vmem:[#allocation15 + $0x1ee8] sm:$0xff]
        %v6839 = vld [vmem:[#allocation15 + $0x1ef0] sm:$0xff]
        %v6840 = vld [vmem:[#allocation15 + $0x1ef8] sm:$0xff]
        %v6841 = vld [vmem:[#allocation15 + $0x1f00] sm:$0xff]
        %v6842 = vld [vmem:[#allocation15 + $0x1f08] sm:$0xff]
        %v6843 = vld [vmem:[#allocation15 + $0x1f10] sm:$0xff]
        %v6844 = vld [vmem:[#allocation15 + $0x1f18] sm:$0xff]
        %v6845 = vld [vmem:[#allocation15 + $0x1f20] sm:$0xff]
        %v6846 = vld [vmem:[#allocation15 + $0x1f28] sm:$0xff]
        %v6847 = vld [vmem:[#allocation15 + $0x1f30] sm:$0xff]
        %v6848 = vld [vmem:[#allocation15 + $0x1f38] sm:$0xff]
        %v6849 = vld [vmem:[#allocation15 + $0x1f40] sm:$0xff]
        %v6850 = vld [vmem:[#allocation15 + $0x1f48] sm:$0xff]
        %v6851 = vld [vmem:[#allocation15 + $0x1f50] sm:$0xff]
        %v6852 = vld [vmem:[#allocation15 + $0x1f58] sm:$0xff]
        %v6853 = vld [vmem:[#allocation15 + $0x1f60] sm:$0xff]
        %v6854 = vld [vmem:[#allocation15 + $0x1f68] sm:$0xff]
        %v6855 = vld [vmem:[#allocation15 + $0x1f70] sm:$0xff]
        %v6856 = vld [vmem:[#allocation15 + $0x1f78] sm:$0xff]
        %v6857 = vld [vmem:[#allocation15 + $0x1f80] sm:$0xff]
        %v6858 = vld [vmem:[#allocation15 + $0x1f88] sm:$0xff]
        %v6859 = vld [vmem:[#allocation15 + $0x1f90] sm:$0xff]
        %v6860 = vld [vmem:[#allocation15 + $0x1f98] sm:$0xff]
        %v6861 = vld [vmem:[#allocation15 + $0x1fa0] sm:$0xff]
        %v6862 = vld [vmem:[#allocation15 + $0x1fa8] sm:$0xff]
        %v6863 = vld [vmem:[#allocation15 + $0x1fb0] sm:$0xff]
        %v6864 = vld [vmem:[#allocation15 + $0x1fb8] sm:$0xff]
        %v6865 = vld [vmem:[#allocation15 + $0x1fc0] sm:$0xff]
        %v6866 = vld [vmem:[#allocation15 + $0x1fc8] sm:$0xff]
        %v6867 = vld [vmem:[#allocation15 + $0x1fd0] sm:$0xff]
        %v6868 = vld [vmem:[#allocation15 + $0x1fd8] sm:$0xff]
        %v6869 = vld [vmem:[#allocation15 + $0x1fe0] sm:$0xff]
        %v6870 = vld [vmem:[#allocation15 + $0x1fe8] sm:$0xff]
        %v6871 = vld [vmem:[#allocation15 + $0x1ff0] sm:$0xff]
        %v6872 = vld [vmem:[#allocation15 + $0x1ff8] sm:$0xff]
        %6873 = vmatpush.msra.mxu0 %v5909
        %6874 = vmatpush.msra.mxu0 %v5905
        %6875 = vmatpush.msra.mxu0 %v5901
        %6876 = vmatpush.msra.mxu0 %v5897
        %6877 = vmatpush.msra.mxu0 %v5893
        %6878 = vmatpush.msra.mxu0 %v5889
        %6879 = vmatpush.msra.mxu0 %v5885
        %6880 = vmatpush.msra.mxu0 %v5881
        %6881 = vmatpush.msra.mxu0 %v5877
        %6882 = vmatpush.msra.mxu0 %v5873
        %6883 = vmatpush.msra.mxu0 %v5869
        %6884 = vmatpush.msra.mxu0 %v5865
        %6885 = vmatpush.msra.mxu0 %v5861
        %6886 = vmatpush.msra.mxu0 %v5857
        %6887 = vmatpush.msra.mxu0 %v5853
        %6888 = vmatpush.msra.mxu0 %v5849
        %6889 = vmatmul.f32.gmra.mxu0 %v5833
        %v6890 = vpop.f32.mrf.mxu0
        %v6891 = vadd.f32 %v3525, %v6890
        %6892 = vdwg.mxu0
        %6893 = vmatpush.msra.mxu0 %v5973
        %6894 = vmatpush.msra.mxu0 %v5969
        %6895 = vmatpush.msra.mxu0 %v5965
        %6896 = vmatpush.msra.mxu0 %v5961
        %6897 = vmatpush.msra.mxu0 %v5957
        %6898 = vmatpush.msra.mxu0 %v5953
        %6899 = vmatpush.msra.mxu0 %v5949
        %6900 = vmatpush.msra.mxu0 %v5945
        %6901 = vmatpush.msra.mxu0 %v5941
        %6902 = vmatpush.msra.mxu0 %v5937
        %6903 = vmatpush.msra.mxu0 %v5933
        %6904 = vmatpush.msra.mxu0 %v5929
        %6905 = vmatpush.msra.mxu0 %v5925
        %6906 = vmatpush.msra.mxu0 %v5921
        %6907 = vmatpush.msra.mxu0 %v5917
        %6908 = vmatpush.msra.mxu0 %v5913
        %6909 = vmatmul.f32.gmra.mxu0 %v5834
        %v6910 = vpop.f32.mrf.mxu0
        %v6911 = vadd.f32 %v6891, %v6910
        %6912 = vdwg.mxu0
        %6913 = vmatpush.msra.mxu0 %v6037
        %6914 = vmatpush.msra.mxu0 %v6033
        %6915 = vmatpush.msra.mxu0 %v6029
        %6916 = vmatpush.msra.mxu0 %v6025
        %6917 = vmatpush.msra.mxu0 %v6021
        %6918 = vmatpush.msra.mxu0 %v6017
        %6919 = vmatpush.msra.mxu0 %v6013
        %6920 = vmatpush.msra.mxu0 %v6009
        %6921 = vmatpush.msra.mxu0 %v6005
        %6922 = vmatpush.msra.mxu0 %v6001
        %6923 = vmatpush.msra.mxu0 %v5997
        %6924 = vmatpush.msra.mxu0 %v5993
        %6925 = vmatpush.msra.mxu0 %v5989
        %6926 = vmatpush.msra.mxu0 %v5985
        %6927 = vmatpush.msra.mxu0 %v5981
        %6928 = vmatpush.msra.mxu0 %v5977
        %6929 = vmatmul.f32.gmra.mxu0 %v5835
        %v6930 = vpop.f32.mrf.mxu0
        %v6931 = vadd.f32 %v6911, %v6930
        %6932 = vdwg.mxu0
        %6933 = vmatpush.msra.mxu0 %v6101
        %6934 = vmatpush.msra.mxu0 %v6097
        %6935 = vmatpush.msra.mxu0 %v6093
        %6936 = vmatpush.msra.mxu0 %v6089
        %6937 = vmatpush.msra.mxu0 %v6085
        %6938 = vmatpush.msra.mxu0 %v6081
        %6939 = vmatpush.msra.mxu0 %v6077
        %6940 = vmatpush.msra.mxu0 %v6073
        %6941 = vmatpush.msra.mxu0 %v6069
        %6942 = vmatpush.msra.mxu0 %v6065
        %6943 = vmatpush.msra.mxu0 %v6061
        %6944 = vmatpush.msra.mxu0 %v6057
        %6945 = vmatpush.msra.mxu0 %v6053
        %6946 = vmatpush.msra.mxu0 %v6049
        %6947 = vmatpush.msra.mxu0 %v6045
        %6948 = vmatpush.msra.mxu0 %v6041
        %6949 = vmatmul.f32.gmra.mxu0 %v5836
        %v6950 = vpop.f32.mrf.mxu0
        %v6951 = vadd.f32 %v6931, %v6950
        %6952 = vdwg.mxu0
        %6953 = vmatpush.msra.mxu0 %v6165
        %6954 = vmatpush.msra.mxu0 %v6161
        %6955 = vmatpush.msra.mxu0 %v6157
        %6956 = vmatpush.msra.mxu0 %v6153
        %6957 = vmatpush.msra.mxu0 %v6149
        %6958 = vmatpush.msra.mxu0 %v6145
        %6959 = vmatpush.msra.mxu0 %v6141
        %6960 = vmatpush.msra.mxu0 %v6137
        %6961 = vmatpush.msra.mxu0 %v6133
        %6962 = vmatpush.msra.mxu0 %v6129
        %6963 = vmatpush.msra.mxu0 %v6125
        %6964 = vmatpush.msra.mxu0 %v6121
        %6965 = vmatpush.msra.mxu0 %v6117
        %6966 = vmatpush.msra.mxu0 %v6113
        %6967 = vmatpush.msra.mxu0 %v6109
        %6968 = vmatpush.msra.mxu0 %v6105
        %6969 = vmatmul.f32.gmra.mxu0 %v5837
        %v6970 = vpop.f32.mrf.mxu0
        %v6971 = vadd.f32 %v6951, %v6970
        %6972 = vdwg.mxu0
        %6973 = vmatpush.msra.mxu0 %v6229
        %6974 = vmatpush.msra.mxu0 %v6225
        %6975 = vmatpush.msra.mxu0 %v6221
        %6976 = vmatpush.msra.mxu0 %v6217
        %6977 = vmatpush.msra.mxu0 %v6213
        %6978 = vmatpush.msra.mxu0 %v6209
        %6979 = vmatpush.msra.mxu0 %v6205
        %6980 = vmatpush.msra.mxu0 %v6201
        %6981 = vmatpush.msra.mxu0 %v6197
        %6982 = vmatpush.msra.mxu0 %v6193
        %6983 = vmatpush.msra.mxu0 %v6189
        %6984 = vmatpush.msra.mxu0 %v6185
        %6985 = vmatpush.msra.mxu0 %v6181
        %6986 = vmatpush.msra.mxu0 %v6177
        %6987 = vmatpush.msra.mxu0 %v6173
        %6988 = vmatpush.msra.mxu0 %v6169
        %6989 = vmatmul.f32.gmra.mxu0 %v5838
        %v6990 = vpop.f32.mrf.mxu0
        %v6991 = vadd.f32 %v6971, %v6990
        %6992 = vdwg.mxu0
        %6993 = vmatpush.msra.mxu0 %v6293
        %6994 = vmatpush.msra.mxu0 %v6289
        %6995 = vmatpush.msra.mxu0 %v6285
        %6996 = vmatpush.msra.mxu0 %v6281
        %6997 = vmatpush.msra.mxu0 %v6277
        %6998 = vmatpush.msra.mxu0 %v6273
        %6999 = vmatpush.msra.mxu0 %v6269
        %7000 = vmatpush.msra.mxu0 %v6265
        %7001 = vmatpush.msra.mxu0 %v6261
        %7002 = vmatpush.msra.mxu0 %v6257
        %7003 = vmatpush.msra.mxu0 %v6253
        %7004 = vmatpush.msra.mxu0 %v6249
        %7005 = vmatpush.msra.mxu0 %v6245
        %7006 = vmatpush.msra.mxu0 %v6241
        %7007 = vmatpush.msra.mxu0 %v6237
        %7008 = vmatpush.msra.mxu0 %v6233
        %7009 = vmatmul.f32.gmra.mxu0 %v5839
        %v7010 = vpop.f32.mrf.mxu0
        %v7011 = vadd.f32 %v6991, %v7010
        %7012 = vdwg.mxu0
        %7013 = vmatpush.msra.mxu0 %v6357
        %7014 = vmatpush.msra.mxu0 %v6353
        %7015 = vmatpush.msra.mxu0 %v6349
        %7016 = vmatpush.msra.mxu0 %v6345
        %7017 = vmatpush.msra.mxu0 %v6341
        %7018 = vmatpush.msra.mxu0 %v6337
        %7019 = vmatpush.msra.mxu0 %v6333
        %7020 = vmatpush.msra.mxu0 %v6329
        %7021 = vmatpush.msra.mxu0 %v6325
        %7022 = vmatpush.msra.mxu0 %v6321
        %7023 = vmatpush.msra.mxu0 %v6317
        %7024 = vmatpush.msra.mxu0 %v6313
        %7025 = vmatpush.msra.mxu0 %v6309
        %7026 = vmatpush.msra.mxu0 %v6305
        %7027 = vmatpush.msra.mxu0 %v6301
        %7028 = vmatpush.msra.mxu0 %v6297
        %7029 = vmatmul.f32.gmra.mxu0 %v5840
        %v7030 = vpop.f32.mrf.mxu0
        %v7031 = vadd.f32 %v7011, %v7030
        %7032 = vdwg.mxu0
        %7033 = vmatpush.msra.mxu0 %v6421
        %7034 = vmatpush.msra.mxu0 %v6417
        %7035 = vmatpush.msra.mxu0 %v6413
        %7036 = vmatpush.msra.mxu0 %v6409
        %7037 = vmatpush.msra.mxu0 %v6405
        %7038 = vmatpush.msra.mxu0 %v6401
        %7039 = vmatpush.msra.mxu0 %v6397
        %7040 = vmatpush.msra.mxu0 %v6393
        %7041 = vmatpush.msra.mxu0 %v6389
        %7042 = vmatpush.msra.mxu0 %v6385
        %7043 = vmatpush.msra.mxu0 %v6381
        %7044 = vmatpush.msra.mxu0 %v6377
        %7045 = vmatpush.msra.mxu0 %v6373
        %7046 = vmatpush.msra.mxu0 %v6369
        %7047 = vmatpush.msra.mxu0 %v6365
        %7048 = vmatpush.msra.mxu0 %v6361
        %7049 = vmatmul.f32.gmra.mxu0 %v5841
        %v7050 = vpop.f32.mrf.mxu0
        %v7051 = vadd.f32 %v7031, %v7050
        %7052 = vdwg.mxu0
        %7053 = vmatpush.msra.mxu0 %v6485
        %7054 = vmatpush.msra.mxu0 %v6481
        %7055 = vmatpush.msra.mxu0 %v6477
        %7056 = vmatpush.msra.mxu0 %v6473
        %7057 = vmatpush.msra.mxu0 %v6469
        %7058 = vmatpush.msra.mxu0 %v6465
        %7059 = vmatpush.msra.mxu0 %v6461
        %7060 = vmatpush.msra.mxu0 %v6457
        %7061 = vmatpush.msra.mxu0 %v6453
        %7062 = vmatpush.msra.mxu0 %v6449
        %7063 = vmatpush.msra.mxu0 %v6445
        %7064 = vmatpush.msra.mxu0 %v6441
        %7065 = vmatpush.msra.mxu0 %v6437
        %7066 = vmatpush.msra.mxu0 %v6433
        %7067 = vmatpush.msra.mxu0 %v6429
        %7068 = vmatpush.msra.mxu0 %v6425
        %7069 = vmatmul.f32.gmra.mxu0 %v5842
        %v7070 = vpop.f32.mrf.mxu0
        %v7071 = vadd.f32 %v7051, %v7070
        %7072 = vdwg.mxu0
        %7073 = vmatpush.msra.mxu0 %v6549
        %7074 = vmatpush.msra.mxu0 %v6545
        %7075 = vmatpush.msra.mxu0 %v6541
        %7076 = vmatpush.msra.mxu0 %v6537
        %7077 = vmatpush.msra.mxu0 %v6533
        %7078 = vmatpush.msra.mxu0 %v6529
        %7079 = vmatpush.msra.mxu0 %v6525
        %7080 = vmatpush.msra.mxu0 %v6521
        %7081 = vmatpush.msra.mxu0 %v6517
        %7082 = vmatpush.msra.mxu0 %v6513
        %7083 = vmatpush.msra.mxu0 %v6509
        %7084 = vmatpush.msra.mxu0 %v6505
        %7085 = vmatpush.msra.mxu0 %v6501
        %7086 = vmatpush.msra.mxu0 %v6497
        %7087 = vmatpush.msra.mxu0 %v6493
        %7088 = vmatpush.msra.mxu0 %v6489
        %7089 = vmatmul.f32.gmra.mxu0 %v5843
        %v7090 = vpop.f32.mrf.mxu0
        %v7091 = vadd.f32 %v7071, %v7090
        %7092 = vdwg.mxu0
        %7093 = vmatpush.msra.mxu0 %v6613
        %7094 = vmatpush.msra.mxu0 %v6609
        %7095 = vmatpush.msra.mxu0 %v6605
        %7096 = vmatpush.msra.mxu0 %v6601
        %7097 = vmatpush.msra.mxu0 %v6597
        %7098 = vmatpush.msra.mxu0 %v6593
        %7099 = vmatpush.msra.mxu0 %v6589
        %7100 = vmatpush.msra.mxu0 %v6585
        %7101 = vmatpush.msra.mxu0 %v6581
        %7102 = vmatpush.msra.mxu0 %v6577
        %7103 = vmatpush.msra.mxu0 %v6573
        %7104 = vmatpush.msra.mxu0 %v6569
        %7105 = vmatpush.msra.mxu0 %v6565
        %7106 = vmatpush.msra.mxu0 %v6561
        %7107 = vmatpush.msra.mxu0 %v6557
        %7108 = vmatpush.msra.mxu0 %v6553
        %7109 = vmatmul.f32.gmra.mxu0 %v5844
        %v7110 = vpop.f32.mrf.mxu0
        %v7111 = vadd.f32 %v7091, %v7110
        %7112 = vdwg.mxu0
        %7113 = vmatpush.msra.mxu0 %v6677
        %7114 = vmatpush.msra.mxu0 %v6673
        %7115 = vmatpush.msra.mxu0 %v6669
        %7116 = vmatpush.msra.mxu0 %v6665
        %7117 = vmatpush.msra.mxu0 %v6661
        %7118 = vmatpush.msra.mxu0 %v6657
        %7119 = vmatpush.msra.mxu0 %v6653
        %7120 = vmatpush.msra.mxu0 %v6649
        %7121 = vmatpush.msra.mxu0 %v6645
        %7122 = vmatpush.msra.mxu0 %v6641
        %7123 = vmatpush.msra.mxu0 %v6637
        %7124 = vmatpush.msra.mxu0 %v6633
        %7125 = vmatpush.msra.mxu0 %v6629
        %7126 = vmatpush.msra.mxu0 %v6625
        %7127 = vmatpush.msra.mxu0 %v6621
        %7128 = vmatpush.msra.mxu0 %v6617
        %7129 = vmatmul.f32.gmra.mxu0 %v5845
        %v7130 = vpop.f32.mrf.mxu0
        %v7131 = vadd.f32 %v7111, %v7130
        %7132 = vdwg.mxu0
        %7133 = vmatpush.msra.mxu0 %v6741
        %7134 = vmatpush.msra.mxu0 %v6737
        %7135 = vmatpush.msra.mxu0 %v6733
        %7136 = vmatpush.msra.mxu0 %v6729
        %7137 = vmatpush.msra.mxu0 %v6725
        %7138 = vmatpush.msra.mxu0 %v6721
        %7139 = vmatpush.msra.mxu0 %v6717
        %7140 = vmatpush.msra.mxu0 %v6713
        %7141 = vmatpush.msra.mxu0 %v6709
        %7142 = vmatpush.msra.mxu0 %v6705
        %7143 = vmatpush.msra.mxu0 %v6701
        %7144 = vmatpush.msra.mxu0 %v6697
        %7145 = vmatpush.msra.mxu0 %v6693
        %7146 = vmatpush.msra.mxu0 %v6689
        %7147 = vmatpush.msra.mxu0 %v6685
        %7148 = vmatpush.msra.mxu0 %v6681
        %7149 = vmatmul.f32.gmra.mxu0 %v5846
        %v7150 = vpop.f32.mrf.mxu0
        %v7151 = vadd.f32 %v7131, %v7150
        %7152 = vdwg.mxu0
        %7153 = vmatpush.msra.mxu0 %v6805
        %7154 = vmatpush.msra.mxu0 %v6801
        %7155 = vmatpush.msra.mxu0 %v6797
        %7156 = vmatpush.msra.mxu0 %v6793
        %7157 = vmatpush.msra.mxu0 %v6789
        %7158 = vmatpush.msra.mxu0 %v6785
        %7159 = vmatpush.msra.mxu0 %v6781
        %7160 = vmatpush.msra.mxu0 %v6777
        %7161 = vmatpush.msra.mxu0 %v6773
        %7162 = vmatpush.msra.mxu0 %v6769
        %7163 = vmatpush.msra.mxu0 %v6765
        %7164 = vmatpush.msra.mxu0 %v6761
        %7165 = vmatpush.msra.mxu0 %v6757
        %7166 = vmatpush.msra.mxu0 %v6753
        %7167 = vmatpush.msra.mxu0 %v6749
        %7168 = vmatpush.msra.mxu0 %v6745
        %7169 = vmatmul.f32.gmra.mxu0 %v5847
        %v7170 = vpop.f32.mrf.mxu0
        %v7171 = vadd.f32 %v7151, %v7170
        %7172 = vdwg.mxu0
        %7173 = vmatpush.msra.mxu0 %v6869
        %7174 = vmatpush.msra.mxu0 %v6865
        %7175 = vmatpush.msra.mxu0 %v6861
        %7176 = vmatpush.msra.mxu0 %v6857
        %7177 = vmatpush.msra.mxu0 %v6853
        %7178 = vmatpush.msra.mxu0 %v6849
        %7179 = vmatpush.msra.mxu0 %v6845
        %7180 = vmatpush.msra.mxu0 %v6841
        %7181 = vmatpush.msra.mxu0 %v6837
        %7182 = vmatpush.msra.mxu0 %v6833
        %7183 = vmatpush.msra.mxu0 %v6829
        %7184 = vmatpush.msra.mxu0 %v6825
        %7185 = vmatpush.msra.mxu0 %v6821
        %7186 = vmatpush.msra.mxu0 %v6817
        %7187 = vmatpush.msra.mxu0 %v6813
        %7188 = vmatpush.msra.mxu0 %v6809
        %7189 = vmatmul.f32.gmra.mxu0 %v5848
        %v7190 = vpop.f32.mrf.mxu0
        %v7191 = vadd.f32 %v7171, %v7190
        %7192 = vdwg.mxu0
        %7193 = vmatpush.msra.mxu0 %v5910
        %7194 = vmatpush.msra.mxu0 %v5906
        %7195 = vmatpush.msra.mxu0 %v5902
        %7196 = vmatpush.msra.mxu0 %v5898
        %7197 = vmatpush.msra.mxu0 %v5894
        %7198 = vmatpush.msra.mxu0 %v5890
        %7199 = vmatpush.msra.mxu0 %v5886
        %7200 = vmatpush.msra.mxu0 %v5882
        %7201 = vmatpush.msra.mxu0 %v5878
        %7202 = vmatpush.msra.mxu0 %v5874
        %7203 = vmatpush.msra.mxu0 %v5870
        %7204 = vmatpush.msra.mxu0 %v5866
        %7205 = vmatpush.msra.mxu0 %v5862
        %7206 = vmatpush.msra.mxu0 %v5858
        %7207 = vmatpush.msra.mxu0 %v5854
        %7208 = vmatpush.msra.mxu0 %v5850
        %7209 = vmatmul.f32.gmra.mxu0 %v5833
        %v7210 = vpop.f32.mrf.mxu0
        %v7211 = vadd.f32 %v3526, %v7210
        %7212 = vdwg.mxu0
        %7213 = vmatpush.msra.mxu0 %v5974
        %7214 = vmatpush.msra.mxu0 %v5970
        %7215 = vmatpush.msra.mxu0 %v5966
        %7216 = vmatpush.msra.mxu0 %v5962
        %7217 = vmatpush.msra.mxu0 %v5958
        %7218 = vmatpush.msra.mxu0 %v5954
        %7219 = vmatpush.msra.mxu0 %v5950
        %7220 = vmatpush.msra.mxu0 %v5946
        %7221 = vmatpush.msra.mxu0 %v5942
        %7222 = vmatpush.msra.mxu0 %v5938
        %7223 = vmatpush.msra.mxu0 %v5934
        %7224 = vmatpush.msra.mxu0 %v5930
        %7225 = vmatpush.msra.mxu0 %v5926
        %7226 = vmatpush.msra.mxu0 %v5922
        %7227 = vmatpush.msra.mxu0 %v5918
        %7228 = vmatpush.msra.mxu0 %v5914
        %7229 = vmatmul.f32.gmra.mxu0 %v5834
        %v7230 = vpop.f32.mrf.mxu0
        %v7231 = vadd.f32 %v7211, %v7230
        %7232 = vdwg.mxu0
        %7233 = vmatpush.msra.mxu0 %v6038
        %7234 = vmatpush.msra.mxu0 %v6034
        %7235 = vmatpush.msra.mxu0 %v6030
        %7236 = vmatpush.msra.mxu0 %v6026
        %7237 = vmatpush.msra.mxu0 %v6022
        %7238 = vmatpush.msra.mxu0 %v6018
        %7239 = vmatpush.msra.mxu0 %v6014
        %7240 = vmatpush.msra.mxu0 %v6010
        %7241 = vmatpush.msra.mxu0 %v6006
        %7242 = vmatpush.msra.mxu0 %v6002
        %7243 = vmatpush.msra.mxu0 %v5998
        %7244 = vmatpush.msra.mxu0 %v5994
        %7245 = vmatpush.msra.mxu0 %v5990
        %7246 = vmatpush.msra.mxu0 %v5986
        %7247 = vmatpush.msra.mxu0 %v5982
        %7248 = vmatpush.msra.mxu0 %v5978
        %7249 = vmatmul.f32.gmra.mxu0 %v5835
        %v7250 = vpop.f32.mrf.mxu0
        %v7251 = vadd.f32 %v7231, %v7250
        %7252 = vdwg.mxu0
        %7253 = vmatpush.msra.mxu0 %v6102
        %7254 = vmatpush.msra.mxu0 %v6098
        %7255 = vmatpush.msra.mxu0 %v6094
        %7256 = vmatpush.msra.mxu0 %v6090
        %7257 = vmatpush.msra.mxu0 %v6086
        %7258 = vmatpush.msra.mxu0 %v6082
        %7259 = vmatpush.msra.mxu0 %v6078
        %7260 = vmatpush.msra.mxu0 %v6074
        %7261 = vmatpush.msra.mxu0 %v6070
        %7262 = vmatpush.msra.mxu0 %v6066
        %7263 = vmatpush.msra.mxu0 %v6062
        %7264 = vmatpush.msra.mxu0 %v6058
        %7265 = vmatpush.msra.mxu0 %v6054
        %7266 = vmatpush.msra.mxu0 %v6050
        %7267 = vmatpush.msra.mxu0 %v6046
        %7268 = vmatpush.msra.mxu0 %v6042
        %7269 = vmatmul.f32.gmra.mxu0 %v5836
        %v7270 = vpop.f32.mrf.mxu0
        %v7271 = vadd.f32 %v7251, %v7270
        %7272 = vdwg.mxu0
        %7273 = vmatpush.msra.mxu0 %v6166
        %7274 = vmatpush.msra.mxu0 %v6162
        %7275 = vmatpush.msra.mxu0 %v6158
        %7276 = vmatpush.msra.mxu0 %v6154
        %7277 = vmatpush.msra.mxu0 %v6150
        %7278 = vmatpush.msra.mxu0 %v6146
        %7279 = vmatpush.msra.mxu0 %v6142
        %7280 = vmatpush.msra.mxu0 %v6138
        %7281 = vmatpush.msra.mxu0 %v6134
        %7282 = vmatpush.msra.mxu0 %v6130
        %7283 = vmatpush.msra.mxu0 %v6126
        %7284 = vmatpush.msra.mxu0 %v6122
        %7285 = vmatpush.msra.mxu0 %v6118
        %7286 = vmatpush.msra.mxu0 %v6114
        %7287 = vmatpush.msra.mxu0 %v6110
        %7288 = vmatpush.msra.mxu0 %v6106
        %7289 = vmatmul.f32.gmra.mxu0 %v5837
        %v7290 = vpop.f32.mrf.mxu0
        %v7291 = vadd.f32 %v7271, %v7290
        %7292 = vdwg.mxu0
        %7293 = vmatpush.msra.mxu0 %v6230
        %7294 = vmatpush.msra.mxu0 %v6226
        %7295 = vmatpush.msra.mxu0 %v6222
        %7296 = vmatpush.msra.mxu0 %v6218
        %7297 = vmatpush.msra.mxu0 %v6214
        %7298 = vmatpush.msra.mxu0 %v6210
        %7299 = vmatpush.msra.mxu0 %v6206
        %7300 = vmatpush.msra.mxu0 %v6202
        %7301 = vmatpush.msra.mxu0 %v6198
        %7302 = vmatpush.msra.mxu0 %v6194
        %7303 = vmatpush.msra.mxu0 %v6190
        %7304 = vmatpush.msra.mxu0 %v6186
        %7305 = vmatpush.msra.mxu0 %v6182
        %7306 = vmatpush.msra.mxu0 %v6178
        %7307 = vmatpush.msra.mxu0 %v6174
        %7308 = vmatpush.msra.mxu0 %v6170
        %7309 = vmatmul.f32.gmra.mxu0 %v5838
        %v7310 = vpop.f32.mrf.mxu0
        %v7311 = vadd.f32 %v7291, %v7310
        %7312 = vdwg.mxu0
        %7313 = vmatpush.msra.mxu0 %v6294
        %7314 = vmatpush.msra.mxu0 %v6290
        %7315 = vmatpush.msra.mxu0 %v6286
        %7316 = vmatpush.msra.mxu0 %v6282
        %7317 = vmatpush.msra.mxu0 %v6278
        %7318 = vmatpush.msra.mxu0 %v6274
        %7319 = vmatpush.msra.mxu0 %v6270
        %7320 = vmatpush.msra.mxu0 %v6266
        %7321 = vmatpush.msra.mxu0 %v6262
        %7322 = vmatpush.msra.mxu0 %v6258
        %7323 = vmatpush.msra.mxu0 %v6254
        %7324 = vmatpush.msra.mxu0 %v6250
        %7325 = vmatpush.msra.mxu0 %v6246
        %7326 = vmatpush.msra.mxu0 %v6242
        %7327 = vmatpush.msra.mxu0 %v6238
        %7328 = vmatpush.msra.mxu0 %v6234
        %7329 = vmatmul.f32.gmra.mxu0 %v5839
        %v7330 = vpop.f32.mrf.mxu0
        %v7331 = vadd.f32 %v7311, %v7330
        %7332 = vdwg.mxu0
        %7333 = vmatpush.msra.mxu0 %v6358
        %7334 = vmatpush.msra.mxu0 %v6354
        %7335 = vmatpush.msra.mxu0 %v6350
        %7336 = vmatpush.msra.mxu0 %v6346
        %7337 = vmatpush.msra.mxu0 %v6342
        %7338 = vmatpush.msra.mxu0 %v6338
        %7339 = vmatpush.msra.mxu0 %v6334
        %7340 = vmatpush.msra.mxu0 %v6330
        %7341 = vmatpush.msra.mxu0 %v6326
        %7342 = vmatpush.msra.mxu0 %v6322
        %7343 = vmatpush.msra.mxu0 %v6318
        %7344 = vmatpush.msra.mxu0 %v6314
        %7345 = vmatpush.msra.mxu0 %v6310
        %7346 = vmatpush.msra.mxu0 %v6306
        %7347 = vmatpush.msra.mxu0 %v6302
        %7348 = vmatpush.msra.mxu0 %v6298
        %7349 = vmatmul.f32.gmra.mxu0 %v5840
        %v7350 = vpop.f32.mrf.mxu0
        %v7351 = vadd.f32 %v7331, %v7350
        %7352 = vdwg.mxu0
        %7353 = vmatpush.msra.mxu0 %v6422
        %7354 = vmatpush.msra.mxu0 %v6418
        %7355 = vmatpush.msra.mxu0 %v6414
        %7356 = vmatpush.msra.mxu0 %v6410
        %7357 = vmatpush.msra.mxu0 %v6406
        %7358 = vmatpush.msra.mxu0 %v6402
        %7359 = vmatpush.msra.mxu0 %v6398
        %7360 = vmatpush.msra.mxu0 %v6394
        %7361 = vmatpush.msra.mxu0 %v6390
        %7362 = vmatpush.msra.mxu0 %v6386
        %7363 = vmatpush.msra.mxu0 %v6382
        %7364 = vmatpush.msra.mxu0 %v6378
        %7365 = vmatpush.msra.mxu0 %v6374
        %7366 = vmatpush.msra.mxu0 %v6370
        %7367 = vmatpush.msra.mxu0 %v6366
        %7368 = vmatpush.msra.mxu0 %v6362
        %7369 = vmatmul.f32.gmra.mxu0 %v5841
        %v7370 = vpop.f32.mrf.mxu0
        %v7371 = vadd.f32 %v7351, %v7370
        %7372 = vdwg.mxu0
        %7373 = vmatpush.msra.mxu0 %v6486
        %7374 = vmatpush.msra.mxu0 %v6482
        %7375 = vmatpush.msra.mxu0 %v6478
        %7376 = vmatpush.msra.mxu0 %v6474
        %7377 = vmatpush.msra.mxu0 %v6470
        %7378 = vmatpush.msra.mxu0 %v6466
        %7379 = vmatpush.msra.mxu0 %v6462
        %7380 = vmatpush.msra.mxu0 %v6458
        %7381 = vmatpush.msra.mxu0 %v6454
        %7382 = vmatpush.msra.mxu0 %v6450
        %7383 = vmatpush.msra.mxu0 %v6446
        %7384 = vmatpush.msra.mxu0 %v6442
        %7385 = vmatpush.msra.mxu0 %v6438
        %7386 = vmatpush.msra.mxu0 %v6434
        %7387 = vmatpush.msra.mxu0 %v6430
        %7388 = vmatpush.msra.mxu0 %v6426
        %7389 = vmatmul.f32.gmra.mxu0 %v5842
        %v7390 = vpop.f32.mrf.mxu0
        %v7391 = vadd.f32 %v7371, %v7390
        %7392 = vdwg.mxu0
        %7393 = vmatpush.msra.mxu0 %v6550
        %7394 = vmatpush.msra.mxu0 %v6546
        %7395 = vmatpush.msra.mxu0 %v6542
        %7396 = vmatpush.msra.mxu0 %v6538
        %7397 = vmatpush.msra.mxu0 %v6534
        %7398 = vmatpush.msra.mxu0 %v6530
        %7399 = vmatpush.msra.mxu0 %v6526
        %7400 = vmatpush.msra.mxu0 %v6522
        %7401 = vmatpush.msra.mxu0 %v6518
        %7402 = vmatpush.msra.mxu0 %v6514
        %7403 = vmatpush.msra.mxu0 %v6510
        %7404 = vmatpush.msra.mxu0 %v6506
        %7405 = vmatpush.msra.mxu0 %v6502
        %7406 = vmatpush.msra.mxu0 %v6498
        %7407 = vmatpush.msra.mxu0 %v6494
        %7408 = vmatpush.msra.mxu0 %v6490
        %7409 = vmatmul.f32.gmra.mxu0 %v5843
        %v7410 = vpop.f32.mrf.mxu0
        %v7411 = vadd.f32 %v7391, %v7410
        %7412 = vdwg.mxu0
        %7413 = vmatpush.msra.mxu0 %v6614
        %7414 = vmatpush.msra.mxu0 %v6610
        %7415 = vmatpush.msra.mxu0 %v6606
        %7416 = vmatpush.msra.mxu0 %v6602
        %7417 = vmatpush.msra.mxu0 %v6598
        %7418 = vmatpush.msra.mxu0 %v6594
        %7419 = vmatpush.msra.mxu0 %v6590
        %7420 = vmatpush.msra.mxu0 %v6586
        %7421 = vmatpush.msra.mxu0 %v6582
        %7422 = vmatpush.msra.mxu0 %v6578
        %7423 = vmatpush.msra.mxu0 %v6574
        %7424 = vmatpush.msra.mxu0 %v6570
        %7425 = vmatpush.msra.mxu0 %v6566
        %7426 = vmatpush.msra.mxu0 %v6562
        %7427 = vmatpush.msra.mxu0 %v6558
        %7428 = vmatpush.msra.mxu0 %v6554
        %7429 = vmatmul.f32.gmra.mxu0 %v5844
        %v7430 = vpop.f32.mrf.mxu0
        %v7431 = vadd.f32 %v7411, %v7430
        %7432 = vdwg.mxu0
        %7433 = vmatpush.msra.mxu0 %v6678
        %7434 = vmatpush.msra.mxu0 %v6674
        %7435 = vmatpush.msra.mxu0 %v6670
        %7436 = vmatpush.msra.mxu0 %v6666
        %7437 = vmatpush.msra.mxu0 %v6662
        %7438 = vmatpush.msra.mxu0 %v6658
        %7439 = vmatpush.msra.mxu0 %v6654
        %7440 = vmatpush.msra.mxu0 %v6650
        %7441 = vmatpush.msra.mxu0 %v6646
        %7442 = vmatpush.msra.mxu0 %v6642
        %7443 = vmatpush.msra.mxu0 %v6638
        %7444 = vmatpush.msra.mxu0 %v6634
        %7445 = vmatpush.msra.mxu0 %v6630
        %7446 = vmatpush.msra.mxu0 %v6626
        %7447 = vmatpush.msra.mxu0 %v6622
        %7448 = vmatpush.msra.mxu0 %v6618
        %7449 = vmatmul.f32.gmra.mxu0 %v5845
        %v7450 = vpop.f32.mrf.mxu0
        %v7451 = vadd.f32 %v7431, %v7450
        %7452 = vdwg.mxu0
        %7453 = vmatpush.msra.mxu0 %v6742
        %7454 = vmatpush.msra.mxu0 %v6738
        %7455 = vmatpush.msra.mxu0 %v6734
        %7456 = vmatpush.msra.mxu0 %v6730
        %7457 = vmatpush.msra.mxu0 %v6726
        %7458 = vmatpush.msra.mxu0 %v6722
        %7459 = vmatpush.msra.mxu0 %v6718
        %7460 = vmatpush.msra.mxu0 %v6714
        %7461 = vmatpush.msra.mxu0 %v6710
        %7462 = vmatpush.msra.mxu0 %v6706
        %7463 = vmatpush.msra.mxu0 %v6702
        %7464 = vmatpush.msra.mxu0 %v6698
        %7465 = vmatpush.msra.mxu0 %v6694
        %7466 = vmatpush.msra.mxu0 %v6690
        %7467 = vmatpush.msra.mxu0 %v6686
        %7468 = vmatpush.msra.mxu0 %v6682
        %7469 = vmatmul.f32.gmra.mxu0 %v5846
        %v7470 = vpop.f32.mrf.mxu0
        %v7471 = vadd.f32 %v7451, %v7470
        %7472 = vdwg.mxu0
        %7473 = vmatpush.msra.mxu0 %v6806
        %7474 = vmatpush.msra.mxu0 %v6802
        %7475 = vmatpush.msra.mxu0 %v6798
        %7476 = vmatpush.msra.mxu0 %v6794
        %7477 = vmatpush.msra.mxu0 %v6790
        %7478 = vmatpush.msra.mxu0 %v6786
        %7479 = vmatpush.msra.mxu0 %v6782
        %7480 = vmatpush.msra.mxu0 %v6778
        %7481 = vmatpush.msra.mxu0 %v6774
        %7482 = vmatpush.msra.mxu0 %v6770
        %7483 = vmatpush.msra.mxu0 %v6766
        %7484 = vmatpush.msra.mxu0 %v6762
        %7485 = vmatpush.msra.mxu0 %v6758
        %7486 = vmatpush.msra.mxu0 %v6754
        %7487 = vmatpush.msra.mxu0 %v6750
        %7488 = vmatpush.msra.mxu0 %v6746
        %7489 = vmatmul.f32.gmra.mxu0 %v5847
        %v7490 = vpop.f32.mrf.mxu0
        %v7491 = vadd.f32 %v7471, %v7490
        %7492 = vdwg.mxu0
        %7493 = vmatpush.msra.mxu0 %v6870
        %7494 = vmatpush.msra.mxu0 %v6866
        %7495 = vmatpush.msra.mxu0 %v6862
        %7496 = vmatpush.msra.mxu0 %v6858
        %7497 = vmatpush.msra.mxu0 %v6854
        %7498 = vmatpush.msra.mxu0 %v6850
        %7499 = vmatpush.msra.mxu0 %v6846
        %7500 = vmatpush.msra.mxu0 %v6842
        %7501 = vmatpush.msra.mxu0 %v6838
        %7502 = vmatpush.msra.mxu0 %v6834
        %7503 = vmatpush.msra.mxu0 %v6830
        %7504 = vmatpush.msra.mxu0 %v6826
        %7505 = vmatpush.msra.mxu0 %v6822
        %7506 = vmatpush.msra.mxu0 %v6818
        %7507 = vmatpush.msra.mxu0 %v6814
        %7508 = vmatpush.msra.mxu0 %v6810
        %7509 = vmatmul.f32.gmra.mxu0 %v5848
        %v7510 = vpop.f32.mrf.mxu0
        %v7511 = vadd.f32 %v7491, %v7510
        %7512 = vdwg.mxu0
        %7513 = vmatpush.msra.mxu0 %v5911
        %7514 = vmatpush.msra.mxu0 %v5907
        %7515 = vmatpush.msra.mxu0 %v5903
        %7516 = vmatpush.msra.mxu0 %v5899
        %7517 = vmatpush.msra.mxu0 %v5895
        %7518 = vmatpush.msra.mxu0 %v5891
        %7519 = vmatpush.msra.mxu0 %v5887
        %7520 = vmatpush.msra.mxu0 %v5883
        %7521 = vmatpush.msra.mxu0 %v5879
        %7522 = vmatpush.msra.mxu0 %v5875
        %7523 = vmatpush.msra.mxu0 %v5871
        %7524 = vmatpush.msra.mxu0 %v5867
        %7525 = vmatpush.msra.mxu0 %v5863
        %7526 = vmatpush.msra.mxu0 %v5859
        %7527 = vmatpush.msra.mxu0 %v5855
        %7528 = vmatpush.msra.mxu0 %v5851
        %7529 = vmatmul.f32.gmra.mxu0 %v5833
        %v7530 = vpop.f32.mrf.mxu0
        %v7531 = vadd.f32 %v3527, %v7530
        %7532 = vdwg.mxu0
        %7533 = vmatpush.msra.mxu0 %v5975
        %7534 = vmatpush.msra.mxu0 %v5971
        %7535 = vmatpush.msra.mxu0 %v5967
        %7536 = vmatpush.msra.mxu0 %v5963
        %7537 = vmatpush.msra.mxu0 %v5959
        %7538 = vmatpush.msra.mxu0 %v5955
        %7539 = vmatpush.msra.mxu0 %v5951
        %7540 = vmatpush.msra.mxu0 %v5947
        %7541 = vmatpush.msra.mxu0 %v5943
        %7542 = vmatpush.msra.mxu0 %v5939
        %7543 = vmatpush.msra.mxu0 %v5935
        %7544 = vmatpush.msra.mxu0 %v5931
        %7545 = vmatpush.msra.mxu0 %v5927
        %7546 = vmatpush.msra.mxu0 %v5923
        %7547 = vmatpush.msra.mxu0 %v5919
        %7548 = vmatpush.msra.mxu0 %v5915
        %7549 = vmatmul.f32.gmra.mxu0 %v5834
        %v7550 = vpop.f32.mrf.mxu0
        %v7551 = vadd.f32 %v7531, %v7550
        %7552 = vdwg.mxu0
        %7553 = vmatpush.msra.mxu0 %v6039
        %7554 = vmatpush.msra.mxu0 %v6035
        %7555 = vmatpush.msra.mxu0 %v6031
        %7556 = vmatpush.msra.mxu0 %v6027
        %7557 = vmatpush.msra.mxu0 %v6023
        %7558 = vmatpush.msra.mxu0 %v6019
        %7559 = vmatpush.msra.mxu0 %v6015
        %7560 = vmatpush.msra.mxu0 %v6011
        %7561 = vmatpush.msra.mxu0 %v6007
        %7562 = vmatpush.msra.mxu0 %v6003
        %7563 = vmatpush.msra.mxu0 %v5999
        %7564 = vmatpush.msra.mxu0 %v5995
        %7565 = vmatpush.msra.mxu0 %v5991
        %7566 = vmatpush.msra.mxu0 %v5987
        %7567 = vmatpush.msra.mxu0 %v5983
        %7568 = vmatpush.msra.mxu0 %v5979
        %7569 = vmatmul.f32.gmra.mxu0 %v5835
        %v7570 = vpop.f32.mrf.mxu0
        %v7571 = vadd.f32 %v7551, %v7570
        %7572 = vdwg.mxu0
        %7573 = vmatpush.msra.mxu0 %v6103
        %7574 = vmatpush.msra.mxu0 %v6099
        %7575 = vmatpush.msra.mxu0 %v6095
        %7576 = vmatpush.msra.mxu0 %v6091
        %7577 = vmatpush.msra.mxu0 %v6087
        %7578 = vmatpush.msra.mxu0 %v6083
        %7579 = vmatpush.msra.mxu0 %v6079
        %7580 = vmatpush.msra.mxu0 %v6075
        %7581 = vmatpush.msra.mxu0 %v6071
        %7582 = vmatpush.msra.mxu0 %v6067
        %7583 = vmatpush.msra.mxu0 %v6063
        %7584 = vmatpush.msra.mxu0 %v6059
        %7585 = vmatpush.msra.mxu0 %v6055
        %7586 = vmatpush.msra.mxu0 %v6051
        %7587 = vmatpush.msra.mxu0 %v6047
        %7588 = vmatpush.msra.mxu0 %v6043
        %7589 = vmatmul.f32.gmra.mxu0 %v5836
        %v7590 = vpop.f32.mrf.mxu0
        %v7591 = vadd.f32 %v7571, %v7590
        %7592 = vdwg.mxu0
        %7593 = vmatpush.msra.mxu0 %v6167
        %7594 = vmatpush.msra.mxu0 %v6163
        %7595 = vmatpush.msra.mxu0 %v6159
        %7596 = vmatpush.msra.mxu0 %v6155
        %7597 = vmatpush.msra.mxu0 %v6151
        %7598 = vmatpush.msra.mxu0 %v6147
        %7599 = vmatpush.msra.mxu0 %v6143
        %7600 = vmatpush.msra.mxu0 %v6139
        %7601 = vmatpush.msra.mxu0 %v6135
        %7602 = vmatpush.msra.mxu0 %v6131
        %7603 = vmatpush.msra.mxu0 %v6127
        %7604 = vmatpush.msra.mxu0 %v6123
        %7605 = vmatpush.msra.mxu0 %v6119
        %7606 = vmatpush.msra.mxu0 %v6115
        %7607 = vmatpush.msra.mxu0 %v6111
        %7608 = vmatpush.msra.mxu0 %v6107
        %7609 = vmatmul.f32.gmra.mxu0 %v5837
        %v7610 = vpop.f32.mrf.mxu0
        %v7611 = vadd.f32 %v7591, %v7610
        %7612 = vdwg.mxu0
        %7613 = vmatpush.msra.mxu0 %v6231
        %7614 = vmatpush.msra.mxu0 %v6227
        %7615 = vmatpush.msra.mxu0 %v6223
        %7616 = vmatpush.msra.mxu0 %v6219
        %7617 = vmatpush.msra.mxu0 %v6215
        %7618 = vmatpush.msra.mxu0 %v6211
        %7619 = vmatpush.msra.mxu0 %v6207
        %7620 = vmatpush.msra.mxu0 %v6203
        %7621 = vmatpush.msra.mxu0 %v6199
        %7622 = vmatpush.msra.mxu0 %v6195
        %7623 = vmatpush.msra.mxu0 %v6191
        %7624 = vmatpush.msra.mxu0 %v6187
        %7625 = vmatpush.msra.mxu0 %v6183
        %7626 = vmatpush.msra.mxu0 %v6179
        %7627 = vmatpush.msra.mxu0 %v6175
        %7628 = vmatpush.msra.mxu0 %v6171
        %7629 = vmatmul.f32.gmra.mxu0 %v5838
        %v7630 = vpop.f32.mrf.mxu0
        %v7631 = vadd.f32 %v7611, %v7630
        %7632 = vdwg.mxu0
        %7633 = vmatpush.msra.mxu0 %v6295
        %7634 = vmatpush.msra.mxu0 %v6291
        %7635 = vmatpush.msra.mxu0 %v6287
        %7636 = vmatpush.msra.mxu0 %v6283
        %7637 = vmatpush.msra.mxu0 %v6279
        %7638 = vmatpush.msra.mxu0 %v6275
        %7639 = vmatpush.msra.mxu0 %v6271
        %7640 = vmatpush.msra.mxu0 %v6267
        %7641 = vmatpush.msra.mxu0 %v6263
        %7642 = vmatpush.msra.mxu0 %v6259
        %7643 = vmatpush.msra.mxu0 %v6255
        %7644 = vmatpush.msra.mxu0 %v6251
        %7645 = vmatpush.msra.mxu0 %v6247
        %7646 = vmatpush.msra.mxu0 %v6243
        %7647 = vmatpush.msra.mxu0 %v6239
        %7648 = vmatpush.msra.mxu0 %v6235
        %7649 = vmatmul.f32.gmra.mxu0 %v5839
        %v7650 = vpop.f32.mrf.mxu0
        %v7651 = vadd.f32 %v7631, %v7650
        %7652 = vdwg.mxu0
        %7653 = vmatpush.msra.mxu0 %v6359
        %7654 = vmatpush.msra.mxu0 %v6355
        %7655 = vmatpush.msra.mxu0 %v6351
        %7656 = vmatpush.msra.mxu0 %v6347
        %7657 = vmatpush.msra.mxu0 %v6343
        %7658 = vmatpush.msra.mxu0 %v6339
        %7659 = vmatpush.msra.mxu0 %v6335
        %7660 = vmatpush.msra.mxu0 %v6331
        %7661 = vmatpush.msra.mxu0 %v6327
        %7662 = vmatpush.msra.mxu0 %v6323
        %7663 = vmatpush.msra.mxu0 %v6319
        %7664 = vmatpush.msra.mxu0 %v6315
        %7665 = vmatpush.msra.mxu0 %v6311
        %7666 = vmatpush.msra.mxu0 %v6307
        %7667 = vmatpush.msra.mxu0 %v6303
        %7668 = vmatpush.msra.mxu0 %v6299
        %7669 = vmatmul.f32.gmra.mxu0 %v5840
        %v7670 = vpop.f32.mrf.mxu0
        %v7671 = vadd.f32 %v7651, %v7670
        %7672 = vdwg.mxu0
        %7673 = vmatpush.msra.mxu0 %v6423
        %7674 = vmatpush.msra.mxu0 %v6419
        %7675 = vmatpush.msra.mxu0 %v6415
        %7676 = vmatpush.msra.mxu0 %v6411
        %7677 = vmatpush.msra.mxu0 %v6407
        %7678 = vmatpush.msra.mxu0 %v6403
        %7679 = vmatpush.msra.mxu0 %v6399
        %7680 = vmatpush.msra.mxu0 %v6395
        %7681 = vmatpush.msra.mxu0 %v6391
        %7682 = vmatpush.msra.mxu0 %v6387
        %7683 = vmatpush.msra.mxu0 %v6383
        %7684 = vmatpush.msra.mxu0 %v6379
        %7685 = vmatpush.msra.mxu0 %v6375
        %7686 = vmatpush.msra.mxu0 %v6371
        %7687 = vmatpush.msra.mxu0 %v6367
        %7688 = vmatpush.msra.mxu0 %v6363
        %7689 = vmatmul.f32.gmra.mxu0 %v5841
        %v7690 = vpop.f32.mrf.mxu0
        %v7691 = vadd.f32 %v7671, %v7690
        %7692 = vdwg.mxu0
        %7693 = vmatpush.msra.mxu0 %v6487
        %7694 = vmatpush.msra.mxu0 %v6483
        %7695 = vmatpush.msra.mxu0 %v6479
        %7696 = vmatpush.msra.mxu0 %v6475
        %7697 = vmatpush.msra.mxu0 %v6471
        %7698 = vmatpush.msra.mxu0 %v6467
        %7699 = vmatpush.msra.mxu0 %v6463
        %7700 = vmatpush.msra.mxu0 %v6459
        %7701 = vmatpush.msra.mxu0 %v6455
        %7702 = vmatpush.msra.mxu0 %v6451
        %7703 = vmatpush.msra.mxu0 %v6447
        %7704 = vmatpush.msra.mxu0 %v6443
        %7705 = vmatpush.msra.mxu0 %v6439
        %7706 = vmatpush.msra.mxu0 %v6435
        %7707 = vmatpush.msra.mxu0 %v6431
        %7708 = vmatpush.msra.mxu0 %v6427
        %7709 = vmatmul.f32.gmra.mxu0 %v5842
        %v7710 = vpop.f32.mrf.mxu0
        %v7711 = vadd.f32 %v7691, %v7710
        %7712 = vdwg.mxu0
        %7713 = vmatpush.msra.mxu0 %v6551
        %7714 = vmatpush.msra.mxu0 %v6547
        %7715 = vmatpush.msra.mxu0 %v6543
        %7716 = vmatpush.msra.mxu0 %v6539
        %7717 = vmatpush.msra.mxu0 %v6535
        %7718 = vmatpush.msra.mxu0 %v6531
        %7719 = vmatpush.msra.mxu0 %v6527
        %7720 = vmatpush.msra.mxu0 %v6523
        %7721 = vmatpush.msra.mxu0 %v6519
        %7722 = vmatpush.msra.mxu0 %v6515
        %7723 = vmatpush.msra.mxu0 %v6511
        %7724 = vmatpush.msra.mxu0 %v6507
        %7725 = vmatpush.msra.mxu0 %v6503
        %7726 = vmatpush.msra.mxu0 %v6499
        %7727 = vmatpush.msra.mxu0 %v6495
        %7728 = vmatpush.msra.mxu0 %v6491
        %7729 = vmatmul.f32.gmra.mxu0 %v5843
        %v7730 = vpop.f32.mrf.mxu0
        %v7731 = vadd.f32 %v7711, %v7730
        %7732 = vdwg.mxu0
        %7733 = vmatpush.msra.mxu0 %v6615
        %7734 = vmatpush.msra.mxu0 %v6611
        %7735 = vmatpush.msra.mxu0 %v6607
        %7736 = vmatpush.msra.mxu0 %v6603
        %7737 = vmatpush.msra.mxu0 %v6599
        %7738 = vmatpush.msra.mxu0 %v6595
        %7739 = vmatpush.msra.mxu0 %v6591
        %7740 = vmatpush.msra.mxu0 %v6587
        %7741 = vmatpush.msra.mxu0 %v6583
        %7742 = vmatpush.msra.mxu0 %v6579
        %7743 = vmatpush.msra.mxu0 %v6575
        %7744 = vmatpush.msra.mxu0 %v6571
        %7745 = vmatpush.msra.mxu0 %v6567
        %7746 = vmatpush.msra.mxu0 %v6563
        %7747 = vmatpush.msra.mxu0 %v6559
        %7748 = vmatpush.msra.mxu0 %v6555
        %7749 = vmatmul.f32.gmra.mxu0 %v5844
        %v7750 = vpop.f32.mrf.mxu0
        %v7751 = vadd.f32 %v7731, %v7750
        %7752 = vdwg.mxu0
        %7753 = vmatpush.msra.mxu0 %v6679
        %7754 = vmatpush.msra.mxu0 %v6675
        %7755 = vmatpush.msra.mxu0 %v6671
        %7756 = vmatpush.msra.mxu0 %v6667
        %7757 = vmatpush.msra.mxu0 %v6663
        %7758 = vmatpush.msra.mxu0 %v6659
        %7759 = vmatpush.msra.mxu0 %v6655
        %7760 = vmatpush.msra.mxu0 %v6651
        %7761 = vmatpush.msra.mxu0 %v6647
        %7762 = vmatpush.msra.mxu0 %v6643
        %7763 = vmatpush.msra.mxu0 %v6639
        %7764 = vmatpush.msra.mxu0 %v6635
        %7765 = vmatpush.msra.mxu0 %v6631
        %7766 = vmatpush.msra.mxu0 %v6627
        %7767 = vmatpush.msra.mxu0 %v6623
        %7768 = vmatpush.msra.mxu0 %v6619
        %7769 = vmatmul.f32.gmra.mxu0 %v5845
        %v7770 = vpop.f32.mrf.mxu0
        %v7771 = vadd.f32 %v7751, %v7770
        %7772 = vdwg.mxu0
        %7773 = vmatpush.msra.mxu0 %v6743
        %7774 = vmatpush.msra.mxu0 %v6739
        %7775 = vmatpush.msra.mxu0 %v6735
        %7776 = vmatpush.msra.mxu0 %v6731
        %7777 = vmatpush.msra.mxu0 %v6727
        %7778 = vmatpush.msra.mxu0 %v6723
        %7779 = vmatpush.msra.mxu0 %v6719
        %7780 = vmatpush.msra.mxu0 %v6715
        %7781 = vmatpush.msra.mxu0 %v6711
        %7782 = vmatpush.msra.mxu0 %v6707
        %7783 = vmatpush.msra.mxu0 %v6703
        %7784 = vmatpush.msra.mxu0 %v6699
        %7785 = vmatpush.msra.mxu0 %v6695
        %7786 = vmatpush.msra.mxu0 %v6691
        %7787 = vmatpush.msra.mxu0 %v6687
        %7788 = vmatpush.msra.mxu0 %v6683
        %7789 = vmatmul.f32.gmra.mxu0 %v5846
        %v7790 = vpop.f32.mrf.mxu0
        %v7791 = vadd.f32 %v7771, %v7790
        %7792 = vdwg.mxu0
        %7793 = vmatpush.msra.mxu0 %v6807
        %7794 = vmatpush.msra.mxu0 %v6803
        %7795 = vmatpush.msra.mxu0 %v6799
        %7796 = vmatpush.msra.mxu0 %v6795
        %7797 = vmatpush.msra.mxu0 %v6791
        %7798 = vmatpush.msra.mxu0 %v6787
        %7799 = vmatpush.msra.mxu0 %v6783
        %7800 = vmatpush.msra.mxu0 %v6779
        %7801 = vmatpush.msra.mxu0 %v6775
        %7802 = vmatpush.msra.mxu0 %v6771
        %7803 = vmatpush.msra.mxu0 %v6767
        %7804 = vmatpush.msra.mxu0 %v6763
        %7805 = vmatpush.msra.mxu0 %v6759
        %7806 = vmatpush.msra.mxu0 %v6755
        %7807 = vmatpush.msra.mxu0 %v6751
        %7808 = vmatpush.msra.mxu0 %v6747
        %7809 = vmatmul.f32.gmra.mxu0 %v5847
        %v7810 = vpop.f32.mrf.mxu0
        %v7811 = vadd.f32 %v7791, %v7810
        %7812 = vdwg.mxu0
        %7813 = vmatpush.msra.mxu0 %v6871
        %7814 = vmatpush.msra.mxu0 %v6867
        %7815 = vmatpush.msra.mxu0 %v6863
        %7816 = vmatpush.msra.mxu0 %v6859
        %7817 = vmatpush.msra.mxu0 %v6855
        %7818 = vmatpush.msra.mxu0 %v6851
        %7819 = vmatpush.msra.mxu0 %v6847
        %7820 = vmatpush.msra.mxu0 %v6843
        %7821 = vmatpush.msra.mxu0 %v6839
        %7822 = vmatpush.msra.mxu0 %v6835
        %7823 = vmatpush.msra.mxu0 %v6831
        %7824 = vmatpush.msra.mxu0 %v6827
        %7825 = vmatpush.msra.mxu0 %v6823
        %7826 = vmatpush.msra.mxu0 %v6819
        %7827 = vmatpush.msra.mxu0 %v6815
        %7828 = vmatpush.msra.mxu0 %v6811
        %7829 = vmatmul.f32.gmra.mxu0 %v5848
        %v7830 = vpop.f32.mrf.mxu0
        %v7831 = vadd.f32 %v7811, %v7830
        %7832 = vdwg.mxu0
        %7833 = vmatpush.msra.mxu0 %v5912
        %7834 = vmatpush.msra.mxu0 %v5908
        %7835 = vmatpush.msra.mxu0 %v5904
        %7836 = vmatpush.msra.mxu0 %v5900
        %7837 = vmatpush.msra.mxu0 %v5896
        %7838 = vmatpush.msra.mxu0 %v5892
        %7839 = vmatpush.msra.mxu0 %v5888
        %7840 = vmatpush.msra.mxu0 %v5884
        %7841 = vmatpush.msra.mxu0 %v5880
        %7842 = vmatpush.msra.mxu0 %v5876
        %7843 = vmatpush.msra.mxu0 %v5872
        %7844 = vmatpush.msra.mxu0 %v5868
        %7845 = vmatpush.msra.mxu0 %v5864
        %7846 = vmatpush.msra.mxu0 %v5860
        %7847 = vmatpush.msra.mxu0 %v5856
        %7848 = vmatpush.msra.mxu0 %v5852
        %7849 = vmatmul.f32.gmra.mxu0 %v5833
        %v7850 = vpop.f32.mrf.mxu0
        %v7851 = vadd.f32 %v3528, %v7850
        %7852 = vdwg.mxu0
        %7853 = vmatpush.msra.mxu0 %v5976
        %7854 = vmatpush.msra.mxu0 %v5972
        %7855 = vmatpush.msra.mxu0 %v5968
        %7856 = vmatpush.msra.mxu0 %v5964
        %7857 = vmatpush.msra.mxu0 %v5960
        %7858 = vmatpush.msra.mxu0 %v5956
        %7859 = vmatpush.msra.mxu0 %v5952
        %7860 = vmatpush.msra.mxu0 %v5948
        %7861 = vmatpush.msra.mxu0 %v5944
        %7862 = vmatpush.msra.mxu0 %v5940
        %7863 = vmatpush.msra.mxu0 %v5936
        %7864 = vmatpush.msra.mxu0 %v5932
        %7865 = vmatpush.msra.mxu0 %v5928
        %7866 = vmatpush.msra.mxu0 %v5924
        %7867 = vmatpush.msra.mxu0 %v5920
        %7868 = vmatpush.msra.mxu0 %v5916
        %7869 = vmatmul.f32.gmra.mxu0 %v5834
        %v7870 = vpop.f32.mrf.mxu0
        %v7871 = vadd.f32 %v7851, %v7870
        %7872 = vdwg.mxu0
        %7873 = vmatpush.msra.mxu0 %v6040
        %7874 = vmatpush.msra.mxu0 %v6036
        %7875 = vmatpush.msra.mxu0 %v6032
        %7876 = vmatpush.msra.mxu0 %v6028
        %7877 = vmatpush.msra.mxu0 %v6024
        %7878 = vmatpush.msra.mxu0 %v6020
        %7879 = vmatpush.msra.mxu0 %v6016
        %7880 = vmatpush.msra.mxu0 %v6012
        %7881 = vmatpush.msra.mxu0 %v6008
        %7882 = vmatpush.msra.mxu0 %v6004
        %7883 = vmatpush.msra.mxu0 %v6000
        %7884 = vmatpush.msra.mxu0 %v5996
        %7885 = vmatpush.msra.mxu0 %v5992
        %7886 = vmatpush.msra.mxu0 %v5988
        %7887 = vmatpush.msra.mxu0 %v5984
        %7888 = vmatpush.msra.mxu0 %v5980
        %7889 = vmatmul.f32.gmra.mxu0 %v5835
        %v7890 = vpop.f32.mrf.mxu0
        %v7891 = vadd.f32 %v7871, %v7890
        %7892 = vdwg.mxu0
        %7893 = vmatpush.msra.mxu0 %v6104
        %7894 = vmatpush.msra.mxu0 %v6100
        %7895 = vmatpush.msra.mxu0 %v6096
        %7896 = vmatpush.msra.mxu0 %v6092
        %7897 = vmatpush.msra.mxu0 %v6088
        %7898 = vmatpush.msra.mxu0 %v6084
        %7899 = vmatpush.msra.mxu0 %v6080
        %7900 = vmatpush.msra.mxu0 %v6076
        %7901 = vmatpush.msra.mxu0 %v6072
        %7902 = vmatpush.msra.mxu0 %v6068
        %7903 = vmatpush.msra.mxu0 %v6064
        %7904 = vmatpush.msra.mxu0 %v6060
        %7905 = vmatpush.msra.mxu0 %v6056
        %7906 = vmatpush.msra.mxu0 %v6052
        %7907 = vmatpush.msra.mxu0 %v6048
        %7908 = vmatpush.msra.mxu0 %v6044
        %7909 = vmatmul.f32.gmra.mxu0 %v5836
        %v7910 = vpop.f32.mrf.mxu0
        %v7911 = vadd.f32 %v7891, %v7910
        %7912 = vdwg.mxu0
        %7913 = vmatpush.msra.mxu0 %v6168
        %7914 = vmatpush.msra.mxu0 %v6164
        %7915 = vmatpush.msra.mxu0 %v6160
        %7916 = vmatpush.msra.mxu0 %v6156
        %7917 = vmatpush.msra.mxu0 %v6152
        %7918 = vmatpush.msra.mxu0 %v6148
        %7919 = vmatpush.msra.mxu0 %v6144
        %7920 = vmatpush.msra.mxu0 %v6140
        %7921 = vmatpush.msra.mxu0 %v6136
        %7922 = vmatpush.msra.mxu0 %v6132
        %7923 = vmatpush.msra.mxu0 %v6128
        %7924 = vmatpush.msra.mxu0 %v6124
        %7925 = vmatpush.msra.mxu0 %v6120
        %7926 = vmatpush.msra.mxu0 %v6116
        %7927 = vmatpush.msra.mxu0 %v6112
        %7928 = vmatpush.msra.mxu0 %v6108
        %7929 = vmatmul.f32.gmra.mxu0 %v5837
        %v7930 = vpop.f32.mrf.mxu0
        %v7931 = vadd.f32 %v7911, %v7930
        %7932 = vdwg.mxu0
        %7933 = vmatpush.msra.mxu0 %v6232
        %7934 = vmatpush.msra.mxu0 %v6228
        %7935 = vmatpush.msra.mxu0 %v6224
        %7936 = vmatpush.msra.mxu0 %v6220
        %7937 = vmatpush.msra.mxu0 %v6216
        %7938 = vmatpush.msra.mxu0 %v6212
        %7939 = vmatpush.msra.mxu0 %v6208
        %7940 = vmatpush.msra.mxu0 %v6204
        %7941 = vmatpush.msra.mxu0 %v6200
        %7942 = vmatpush.msra.mxu0 %v6196
        %7943 = vmatpush.msra.mxu0 %v6192
        %7944 = vmatpush.msra.mxu0 %v6188
        %7945 = vmatpush.msra.mxu0 %v6184
        %7946 = vmatpush.msra.mxu0 %v6180
        %7947 = vmatpush.msra.mxu0 %v6176
        %7948 = vmatpush.msra.mxu0 %v6172
        %7949 = vmatmul.f32.gmra.mxu0 %v5838
        %v7950 = vpop.f32.mrf.mxu0
        %v7951 = vadd.f32 %v7931, %v7950
        %7952 = vdwg.mxu0
        %7953 = vmatpush.msra.mxu0 %v6296
        %7954 = vmatpush.msra.mxu0 %v6292
        %7955 = vmatpush.msra.mxu0 %v6288
        %7956 = vmatpush.msra.mxu0 %v6284
        %7957 = vmatpush.msra.mxu0 %v6280
        %7958 = vmatpush.msra.mxu0 %v6276
        %7959 = vmatpush.msra.mxu0 %v6272
        %7960 = vmatpush.msra.mxu0 %v6268
        %7961 = vmatpush.msra.mxu0 %v6264
        %7962 = vmatpush.msra.mxu0 %v6260
        %7963 = vmatpush.msra.mxu0 %v6256
        %7964 = vmatpush.msra.mxu0 %v6252
        %7965 = vmatpush.msra.mxu0 %v6248
        %7966 = vmatpush.msra.mxu0 %v6244
        %7967 = vmatpush.msra.mxu0 %v6240
        %7968 = vmatpush.msra.mxu0 %v6236
        %7969 = vmatmul.f32.gmra.mxu0 %v5839
        %v7970 = vpop.f32.mrf.mxu0
        %v7971 = vadd.f32 %v7951, %v7970
        %7972 = vdwg.mxu0
        %7973 = vmatpush.msra.mxu0 %v6360
        %7974 = vmatpush.msra.mxu0 %v6356
        %7975 = vmatpush.msra.mxu0 %v6352
        %7976 = vmatpush.msra.mxu0 %v6348
        %7977 = vmatpush.msra.mxu0 %v6344
        %7978 = vmatpush.msra.mxu0 %v6340
        %7979 = vmatpush.msra.mxu0 %v6336
        %7980 = vmatpush.msra.mxu0 %v6332
        %7981 = vmatpush.msra.mxu0 %v6328
        %7982 = vmatpush.msra.mxu0 %v6324
        %7983 = vmatpush.msra.mxu0 %v6320
        %7984 = vmatpush.msra.mxu0 %v6316
        %7985 = vmatpush.msra.mxu0 %v6312
        %7986 = vmatpush.msra.mxu0 %v6308
        %7987 = vmatpush.msra.mxu0 %v6304
        %7988 = vmatpush.msra.mxu0 %v6300
        %7989 = vmatmul.f32.gmra.mxu0 %v5840
        %v7990 = vpop.f32.mrf.mxu0
        %v7991 = vadd.f32 %v7971, %v7990
        %7992 = vdwg.mxu0
        %7993 = vmatpush.msra.mxu0 %v6424
        %7994 = vmatpush.msra.mxu0 %v6420
        %7995 = vmatpush.msra.mxu0 %v6416
        %7996 = vmatpush.msra.mxu0 %v6412
        %7997 = vmatpush.msra.mxu0 %v6408
        %7998 = vmatpush.msra.mxu0 %v6404
        %7999 = vmatpush.msra.mxu0 %v6400
        %8000 = vmatpush.msra.mxu0 %v6396
        %8001 = vmatpush.msra.mxu0 %v6392
        %8002 = vmatpush.msra.mxu0 %v6388
        %8003 = vmatpush.msra.mxu0 %v6384
        %8004 = vmatpush.msra.mxu0 %v6380
        %8005 = vmatpush.msra.mxu0 %v6376
        %8006 = vmatpush.msra.mxu0 %v6372
        %8007 = vmatpush.msra.mxu0 %v6368
        %8008 = vmatpush.msra.mxu0 %v6364
        %8009 = vmatmul.f32.gmra.mxu0 %v5841
        %v8010 = vpop.f32.mrf.mxu0
        %v8011 = vadd.f32 %v7991, %v8010
        %8012 = vdwg.mxu0
        %8013 = vmatpush.msra.mxu0 %v6488
        %8014 = vmatpush.msra.mxu0 %v6484
        %8015 = vmatpush.msra.mxu0 %v6480
        %8016 = vmatpush.msra.mxu0 %v6476
        %8017 = vmatpush.msra.mxu0 %v6472
        %8018 = vmatpush.msra.mxu0 %v6468
        %8019 = vmatpush.msra.mxu0 %v6464
        %8020 = vmatpush.msra.mxu0 %v6460
        %8021 = vmatpush.msra.mxu0 %v6456
        %8022 = vmatpush.msra.mxu0 %v6452
        %8023 = vmatpush.msra.mxu0 %v6448
        %8024 = vmatpush.msra.mxu0 %v6444
        %8025 = vmatpush.msra.mxu0 %v6440
        %8026 = vmatpush.msra.mxu0 %v6436
        %8027 = vmatpush.msra.mxu0 %v6432
        %8028 = vmatpush.msra.mxu0 %v6428
        %8029 = vmatmul.f32.gmra.mxu0 %v5842
        %v8030 = vpop.f32.mrf.mxu0
        %v8031 = vadd.f32 %v8011, %v8030
        %8032 = vdwg.mxu0
        %8033 = vmatpush.msra.mxu0 %v6552
        %8034 = vmatpush.msra.mxu0 %v6548
        %8035 = vmatpush.msra.mxu0 %v6544
        %8036 = vmatpush.msra.mxu0 %v6540
        %8037 = vmatpush.msra.mxu0 %v6536
        %8038 = vmatpush.msra.mxu0 %v6532
        %8039 = vmatpush.msra.mxu0 %v6528
        %8040 = vmatpush.msra.mxu0 %v6524
        %8041 = vmatpush.msra.mxu0 %v6520
        %8042 = vmatpush.msra.mxu0 %v6516
        %8043 = vmatpush.msra.mxu0 %v6512
        %8044 = vmatpush.msra.mxu0 %v6508
        %8045 = vmatpush.msra.mxu0 %v6504
        %8046 = vmatpush.msra.mxu0 %v6500
        %8047 = vmatpush.msra.mxu0 %v6496
        %8048 = vmatpush.msra.mxu0 %v6492
        %8049 = vmatmul.f32.gmra.mxu0 %v5843
        %v8050 = vpop.f32.mrf.mxu0
        %v8051 = vadd.f32 %v8031, %v8050
        %8052 = vdwg.mxu0
        %8053 = vmatpush.msra.mxu0 %v6616
        %8054 = vmatpush.msra.mxu0 %v6612
        %8055 = vmatpush.msra.mxu0 %v6608
        %8056 = vmatpush.msra.mxu0 %v6604
        %8057 = vmatpush.msra.mxu0 %v6600
        %8058 = vmatpush.msra.mxu0 %v6596
        %8059 = vmatpush.msra.mxu0 %v6592
        %8060 = vmatpush.msra.mxu0 %v6588
        %8061 = vmatpush.msra.mxu0 %v6584
        %8062 = vmatpush.msra.mxu0 %v6580
        %8063 = vmatpush.msra.mxu0 %v6576
        %8064 = vmatpush.msra.mxu0 %v6572
        %8065 = vmatpush.msra.mxu0 %v6568
        %8066 = vmatpush.msra.mxu0 %v6564
        %8067 = vmatpush.msra.mxu0 %v6560
        %8068 = vmatpush.msra.mxu0 %v6556
        %8069 = vmatmul.f32.gmra.mxu0 %v5844
        %v8070 = vpop.f32.mrf.mxu0
        %v8071 = vadd.f32 %v8051, %v8070
        %8072 = vdwg.mxu0
        %8073 = vmatpush.msra.mxu0 %v6680
        %8074 = vmatpush.msra.mxu0 %v6676
        %8075 = vmatpush.msra.mxu0 %v6672
        %8076 = vmatpush.msra.mxu0 %v6668
        %8077 = vmatpush.msra.mxu0 %v6664
        %8078 = vmatpush.msra.mxu0 %v6660
        %8079 = vmatpush.msra.mxu0 %v6656
        %8080 = vmatpush.msra.mxu0 %v6652
        %8081 = vmatpush.msra.mxu0 %v6648
        %8082 = vmatpush.msra.mxu0 %v6644
        %8083 = vmatpush.msra.mxu0 %v6640
        %8084 = vmatpush.msra.mxu0 %v6636
        %8085 = vmatpush.msra.mxu0 %v6632
        %8086 = vmatpush.msra.mxu0 %v6628
        %8087 = vmatpush.msra.mxu0 %v6624
        %8088 = vmatpush.msra.mxu0 %v6620
        %8089 = vmatmul.f32.gmra.mxu0 %v5845
        %v8090 = vpop.f32.mrf.mxu0
        %v8091 = vadd.f32 %v8071, %v8090
        %8092 = vdwg.mxu0
        %8093 = vmatpush.msra.mxu0 %v6744
        %8094 = vmatpush.msra.mxu0 %v6740
        %8095 = vmatpush.msra.mxu0 %v6736
        %8096 = vmatpush.msra.mxu0 %v6732
        %8097 = vmatpush.msra.mxu0 %v6728
        %8098 = vmatpush.msra.mxu0 %v6724
        %8099 = vmatpush.msra.mxu0 %v6720
        %8100 = vmatpush.msra.mxu0 %v6716
        %8101 = vmatpush.msra.mxu0 %v6712
        %8102 = vmatpush.msra.mxu0 %v6708
        %8103 = vmatpush.msra.mxu0 %v6704
        %8104 = vmatpush.msra.mxu0 %v6700
        %8105 = vmatpush.msra.mxu0 %v6696
        %8106 = vmatpush.msra.mxu0 %v6692
        %8107 = vmatpush.msra.mxu0 %v6688
        %8108 = vmatpush.msra.mxu0 %v6684
        %8109 = vmatmul.f32.gmra.mxu0 %v5846
        %v8110 = vpop.f32.mrf.mxu0
        %v8111 = vadd.f32 %v8091, %v8110
        %8112 = vdwg.mxu0
        %8113 = vmatpush.msra.mxu0 %v6808
        %8114 = vmatpush.msra.mxu0 %v6804
        %8115 = vmatpush.msra.mxu0 %v6800
        %8116 = vmatpush.msra.mxu0 %v6796
        %8117 = vmatpush.msra.mxu0 %v6792
        %8118 = vmatpush.msra.mxu0 %v6788
        %8119 = vmatpush.msra.mxu0 %v6784
        %8120 = vmatpush.msra.mxu0 %v6780
        %8121 = vmatpush.msra.mxu0 %v6776
        %8122 = vmatpush.msra.mxu0 %v6772
        %8123 = vmatpush.msra.mxu0 %v6768
        %8124 = vmatpush.msra.mxu0 %v6764
        %8125 = vmatpush.msra.mxu0 %v6760
        %8126 = vmatpush.msra.mxu0 %v6756
        %8127 = vmatpush.msra.mxu0 %v6752
        %8128 = vmatpush.msra.mxu0 %v6748
        %8129 = vmatmul.f32.gmra.mxu0 %v5847
        %v8130 = vpop.f32.mrf.mxu0
        %v8131 = vadd.f32 %v8111, %v8130
        %8132 = vdwg.mxu0
        %8133 = vmatpush.msra.mxu0 %v6872
        %8134 = vmatpush.msra.mxu0 %v6868
        %8135 = vmatpush.msra.mxu0 %v6864
        %8136 = vmatpush.msra.mxu0 %v6860
        %8137 = vmatpush.msra.mxu0 %v6856
        %8138 = vmatpush.msra.mxu0 %v6852
        %8139 = vmatpush.msra.mxu0 %v6848
        %8140 = vmatpush.msra.mxu0 %v6844
        %8141 = vmatpush.msra.mxu0 %v6840
        %8142 = vmatpush.msra.mxu0 %v6836
        %8143 = vmatpush.msra.mxu0 %v6832
        %8144 = vmatpush.msra.mxu0 %v6828
        %8145 = vmatpush.msra.mxu0 %v6824
        %8146 = vmatpush.msra.mxu0 %v6820
        %8147 = vmatpush.msra.mxu0 %v6816
        %8148 = vmatpush.msra.mxu0 %v6812
        %8149 = vmatmul.f32.gmra.mxu0 %v5848
        %v8150 = vpop.f32.mrf.mxu0
        %v8151 = vadd.f32 %v8131, %v8150
        %8152 = vdwg.mxu0
        %v8153 = vadd.f32 %v7191, %v7511
        %v8154 = vadd.f32 %v8153, %v7831
        %v8155 = vadd.f32 %v8154, %v8151
        %8156 = vadd.xlane.f32.xlu0 %v8155
        %v8157 = vpop.xlane.xlu0 %8156
        %v8158 = vmul.f32 %v8157, %v3498
        %v8159 = vsub.f32 %v7191, %v8158
        %v8160 = vsub.f32 %v7511, %v8158
        %v8161 = vsub.f32 %v7831, %v8158
        %v8162 = vsub.f32 %v8151, %v8158
        %v8163 = vmul.f32 %v8159, %v8159
        %v8164 = vmul.f32 %v8160, %v8160
        %v8165 = vmul.f32 %v8161, %v8161
        %v8166 = vmul.f32 %v8162, %v8162
        %v8167 = vadd.f32 %v8163, %v8164
        %v8168 = vadd.f32 %v8167, %v8165
        %v8169 = vadd.f32 %v8168, %v8166
        %8170 = vadd.xlane.f32.xlu0 %v8169
        %v8171 = vpop.xlane.xlu0 %8170
        %v8172 = vmul.f32 %v8171, %v3498
        %v8173 = vadd.f32 %v8172, 1e-05
        %v8174 = vrsqrt.pop %v8173
        %v8175 = vmul.f32 %v8174, %v8173
        %v8176 = vmul.f32 %v8175, %v8174
        %v8177 = vmul.f32 0.5, %v8176
        %v8178 = vsub.f32 1.5, %v8177
        %v8179 = vmul.f32 %v8174, %v8178
        %vm8180 = vweird.f32 %v8173
        %vm8181 = vweird.f32 %v8174
        %vm8182 = vmor %vm8180, %vm8181
        %v8183 = vsel %vm8182, %v8174, %v8179
        %v8184 = vmul.f32 %v8159, %v8183
        %v8185 = vmul.f32 %v8160, %v8183
        %v8186 = vmul.f32 %v8161, %v8183
        %v8187 = vmul.f32 %v8162, %v8183
        %8188 = vst [vmem:[%s469] sm:$0xff] %v8184
        %8189 = vst [vmem:[%s469 + $0x8] sm:$0xff] %v8185
        %8190 = vst [vmem:[%s469 + $0x10] sm:$0xff] %v8186
        %8191 = vst [vmem:[%s469 + $0x18] sm:$0xff] %v8187
        %s8192 = sand.u32 %s215, 1
        %s8193 = scalar_lea.sflag [#allocation6], %s8192
        %s8194 = sand.u32 %s215, 1
        %s8195 = smul.addr %s8194, 32
        %s8196 = scalar_lea.vmem [#allocation16], %s8195
        %s8197 = sand.u32 %s243, 1
        %s8198 = scalar_lea.sflag [#allocation18], %s8197
        %s8199 = sand.u32 %s243, 1
        %s8200 = smul.addr %s8199, 64
        %s8201 = scalar_lea.vmem [#allocation17], %s8200
        // Predicated region
        $region81: #{encoder_layer.1} parent=47 // pred_check
          %p8202 = pneg %p225
        $region82: #{encoder_layer.1} parent=47 // pred_check_branch
          %8204 = sbr.rel (%p8202) target = $region84
        $region83: #{encoder_layer.1} parent=47 // pred_region
          %8206 = vsyncadd %s8193, 0
          %s8207 = smul.addr %s39, 4
          %s8208 = smul.addr %s38, 4
          %s8209 = sadd.s32 %s8207, %s8208
          %s8210 = smul.addr %s8209, 8
          %s8211 = scalar_lea.hbm %s7, %s8210
          %s8213 = sshll.u32 %s8196, 4
          %s8214 = int_to_ptr.vmem [resolvable:$true] %s8213
          %s8215 = sshll.u32 %s8211, 4
          %s8216 = int_to_ptr.hbm [resolvable:$true] %s8215
          %8218 = dma.vmem_to_hbm [thread:$0]  %s8214, 512, %s8216, %s8193
        $region84: #{encoder_layer.1} parent=47 // pred_fallthru
          _
        // Predicated region
        $region85: #{encoder_layer.1} parent=47 // pred_check
          %p8219 = pneg %p253
        $region86: #{encoder_layer.1} parent=47 // pred_check_branch
          %8221 = sbr.rel (%p8219) target = $region88
        $region87: #{encoder_layer.1} parent=47 // pred_region
          %8223 = vsyncadd %s8198, 0
          %s8224 = smul.addr %s38, 8
          %s8225 = sadd.s32 %s39, %s8224
          %s8226 = smul.addr %s8225, 8
          %s8227 = scalar_lea.hbm %s8, %s8226
          %s8228 = sshll.u32 %s8201, 4
          %s8229 = int_to_ptr.vmem [resolvable:$true] %s8228
          %s8230 = sshll.u32 %s8227, 4
          %s8231 = int_to_ptr.hbm [resolvable:$true] %s8230
          %8236 = dma.vmem_to_hbm [thread:$0]  %s8229, 1024, %s8231, %s8198, 128, 128, 8
        $region88: #{encoder_layer.1} parent=47 // pred_fallthru
          _
      $region48: #{encoder_layer.1} parent=5 // pred_fallthru
        _
      %p8237 = scmp.le.s32.totalorder 2, %s29
      // Predicated region
      $region89: #{encoder_layer.1} parent=5 // pred_check
        %p8238 = pneg %p8237
      $region90: #{encoder_layer.1} parent=5 // pred_check_branch
        %8240 = sbr.rel (%p8238) target = $region92
      $region91: #{encoder_layer.1} parent=5 // pred_region
        %s8241 = ssub.s32 %s29, 2
        // Predicated region
        $region93: #{encoder_layer.1} parent=91 // pred_check
          %p8242 = pneg %p231
        $region94: #{encoder_layer.1} parent=91 // pred_check_branch
          %8244 = sbr.rel (%p8242) target = $region96
        $region95: #{encoder_layer.1} parent=91 // pred_region
          %s8245 = sand.u32 %s216, 1
          %s8246 = scalar_lea.sflag [#allocation6], %s8245
          %s8247 = sand.u32 %s216, 1
          %s8248 = smul.addr %s8247, 32
          %s8249 = scalar_lea.vmem [#allocation16], %s8248
          %8251 = dma.done %s8246, 512
        $region96: #{encoder_layer.1} parent=91 // pred_fallthru
          _
        // Predicated region
        $region97: #{encoder_layer.1} parent=91 // pred_check
          %p8252 = pneg %p259
        $region98: #{encoder_layer.1} parent=91 // pred_check_branch
          %8254 = sbr.rel (%p8252) target = $region100
        $region99: #{encoder_layer.1} parent=91 // pred_region
          %s8255 = sand.u32 %s244, 1
          %s8256 = scalar_lea.sflag [#allocation18], %s8255
          %s8257 = sand.u32 %s244, 1
          %s8258 = smul.addr %s8257, 64
          %s8259 = scalar_lea.vmem [#allocation17], %s8258
          %8261 = dma.done %s8256, 1024
        $region100: #{encoder_layer.1} parent=91 // pred_fallthru
          _
      $region92: #{encoder_layer.1} parent=5 // pred_fallthru
        _
    $region6: #{encoder_layer.1} parent=1 // loop_footer
      %s33 = sadd.s32 1, %s29
    $region7: #{encoder_layer.1} parent=1 // loop_footer_branch
      %28 = sbr.rel target = $region3
    $region8: #{encoder_layer.1} parent=1 // loop_exit
      _
    %8262 = vsyncpa [#allocation5], 1
    %s8263 = scalar_lea.sflag [#allocation5], 1
    %8264 = vsyncpa %s8263, 1
    %8265 = vsyncpa [#allocation8], 1
    %s8266 = scalar_lea.sflag [#allocation8], 1
    %8267 = vsyncpa %s8266, 1
    %8268 = vsyncpa [#allocation11], 1
    %8269 = vsyncpa [#allocation14], 1
    %8270 = vsyncpa [#allocation6], 1
    %s8271 = scalar_lea.sflag [#allocation6], 1
    %8272 = vsyncpa %s8271, 1
    %8273 = vsyncpa [#allocation18], 1
    %s8274 = scalar_lea.sflag [#allocation18], 1
    %8275 = vsyncpa %s8274, 1

</llo_original>
